<compile_context>
chip_gen: v5e
topology: v5e:2x2
jax: 0.10.0
libtpu: 0.0.40
codegen_flags: <defaults>
</compile_context>

<pallas_src>
import functools
import math

import numpy as np
import jax
import jax.numpy as jnp
from jax.experimental import pallas as pl
from jax.experimental.pallas import tpu as pltpu

CP = 128            # padded channel width (lane dim) inside the conv kernel
LEAKY_SLOPE = 0.01  # PyTorch nn.LeakyReLU default
C1_VIS, C2_VIS = 16, 32   # visual encoder channels (stand-in architecture)
C1_AUD, C2_AUD = 8, 16    # audio encoder channels  (stand-in architecture)
CIN = 4                   # combined input channels: visual RGB in 0:3, audio in 3
K1P = 128                 # lane-padded im2col K for conv1 (9*CIN=36 -> 128)
MLP_HID = 256             # stand-in MLP hidden width


def _leaky(x):
    return jnp.where(x > 0, x, LEAKY_SLOPE * x)


# ---------------------------------------------------------------------------
# Kernel 1: merged visual+audio two-layer conv encoder, batch folded into M.
#   conv1: one im2col matmul.  conv2: one precomputed selection-matrix matmul
#   ("gather as matmul") + one tap-major K=1152 matmul.  3 MXU pushes total.
# ---------------------------------------------------------------------------
def _conv_encoder_kernel(col_ref, w1_ref, b1_ref, sel_ref, w2_ref, b2_ref,
                         o_ref, *, n_rows_out):
    # col_ref: (M1, K1P)   bf16  M1 = B_tot * s_mid^2, rows (b, hm, wm)
    # w1_ref:  (K1P, CP)   bf16  combined conv1 weight (vis lanes 0:16, aud 16:24)
    # b1_ref:  (1, CP)     f32
    # sel_ref: (9*M2, M1)  bf16  stacked (tap-major) block-diag 0/1 gather operator
    # w2_ref:  (9*CP, CP)  bf16  tap-major combined conv2 weight
    # b2_ref:  (1, CP)     f32
    # o_ref:   (M2, CP)    bf16  rows ordered [src | (drv_f, aud_f) per frame]
    h = jnp.dot(col_ref[...], w1_ref[...], preferred_element_type=jnp.float32)
    h = _leaky(h + b1_ref[...]).astype(jnp.bfloat16)          # (M1, CP) bf16

    g = jnp.dot(sel_ref[...], h, preferred_element_type=jnp.float32)
    g = g.astype(jnp.bfloat16)                                 # (9*M2, CP)
    # tap-major row blocks -> lane blocks (all slices 128-lane / 16-sublane aligned)
    g_taps = jnp.concatenate(
        [g[t * n_rows_out:(t + 1) * n_rows_out, :] for t in range(9)], axis=-1)

    z = jnp.dot(g_taps, w2_ref[...], preferred_element_type=jnp.float32)
    o_ref[...] = _leaky(z + b2_ref[...]).astype(o_ref.dtype)


def _im2col_3x3_s2(x_nhwc):
    """3x3 / stride-2 / pad-1 patches; rows ordered (b, ho, wo), K ordered (tap, c)."""
    B, H, W, C = x_nhwc.shape
    Ho, Wo = H // 2, W // 2
    xp = jnp.pad(x_nhwc, ((0, 0), (1, 1), (1, 1), (0, 0)))
    patches = [xp[:, i:i + 2 * Ho:2, j:j + 2 * Wo:2, :]
               for i in range(3) for j in range(3)]
    col = jnp.concatenate(patches, axis=-1)                    # (B, Ho, Wo, 9C)
    return col.reshape(B * Ho * Wo, 9 * C)


@functools.lru_cache(maxsize=None)
def _conv2_selection(b_tot, s_mid, s_out, out_order):
    """Precomputed stacked (tap-major), batch-block-diagonal 0/1 gather operator
    for the second 3x3/stride-2/pad-1 conv; out_order permutes output images."""
    m2 = len(out_order) * s_out * s_out
    sel = np.zeros((9 * m2, b_tot * s_mid * s_mid), np.float32)
    for t in range(9):
        di, dj = t // 3, t % 3
        for o, b in enumerate(out_order):
            for ho in range(s_out):
                hr = 2 * ho + di - 1
                if not (0 <= hr < s_mid):
                    continue
                for wo in range(s_out):
                    wr = 2 * wo + dj - 1
                    if not (0 <= wr < s_mid):
                        continue
                    row = t * m2 + o * s_out * s_out + ho * s_out + wo
                    sel[row, b * s_mid * s_mid + hr * s_mid + wr] = 1.0
    return jnp.asarray(sel, jnp.bfloat16)


def fused_conv_encoders(p_conv, sel, x_all):
    """(B_tot, S, S, CIN) NHWC -> (B_tot * (S//4)^2, CP) bf16 in one pallas_call."""
    b_tot, s = x_all.shape[0], x_all.shape[1]
    s_out = s // 4
    m2 = b_tot * s_out * s_out

    col = _im2col_3x3_s2(x_all)                                # (B_tot*(S//2)^2, 9*CIN)
    col = jnp.pad(col, ((0, 0), (0, K1P - col.shape[-1]))).astype(jnp.bfloat16)

    args = (col, p_conv["w1"], p_conv["b1"], sel, p_conv["w2"], p_conv["b2"])

    def whole(a):
        return pl.BlockSpec(a.shape, lambda i, n=a.ndim: (0,) * n)

    kern = functools.partial(_conv_encoder_kernel, n_rows_out=m2)
    return pl.pallas_call(
        kern,
        out_shape=jax.ShapeDtypeStruct((m2, CP), jnp.bfloat16),
        grid=(1,),
        in_specs=[whole(a) for a in args],
        out_specs=pl.BlockSpec((m2, CP), lambda i: (0, 0)),
        compiler_params=pltpu.CompilerParams(
            dimension_semantics=("arbitrary",)),
    )(*args)


# ---------------------------------------------------------------------------
# Kernel 2: fused style / decoder tail
#   CanonicalEncoder MLP + MotionEncoder MLP + repeat/add + TemporalFusion
#   (block-diagonal matmul) + Decoder, all resident in VMEM.
# ---------------------------------------------------------------------------
def _style_decoder_kernel(szf_ref, dzf_ref,
                          wc1_ref, bc1_ref, wc2_ref, bc2_ref,
                          wm1_ref, bm1_ref, wm2_ref, bm2_ref,
                          wt_ref, bt_ref, wd_ref, bd_ref,
                          src_zc_ref, drv_zc_ref, lat_ref, im_ref):
    def mlp2(x, w1, b1, w2, b2):
        h = jnp.dot(x, w1[...], preferred_element_type=jnp.float32) + b1[...]
        h = _leaky(h).astype(jnp.bfloat16)
        return jnp.dot(h, w2[...], preferred_element_type=jnp.float32) + b2[...]

    zc = mlp2(szf_ref[...], wc1_ref, bc1_ref, wc2_ref, bc2_ref)   # (1,  SP)
    zm = mlp2(dzf_ref[...], wm1_ref, bm1_ref, wm2_ref, bm2_ref)   # (nf, SP)
    zc_rep = jnp.broadcast_to(zc, zm.shape)                       # .repeat(nf,1,1)
    style = zc_rep + zm
    fused = jnp.dot(style.astype(jnp.bfloat16), wt_ref[...],
                    preferred_element_type=jnp.float32) + bt_ref[...]
    im = jnp.tanh(jnp.dot(fused.astype(jnp.bfloat16), wd_ref[...],
                          preferred_element_type=jnp.float32) + bd_ref[...])
    src_zc_ref[...] = zc_rep
    drv_zc_ref[...] = zm
    lat_ref[...] = fused
    im_ref[...] = im


def style_decoder(params, src_zf, drv_aud_zf):
    nf = drv_aud_zf.shape[0]
    sp = params["tf"]["b"].shape[-1]
    img_dim = params["dec"]["b"].shape[-1]

    args = (src_zf, drv_aud_zf,
            params["can"]["w1"], params["can"]["b1"],
            params["can"]["w2"], params["can"]["b2"],
            params["mot"]["w1"], params["mot"]["b1"],
            params["mot"]["w2"], params["mot"]["b2"],
            params["tf"]["w"], params["tf"]["b"],
            params["dec"]["w"], params["dec"]["b"])

    def whole(a):
        return pl.BlockSpec(a.shape, lambda i, n=a.ndim: (0,) * n)

    out_shapes = (jax.ShapeDtypeStruct((nf, sp), jnp.float32),
                  jax.ShapeDtypeStruct((nf, sp), jnp.float32),
                  jax.ShapeDtypeStruct((nf, sp), jnp.float32),
                  jax.ShapeDtypeStruct((nf, img_dim), jnp.float32))
    out_specs = tuple(pl.BlockSpec(s.shape, lambda i: (0, 0)) for s in out_shapes)

    return pl.pallas_call(
        _style_decoder_kernel,
        out_shape=out_shapes,
        grid=(1,),
        in_specs=[whole(a) for a in args],
        out_specs=out_specs,
        compiler_params=pltpu.CompilerParams(
            dimension_semantics=("arbitrary",)),
    )(*args)


# ---------------------------------------------------------------------------
# Generator forward (mirrors the PyTorch Generator.forward glue code)
# ---------------------------------------------------------------------------
def generator_forward(params, src, drv, aud, opts):
    size, latent_dim = opts["size"], opts["latent_dim"]
    n_styles = int(round(math.log2(size))) * 2 - 2
    style_dim = n_styles * latent_dim
    nf = drv.shape[0]
    b_tot = 1 + 2 * nf
    s_out = size // 4
    feat = s_out * s_out * CP        # padded per-image flatten width (lane-dense)

    # Boundary glue: NCHW -> NHWC once, pack visual RGB into channels 0:3 and
    # audio into channel 3 so one combined conv weight serves both encoders.
    vis = jnp.concatenate([src, drv], axis=0).transpose(0, 2, 3, 1)
    vis = jnp.pad(vis, ((0, 0), (0, 0), (0, 0), (0, CIN - 3)))
    audn = jnp.pad(aud.transpose(0, 2, 3, 1),
                   ((0, 0), (0, 0), (0, 0), (CIN - 1, 0)))
    x_all = jnp.concatenate([vis, audn], axis=0)               # (b_tot, S, S, CIN)

    # Output image order [src, drv_0, aud_0, drv_1, aud_1, ...] so the MLP inputs
    # below are plain contiguous reshapes (no slice/concat glue between kernels).
    out_order = (0,) + tuple(x for f in range(nf) for x in (1 + f, 1 + nf + f))
    sel = _conv2_selection(b_tot, size // 2, s_out, out_order)

    z = fused_conv_encoders(params["conv"], sel, x_all)        # (b_tot*s_out^2, CP) bf16

    src_zf = z[:s_out * s_out].reshape(1, feat)                # (1, 2048)
    drv_aud_zf = z[s_out * s_out:].reshape(nf, 2 * feat)       # (nf, 4096)

    src_zc_p, drv_zc_p, lat_p, im_flat = style_decoder(params, src_zf, drv_aud_zf)

    s3 = (nf, n_styles, latent_dim)
    im = im_flat.reshape(nf, 3, size, size)
    return (im,
            src_zc_p[:, :style_dim].reshape(s3),
            drv_zc_p[:, :style_dim].reshape(s3),
            lat_p[:, :style_dim].reshape(s3))


# ---------------------------------------------------------------------------
# Deterministic parameter init (weights stored in kernel-ready packed layouts)
# ---------------------------------------------------------------------------
def init_params(key, opts):
    size, latent_dim = opts["size"], opts["latent_dim"]
    n_styles = int(round(math.log2(size))) * 2 - 2
    style_dim = n_styles * latent_dim
    s_out = size // 4
    feat = s_out * s_out * CP
    sp = ((style_dim + 127) // 128) * 128          # lane-padded style width (192->256)
    img_dim = 3 * size * size

    ks = iter(jax.random.split(key, 24))

    def w(shape, scale=0.05):
        return np.asarray(scale * jax.random.normal(next(ks), shape, jnp.float32))

    # ---- combined conv1: visual 3ch -> lanes 0:16, audio 1ch -> lanes 16:24 ----
    w1_vis, w1_aud = w((3, 3, 3, C1_VIS)), w((3, 3, 1, C1_AUD))
    w1 = np.zeros((K1P, CP), np.float32)
    for t in range(9):
        i, j = t // 3, t % 3
        w1[t * CIN:t * CIN + 3, :C1_VIS] = w1_vis[i, j]
        w1[t * CIN + 3, C1_VIS:C1_VIS + C1_AUD] = w1_aud[i, j, 0]
    b1 = np.zeros((1, CP), np.float32)
    b1[0, :C1_VIS] = w((C1_VIS,))
    b1[0, C1_VIS:C1_VIS + C1_AUD] = w((C1_AUD,))

    # ---- combined conv2 (tap-major rows): vis hidden 0:16 -> out 0:32,
    #      aud hidden 16:24 -> out 32:48 ----
    w2_vis, w2_aud = w((3, 3, C1_VIS, C2_VIS)), w((3, 3, C1_AUD, C2_AUD))
    w2 = np.zeros((9 * CP, CP), np.float32)
    for t in range(9):
        i, j = t // 3, t % 3
        w2[t * CP:t * CP + C1_VIS, :C2_VIS] = w2_vis[i, j]
        w2[t * CP + C1_VIS:t * CP + C1_VIS + C1_AUD,
           C2_VIS:C2_VIS + C2_AUD] = w2_aud[i, j]
    b2 = np.zeros((1, CP), np.float32)
    b2[0, :C2_VIS] = w((C2_VIS,))
    b2[0, C2_VIS:C2_VIS + C2_AUD] = w((C2_AUD,))

    # ---- CanonicalEncoder MLP: K rows for garbage/pad lanes are zero ----
    wc1 = np.zeros((s_out * s_out, CP, MLP_HID), np.float32)
    wc1[:, :C2_VIS, :] = w((s_out * s_out, C2_VIS, MLP_HID))
    wc1 = wc1.reshape(feat, MLP_HID)
    bc1 = w((1, MLP_HID))
    wc2 = np.zeros((MLP_HID, sp), np.float32)
    wc2[:, :style_dim] = w((MLP_HID, style_dim))
    bc2 = np.zeros((1, sp), np.float32)
    bc2[0, :style_dim] = w((style_dim,))

    # ---- MotionEncoder MLP: [drv visual flatten | audio flatten] K layout ----
    wm1 = np.zeros((2, s_out * s_out, CP, MLP_HID), np.float32)
    wm1[0, :, :C2_VIS, :] = w((s_out * s_out, C2_VIS, MLP_HID))
    wm1[1, :, C2_VIS:C2_VIS + C2_AUD, :] = w((s_out * s_out, C2_AUD, MLP_HID))
    wm1 = wm1.reshape(2 * feat, MLP_HID)
    bm1 = w((1, MLP_HID))
    wm2 = np.zeros((MLP_HID, sp), np.float32)
    wm2[:, :style_dim] = w((MLP_HID, style_dim))
    bm2 = np.zeros((1, sp), np.float32)
    bm2[0, :style_dim] = w((style_dim,))

    # ---- TemporalFusion stand-in: per-style linear -> block-diag, lane-padded ----
    wt = np.zeros((sp, sp), np.float32)
    wt[:style_dim, :style_dim] = np.kron(np.eye(n_styles, dtype=np.float32),
                                         w((latent_dim, latent_dim)))
    bt = np.zeros((1, sp), np.float32)
    bt[0, :style_dim] = w((style_dim,))

    # ---- Decoder stand-in ----
    wd = np.zeros((sp, img_dim), np.float32)
    wd[:style_dim, :] = w((style_dim, img_dim))
    bd = w((1, img_dim))

    bf = lambda a: jnp.asarray(a, jnp.bfloat16)
    f32 = lambda a: jnp.asarray(a, jnp.float32)
    return {
        "conv": {"w1": bf(w1), "b1": f32(b1), "w2": bf(w2), "b2": f32(b2)},
        "can": {"w1": bf(wc1), "b1": f32(bc1), "w2": bf(wc2), "b2": f32(bc2)},
        "mot": {"w1": bf(wm1), "b1": f32(bm1), "w2": bf(wm2), "b2": f32(bm2)},
        "tf":  {"w": bf(wt), "b": f32(bt)},
        "dec": {"w": bf(wd), "b": f32(bd)},
    }


# ---------------------------------------------------------------------------
if __name__ == "__main__":
    opts = {"size": 16, "latent_dim": 32}   # n_styles = round(log2(16))*2 - 2 = 6
    nf = 2

    key = jax.random.PRNGKey(0)
    k_src, k_drv, k_aud, k_par = jax.random.split(key, 4)
    src = jax.random.normal(k_src, (1, 3, 16, 16), jnp.float32)
    drv = jax.random.normal(k_drv, (nf, 3, 16, 16), jnp.float32)
    aud = jax.random.normal(k_aud, (nf, 1, 16, 16), jnp.float32)

    params = init_params(k_par, opts)
    fwd = jax.jit(functools.partial(generator_forward, opts=opts))
    im, src_zc, drv_aud_zc, latents = fwd(params, src, drv, aud)
    jax.block_until_ready((im, src_zc, drv_aud_zc, latents))

    n_styles = int(round(math.log2(opts["size"]))) * 2 - 2
    assert im.shape == (nf, 3, opts["size"], opts["size"])
    assert src_zc.shape == (nf, n_styles, opts["latent_dim"])
    assert drv_aud_zc.shape == (nf, n_styles, opts["latent_dim"])
    assert latents.shape == (nf, n_styles, opts["latent_dim"])
    assert bool(jnp.all(jnp.isfinite(im)))
    print("KERNEL_OK")
</pallas_src>

<mosaic_0001>
module attributes {stable_mosaic.version = 11 : i64} {
  func.func @_conv_encoder_kernel(%arg0: i32, %arg1: memref<320x128xbf16, #tpu.memory_space<vmem>>, %arg2: memref<128x128xbf16, #tpu.memory_space<vmem>>, %arg3: memref<1x128xf32, #tpu.memory_space<vmem>>, %arg4: memref<720x320xbf16, #tpu.memory_space<vmem>>, %arg5: memref<1152x128xbf16, #tpu.memory_space<vmem>>, %arg6: memref<1x128xf32, #tpu.memory_space<vmem>>, %arg7: memref<80x128xbf16, #tpu.memory_space<vmem>>) attributes {dimension_semantics = [#tpu.dimension_semantics<arbitrary>], iteration_bounds = array<i64: 1>, scalar_prefetch = 0 : i64, scratch_operands = 0 : i64, tpu.core_type = #tpu.core_type<tc>, window_params = [{pipeline_mode = #tpu.pipeline_mode<synchronous>, transform_indices = @transform_0, window_bounds = array<i64: 320, 128>}, {pipeline_mode = #tpu.pipeline_mode<synchronous>, transform_indices = @transform_1, window_bounds = array<i64: 128, 128>}, {pipeline_mode = #tpu.pipeline_mode<synchronous>, transform_indices = @transform_2, window_bounds = array<i64: 1, 128>}, {pipeline_mode = #tpu.pipeline_mode<synchronous>, transform_indices = @transform_3, window_bounds = array<i64: 720, 320>}, {pipeline_mode = #tpu.pipeline_mode<synchronous>, transform_indices = @transform_4, window_bounds = array<i64: 1152, 128>}, {pipeline_mode = #tpu.pipeline_mode<synchronous>, transform_indices = @transform_5, window_bounds = array<i64: 1, 128>}, {pipeline_mode = #tpu.pipeline_mode<synchronous>, transform_indices = @transform_6, window_bounds = array<i64: 80, 128>}]} {
    %c0 = arith.constant 0 : index
    %c0_0 = arith.constant 0 : index
    %0 = vector.load %arg1[%c0, %c0_0] : memref<320x128xbf16, #tpu.memory_space<vmem>>, vector<320x128xbf16>
    %c0_1 = arith.constant 0 : index
    %c0_2 = arith.constant 0 : index
    %1 = vector.load %arg2[%c0_1, %c0_2] : memref<128x128xbf16, #tpu.memory_space<vmem>>, vector<128x128xbf16>
    %cst = arith.constant dense<0.000000e+00> : vector<320x128xf32>
    %2 = tpu.matmul %0, %1, %cst {dimension_numbers = #tpu.dot_dimension_numbers<[1], [0], [0], [1], [0, 0, 1, 1], [], []>} : vector<320x128xbf16>, vector<128x128xbf16>, vector<320x128xf32> -> vector<320x128xf32>
    %c0_3 = arith.constant 0 : index
    %c0_4 = arith.constant 0 : index
    %3 = vector.load %arg3[%c0_3, %c0_4] : memref<1x128xf32, #tpu.memory_space<vmem>>, vector<1x128xf32>
    %4 = vector.broadcast %3 : vector<1x128xf32> to vector<320x128xf32>
    %5 = arith.addf %2, %4 : vector<320x128xf32>
    %cst_5 = arith.constant 0.000000e+00 : f32
    %6 = vector.broadcast %cst_5 : f32 to vector<320x128xf32>
    %7 = arith.cmpf ogt, %5, %6 : vector<320x128xf32>
    %cst_6 = arith.constant 0.00999999977 : f32
    %8 = vector.broadcast %cst_6 : f32 to vector<320x128xf32>
    %9 = arith.mulf %8, %5 : vector<320x128xf32>
    %10 = arith.select %7, %5, %9 : vector<320x128xi1>, vector<320x128xf32>
    %11 = arith.truncf %10 : vector<320x128xf32> to vector<320x128xbf16>
    %c0_7 = arith.constant 0 : index
    %c0_8 = arith.constant 0 : index
    %12 = vector.load %arg4[%c0_7, %c0_8] : memref<720x320xbf16, #tpu.memory_space<vmem>>, vector<720x320xbf16>
    %cst_9 = arith.constant dense<0.000000e+00> : vector<720x128xf32>
    %13 = tpu.matmul %12, %11, %cst_9 {dimension_numbers = #tpu.dot_dimension_numbers<[1], [0], [0], [1], [0, 0, 1, 1], [], []>} : vector<720x320xbf16>, vector<320x128xbf16>, vector<720x128xf32> -> vector<720x128xf32>
    %14 = arith.truncf %13 : vector<720x128xf32> to vector<720x128xbf16>
    %15 = vector.extract_strided_slice %14 {offsets = [0, 0], sizes = [80, 128], strides = [1, 1]} : vector<720x128xbf16> to vector<80x128xbf16>
    %16 = vector.extract_strided_slice %14 {offsets = [80, 0], sizes = [80, 128], strides = [1, 1]} : vector<720x128xbf16> to vector<80x128xbf16>
    %17 = vector.extract_strided_slice %14 {offsets = [160, 0], sizes = [80, 128], strides = [1, 1]} : vector<720x128xbf16> to vector<80x128xbf16>
    %18 = vector.extract_strided_slice %14 {offsets = [240, 0], sizes = [80, 128], strides = [1, 1]} : vector<720x128xbf16> to vector<80x128xbf16>
    %19 = vector.extract_strided_slice %14 {offsets = [320, 0], sizes = [80, 128], strides = [1, 1]} : vector<720x128xbf16> to vector<80x128xbf16>
    %20 = vector.extract_strided_slice %14 {offsets = [400, 0], sizes = [80, 128], strides = [1, 1]} : vector<720x128xbf16> to vector<80x128xbf16>
    %21 = vector.extract_strided_slice %14 {offsets = [480, 0], sizes = [80, 128], strides = [1, 1]} : vector<720x128xbf16> to vector<80x128xbf16>
    %22 = vector.extract_strided_slice %14 {offsets = [560, 0], sizes = [80, 128], strides = [1, 1]} : vector<720x128xbf16> to vector<80x128xbf16>
    %23 = vector.extract_strided_slice %14 {offsets = [640, 0], sizes = [80, 128], strides = [1, 1]} : vector<720x128xbf16> to vector<80x128xbf16>
    %24 = tpu.concatenate %15, %16, %17, %18, %19, %20, %21, %22, %23 in 1 : vector<80x128xbf16>, vector<80x128xbf16>, vector<80x128xbf16>, vector<80x128xbf16>, vector<80x128xbf16>, vector<80x128xbf16>, vector<80x128xbf16>, vector<80x128xbf16>, vector<80x128xbf16> -> vector<80x1152xbf16>
    %c0_10 = arith.constant 0 : index
    %c0_11 = arith.constant 0 : index
    %25 = vector.load %arg5[%c0_10, %c0_11] : memref<1152x128xbf16, #tpu.memory_space<vmem>>, vector<1152x128xbf16>
    %cst_12 = arith.constant dense<0.000000e+00> : vector<80x128xf32>
    %26 = tpu.matmul %24, %25, %cst_12 {dimension_numbers = #tpu.dot_dimension_numbers<[1], [0], [0], [1], [0, 0, 1, 1], [], []>} : vector<80x1152xbf16>, vector<1152x128xbf16>, vector<80x128xf32> -> vector<80x128xf32>
    %c0_13 = arith.constant 0 : index
    %c0_14 = arith.constant 0 : index
    %27 = vector.load %arg6[%c0_13, %c0_14] : memref<1x128xf32, #tpu.memory_space<vmem>>, vector<1x128xf32>
    %28 = vector.broadcast %27 : vector<1x128xf32> to vector<80x128xf32>
    %29 = arith.addf %26, %28 : vector<80x128xf32>
    %cst_15 = arith.constant 0.000000e+00 : f32
    %30 = vector.broadcast %cst_15 : f32 to vector<80x128xf32>
    %31 = arith.cmpf ogt, %29, %30 : vector<80x128xf32>
    %cst_16 = arith.constant 0.00999999977 : f32
    %32 = vector.broadcast %cst_16 : f32 to vector<80x128xf32>
    %33 = arith.mulf %32, %29 : vector<80x128xf32>
    %34 = arith.select %31, %29, %33 : vector<80x128xi1>, vector<80x128xf32>
    %35 = arith.truncf %34 : vector<80x128xf32> to vector<80x128xbf16>
    %c0_17 = arith.constant 0 : index
    %c0_18 = arith.constant 0 : index
    %36 = vector.load %arg7[%c0_17, %c0_18] : memref<80x128xbf16, #tpu.memory_space<vmem>>, vector<80x128xbf16>
    tpu.vector_store %arg7[%c0_17, %c0_18], %35 {strides = array<i32>} : memref<80x128xbf16, #tpu.memory_space<vmem>>, vector<80x128xbf16>,
    return
  }
  func.func @transform_0(%arg0: i32) -> (i32, i32) {
    %c0_i32 = arith.constant 0 : i32
    %c0_i32_0 = arith.constant 0 : i32
    %c0_i32_1 = arith.constant 0 : i32
    return %c0_i32, %c0_i32_0 : i32, i32
  }
  func.func @transform_1(%arg0: i32) -> (i32, i32) {
    %c0_i32 = arith.constant 0 : i32
    %c0_i32_0 = arith.constant 0 : i32
    %c0_i32_1 = arith.constant 0 : i32
    return %c0_i32, %c0_i32_0 : i32, i32
  }
  func.func @transform_2(%arg0: i32) -> (i32, i32) {
    %c0_i32 = arith.constant 0 : i32
    %c0_i32_0 = arith.constant 0 : i32
    %c0_i32_1 = arith.constant 0 : i32
    return %c0_i32, %c0_i32_0 : i32, i32
  }
  func.func @transform_3(%arg0: i32) -> (i32, i32) {
    %c0_i32 = arith.constant 0 : i32
    %c0_i32_0 = arith.constant 0 : i32
    %c0_i32_1 = arith.constant 0 : i32
    return %c0_i32, %c0_i32_0 : i32, i32
  }
  func.func @transform_4(%arg0: i32) -> (i32, i32) {
    %c0_i32 = arith.constant 0 : i32
    %c0_i32_0 = arith.constant 0 : i32
    %c0_i32_1 = arith.constant 0 : i32
    return %c0_i32, %c0_i32_0 : i32, i32
  }
  func.func @transform_5(%arg0: i32) -> (i32, i32) {
    %c0_i32 = arith.constant 0 : i32
    %c0_i32_0 = arith.constant 0 : i32
    %c0_i32_1 = arith.constant 0 : i32
    return %c0_i32, %c0_i32_0 : i32, i32
  }
  func.func @transform_6(%arg0: i32) -> (i32, i32) {
    %c0_i32 = arith.constant 0 : i32
    %c0_i32_0 = arith.constant 0 : i32
    %c0_i32_1 = arith.constant 0 : i32
    return %c0_i32, %c0_i32_0 : i32, i32
  }
}

module attributes {stable_mosaic.version = 11 : i64} {
  func.func @_style_decoder_kernel(%arg0: i32, %arg1: memref<1x2048xbf16, #tpu.memory_space<vmem>>, %arg2: memref<2x4096xbf16, #tpu.memory_space<vmem>>, %arg3: memref<2048x256xbf16, #tpu.memory_space<vmem>>, %arg4: memref<1x256xf32, #tpu.memory_space<vmem>>, %arg5: memref<256x256xbf16, #tpu.memory_space<vmem>>, %arg6: memref<1x256xf32, #tpu.memory_space<vmem>>, %arg7: memref<4096x256xbf16, #tpu.memory_space<vmem>>, %arg8: memref<1x256xf32, #tpu.memory_space<vmem>>, %arg9: memref<256x256xbf16, #tpu.memory_space<vmem>>, %arg10: memref<1x256xf32, #tpu.memory_space<vmem>>, %arg11: memref<256x256xbf16, #tpu.memory_space<vmem>>, %arg12: memref<1x256xf32, #tpu.memory_space<vmem>>, %arg13: memref<256x768xbf16, #tpu.memory_space<vmem>>, %arg14: memref<1x768xf32, #tpu.memory_space<vmem>>, %arg15: memref<2x256xf32, #tpu.memory_space<vmem>>, %arg16: memref<2x256xf32, #tpu.memory_space<vmem>>, %arg17: memref<2x256xf32, #tpu.memory_space<vmem>>, %arg18: memref<2x768xf32, #tpu.memory_space<vmem>>) attributes {dimension_semantics = [#tpu.dimension_semantics<arbitrary>], iteration_bounds = array<i64: 1>, scalar_prefetch = 0 : i64, scratch_operands = 0 : i64, tpu.core_type = #tpu.core_type<tc>, window_params = [{pipeline_mode = #tpu.pipeline_mode<synchronous>, transform_indices = @transform_0, window_bounds = array<i64: 1, 2048>}, {pipeline_mode = #tpu.pipeline_mode<synchronous>, transform_indices = @transform_1, window_bounds = array<i64: 2, 4096>}, {pipeline_mode = #tpu.pipeline_mode<synchronous>, transform_indices = @transform_2, window_bounds = array<i64: 2048, 256>}, {pipeline_mode = #tpu.pipeline_mode<synchronous>, transform_indices = @transform_3, window_bounds = array<i64: 1, 256>}, {pipeline_mode = #tpu.pipeline_mode<synchronous>, transform_indices = @transform_4, window_bounds = array<i64: 256, 256>}, {pipeline_mode = #tpu.pipeline_mode<synchronous>, transform_indices = @transform_5, window_bounds = array<i64: 1, 256>}, {pipeline_mode = #tpu.pipeline_mode<synchronous>, transform_indices = @transform_6, window_bounds = array<i64: 4096, 256>}, {pipeline_mode = #tpu.pipeline_mode<synchronous>, transform_indices = @transform_7, window_bounds = array<i64: 1, 256>}, {pipeline_mode = #tpu.pipeline_mode<synchronous>, transform_indices = @transform_8, window_bounds = array<i64: 256, 256>}, {pipeline_mode = #tpu.pipeline_mode<synchronous>, transform_indices = @transform_9, window_bounds = array<i64: 1, 256>}, {pipeline_mode = #tpu.pipeline_mode<synchronous>, transform_indices = @transform_10, window_bounds = array<i64: 256, 256>}, {pipeline_mode = #tpu.pipeline_mode<synchronous>, transform_indices = @transform_11, window_bounds = array<i64: 1, 256>}, {pipeline_mode = #tpu.pipeline_mode<synchronous>, transform_indices = @transform_12, window_bounds = array<i64: 256, 768>}, {pipeline_mode = #tpu.pipeline_mode<synchronous>, transform_indices = @transform_13, window_bounds = array<i64: 1, 768>}, {pipeline_mode = #tpu.pipeline_mode<synchronous>, transform_indices = @transform_14, window_bounds = array<i64: 2, 256>}, {pipeline_mode = #tpu.pipeline_mode<synchronous>, transform_indices = @transform_15, window_bounds = array<i64: 2, 256>}, {pipeline_mode = #tpu.pipeline_mode<synchronous>, transform_indices = @transform_16, window_bounds = array<i64: 2, 256>}, {pipeline_mode = #tpu.pipeline_mode<synchronous>, transform_indices = @transform_17, window_bounds = array<i64: 2, 768>}]} {
    %c0 = arith.constant 0 : index
    %c0_0 = arith.constant 0 : index
    %0 = vector.load %arg1[%c0, %c0_0] : memref<1x2048xbf16, #tpu.memory_space<vmem>>, vector<1x2048xbf16>
    %c0_1 = arith.constant 0 : index
    %c0_2 = arith.constant 0 : index
    %1 = vector.load %arg3[%c0_1, %c0_2] : memref<2048x256xbf16, #tpu.memory_space<vmem>>, vector<2048x256xbf16>
    %cst = arith.constant dense<0.000000e+00> : vector<1x256xf32>
    %2 = tpu.matmul %0, %1, %cst {dimension_numbers = #tpu.dot_dimension_numbers<[1], [0], [0], [1], [0, 0, 1, 1], [], []>} : vector<1x2048xbf16>, vector<2048x256xbf16>, vector<1x256xf32> -> vector<1x256xf32>
    %c0_3 = arith.constant 0 : index
    %c0_4 = arith.constant 0 : index
    %3 = vector.load %arg4[%c0_3, %c0_4] : memref<1x256xf32, #tpu.memory_space<vmem>>, vector<1x256xf32>
    %4 = arith.addf %2, %3 : vector<1x256xf32>
    %cst_5 = arith.constant 0.000000e+00 : f32
    %5 = vector.broadcast %cst_5 : f32 to vector<1x256xf32>
    %6 = arith.cmpf ogt, %4, %5 : vector<1x256xf32>
    %cst_6 = arith.constant 0.00999999977 : f32
    %7 = vector.broadcast %cst_6 : f32 to vector<1x256xf32>
    %8 = arith.mulf %7, %4 : vector<1x256xf32>
    %9 = arith.select %6, %4, %8 : vector<1x256xi1>, vector<1x256xf32>
    %10 = arith.truncf %9 : vector<1x256xf32> to vector<1x256xbf16>
    %c0_7 = arith.constant 0 : index
    %c0_8 = arith.constant 0 : index
    %11 = vector.load %arg5[%c0_7, %c0_8] : memref<256x256xbf16, #tpu.memory_space<vmem>>, vector<256x256xbf16>
    %cst_9 = arith.constant dense<0.000000e+00> : vector<1x256xf32>
    %12 = tpu.matmul %10, %11, %cst_9 {dimension_numbers = #tpu.dot_dimension_numbers<[1], [0], [0], [1], [0, 0, 1, 1], [], []>} : vector<1x256xbf16>, vector<256x256xbf16>, vector<1x256xf32> -> vector<1x256xf32>
    %c0_10 = arith.constant 0 : index
    %c0_11 = arith.constant 0 : index
    %13 = vector.load %arg6[%c0_10, %c0_11] : memref<1x256xf32, #tpu.memory_space<vmem>>, vector<1x256xf32>
    %14 = arith.addf %12, %13 : vector<1x256xf32>
    %c0_12 = arith.constant 0 : index
    %c0_13 = arith.constant 0 : index
    %15 = vector.load %arg2[%c0_12, %c0_13] : memref<2x4096xbf16, #tpu.memory_space<vmem>>, vector<2x4096xbf16>
    %c0_14 = arith.constant 0 : index
    %c0_15 = arith.constant 0 : index
    %16 = vector.load %arg7[%c0_14, %c0_15] : memref<4096x256xbf16, #tpu.memory_space<vmem>>, vector<4096x256xbf16>
    %cst_16 = arith.constant dense<0.000000e+00> : vector<2x256xf32>
    %17 = tpu.matmul %15, %16, %cst_16 {dimension_numbers = #tpu.dot_dimension_numbers<[1], [0], [0], [1], [0, 0, 1, 1], [], []>} : vector<2x4096xbf16>, vector<4096x256xbf16>, vector<2x256xf32> -> vector<2x256xf32>
    %c0_17 = arith.constant 0 : index
    %c0_18 = arith.constant 0 : index
    %18 = vector.load %arg8[%c0_17, %c0_18] : memref<1x256xf32, #tpu.memory_space<vmem>>, vector<1x256xf32>
    %19 = vector.broadcast %18 : vector<1x256xf32> to vector<2x256xf32>
    %20 = arith.addf %17, %19 : vector<2x256xf32>
    %cst_19 = arith.constant 0.000000e+00 : f32
    %21 = vector.broadcast %cst_19 : f32 to vector<2x256xf32>
    %22 = arith.cmpf ogt, %20, %21 : vector<2x256xf32>
    %cst_20 = arith.constant 0.00999999977 : f32
    %23 = vector.broadcast %cst_20 : f32 to vector<2x256xf32>
    %24 = arith.mulf %23, %20 : vector<2x256xf32>
    %25 = arith.select %22, %20, %24 : vector<2x256xi1>, vector<2x256xf32>
    %26 = arith.truncf %25 : vector<2x256xf32> to vector<2x256xbf16>
    %c0_21 = arith.constant 0 : index
    %c0_22 = arith.constant 0 : index
    %27 = vector.load %arg9[%c0_21, %c0_22] : memref<256x256xbf16, #tpu.memory_space<vmem>>, vector<256x256xbf16>
    %cst_23 = arith.constant dense<0.000000e+00> : vector<2x256xf32>
    %28 = tpu.matmul %26, %27, %cst_23 {dimension_numbers = #tpu.dot_dimension_numbers<[1], [0], [0], [1], [0, 0, 1, 1], [], []>} : vector<2x256xbf16>, vector<256x256xbf16>, vector<2x256xf32> -> vector<2x256xf32>
    %c0_24 = arith.constant 0 : index
    %c0_25 = arith.constant 0 : index
    %29 = vector.load %arg10[%c0_24, %c0_25] : memref<1x256xf32, #tpu.memory_space<vmem>>, vector<1x256xf32>
    %30 = vector.broadcast %29 : vector<1x256xf32> to vector<2x256xf32>
    %31 = arith.addf %28, %30 : vector<2x256xf32>
    %32 = vector.shape_cast %14 : vector<1x256xf32> to vector<1x256xf32>
    %33 = vector.broadcast %32 : vector<1x256xf32> to vector<2x256xf32>
    %34 = arith.addf %33, %31 : vector<2x256xf32>
    %35 = arith.truncf %34 : vector<2x256xf32> to vector<2x256xbf16>
    %c0_26 = arith.constant 0 : index
    %c0_27 = arith.constant 0 : index
    %36 = vector.load %arg11[%c0_26, %c0_27] : memref<256x256xbf16, #tpu.memory_space<vmem>>, vector<256x256xbf16>
    %cst_28 = arith.constant dense<0.000000e+00> : vector<2x256xf32>
    %37 = tpu.matmul %35, %36, %cst_28 {dimension_numbers = #tpu.dot_dimension_numbers<[1], [0], [0], [1], [0, 0, 1, 1], [], []>} : vector<2x256xbf16>, vector<256x256xbf16>, vector<2x256xf32> -> vector<2x256xf32>
    %c0_29 = arith.constant 0 : index
    %c0_30 = arith.constant 0 : index
    %38 = vector.load %arg12[%c0_29, %c0_30] : memref<1x256xf32, #tpu.memory_space<vmem>>, vector<1x256xf32>
    %39 = vector.broadcast %38 : vector<1x256xf32> to vector<2x256xf32>
    %40 = arith.addf %37, %39 : vector<2x256xf32>
    %41 = arith.truncf %40 : vector<2x256xf32> to vector<2x256xbf16>
    %c0_31 = arith.constant 0 : index
    %c0_32 = arith.constant 0 : index
    %42 = vector.load %arg13[%c0_31, %c0_32] : memref<256x768xbf16, #tpu.memory_space<vmem>>, vector<256x768xbf16>
    %cst_33 = arith.constant dense<0.000000e+00> : vector<2x768xf32>
    %43 = tpu.matmul %41, %42, %cst_33 {dimension_numbers = #tpu.dot_dimension_numbers<[1], [0], [0], [1], [0, 0, 1, 1], [], []>} : vector<2x256xbf16>, vector<256x768xbf16>, vector<2x768xf32> -> vector<2x768xf32>
    %c0_34 = arith.constant 0 : index
    %c0_35 = arith.constant 0 : index
    %44 = vector.load %arg14[%c0_34, %c0_35] : memref<1x768xf32, #tpu.memory_space<vmem>>, vector<1x768xf32>
    %45 = vector.broadcast %44 : vector<1x768xf32> to vector<2x768xf32>
    %46 = arith.addf %43, %45 : vector<2x768xf32>
    %47 = math.tanh %46 : vector<2x768xf32>
    %c0_36 = arith.constant 0 : index
    %c0_37 = arith.constant 0 : index
    %48 = vector.load %arg15[%c0_36, %c0_37] : memref<2x256xf32, #tpu.memory_space<vmem>>, vector<2x256xf32>
    tpu.vector_store %arg15[%c0_36, %c0_37], %33 {strides = array<i32>} : memref<2x256xf32, #tpu.memory_space<vmem>>, vector<2x256xf32>,
    %c0_38 = arith.constant 0 : index
    %c0_39 = arith.constant 0 : index
    %49 = vector.load %arg16[%c0_38, %c0_39] : memref<2x256xf32, #tpu.memory_space<vmem>>, vector<2x256xf32>
    tpu.vector_store %arg16[%c0_38, %c0_39], %31 {strides = array<i32>} : memref<2x256xf32, #tpu.memory_space<vmem>>, vector<2x256xf32>,
    %c0_40 = arith.constant 0 : index
    %c0_41 = arith.constant 0 : index
    %50 = vector.load %arg17[%c0_40, %c0_41] : memref<2x256xf32, #tpu.memory_space<vmem>>, vector<2x256xf32>
    tpu.vector_store %arg17[%c0_40, %c0_41], %40 {strides = array<i32>} : memref<2x256xf32, #tpu.memory_space<vmem>>, vector<2x256xf32>,
    %c0_42 = arith.constant 0 : index
    %c0_43 = arith.constant 0 : index
    %51 = vector.load %arg18[%c0_42, %c0_43] : memref<2x768xf32, #tpu.memory_space<vmem>>, vector<2x768xf32>
    tpu.vector_store %arg18[%c0_42, %c0_43], %47 {strides = array<i32>} : memref<2x768xf32, #tpu.memory_space<vmem>>, vector<2x768xf32>,
    return
  }
  func.func @transform_0(%arg0: i32) -> (i32, i32) {
    %c0_i32 = arith.constant 0 : i32
    %c0_i32_0 = arith.constant 0 : i32
    %c0_i32_1 = arith.constant 0 : i32
    return %c0_i32, %c0_i32_0 : i32, i32
  }
  func.func @transform_1(%arg0: i32) -> (i32, i32) {
    %c0_i32 = arith.constant 0 : i32
    %c0_i32_0 = arith.constant 0 : i32
    %c0_i32_1 = arith.constant 0 : i32
    return %c0_i32, %c0_i32_0 : i32, i32
  }
  func.func @transform_2(%arg0: i32) -> (i32, i32) {
    %c0_i32 = arith.constant 0 : i32
    %c0_i32_0 = arith.constant 0 : i32
    %c0_i32_1 = arith.constant 0 : i32
    return %c0_i32, %c0_i32_0 : i32, i32
  }
  func.func @transform_3(%arg0: i32) -> (i32, i32) {
    %c0_i32 = arith.constant 0 : i32
    %c0_i32_0 = arith.constant 0 : i32
    %c0_i32_1 = arith.constant 0 : i32
    return %c0_i32, %c0_i32_0 : i32, i32
  }
  func.func @transform_4(%arg0: i32) -> (i32, i32) {
    %c0_i32 = arith.constant 0 : i32
    %c0_i32_0 = arith.constant 0 : i32
    %c0_i32_1 = arith.constant 0 : i32
    return %c0_i32, %c0_i32_0 : i32, i32
  }
  func.func @transform_5(%arg0: i32) -> (i32, i32) {
    %c0_i32 = arith.constant 0 : i32
    %c0_i32_0 = arith.constant 0 : i32
    %c0_i32_1 = arith.constant 0 : i32
    return %c0_i32, %c0_i32_0 : i32, i32
  }
  func.func @transform_6(%arg0: i32) -> (i32, i32) {
    %c0_i32 = arith.constant 0 : i32
    %c0_i32_0 = arith.constant 0 : i32
    %c0_i32_1 = arith.constant 0 : i32
    return %c0_i32, %c0_i32_0 : i32, i32
  }
  func.func @transform_7(%arg0: i32) -> (i32, i32) {
    %c0_i32 = arith.constant 0 : i32
    %c0_i32_0 = arith.constant 0 : i32
    %c0_i32_1 = arith.constant 0 : i32
    return %c0_i32, %c0_i32_0 : i32, i32
  }
  func.func @transform_8(%arg0: i32) -> (i32, i32) {
    %c0_i32 = arith.constant 0 : i32
    %c0_i32_0 = arith.constant 0 : i32
    %c0_i32_1 = arith.constant 0 : i32
    return %c0_i32, %c0_i32_0 : i32, i32
  }
  func.func @transform_9(%arg0: i32) -> (i32, i32) {
    %c0_i32 = arith.constant 0 : i32
    %c0_i32_0 = arith.constant 0 : i32
    %c0_i32_1 = arith.constant 0 : i32
    return %c0_i32, %c0_i32_0 : i32, i32
  }
  func.func @transform_10(%arg0: i32) -> (i32, i32) {
    %c0_i32 = arith.constant 0 : i32
    %c0_i32_0 = arith.constant 0 : i32
    %c0_i32_1 = arith.constant 0 : i32
    return %c0_i32, %c0_i32_0 : i32, i32
  }
  func.func @transform_11(%arg0: i32) -> (i32, i32) {
    %c0_i32 = arith.constant 0 : i32
    %c0_i32_0 = arith.constant 0 : i32
    %c0_i32_1 = arith.constant 0 : i32
    return %c0_i32, %c0_i32_0 : i32, i32
  }
  func.func @transform_12(%arg0: i32) -> (i32, i32) {
    %c0_i32 = arith.constant 0 : i32
    %c0_i32_0 = arith.constant 0 : i32
    %c0_i32_1 = arith.constant 0 : i32
    return %c0_i32, %c0_i32_0 : i32, i32
  }
  func.func @transform_13(%arg0: i32) -> (i32, i32) {
    %c0_i32 = arith.constant 0 : i32
    %c0_i32_0 = arith.constant 0 : i32
    %c0_i32_1 = arith.constant 0 : i32
    return %c0_i32, %c0_i32_0 : i32, i32
  }
  func.func @transform_14(%arg0: i32) -> (i32, i32) {
    %c0_i32 = arith.constant 0 : i32
    %c0_i32_0 = arith.constant 0 : i32
    %c0_i32_1 = arith.constant 0 : i32
    return %c0_i32, %c0_i32_0 : i32, i32
  }
  func.func @transform_15(%arg0: i32) -> (i32, i32) {
    %c0_i32 = arith.constant 0 : i32
    %c0_i32_0 = arith.constant 0 : i32
    %c0_i32_1 = arith.constant 0 : i32
    return %c0_i32, %c0_i32_0 : i32, i32
  }
  func.func @transform_16(%arg0: i32) -> (i32, i32) {
    %c0_i32 = arith.constant 0 : i32
    %c0_i32_0 = arith.constant 0 : i32
    %c0_i32_1 = arith.constant 0 : i32
    return %c0_i32, %c0_i32_0 : i32, i32
  }
  func.func @transform_17(%arg0: i32) -> (i32, i32) {
    %c0_i32 = arith.constant 0 : i32
    %c0_i32_0 = arith.constant 0 : i32
    %c0_i32_1 = arith.constant 0 : i32
    return %c0_i32, %c0_i32_0 : i32, i32
  }
}

</mosaic_0001>

<llo_original>
// kernel: generator_forward.2
$region0: #{generator_forward.2}
  #allocation0 [shape = 'u32[]', space=smem, size = 0x4, offset = 0x4, fixed_abs, tag = 'smem constant byte address 0x4 - core index']
  #allocation1 [shape = 'u32[72,128]{1,0:T(1,128)}', space=vmem, size = 0x9000, scoped, tag = 'internal scratch']
  %s0 = inlined_call_operand.vmem [shape: bf16[320,128], index: 0, kind: input, shape index: {}]
  %s1 = inlined_call_operand.vmem [shape: bf16[128,128], index: 1, kind: input, shape index: {}]
  %s2 = inlined_call_operand.vmem [shape: f32[1,128], index: 2, kind: input, shape index: {}]
  %s3 = inlined_call_operand.hbm [shape: bf16[720,320], index: 3, kind: input, shape index: {}]
  %s4 = inlined_call_operand.hbm [shape: bf16[1152,128], index: 4, kind: input, shape index: {}]
  %s5 = inlined_call_operand.vmem [shape: f32[1,128], index: 5, kind: input, shape index: {}]
  %s6 = inlined_call_operand.vmem [shape: bf16[80,128], index: 6, kind: output, shape index: {}]
  %s7 = sld [smem:[#allocation0]]
  $region42: #{generator_forward.2} parent=0
    _
  %s9 = ssub.s32 1, %s7
  %s10 = scalar_select 0, %s9, %s7
  $region1: #{generator_forward.2} parent=0
    #allocation2 [shape = 'u8[552960]{0}', space=vmem, size = 0x87000, scoped, tag = 'input window, operand 3, single buffered']
    #allocation3 [shape = 's32[1]{0}', space=sflag, size = 0x4, scoped, tag = 'scoped memory for generator_forward.2']
    #allocation4 [shape = 'u8[294912]{0}', space=vmem, size = 0x48000, scoped, tag = 'input window, operand 4, single buffered']
    #allocation5 [shape = 's32[1]{0}', space=sflag, size = 0x4, scoped, tag = 'scoped memory for generator_forward.2']
    %11 = vsyncpa [#allocation3], 0
    %12 = vsyncpa [#allocation5], 0
    // Predicated region
    $region2: #{generator_forward.2} parent=1 // pred_check
      _
    $region3: #{generator_forward.2} parent=1 // pred_check_branch
      %14 = sbr.rel (0) target = $region5
    $region4: #{generator_forward.2} parent=1 // pred_region
      _
    $region5: #{generator_forward.2} parent=1 // pred_fallthru
      _
    // Predicated region
    $region6: #{generator_forward.2} parent=1 // pred_check
      _
    $region7: #{generator_forward.2} parent=1 // pred_check_branch
      %16 = sbr.rel (0) target = $region9
    $region8: #{generator_forward.2} parent=1 // pred_region
      _
    $region9: #{generator_forward.2} parent=1 // pred_fallthru
      _
    // Predicated region
    $region10: #{generator_forward.2} parent=1 // pred_check
      _
    $region11: #{generator_forward.2} parent=1 // pred_check_branch
      %18 = sbr.rel (0) target = $region13
    $region12: #{generator_forward.2} parent=1 // pred_region
      _
    $region13: #{generator_forward.2} parent=1 // pred_fallthru
      _
    // Predicated region
    $region14: #{generator_forward.2} parent=1 // pred_check
      _
    $region15: #{generator_forward.2} parent=1 // pred_check_branch
      %20 = sbr.rel (0) target = $region17
    $region16: #{generator_forward.2} parent=1 // pred_region
      %22 = vsyncadd [#allocation3], 0
      %s23 = sshll.u32 %s3, 4
      %s24 = int_to_ptr.hbm [resolvable:$true] %s23
      %s25 = sshll.u32 [#allocation2], 4
      %s26 = int_to_ptr.vmem [resolvable:$true] %s25
      %31 = dma.hbm_to_vmem [thread:$0]  %s24, 17280, %s26, [#allocation3], 192, 192, 12
    $region17: #{generator_forward.2} parent=1 // pred_fallthru
      _
    // Predicated region
    $region18: #{generator_forward.2} parent=1 // pred_check
      _
    $region19: #{generator_forward.2} parent=1 // pred_check_branch
      %33 = sbr.rel (0) target = $region21
    $region20: #{generator_forward.2} parent=1 // pred_region
      %35 = vsyncadd [#allocation5], 0
      %s36 = sshll.u32 %s4, 4
      %s37 = int_to_ptr.hbm [resolvable:$true] %s36
      %s38 = sshll.u32 [#allocation4], 4
      %s39 = int_to_ptr.vmem [resolvable:$true] %s38
      %44 = dma.hbm_to_vmem [thread:$0]  %s37, 9216, %s39, [#allocation5], 64, 64, 4
    $region21: #{generator_forward.2} parent=1 // pred_fallthru
      _
    // Predicated region
    $region22: #{generator_forward.2} parent=1 // pred_check
      _
    $region23: #{generator_forward.2} parent=1 // pred_check_branch
      %46 = sbr.rel (0) target = $region25
    $region24: #{generator_forward.2} parent=1 // pred_region
      _
    $region25: #{generator_forward.2} parent=1 // pred_fallthru
      _
    // Predicated region
    $region26: #{generator_forward.2} parent=1 // pred_check
      _
    $region27: #{generator_forward.2} parent=1 // pred_check_branch
      %48 = sbr.rel (0) target = $region29
    $region28: #{generator_forward.2} parent=1 // pred_region
      %50 = dma.done [#allocation3], 17280
    $region29: #{generator_forward.2} parent=1 // pred_fallthru
      _
    // Predicated region
    $region30: #{generator_forward.2} parent=1 // pred_check
      _
    $region31: #{generator_forward.2} parent=1 // pred_check_branch
      %52 = sbr.rel (0) target = $region33
    $region32: #{generator_forward.2} parent=1 // pred_region
      %54 = dma.done [#allocation5], 9216
    $region33: #{generator_forward.2} parent=1 // pred_fallthru
      _
    %v56 = vld [vmem:[%s0] sm:$0xf]
    %v57 = vld [vmem:[%s0 + $0x4] sm:$0xf]
    %v58 = vld [vmem:[%s0 + $0x8] sm:$0xf]
    %v59 = vld [vmem:[%s0 + $0xc] sm:$0xf]
    %v60 = vld [vmem:[%s0 + $0x10] sm:$0xf]
    %v61 = vld [vmem:[%s0 + $0x14] sm:$0xf]
    %v62 = vld [vmem:[%s0 + $0x18] sm:$0xf]
    %v63 = vld [vmem:[%s0 + $0x1c] sm:$0xf]
    %v64 = vld [vmem:[%s0 + $0x20] sm:$0xf]
    %v65 = vld [vmem:[%s0 + $0x24] sm:$0xf]
    %v66 = vld [vmem:[%s0 + $0x28] sm:$0xf]
    %v67 = vld [vmem:[%s0 + $0x2c] sm:$0xf]
    %v68 = vld [vmem:[%s0 + $0x30] sm:$0xf]
    %v69 = vld [vmem:[%s0 + $0x34] sm:$0xf]
    %v70 = vld [vmem:[%s0 + $0x38] sm:$0xf]
    %v71 = vld [vmem:[%s0 + $0x3c] sm:$0xf]
    %v72 = vld [vmem:[%s0 + $0x40] sm:$0xf]
    %v73 = vld [vmem:[%s0 + $0x44] sm:$0xf]
    %v74 = vld [vmem:[%s0 + $0x48] sm:$0xf]
    %v75 = vld [vmem:[%s0 + $0x4c] sm:$0xf]
    %v76 = vld [vmem:[%s0 + $0x50] sm:$0xf]
    %v77 = vld [vmem:[%s0 + $0x54] sm:$0xf]
    %v78 = vld [vmem:[%s0 + $0x58] sm:$0xf]
    %v79 = vld [vmem:[%s0 + $0x5c] sm:$0xf]
    %v80 = vld [vmem:[%s0 + $0x60] sm:$0xf]
    %v81 = vld [vmem:[%s0 + $0x64] sm:$0xf]
    %v82 = vld [vmem:[%s0 + $0x68] sm:$0xf]
    %v83 = vld [vmem:[%s0 + $0x6c] sm:$0xf]
    %v84 = vld [vmem:[%s0 + $0x70] sm:$0xf]
    %v85 = vld [vmem:[%s0 + $0x74] sm:$0xf]
    %v86 = vld [vmem:[%s0 + $0x78] sm:$0xf]
    %v87 = vld [vmem:[%s0 + $0x7c] sm:$0xf]
    %v88 = vld [vmem:[%s0 + $0x80] sm:$0xf]
    %v89 = vld [vmem:[%s0 + $0x84] sm:$0xf]
    %v90 = vld [vmem:[%s0 + $0x88] sm:$0xf]
    %v91 = vld [vmem:[%s0 + $0x8c] sm:$0xf]
    %v92 = vld [vmem:[%s0 + $0x90] sm:$0xf]
    %v93 = vld [vmem:[%s0 + $0x94] sm:$0xf]
    %v94 = vld [vmem:[%s0 + $0x98] sm:$0xf]
    %v95 = vld [vmem:[%s0 + $0x9c] sm:$0xf]
    %v96 = vld [vmem:[%s1] sm:$0xf]
    %v97 = vld [vmem:[%s1 + $0x4] sm:$0xf]
    %v98 = vld [vmem:[%s1 + $0x8] sm:$0xf]
    %v99 = vld [vmem:[%s1 + $0xc] sm:$0xf]
    %v100 = vld [vmem:[%s1 + $0x10] sm:$0xf]
    %v101 = vld [vmem:[%s1 + $0x14] sm:$0xf]
    %v102 = vld [vmem:[%s1 + $0x18] sm:$0xf]
    %v103 = vld [vmem:[%s1 + $0x1c] sm:$0xf]
    %v104 = vld [vmem:[%s1 + $0x20] sm:$0xf]
    %v105 = vld [vmem:[%s1 + $0x24] sm:$0xf]
    %v106 = vld [vmem:[%s1 + $0x28] sm:$0xf]
    %v107 = vld [vmem:[%s1 + $0x2c] sm:$0xf]
    %v108 = vld [vmem:[%s1 + $0x30] sm:$0xf]
    %v109 = vld [vmem:[%s1 + $0x34] sm:$0xf]
    %v110 = vld [vmem:[%s1 + $0x38] sm:$0xf]
    %v111 = vld [vmem:[%s1 + $0x3c] sm:$0xf]
    %v112 = vld [vmem:[%s2] sm:$0x1]
    %v114 = vperm.slane %v112, 0
    %v156 = vunpack.c.l.b16 %v56
    %v157 = vunpack.c.l.b16 %v57
    %v158 = vunpack.c.l.b16 %v58
    %v159 = vunpack.c.l.b16 %v59
    %v160 = vunpack.c.l.b16 %v60
    %v161 = vunpack.c.l.b16 %v61
    %v162 = vunpack.c.l.b16 %v62
    %v163 = vunpack.c.l.b16 %v63
    %v164 = vunpack.c.l.b16 %v64
    %v165 = vunpack.c.l.b16 %v65
    %v166 = vunpack.c.l.b16 %v66
    %v167 = vunpack.c.l.b16 %v67
    %v168 = vunpack.c.l.b16 %v68
    %v169 = vunpack.c.l.b16 %v69
    %v170 = vunpack.c.l.b16 %v70
    %v171 = vunpack.c.l.b16 %v71
    %v172 = vunpack.c.l.b16 %v72
    %v173 = vunpack.c.l.b16 %v73
    %v174 = vunpack.c.l.b16 %v74
    %v175 = vunpack.c.l.b16 %v75
    %v176 = vunpack.c.l.b16 %v76
    %v177 = vunpack.c.l.b16 %v77
    %v178 = vunpack.c.l.b16 %v78
    %v179 = vunpack.c.l.b16 %v79
    %v180 = vunpack.c.l.b16 %v80
    %v181 = vunpack.c.l.b16 %v81
    %v182 = vunpack.c.l.b16 %v82
    %v183 = vunpack.c.l.b16 %v83
    %v184 = vunpack.c.l.b16 %v84
    %v185 = vunpack.c.l.b16 %v85
    %v186 = vunpack.c.l.b16 %v86
    %v187 = vunpack.c.l.b16 %v87
    %v188 = vunpack.c.l.b16 %v88
    %v189 = vunpack.c.l.b16 %v89
    %v190 = vunpack.c.l.b16 %v90
    %v191 = vunpack.c.l.b16 %v91
    %v192 = vunpack.c.l.b16 %v92
    %v193 = vunpack.c.l.b16 %v93
    %v194 = vunpack.c.l.b16 %v94
    %v195 = vunpack.c.l.b16 %v95
    %v196 = vpack.c.b16 %v157, %v156
    %v197 = vpack.c.b16 %v159, %v158
    %v198 = vpack.c.b16 %v161, %v160
    %v199 = vpack.c.b16 %v163, %v162
    %v200 = vpack.c.b16 %v165, %v164
    %v201 = vpack.c.b16 %v167, %v166
    %v202 = vpack.c.b16 %v169, %v168
    %v203 = vpack.c.b16 %v171, %v170
    %v204 = vpack.c.b16 %v173, %v172
    %v205 = vpack.c.b16 %v175, %v174
    %v206 = vpack.c.b16 %v177, %v176
    %v207 = vpack.c.b16 %v179, %v178
    %v208 = vpack.c.b16 %v181, %v180
    %v209 = vpack.c.b16 %v183, %v182
    %v210 = vpack.c.b16 %v185, %v184
    %v211 = vpack.c.b16 %v187, %v186
    %v212 = vpack.c.b16 %v189, %v188
    %v213 = vpack.c.b16 %v191, %v190
    %v214 = vpack.c.b16 %v193, %v192
    %v215 = vpack.c.b16 %v195, %v194
    %v252 = vunpack.c.l.b16 %v96
    %v253 = vunpack.c.l.b16 %v97
    %v254 = vunpack.c.l.b16 %v98
    %v255 = vunpack.c.l.b16 %v99
    %v256 = vunpack.c.l.b16 %v100
    %v257 = vunpack.c.l.b16 %v101
    %v258 = vunpack.c.l.b16 %v102
    %v259 = vunpack.c.l.b16 %v103
    %v260 = vunpack.c.l.b16 %v104
    %v261 = vunpack.c.l.b16 %v105
    %v262 = vunpack.c.l.b16 %v106
    %v263 = vunpack.c.l.b16 %v107
    %v264 = vunpack.c.l.b16 %v108
    %v265 = vunpack.c.l.b16 %v109
    %v266 = vunpack.c.l.b16 %v110
    %v267 = vunpack.c.l.b16 %v111
    %v268 = vpack.c.b16 %v253, %v252
    %v269 = vpack.c.b16 %v255, %v254
    %v270 = vpack.c.b16 %v257, %v256
    %v271 = vpack.c.b16 %v259, %v258
    %v272 = vpack.c.b16 %v261, %v260
    %v273 = vpack.c.b16 %v263, %v262
    %v274 = vpack.c.b16 %v265, %v264
    %v275 = vpack.c.b16 %v267, %v266
    %284 = vmatpush.bf16.msra.mxu0 %v275
    %285 = vmatpush.bf16.msra.mxu0 %v274
    %286 = vmatpush.bf16.msra.mxu0 %v273
    %287 = vmatpush.bf16.msra.mxu0 %v272
    %288 = vmatpush.bf16.msra.mxu0 %v271
    %289 = vmatpush.bf16.msra.mxu0 %v270
    %290 = vmatpush.bf16.msra.mxu0 %v269
    %291 = vmatpush.bf16.msra.mxu0 %v268
    %292 = vmatmul.bf16.gmra.mxu0 %v196
    %v293 = vpop.f32.mrf.mxu0
    %v294 = vadd.f32 %v114, %v293
    %v295 = vpop.f32.mrf.mxu0
    %v296 = vadd.f32 %v114, %v295
    %297 = vmatmul.bf16.gmra.mxu0 %v197
    %v298 = vpop.f32.mrf.mxu0
    %v299 = vadd.f32 %v114, %v298
    %v300 = vpop.f32.mrf.mxu0
    %v301 = vadd.f32 %v114, %v300
    %302 = vmatmul.bf16.gmra.mxu0 %v198
    %v303 = vpop.f32.mrf.mxu0
    %v304 = vadd.f32 %v114, %v303
    %v305 = vpop.f32.mrf.mxu0
    %v306 = vadd.f32 %v114, %v305
    %307 = vmatmul.bf16.gmra.mxu0 %v199
    %v308 = vpop.f32.mrf.mxu0
    %v309 = vadd.f32 %v114, %v308
    %v310 = vpop.f32.mrf.mxu0
    %v311 = vadd.f32 %v114, %v310
    %312 = vmatmul.bf16.gmra.mxu0 %v200
    %v313 = vpop.f32.mrf.mxu0
    %v314 = vadd.f32 %v114, %v313
    %v315 = vpop.f32.mrf.mxu0
    %v316 = vadd.f32 %v114, %v315
    %317 = vmatmul.bf16.gmra.mxu0 %v201
    %v318 = vpop.f32.mrf.mxu0
    %v319 = vadd.f32 %v114, %v318
    %v320 = vpop.f32.mrf.mxu0
    %v321 = vadd.f32 %v114, %v320
    %322 = vmatmul.bf16.gmra.mxu0 %v202
    %v323 = vpop.f32.mrf.mxu0
    %v324 = vadd.f32 %v114, %v323
    %v325 = vpop.f32.mrf.mxu0
    %v326 = vadd.f32 %v114, %v325
    %327 = vmatmul.bf16.gmra.mxu0 %v203
    %v328 = vpop.f32.mrf.mxu0
    %v329 = vadd.f32 %v114, %v328
    %v330 = vpop.f32.mrf.mxu0
    %v331 = vadd.f32 %v114, %v330
    %332 = vmatmul.bf16.gmra.mxu0 %v204
    %v333 = vpop.f32.mrf.mxu0
    %v334 = vadd.f32 %v114, %v333
    %v335 = vpop.f32.mrf.mxu0
    %v336 = vadd.f32 %v114, %v335
    %337 = vmatmul.bf16.gmra.mxu0 %v205
    %v338 = vpop.f32.mrf.mxu0
    %v339 = vadd.f32 %v114, %v338
    %v340 = vpop.f32.mrf.mxu0
    %v341 = vadd.f32 %v114, %v340
    %342 = vmatmul.bf16.gmra.mxu0 %v206
    %v343 = vpop.f32.mrf.mxu0
    %v344 = vadd.f32 %v114, %v343
    %v345 = vpop.f32.mrf.mxu0
    %v346 = vadd.f32 %v114, %v345
    %347 = vmatmul.bf16.gmra.mxu0 %v207
    %v348 = vpop.f32.mrf.mxu0
    %v349 = vadd.f32 %v114, %v348
    %v350 = vpop.f32.mrf.mxu0
    %v351 = vadd.f32 %v114, %v350
    %352 = vmatmul.bf16.gmra.mxu0 %v208
    %v353 = vpop.f32.mrf.mxu0
    %v354 = vadd.f32 %v114, %v353
    %v355 = vpop.f32.mrf.mxu0
    %v356 = vadd.f32 %v114, %v355
    %357 = vmatmul.bf16.gmra.mxu0 %v209
    %v358 = vpop.f32.mrf.mxu0
    %v359 = vadd.f32 %v114, %v358
    %v360 = vpop.f32.mrf.mxu0
    %v361 = vadd.f32 %v114, %v360
    %362 = vmatmul.bf16.gmra.mxu0 %v210
    %v363 = vpop.f32.mrf.mxu0
    %v364 = vadd.f32 %v114, %v363
    %v365 = vpop.f32.mrf.mxu0
    %v366 = vadd.f32 %v114, %v365
    %367 = vmatmul.bf16.gmra.mxu0 %v211
    %v368 = vpop.f32.mrf.mxu0
    %v369 = vadd.f32 %v114, %v368
    %v370 = vpop.f32.mrf.mxu0
    %v371 = vadd.f32 %v114, %v370
    %372 = vmatmul.bf16.gmra.mxu0 %v212
    %v373 = vpop.f32.mrf.mxu0
    %v374 = vadd.f32 %v114, %v373
    %v375 = vpop.f32.mrf.mxu0
    %v376 = vadd.f32 %v114, %v375
    %377 = vmatmul.bf16.gmra.mxu0 %v213
    %v378 = vpop.f32.mrf.mxu0
    %v379 = vadd.f32 %v114, %v378
    %v380 = vpop.f32.mrf.mxu0
    %v381 = vadd.f32 %v114, %v380
    %382 = vmatmul.bf16.gmra.mxu0 %v214
    %v383 = vpop.f32.mrf.mxu0
    %v384 = vadd.f32 %v114, %v383
    %v385 = vpop.f32.mrf.mxu0
    %v386 = vadd.f32 %v114, %v385
    %387 = vmatmul.bf16.gmra.mxu0 %v215
    %v388 = vpop.f32.mrf.mxu0
    %v389 = vadd.f32 %v114, %v388
    %v390 = vpop.f32.mrf.mxu0
    %v391 = vadd.f32 %v114, %v390
    %392 = vdwg.mxu0
    %vm393 = vcmp.gt.f32.partialorder %v294, 0.0
    %vm394 = vcmp.gt.f32.partialorder %v296, 0.0
    %vm395 = vcmp.gt.f32.partialorder %v299, 0.0
    %vm396 = vcmp.gt.f32.partialorder %v301, 0.0
    %vm397 = vcmp.gt.f32.partialorder %v304, 0.0
    %vm398 = vcmp.gt.f32.partialorder %v306, 0.0
    %vm399 = vcmp.gt.f32.partialorder %v309, 0.0
    %vm400 = vcmp.gt.f32.partialorder %v311, 0.0
    %vm401 = vcmp.gt.f32.partialorder %v314, 0.0
    %vm402 = vcmp.gt.f32.partialorder %v316, 0.0
    %vm403 = vcmp.gt.f32.partialorder %v319, 0.0
    %vm404 = vcmp.gt.f32.partialorder %v321, 0.0
    %vm405 = vcmp.gt.f32.partialorder %v324, 0.0
    %vm406 = vcmp.gt.f32.partialorder %v326, 0.0
    %vm407 = vcmp.gt.f32.partialorder %v329, 0.0
    %vm408 = vcmp.gt.f32.partialorder %v331, 0.0
    %vm409 = vcmp.gt.f32.partialorder %v334, 0.0
    %vm410 = vcmp.gt.f32.partialorder %v336, 0.0
    %vm411 = vcmp.gt.f32.partialorder %v339, 0.0
    %vm412 = vcmp.gt.f32.partialorder %v341, 0.0
    %vm413 = vcmp.gt.f32.partialorder %v344, 0.0
    %vm414 = vcmp.gt.f32.partialorder %v346, 0.0
    %vm415 = vcmp.gt.f32.partialorder %v349, 0.0
    %vm416 = vcmp.gt.f32.partialorder %v351, 0.0
    %vm417 = vcmp.gt.f32.partialorder %v354, 0.0
    %vm418 = vcmp.gt.f32.partialorder %v356, 0.0
    %vm419 = vcmp.gt.f32.partialorder %v359, 0.0
    %vm420 = vcmp.gt.f32.partialorder %v361, 0.0
    %vm421 = vcmp.gt.f32.partialorder %v364, 0.0
    %vm422 = vcmp.gt.f32.partialorder %v366, 0.0
    %vm423 = vcmp.gt.f32.partialorder %v369, 0.0
    %vm424 = vcmp.gt.f32.partialorder %v371, 0.0
    %vm425 = vcmp.gt.f32.partialorder %v374, 0.0
    %vm426 = vcmp.gt.f32.partialorder %v376, 0.0
    %vm427 = vcmp.gt.f32.partialorder %v379, 0.0
    %vm428 = vcmp.gt.f32.partialorder %v381, 0.0
    %vm429 = vcmp.gt.f32.partialorder %v384, 0.0
    %vm430 = vcmp.gt.f32.partialorder %v386, 0.0
    %vm431 = vcmp.gt.f32.partialorder %v389, 0.0
    %vm432 = vcmp.gt.f32.partialorder %v391, 0.0
    %v433 = vmul.f32 %v294, 0.01
    %v434 = vmul.f32 %v296, 0.01
    %v435 = vmul.f32 %v299, 0.01
    %v436 = vmul.f32 %v301, 0.01
    %v437 = vmul.f32 %v304, 0.01
    %v438 = vmul.f32 %v306, 0.01
    %v439 = vmul.f32 %v309, 0.01
    %v440 = vmul.f32 %v311, 0.01
    %v441 = vmul.f32 %v314, 0.01
    %v442 = vmul.f32 %v316, 0.01
    %v443 = vmul.f32 %v319, 0.01
    %v444 = vmul.f32 %v321, 0.01
    %v445 = vmul.f32 %v324, 0.01
    %v446 = vmul.f32 %v326, 0.01
    %v447 = vmul.f32 %v329, 0.01
    %v448 = vmul.f32 %v331, 0.01
    %v449 = vmul.f32 %v334, 0.01
    %v450 = vmul.f32 %v336, 0.01
    %v451 = vmul.f32 %v339, 0.01
    %v452 = vmul.f32 %v341, 0.01
    %v453 = vmul.f32 %v344, 0.01
    %v454 = vmul.f32 %v346, 0.01
    %v455 = vmul.f32 %v349, 0.01
    %v456 = vmul.f32 %v351, 0.01
    %v457 = vmul.f32 %v354, 0.01
    %v458 = vmul.f32 %v356, 0.01
    %v459 = vmul.f32 %v359, 0.01
    %v460 = vmul.f32 %v361, 0.01
    %v461 = vmul.f32 %v364, 0.01
    %v462 = vmul.f32 %v366, 0.01
    %v463 = vmul.f32 %v369, 0.01
    %v464 = vmul.f32 %v371, 0.01
    %v465 = vmul.f32 %v374, 0.01
    %v466 = vmul.f32 %v376, 0.01
    %v467 = vmul.f32 %v379, 0.01
    %v468 = vmul.f32 %v381, 0.01
    %v469 = vmul.f32 %v384, 0.01
    %v470 = vmul.f32 %v386, 0.01
    %v471 = vmul.f32 %v389, 0.01
    %v472 = vmul.f32 %v391, 0.01
    %v473 = vsel %vm393, %v294, %v433
    %v474 = vsel %vm394, %v296, %v434
    %v475 = vsel %vm395, %v299, %v435
    %v476 = vsel %vm396, %v301, %v436
    %v477 = vsel %vm397, %v304, %v437
    %v478 = vsel %vm398, %v306, %v438
    %v479 = vsel %vm399, %v309, %v439
    %v480 = vsel %vm400, %v311, %v440
    %v481 = vsel %vm401, %v314, %v441
    %v482 = vsel %vm402, %v316, %v442
    %v483 = vsel %vm403, %v319, %v443
    %v484 = vsel %vm404, %v321, %v444
    %v485 = vsel %vm405, %v324, %v445
    %v486 = vsel %vm406, %v326, %v446
    %v487 = vsel %vm407, %v329, %v447
    %v488 = vsel %vm408, %v331, %v448
    %v489 = vsel %vm409, %v334, %v449
    %v490 = vsel %vm410, %v336, %v450
    %v491 = vsel %vm411, %v339, %v451
    %v492 = vsel %vm412, %v341, %v452
    %v493 = vsel %vm413, %v344, %v453
    %v494 = vsel %vm414, %v346, %v454
    %v495 = vsel %vm415, %v349, %v455
    %v496 = vsel %vm416, %v351, %v456
    %v497 = vsel %vm417, %v354, %v457
    %v498 = vsel %vm418, %v356, %v458
    %v499 = vsel %vm419, %v359, %v459
    %v500 = vsel %vm420, %v361, %v460
    %v501 = vsel %vm421, %v364, %v461
    %v502 = vsel %vm422, %v366, %v462
    %v503 = vsel %vm423, %v369, %v463
    %v504 = vsel %vm424, %v371, %v464
    %v505 = vsel %vm425, %v374, %v465
    %v506 = vsel %vm426, %v376, %v466
    %v507 = vsel %vm427, %v379, %v467
    %v508 = vsel %vm428, %v381, %v468
    %v509 = vsel %vm429, %v384, %v469
    %v510 = vsel %vm430, %v386, %v470
    %v511 = vsel %vm431, %v389, %v471
    %v512 = vsel %vm432, %v391, %v472
    %v513 = vpack.c.bf16 %v474, %v473
    %v514 = vpack.c.bf16 %v476, %v475
    %v515 = vpack.c.bf16 %v478, %v477
    %v516 = vpack.c.bf16 %v480, %v479
    %v517 = vpack.c.bf16 %v482, %v481
    %v518 = vpack.c.bf16 %v484, %v483
    %v519 = vpack.c.bf16 %v486, %v485
    %v520 = vpack.c.bf16 %v488, %v487
    %v521 = vpack.c.bf16 %v490, %v489
    %v522 = vpack.c.bf16 %v492, %v491
    %v523 = vpack.c.bf16 %v494, %v493
    %v524 = vpack.c.bf16 %v496, %v495
    %v525 = vpack.c.bf16 %v498, %v497
    %v526 = vpack.c.bf16 %v500, %v499
    %v527 = vpack.c.bf16 %v502, %v501
    %v528 = vpack.c.bf16 %v504, %v503
    %v529 = vpack.c.bf16 %v506, %v505
    %v530 = vpack.c.bf16 %v508, %v507
    %v531 = vpack.c.bf16 %v510, %v509
    %v532 = vpack.c.bf16 %v512, %v511
    %v533 = vld [vmem:[#allocation2] sm:$0xff]
    %v534 = vld [vmem:[#allocation2 + $0x8] sm:$0xf]
    %v535 = vld [vmem:[#allocation2 + $0xc] sm:$0xff]
    %v536 = vld [vmem:[#allocation2 + $0x14] sm:$0xf]
    %v537 = vld [vmem:[#allocation2 + $0x18] sm:$0xff]
    %v538 = vld [vmem:[#allocation2 + $0x20] sm:$0xf]
    %v539 = vld [vmem:[#allocation2 + $0x24] sm:$0xff]
    %v540 = vld [vmem:[#allocation2 + $0x2c] sm:$0xf]
    %v541 = vld [vmem:[#allocation2 + $0x30] sm:$0xff]
    %v542 = vld [vmem:[#allocation2 + $0x38] sm:$0xf]
    %v543 = vld [vmem:[#allocation2 + $0x3c] sm:$0xff]
    %v544 = vld [vmem:[#allocation2 + $0x44] sm:$0xf]
    %v545 = vld [vmem:[#allocation2 + $0x48] sm:$0xff]
    %v546 = vld [vmem:[#allocation2 + $0x50] sm:$0xf]
    %v547 = vld [vmem:[#allocation2 + $0x54] sm:$0xff]
    %v548 = vld [vmem:[#allocation2 + $0x5c] sm:$0xf]
    %v549 = vld [vmem:[#allocation2 + $0x60] sm:$0xff]
    %v550 = vld [vmem:[#allocation2 + $0x68] sm:$0xf]
    %v551 = vld [vmem:[#allocation2 + $0x6c] sm:$0xff]
    %v552 = vld [vmem:[#allocation2 + $0x74] sm:$0xf]
    %v553 = vld [vmem:[#allocation2 + $0x78] sm:$0xff]
    %v554 = vld [vmem:[#allocation2 + $0x80] sm:$0xf]
    %v555 = vld [vmem:[#allocation2 + $0x84] sm:$0xff]
    %v556 = vld [vmem:[#allocation2 + $0x8c] sm:$0xf]
    %v557 = vld [vmem:[#allocation2 + $0x90] sm:$0xff]
    %v558 = vld [vmem:[#allocation2 + $0x98] sm:$0xf]
    %v559 = vld [vmem:[#allocation2 + $0x9c] sm:$0xff]
    %v560 = vld [vmem:[#allocation2 + $0xa4] sm:$0xf]
    %v561 = vld [vmem:[#allocation2 + $0xa8] sm:$0xff]
    %v562 = vld [vmem:[#allocation2 + $0xb0] sm:$0xf]
    %v563 = vld [vmem:[#allocation2 + $0xb4] sm:$0xff]
    %v564 = vld [vmem:[#allocation2 + $0xbc] sm:$0xf]
    %v565 = vld [vmem:[#allocation2 + $0xc0] sm:$0xff]
    %v566 = vld [vmem:[#allocation2 + $0xc8] sm:$0xf]
    %v567 = vld [vmem:[#allocation2 + $0xcc] sm:$0xff]
    %v568 = vld [vmem:[#allocation2 + $0xd4] sm:$0xf]
    %v569 = vld [vmem:[#allocation2 + $0xd8] sm:$0xff]
    %v570 = vld [vmem:[#allocation2 + $0xe0] sm:$0xf]
    %v571 = vld [vmem:[#allocation2 + $0xe4] sm:$0xff]
    %v572 = vld [vmem:[#allocation2 + $0xec] sm:$0xf]
    %v573 = vld [vmem:[#allocation2 + $0xf0] sm:$0xff]
    %v574 = vld [vmem:[#allocation2 + $0xf8] sm:$0xf]
    %v575 = vld [vmem:[#allocation2 + $0xfc] sm:$0xff]
    %v576 = vld [vmem:[#allocation2 + $0x104] sm:$0xf]
    %v577 = vld [vmem:[#allocation2 + $0x108] sm:$0xff]
    %v578 = vld [vmem:[#allocation2 + $0x110] sm:$0xf]
    %v579 = vld [vmem:[#allocation2 + $0x114] sm:$0xff]
    %v580 = vld [vmem:[#allocation2 + $0x11c] sm:$0xf]
    %v581 = vld [vmem:[#allocation2 + $0x120] sm:$0xff]
    %v582 = vld [vmem:[#allocation2 + $0x128] sm:$0xf]
    %v583 = vld [vmem:[#allocation2 + $0x12c] sm:$0xff]
    %v584 = vld [vmem:[#allocation2 + $0x134] sm:$0xf]
    %v585 = vld [vmem:[#allocation2 + $0x138] sm:$0xff]
    %v586 = vld [vmem:[#allocation2 + $0x140] sm:$0xf]
    %v587 = vld [vmem:[#allocation2 + $0x144] sm:$0xff]
    %v588 = vld [vmem:[#allocation2 + $0x14c] sm:$0xf]
    %v589 = vld [vmem:[#allocation2 + $0x150] sm:$0xff]
    %v590 = vld [vmem:[#allocation2 + $0x158] sm:$0xf]
    %v591 = vld [vmem:[#allocation2 + $0x15c] sm:$0xff]
    %v592 = vld [vmem:[#allocation2 + $0x164] sm:$0xf]
    %v593 = vld [vmem:[#allocation2 + $0x168] sm:$0xff]
    %v594 = vld [vmem:[#allocation2 + $0x170] sm:$0xf]
    %v595 = vld [vmem:[#allocation2 + $0x174] sm:$0xff]
    %v596 = vld [vmem:[#allocation2 + $0x17c] sm:$0xf]
    %v597 = vld [vmem:[#allocation2 + $0x180] sm:$0xff]
    %v598 = vld [vmem:[#allocation2 + $0x188] sm:$0xf]
    %v599 = vld [vmem:[#allocation2 + $0x18c] sm:$0xff]
    %v600 = vld [vmem:[#allocation2 + $0x194] sm:$0xf]
    %v601 = vld [vmem:[#allocation2 + $0x198] sm:$0xff]
    %v602 = vld [vmem:[#allocation2 + $0x1a0] sm:$0xf]
    %v603 = vld [vmem:[#allocation2 + $0x1a4] sm:$0xff]
    %v604 = vld [vmem:[#allocation2 + $0x1ac] sm:$0xf]
    %v605 = vld [vmem:[#allocation2 + $0x1b0] sm:$0xff]
    %v606 = vld [vmem:[#allocation2 + $0x1b8] sm:$0xf]
    %v607 = vld [vmem:[#allocation2 + $0x1bc] sm:$0xff]
    %v608 = vld [vmem:[#allocation2 + $0x1c4] sm:$0xf]
    %v609 = vld [vmem:[#allocation2 + $0x1c8] sm:$0xff]
    %v610 = vld [vmem:[#allocation2 + $0x1d0] sm:$0xf]
    %v611 = vld [vmem:[#allocation2 + $0x1d4] sm:$0xff]
    %v612 = vld [vmem:[#allocation2 + $0x1dc] sm:$0xf]
    %v613 = vld [vmem:[#allocation2 + $0x1e0] sm:$0xff]
    %v614 = vld [vmem:[#allocation2 + $0x1e8] sm:$0xf]
    %v615 = vld [vmem:[#allocation2 + $0x1ec] sm:$0xff]
    %v616 = vld [vmem:[#allocation2 + $0x1f4] sm:$0xf]
    %v617 = vld [vmem:[#allocation2 + $0x1f8] sm:$0xff]
    %v618 = vld [vmem:[#allocation2 + $0x200] sm:$0xf]
    %v619 = vld [vmem:[#allocation2 + $0x204] sm:$0xff]
    %v620 = vld [vmem:[#allocation2 + $0x20c] sm:$0xf]
    %v621 = vld [vmem:[#allocation2 + $0x210] sm:$0xff]
    %v622 = vld [vmem:[#allocation2 + $0x218] sm:$0xf]
    %v623 = vld [vmem:[#allocation2 + $0x21c] sm:$0xff]
    %v624 = vld [vmem:[#allocation2 + $0x224] sm:$0xf]
    %v625 = vld [vmem:[#allocation2 + $0x228] sm:$0xff]
    %v626 = vld [vmem:[#allocation2 + $0x230] sm:$0xf]
    %v627 = vld [vmem:[#allocation2 + $0x234] sm:$0xff]
    %v628 = vld [vmem:[#allocation2 + $0x23c] sm:$0xf]
    %v629 = vld [vmem:[#allocation2 + $0x240] sm:$0xff]
    %v630 = vld [vmem:[#allocation2 + $0x248] sm:$0xf]
    %v631 = vld [vmem:[#allocation2 + $0x24c] sm:$0xff]
    %v632 = vld [vmem:[#allocation2 + $0x254] sm:$0xf]
    %v633 = vld [vmem:[#allocation2 + $0x258] sm:$0xff]
    %v634 = vld [vmem:[#allocation2 + $0x260] sm:$0xf]
    %v635 = vld [vmem:[#allocation2 + $0x264] sm:$0xff]
    %v636 = vld [vmem:[#allocation2 + $0x26c] sm:$0xf]
    %v637 = vld [vmem:[#allocation2 + $0x270] sm:$0xff]
    %v638 = vld [vmem:[#allocation2 + $0x278] sm:$0xf]
    %v639 = vld [vmem:[#allocation2 + $0x27c] sm:$0xff]
    %v640 = vld [vmem:[#allocation2 + $0x284] sm:$0xf]
    %v641 = vld [vmem:[#allocation2 + $0x288] sm:$0xff]
    %v642 = vld [vmem:[#allocation2 + $0x290] sm:$0xf]
    %v643 = vld [vmem:[#allocation2 + $0x294] sm:$0xff]
    %v644 = vld [vmem:[#allocation2 + $0x29c] sm:$0xf]
    %v645 = vld [vmem:[#allocation2 + $0x2a0] sm:$0xff]
    %v646 = vld [vmem:[#allocation2 + $0x2a8] sm:$0xf]
    %v647 = vld [vmem:[#allocation2 + $0x2ac] sm:$0xff]
    %v648 = vld [vmem:[#allocation2 + $0x2b4] sm:$0xf]
    %v649 = vld [vmem:[#allocation2 + $0x2b8] sm:$0xff]
    %v650 = vld [vmem:[#allocation2 + $0x2c0] sm:$0xf]
    %v651 = vld [vmem:[#allocation2 + $0x2c4] sm:$0xff]
    %v652 = vld [vmem:[#allocation2 + $0x2cc] sm:$0xf]
    %v653 = vld [vmem:[#allocation2 + $0x2d0] sm:$0xff]
    %v654 = vld [vmem:[#allocation2 + $0x2d8] sm:$0xf]
    %v655 = vld [vmem:[#allocation2 + $0x2dc] sm:$0xff]
    %v656 = vld [vmem:[#allocation2 + $0x2e4] sm:$0xf]
    %v657 = vld [vmem:[#allocation2 + $0x2e8] sm:$0xff]
    %v658 = vld [vmem:[#allocation2 + $0x2f0] sm:$0xf]
    %v659 = vld [vmem:[#allocation2 + $0x2f4] sm:$0xff]
    %v660 = vld [vmem:[#allocation2 + $0x2fc] sm:$0xf]
    %v661 = vld [vmem:[#allocation2 + $0x300] sm:$0xff]
    %v662 = vld [vmem:[#allocation2 + $0x308] sm:$0xf]
    %v663 = vld [vmem:[#allocation2 + $0x30c] sm:$0xff]
    %v664 = vld [vmem:[#allocation2 + $0x314] sm:$0xf]
    %v665 = vld [vmem:[#allocation2 + $0x318] sm:$0xff]
    %v666 = vld [vmem:[#allocation2 + $0x320] sm:$0xf]
    %v667 = vld [vmem:[#allocation2 + $0x324] sm:$0xff]
    %v668 = vld [vmem:[#allocation2 + $0x32c] sm:$0xf]
    %v669 = vld [vmem:[#allocation2 + $0x330] sm:$0xff]
    %v670 = vld [vmem:[#allocation2 + $0x338] sm:$0xf]
    %v671 = vld [vmem:[#allocation2 + $0x33c] sm:$0xff]
    %v672 = vld [vmem:[#allocation2 + $0x344] sm:$0xf]
    %v673 = vld [vmem:[#allocation2 + $0x348] sm:$0xff]
    %v674 = vld [vmem:[#allocation2 + $0x350] sm:$0xf]
    %v675 = vld [vmem:[#allocation2 + $0x354] sm:$0xff]
    %v676 = vld [vmem:[#allocation2 + $0x35c] sm:$0xf]
    %v677 = vld [vmem:[#allocation2 + $0x360] sm:$0xff]
    %v678 = vld [vmem:[#allocation2 + $0x368] sm:$0xf]
    %v679 = vld [vmem:[#allocation2 + $0x36c] sm:$0xff]
    %v680 = vld [vmem:[#allocation2 + $0x374] sm:$0xf]
    %v681 = vld [vmem:[#allocation2 + $0x378] sm:$0xff]
    %v682 = vld [vmem:[#allocation2 + $0x380] sm:$0xf]
    %v683 = vld [vmem:[#allocation2 + $0x384] sm:$0xff]
    %v684 = vld [vmem:[#allocation2 + $0x38c] sm:$0xf]
    %v685 = vld [vmem:[#allocation2 + $0x390] sm:$0xff]
    %v686 = vld [vmem:[#allocation2 + $0x398] sm:$0xf]
    %v687 = vld [vmem:[#allocation2 + $0x39c] sm:$0xff]
    %v688 = vld [vmem:[#allocation2 + $0x3a4] sm:$0xf]
    %v689 = vld [vmem:[#allocation2 + $0x3a8] sm:$0xff]
    %v690 = vld [vmem:[#allocation2 + $0x3b0] sm:$0xf]
    %v691 = vld [vmem:[#allocation2 + $0x3b4] sm:$0xff]
    %v692 = vld [vmem:[#allocation2 + $0x3bc] sm:$0xf]
    %v693 = vld [vmem:[#allocation2 + $0x3c0] sm:$0xff]
    %v694 = vld [vmem:[#allocation2 + $0x3c8] sm:$0xf]
    %v695 = vld [vmem:[#allocation2 + $0x3cc] sm:$0xff]
    %v696 = vld [vmem:[#allocation2 + $0x3d4] sm:$0xf]
    %v697 = vld [vmem:[#allocation2 + $0x3d8] sm:$0xff]
    %v698 = vld [vmem:[#allocation2 + $0x3e0] sm:$0xf]
    %v699 = vld [vmem:[#allocation2 + $0x3e4] sm:$0xff]
    %v700 = vld [vmem:[#allocation2 + $0x3ec] sm:$0xf]
    %v701 = vld [vmem:[#allocation2 + $0x3f0] sm:$0xff]
    %v702 = vld [vmem:[#allocation2 + $0x3f8] sm:$0xf]
    %v703 = vld [vmem:[#allocation2 + $0x3fc] sm:$0xff]
    %v704 = vld [vmem:[#allocation2 + $0x404] sm:$0xf]
    %v705 = vld [vmem:[#allocation2 + $0x408] sm:$0xff]
    %v706 = vld [vmem:[#allocation2 + $0x410] sm:$0xf]
    %v707 = vld [vmem:[#allocation2 + $0x414] sm:$0xff]
    %v708 = vld [vmem:[#allocation2 + $0x41c] sm:$0xf]
    %v709 = vld [vmem:[#allocation2 + $0x420] sm:$0xff]
    %v710 = vld [vmem:[#allocation2 + $0x428] sm:$0xf]
    %v711 = vld [vmem:[#allocation2 + $0x42c] sm:$0xff]
    %v712 = vld [vmem:[#allocation2 + $0x434] sm:$0xf]
    %v893 = vunpack.c.l.b16 %v533
    %v894 = vunpack.c.h.b16 %v533
    %v895 = vunpack.c.l.b16 %v534
    %v896 = vunpack.c.l.b16 %v535
    %v897 = vunpack.c.h.b16 %v535
    %v898 = vunpack.c.l.b16 %v536
    %v899 = vunpack.c.l.b16 %v537
    %v900 = vunpack.c.h.b16 %v537
    %v901 = vunpack.c.l.b16 %v538
    %v902 = vunpack.c.l.b16 %v539
    %v903 = vunpack.c.h.b16 %v539
    %v904 = vunpack.c.l.b16 %v540
    %v905 = vunpack.c.l.b16 %v541
    %v906 = vunpack.c.h.b16 %v541
    %v907 = vunpack.c.l.b16 %v542
    %v908 = vunpack.c.l.b16 %v543
    %v909 = vunpack.c.h.b16 %v543
    %v910 = vunpack.c.l.b16 %v544
    %v911 = vunpack.c.l.b16 %v545
    %v912 = vunpack.c.h.b16 %v545
    %v913 = vunpack.c.l.b16 %v546
    %v914 = vunpack.c.l.b16 %v547
    %v915 = vunpack.c.h.b16 %v547
    %v916 = vunpack.c.l.b16 %v548
    %v917 = vunpack.c.l.b16 %v549
    %v918 = vunpack.c.h.b16 %v549
    %v919 = vunpack.c.l.b16 %v550
    %v920 = vunpack.c.l.b16 %v551
    %v921 = vunpack.c.h.b16 %v551
    %v922 = vunpack.c.l.b16 %v552
    %v923 = vunpack.c.l.b16 %v553
    %v924 = vunpack.c.h.b16 %v553
    %v925 = vunpack.c.l.b16 %v554
    %v926 = vunpack.c.l.b16 %v555
    %v927 = vunpack.c.h.b16 %v555
    %v928 = vunpack.c.l.b16 %v556
    %v929 = vunpack.c.l.b16 %v557
    %v930 = vunpack.c.h.b16 %v557
    %v931 = vunpack.c.l.b16 %v558
    %v932 = vunpack.c.l.b16 %v559
    %v933 = vunpack.c.h.b16 %v559
    %v934 = vunpack.c.l.b16 %v560
    %v935 = vunpack.c.l.b16 %v561
    %v936 = vunpack.c.h.b16 %v561
    %v937 = vunpack.c.l.b16 %v562
    %v938 = vunpack.c.l.b16 %v563
    %v939 = vunpack.c.h.b16 %v563
    %v940 = vunpack.c.l.b16 %v564
    %v941 = vunpack.c.l.b16 %v565
    %v942 = vunpack.c.h.b16 %v565
    %v943 = vunpack.c.l.b16 %v566
    %v944 = vunpack.c.l.b16 %v567
    %v945 = vunpack.c.h.b16 %v567
    %v946 = vunpack.c.l.b16 %v568
    %v947 = vunpack.c.l.b16 %v569
    %v948 = vunpack.c.h.b16 %v569
    %v949 = vunpack.c.l.b16 %v570
    %v950 = vunpack.c.l.b16 %v571
    %v951 = vunpack.c.h.b16 %v571
    %v952 = vunpack.c.l.b16 %v572
    %v953 = vunpack.c.l.b16 %v573
    %v954 = vunpack.c.h.b16 %v573
    %v955 = vunpack.c.l.b16 %v574
    %v956 = vunpack.c.l.b16 %v575
    %v957 = vunpack.c.h.b16 %v575
    %v958 = vunpack.c.l.b16 %v576
    %v959 = vunpack.c.l.b16 %v577
    %v960 = vunpack.c.h.b16 %v577
    %v961 = vunpack.c.l.b16 %v578
    %v962 = vunpack.c.l.b16 %v579
    %v963 = vunpack.c.h.b16 %v579
    %v964 = vunpack.c.l.b16 %v580
    %v965 = vunpack.c.l.b16 %v581
    %v966 = vunpack.c.h.b16 %v581
    %v967 = vunpack.c.l.b16 %v582
    %v968 = vunpack.c.l.b16 %v583
    %v969 = vunpack.c.h.b16 %v583
    %v970 = vunpack.c.l.b16 %v584
    %v971 = vunpack.c.l.b16 %v585
    %v972 = vunpack.c.h.b16 %v585
    %v973 = vunpack.c.l.b16 %v586
    %v974 = vunpack.c.l.b16 %v587
    %v975 = vunpack.c.h.b16 %v587
    %v976 = vunpack.c.l.b16 %v588
    %v977 = vunpack.c.l.b16 %v589
    %v978 = vunpack.c.h.b16 %v589
    %v979 = vunpack.c.l.b16 %v590
    %v980 = vunpack.c.l.b16 %v591
    %v981 = vunpack.c.h.b16 %v591
    %v982 = vunpack.c.l.b16 %v592
    %v983 = vunpack.c.l.b16 %v593
    %v984 = vunpack.c.h.b16 %v593
    %v985 = vunpack.c.l.b16 %v594
    %v986 = vunpack.c.l.b16 %v595
    %v987 = vunpack.c.h.b16 %v595
    %v988 = vunpack.c.l.b16 %v596
    %v989 = vunpack.c.l.b16 %v597
    %v990 = vunpack.c.h.b16 %v597
    %v991 = vunpack.c.l.b16 %v598
    %v992 = vunpack.c.l.b16 %v599
    %v993 = vunpack.c.h.b16 %v599
    %v994 = vunpack.c.l.b16 %v600
    %v995 = vunpack.c.l.b16 %v601
    %v996 = vunpack.c.h.b16 %v601
    %v997 = vunpack.c.l.b16 %v602
    %v998 = vunpack.c.l.b16 %v603
    %v999 = vunpack.c.h.b16 %v603
    %v1000 = vunpack.c.l.b16 %v604
    %v1001 = vunpack.c.l.b16 %v605
    %v1002 = vunpack.c.h.b16 %v605
    %v1003 = vunpack.c.l.b16 %v606
    %v1004 = vunpack.c.l.b16 %v607
    %v1005 = vunpack.c.h.b16 %v607
    %v1006 = vunpack.c.l.b16 %v608
    %v1007 = vunpack.c.l.b16 %v609
    %v1008 = vunpack.c.h.b16 %v609
    %v1009 = vunpack.c.l.b16 %v610
    %v1010 = vunpack.c.l.b16 %v611
    %v1011 = vunpack.c.h.b16 %v611
    %v1012 = vunpack.c.l.b16 %v612
    %v1013 = vunpack.c.l.b16 %v613
    %v1014 = vunpack.c.h.b16 %v613
    %v1015 = vunpack.c.l.b16 %v614
    %v1016 = vunpack.c.l.b16 %v615
    %v1017 = vunpack.c.h.b16 %v615
    %v1018 = vunpack.c.l.b16 %v616
    %v1019 = vunpack.c.l.b16 %v617
    %v1020 = vunpack.c.h.b16 %v617
    %v1021 = vunpack.c.l.b16 %v618
    %v1022 = vunpack.c.l.b16 %v619
    %v1023 = vunpack.c.h.b16 %v619
    %v1024 = vunpack.c.l.b16 %v620
    %v1025 = vunpack.c.l.b16 %v621
    %v1026 = vunpack.c.h.b16 %v621
    %v1027 = vunpack.c.l.b16 %v622
    %v1028 = vunpack.c.l.b16 %v623
    %v1029 = vunpack.c.h.b16 %v623
    %v1030 = vunpack.c.l.b16 %v624
    %v1031 = vunpack.c.l.b16 %v625
    %v1032 = vunpack.c.h.b16 %v625
    %v1033 = vunpack.c.l.b16 %v626
    %v1034 = vunpack.c.l.b16 %v627
    %v1035 = vunpack.c.h.b16 %v627
    %v1036 = vunpack.c.l.b16 %v628
    %v1037 = vunpack.c.l.b16 %v629
    %v1038 = vunpack.c.h.b16 %v629
    %v1039 = vunpack.c.l.b16 %v630
    %v1040 = vunpack.c.l.b16 %v631
    %v1041 = vunpack.c.h.b16 %v631
    %v1042 = vunpack.c.l.b16 %v632
    %v1043 = vunpack.c.l.b16 %v633
    %v1044 = vunpack.c.h.b16 %v633
    %v1045 = vunpack.c.l.b16 %v634
    %v1046 = vunpack.c.l.b16 %v635
    %v1047 = vunpack.c.h.b16 %v635
    %v1048 = vunpack.c.l.b16 %v636
    %v1049 = vunpack.c.l.b16 %v637
    %v1050 = vunpack.c.h.b16 %v637
    %v1051 = vunpack.c.l.b16 %v638
    %v1052 = vunpack.c.l.b16 %v639
    %v1053 = vunpack.c.h.b16 %v639
    %v1054 = vunpack.c.l.b16 %v640
    %v1055 = vunpack.c.l.b16 %v641
    %v1056 = vunpack.c.h.b16 %v641
    %v1057 = vunpack.c.l.b16 %v642
    %v1058 = vunpack.c.l.b16 %v643
    %v1059 = vunpack.c.h.b16 %v643
    %v1060 = vunpack.c.l.b16 %v644
    %v1061 = vunpack.c.l.b16 %v645
    %v1062 = vunpack.c.h.b16 %v645
    %v1063 = vunpack.c.l.b16 %v646
    %v1064 = vunpack.c.l.b16 %v647
    %v1065 = vunpack.c.h.b16 %v647
    %v1066 = vunpack.c.l.b16 %v648
    %v1067 = vunpack.c.l.b16 %v649
    %v1068 = vunpack.c.h.b16 %v649
    %v1069 = vunpack.c.l.b16 %v650
    %v1070 = vunpack.c.l.b16 %v651
    %v1071 = vunpack.c.h.b16 %v651
    %v1072 = vunpack.c.l.b16 %v652
    %v1073 = vunpack.c.l.b16 %v653
    %v1074 = vunpack.c.h.b16 %v653
    %v1075 = vunpack.c.l.b16 %v654
    %v1076 = vunpack.c.l.b16 %v655
    %v1077 = vunpack.c.h.b16 %v655
    %v1078 = vunpack.c.l.b16 %v656
    %v1079 = vunpack.c.l.b16 %v657
    %v1080 = vunpack.c.h.b16 %v657
    %v1081 = vunpack.c.l.b16 %v658
    %v1082 = vunpack.c.l.b16 %v659
    %v1083 = vunpack.c.h.b16 %v659
    %v1084 = vunpack.c.l.b16 %v660
    %v1085 = vunpack.c.l.b16 %v661
    %v1086 = vunpack.c.h.b16 %v661
    %v1087 = vunpack.c.l.b16 %v662
    %v1088 = vunpack.c.l.b16 %v663
    %v1089 = vunpack.c.h.b16 %v663
    %v1090 = vunpack.c.l.b16 %v664
    %v1091 = vunpack.c.l.b16 %v665
    %v1092 = vunpack.c.h.b16 %v665
    %v1093 = vunpack.c.l.b16 %v666
    %v1094 = vunpack.c.l.b16 %v667
    %v1095 = vunpack.c.h.b16 %v667
    %v1096 = vunpack.c.l.b16 %v668
    %v1097 = vunpack.c.l.b16 %v669
    %v1098 = vunpack.c.h.b16 %v669
    %v1099 = vunpack.c.l.b16 %v670
    %v1100 = vunpack.c.l.b16 %v671
    %v1101 = vunpack.c.h.b16 %v671
    %v1102 = vunpack.c.l.b16 %v672
    %v1103 = vunpack.c.l.b16 %v673
    %v1104 = vunpack.c.h.b16 %v673
    %v1105 = vunpack.c.l.b16 %v674
    %v1106 = vunpack.c.l.b16 %v675
    %v1107 = vunpack.c.h.b16 %v675
    %v1108 = vunpack.c.l.b16 %v676
    %v1109 = vunpack.c.l.b16 %v677
    %v1110 = vunpack.c.h.b16 %v677
    %v1111 = vunpack.c.l.b16 %v678
    %v1112 = vunpack.c.l.b16 %v679
    %v1113 = vunpack.c.h.b16 %v679
    %v1114 = vunpack.c.l.b16 %v680
    %v1115 = vunpack.c.l.b16 %v681
    %v1116 = vunpack.c.h.b16 %v681
    %v1117 = vunpack.c.l.b16 %v682
    %v1118 = vunpack.c.l.b16 %v683
    %v1119 = vunpack.c.h.b16 %v683
    %v1120 = vunpack.c.l.b16 %v684
    %v1121 = vunpack.c.l.b16 %v685
    %v1122 = vunpack.c.h.b16 %v685
    %v1123 = vunpack.c.l.b16 %v686
    %v1124 = vunpack.c.l.b16 %v687
    %v1125 = vunpack.c.h.b16 %v687
    %v1126 = vunpack.c.l.b16 %v688
    %v1127 = vunpack.c.l.b16 %v689
    %v1128 = vunpack.c.h.b16 %v689
    %v1129 = vunpack.c.l.b16 %v690
    %v1130 = vunpack.c.l.b16 %v691
    %v1131 = vunpack.c.h.b16 %v691
    %v1132 = vunpack.c.l.b16 %v692
    %v1133 = vunpack.c.l.b16 %v693
    %v1134 = vunpack.c.h.b16 %v693
    %v1135 = vunpack.c.l.b16 %v694
    %v1136 = vunpack.c.l.b16 %v695
    %v1137 = vunpack.c.h.b16 %v695
    %v1138 = vunpack.c.l.b16 %v696
    %v1139 = vunpack.c.l.b16 %v697
    %v1140 = vunpack.c.h.b16 %v697
    %v1141 = vunpack.c.l.b16 %v698
    %v1142 = vunpack.c.l.b16 %v699
    %v1143 = vunpack.c.h.b16 %v699
    %v1144 = vunpack.c.l.b16 %v700
    %v1145 = vunpack.c.l.b16 %v701
    %v1146 = vunpack.c.h.b16 %v701
    %v1147 = vunpack.c.l.b16 %v702
    %v1148 = vunpack.c.l.b16 %v703
    %v1149 = vunpack.c.h.b16 %v703
    %v1150 = vunpack.c.l.b16 %v704
    %v1151 = vunpack.c.l.b16 %v705
    %v1152 = vunpack.c.h.b16 %v705
    %v1153 = vunpack.c.l.b16 %v706
    %v1154 = vunpack.c.l.b16 %v707
    %v1155 = vunpack.c.h.b16 %v707
    %v1156 = vunpack.c.l.b16 %v708
    %v1157 = vunpack.c.l.b16 %v709
    %v1158 = vunpack.c.h.b16 %v709
    %v1159 = vunpack.c.l.b16 %v710
    %v1160 = vunpack.c.l.b16 %v711
    %v1161 = vunpack.c.h.b16 %v711
    %v1162 = vunpack.c.l.b16 %v712
    %v1163 = vpack.c.b16 %v896, %v893
    %v1164 = vpack.c.b16 %v897, %v894
    %v1165 = vpack.c.b16 %v898, %v895
    %v1166 = vpack.c.b16 %v902, %v899
    %v1167 = vpack.c.b16 %v903, %v900
    %v1168 = vpack.c.b16 %v904, %v901
    %v1169 = vpack.c.b16 %v908, %v905
    %v1170 = vpack.c.b16 %v909, %v906
    %v1171 = vpack.c.b16 %v910, %v907
    %v1172 = vpack.c.b16 %v914, %v911
    %v1173 = vpack.c.b16 %v915, %v912
    %v1174 = vpack.c.b16 %v916, %v913
    %v1175 = vpack.c.b16 %v920, %v917
    %v1176 = vpack.c.b16 %v921, %v918
    %v1177 = vpack.c.b16 %v922, %v919
    %v1178 = vpack.c.b16 %v926, %v923
    %v1179 = vpack.c.b16 %v927, %v924
    %v1180 = vpack.c.b16 %v928, %v925
    %v1181 = vpack.c.b16 %v932, %v929
    %v1182 = vpack.c.b16 %v933, %v930
    %v1183 = vpack.c.b16 %v934, %v931
    %v1184 = vpack.c.b16 %v938, %v935
    %v1185 = vpack.c.b16 %v939, %v936
    %v1186 = vpack.c.b16 %v940, %v937
    %v1187 = vpack.c.b16 %v944, %v941
    %v1188 = vpack.c.b16 %v945, %v942
    %v1189 = vpack.c.b16 %v946, %v943
    %v1190 = vpack.c.b16 %v950, %v947
    %v1191 = vpack.c.b16 %v951, %v948
    %v1192 = vpack.c.b16 %v952, %v949
    %v1193 = vpack.c.b16 %v956, %v953
    %v1194 = vpack.c.b16 %v957, %v954
    %v1195 = vpack.c.b16 %v958, %v955
    %v1196 = vpack.c.b16 %v962, %v959
    %v1197 = vpack.c.b16 %v963, %v960
    %v1198 = vpack.c.b16 %v964, %v961
    %v1199 = vpack.c.b16 %v968, %v965
    %v1200 = vpack.c.b16 %v969, %v966
    %v1201 = vpack.c.b16 %v970, %v967
    %v1202 = vpack.c.b16 %v974, %v971
    %v1203 = vpack.c.b16 %v975, %v972
    %v1204 = vpack.c.b16 %v976, %v973
    %v1205 = vpack.c.b16 %v980, %v977
    %v1206 = vpack.c.b16 %v981, %v978
    %v1207 = vpack.c.b16 %v982, %v979
    %v1208 = vpack.c.b16 %v986, %v983
    %v1209 = vpack.c.b16 %v987, %v984
    %v1210 = vpack.c.b16 %v988, %v985
    %v1211 = vpack.c.b16 %v992, %v989
    %v1212 = vpack.c.b16 %v993, %v990
    %v1213 = vpack.c.b16 %v994, %v991
    %v1214 = vpack.c.b16 %v998, %v995
    %v1215 = vpack.c.b16 %v999, %v996
    %v1216 = vpack.c.b16 %v1000, %v997
    %v1217 = vpack.c.b16 %v1004, %v1001
    %v1218 = vpack.c.b16 %v1005, %v1002
    %v1219 = vpack.c.b16 %v1006, %v1003
    %v1220 = vpack.c.b16 %v1010, %v1007
    %v1221 = vpack.c.b16 %v1011, %v1008
    %v1222 = vpack.c.b16 %v1012, %v1009
    %v1223 = vpack.c.b16 %v1016, %v1013
    %v1224 = vpack.c.b16 %v1017, %v1014
    %v1225 = vpack.c.b16 %v1018, %v1015
    %v1226 = vpack.c.b16 %v1022, %v1019
    %v1227 = vpack.c.b16 %v1023, %v1020
    %v1228 = vpack.c.b16 %v1024, %v1021
    %v1229 = vpack.c.b16 %v1028, %v1025
    %v1230 = vpack.c.b16 %v1029, %v1026
    %v1231 = vpack.c.b16 %v1030, %v1027
    %v1232 = vpack.c.b16 %v1034, %v1031
    %v1233 = vpack.c.b16 %v1035, %v1032
    %v1234 = vpack.c.b16 %v1036, %v1033
    %v1235 = vpack.c.b16 %v1040, %v1037
    %v1236 = vpack.c.b16 %v1041, %v1038
    %v1237 = vpack.c.b16 %v1042, %v1039
    %v1238 = vpack.c.b16 %v1046, %v1043
    %v1239 = vpack.c.b16 %v1047, %v1044
    %v1240 = vpack.c.b16 %v1048, %v1045
    %v1241 = vpack.c.b16 %v1052, %v1049
    %v1242 = vpack.c.b16 %v1053, %v1050
    %v1243 = vpack.c.b16 %v1054, %v1051
    %v1244 = vpack.c.b16 %v1058, %v1055
    %v1245 = vpack.c.b16 %v1059, %v1056
    %v1246 = vpack.c.b16 %v1060, %v1057
    %v1247 = vpack.c.b16 %v1064, %v1061
    %v1248 = vpack.c.b16 %v1065, %v1062
    %v1249 = vpack.c.b16 %v1066, %v1063
    %v1250 = vpack.c.b16 %v1070, %v1067
    %v1251 = vpack.c.b16 %v1071, %v1068
    %v1252 = vpack.c.b16 %v1072, %v1069
    %v1253 = vpack.c.b16 %v1076, %v1073
    %v1254 = vpack.c.b16 %v1077, %v1074
    %v1255 = vpack.c.b16 %v1078, %v1075
    %v1256 = vpack.c.b16 %v1082, %v1079
    %v1257 = vpack.c.b16 %v1083, %v1080
    %v1258 = vpack.c.b16 %v1084, %v1081
    %v1259 = vpack.c.b16 %v1088, %v1085
    %v1260 = vpack.c.b16 %v1089, %v1086
    %v1261 = vpack.c.b16 %v1090, %v1087
    %v1262 = vpack.c.b16 %v1094, %v1091
    %v1263 = vpack.c.b16 %v1095, %v1092
    %v1264 = vpack.c.b16 %v1096, %v1093
    %v1265 = vpack.c.b16 %v1100, %v1097
    %v1266 = vpack.c.b16 %v1101, %v1098
    %v1267 = vpack.c.b16 %v1102, %v1099
    %v1268 = vpack.c.b16 %v1106, %v1103
    %v1269 = vpack.c.b16 %v1107, %v1104
    %v1270 = vpack.c.b16 %v1108, %v1105
    %v1271 = vpack.c.b16 %v1112, %v1109
    %v1272 = vpack.c.b16 %v1113, %v1110
    %v1273 = vpack.c.b16 %v1114, %v1111
    %v1274 = vpack.c.b16 %v1118, %v1115
    %v1275 = vpack.c.b16 %v1119, %v1116
    %v1276 = vpack.c.b16 %v1120, %v1117
    %v1277 = vpack.c.b16 %v1124, %v1121
    %v1278 = vpack.c.b16 %v1125, %v1122
    %v1279 = vpack.c.b16 %v1126, %v1123
    %v1280 = vpack.c.b16 %v1130, %v1127
    %v1281 = vpack.c.b16 %v1131, %v1128
    %v1282 = vpack.c.b16 %v1132, %v1129
    %v1283 = vpack.c.b16 %v1136, %v1133
    %v1284 = vpack.c.b16 %v1137, %v1134
    %v1285 = vpack.c.b16 %v1138, %v1135
    %v1286 = vpack.c.b16 %v1142, %v1139
    %v1287 = vpack.c.b16 %v1143, %v1140
    %v1288 = vpack.c.b16 %v1144, %v1141
    %v1289 = vpack.c.b16 %v1148, %v1145
    %v1290 = vpack.c.b16 %v1149, %v1146
    %v1291 = vpack.c.b16 %v1150, %v1147
    %v1292 = vpack.c.b16 %v1154, %v1151
    %v1293 = vpack.c.b16 %v1155, %v1152
    %v1294 = vpack.c.b16 %v1156, %v1153
    %v1295 = vpack.c.b16 %v1160, %v1157
    %v1296 = vpack.c.b16 %v1161, %v1158
    %v1297 = vpack.c.b16 %v1162, %v1159
    %vm1388 = vcmask 523264
    %v1390 = vsel %vm1388, %v1165, 0
    %v1393 = vsel %vm1388, %v1168, 0
    %v1396 = vsel %vm1388, %v1171, 0
    %v1399 = vsel %vm1388, %v1174, 0
    %v1402 = vsel %vm1388, %v1177, 0
    %v1405 = vsel %vm1388, %v1180, 0
    %v1408 = vsel %vm1388, %v1183, 0
    %v1411 = vsel %vm1388, %v1186, 0
    %v1414 = vsel %vm1388, %v1189, 0
    %v1417 = vsel %vm1388, %v1192, 0
    %v1420 = vsel %vm1388, %v1195, 0
    %v1423 = vsel %vm1388, %v1198, 0
    %v1426 = vsel %vm1388, %v1201, 0
    %v1429 = vsel %vm1388, %v1204, 0
    %v1432 = vsel %vm1388, %v1207, 0
    %v1435 = vsel %vm1388, %v1210, 0
    %v1438 = vsel %vm1388, %v1213, 0
    %v1441 = vsel %vm1388, %v1216, 0
    %v1444 = vsel %vm1388, %v1219, 0
    %v1447 = vsel %vm1388, %v1222, 0
    %v1450 = vsel %vm1388, %v1225, 0
    %v1453 = vsel %vm1388, %v1228, 0
    %v1456 = vsel %vm1388, %v1231, 0
    %v1459 = vsel %vm1388, %v1234, 0
    %v1462 = vsel %vm1388, %v1237, 0
    %v1465 = vsel %vm1388, %v1240, 0
    %v1468 = vsel %vm1388, %v1243, 0
    %v1471 = vsel %vm1388, %v1246, 0
    %v1474 = vsel %vm1388, %v1249, 0
    %v1477 = vsel %vm1388, %v1252, 0
    %v1480 = vsel %vm1388, %v1255, 0
    %v1483 = vsel %vm1388, %v1258, 0
    %v1486 = vsel %vm1388, %v1261, 0
    %v1489 = vsel %vm1388, %v1264, 0
    %v1492 = vsel %vm1388, %v1267, 0
    %v1495 = vsel %vm1388, %v1270, 0
    %v1498 = vsel %vm1388, %v1273, 0
    %v1501 = vsel %vm1388, %v1276, 0
    %v1504 = vsel %vm1388, %v1279, 0
    %v1507 = vsel %vm1388, %v1282, 0
    %v1510 = vsel %vm1388, %v1285, 0
    %v1513 = vsel %vm1388, %v1288, 0
    %v1516 = vsel %vm1388, %v1291, 0
    %v1519 = vsel %vm1388, %v1294, 0
    %v1522 = vsel %vm1388, %v1297, 0
    %1524 = vmatpush.bf16.msra.mxu0 %v520
    %1525 = vmatpush.bf16.msra.mxu0 %v519
    %1526 = vmatpush.bf16.msra.mxu0 %v518
    %1527 = vmatpush.bf16.msra.mxu0 %v517
    %1528 = vmatpush.bf16.msra.mxu0 %v516
    %1529 = vmatpush.bf16.msra.mxu0 %v515
    %1530 = vmatpush.bf16.msra.mxu0 %v514
    %1531 = vmatpush.bf16.msra.mxu0 %v513
    %1532 = vmatmul.bf16.gmra.mxu0 %v1163
    %v1533 = vpop.f32.mrf.mxu0
    %v1534 = vadd.f32 0.0, %v1533
    %v1535 = vpop.f32.mrf.mxu0
    %v1536 = vadd.f32 0.0, %v1535
    %1537 = vmatmul.bf16.gmra.mxu0 %v1166
    %v1538 = vpop.f32.mrf.mxu0
    %v1539 = vadd.f32 0.0, %v1538
    %v1540 = vpop.f32.mrf.mxu0
    %v1541 = vadd.f32 0.0, %v1540
    %1542 = vmatmul.bf16.gmra.mxu0 %v1169
    %v1543 = vpop.f32.mrf.mxu0
    %v1544 = vadd.f32 0.0, %v1543
    %v1545 = vpop.f32.mrf.mxu0
    %v1546 = vadd.f32 0.0, %v1545
    %1547 = vmatmul.bf16.gmra.mxu0 %v1172
    %v1548 = vpop.f32.mrf.mxu0
    %v1549 = vadd.f32 0.0, %v1548
    %v1550 = vpop.f32.mrf.mxu0
    %v1551 = vadd.f32 0.0, %v1550
    %1552 = vmatmul.bf16.gmra.mxu0 %v1175
    %v1553 = vpop.f32.mrf.mxu0
    %v1554 = vadd.f32 0.0, %v1553
    %v1555 = vpop.f32.mrf.mxu0
    %v1556 = vadd.f32 0.0, %v1555
    %1557 = vmatmul.bf16.gmra.mxu0 %v1178
    %v1558 = vpop.f32.mrf.mxu0
    %v1559 = vadd.f32 0.0, %v1558
    %v1560 = vpop.f32.mrf.mxu0
    %v1561 = vadd.f32 0.0, %v1560
    %1562 = vmatmul.bf16.gmra.mxu0 %v1181
    %v1563 = vpop.f32.mrf.mxu0
    %v1564 = vadd.f32 0.0, %v1563
    %v1565 = vpop.f32.mrf.mxu0
    %v1566 = vadd.f32 0.0, %v1565
    %1567 = vmatmul.bf16.gmra.mxu0 %v1184
    %v1568 = vpop.f32.mrf.mxu0
    %v1569 = vadd.f32 0.0, %v1568
    %v1570 = vpop.f32.mrf.mxu0
    %v1571 = vadd.f32 0.0, %v1570
    %1572 = vmatmul.bf16.gmra.mxu0 %v1187
    %v1573 = vpop.f32.mrf.mxu0
    %v1574 = vadd.f32 0.0, %v1573
    %v1575 = vpop.f32.mrf.mxu0
    %v1576 = vadd.f32 0.0, %v1575
    %1577 = vmatmul.bf16.gmra.mxu0 %v1190
    %v1578 = vpop.f32.mrf.mxu0
    %v1579 = vadd.f32 0.0, %v1578
    %v1580 = vpop.f32.mrf.mxu0
    %v1581 = vadd.f32 0.0, %v1580
    %1582 = vmatmul.bf16.gmra.mxu0 %v1193
    %v1583 = vpop.f32.mrf.mxu0
    %v1584 = vadd.f32 0.0, %v1583
    %v1585 = vpop.f32.mrf.mxu0
    %v1586 = vadd.f32 0.0, %v1585
    %1587 = vmatmul.bf16.gmra.mxu0 %v1196
    %v1588 = vpop.f32.mrf.mxu0
    %v1589 = vadd.f32 0.0, %v1588
    %v1590 = vpop.f32.mrf.mxu0
    %v1591 = vadd.f32 0.0, %v1590
    %1592 = vmatmul.bf16.gmra.mxu0 %v1199
    %v1593 = vpop.f32.mrf.mxu0
    %v1594 = vadd.f32 0.0, %v1593
    %v1595 = vpop.f32.mrf.mxu0
    %v1596 = vadd.f32 0.0, %v1595
    %1597 = vmatmul.bf16.gmra.mxu0 %v1202
    %v1598 = vpop.f32.mrf.mxu0
    %v1599 = vadd.f32 0.0, %v1598
    %v1600 = vpop.f32.mrf.mxu0
    %v1601 = vadd.f32 0.0, %v1600
    %1602 = vmatmul.bf16.gmra.mxu0 %v1205
    %v1603 = vpop.f32.mrf.mxu0
    %v1604 = vadd.f32 0.0, %v1603
    %v1605 = vpop.f32.mrf.mxu0
    %v1606 = vadd.f32 0.0, %v1605
    %1607 = vmatmul.bf16.gmra.mxu0 %v1208
    %v1608 = vpop.f32.mrf.mxu0
    %v1609 = vadd.f32 0.0, %v1608
    %v1610 = vpop.f32.mrf.mxu0
    %v1611 = vadd.f32 0.0, %v1610
    %1612 = vmatmul.bf16.gmra.mxu0 %v1211
    %v1613 = vpop.f32.mrf.mxu0
    %v1614 = vadd.f32 0.0, %v1613
    %v1615 = vpop.f32.mrf.mxu0
    %v1616 = vadd.f32 0.0, %v1615
    %1617 = vmatmul.bf16.gmra.mxu0 %v1214
    %v1618 = vpop.f32.mrf.mxu0
    %v1619 = vadd.f32 0.0, %v1618
    %v1620 = vpop.f32.mrf.mxu0
    %v1621 = vadd.f32 0.0, %v1620
    %1622 = vmatmul.bf16.gmra.mxu0 %v1217
    %v1623 = vpop.f32.mrf.mxu0
    %v1624 = vadd.f32 0.0, %v1623
    %v1625 = vpop.f32.mrf.mxu0
    %v1626 = vadd.f32 0.0, %v1625
    %1627 = vmatmul.bf16.gmra.mxu0 %v1220
    %v1628 = vpop.f32.mrf.mxu0
    %v1629 = vadd.f32 0.0, %v1628
    %v1630 = vpop.f32.mrf.mxu0
    %v1631 = vadd.f32 0.0, %v1630
    %1632 = vmatmul.bf16.gmra.mxu0 %v1223
    %v1633 = vpop.f32.mrf.mxu0
    %v1634 = vadd.f32 0.0, %v1633
    %v1635 = vpop.f32.mrf.mxu0
    %v1636 = vadd.f32 0.0, %v1635
    %1637 = vmatmul.bf16.gmra.mxu0 %v1226
    %v1638 = vpop.f32.mrf.mxu0
    %v1639 = vadd.f32 0.0, %v1638
    %v1640 = vpop.f32.mrf.mxu0
    %v1641 = vadd.f32 0.0, %v1640
    %1642 = vmatmul.bf16.gmra.mxu0 %v1229
    %v1643 = vpop.f32.mrf.mxu0
    %v1644 = vadd.f32 0.0, %v1643
    %v1645 = vpop.f32.mrf.mxu0
    %v1646 = vadd.f32 0.0, %v1645
    %1647 = vmatmul.bf16.gmra.mxu0 %v1232
    %v1648 = vpop.f32.mrf.mxu0
    %v1649 = vadd.f32 0.0, %v1648
    %v1650 = vpop.f32.mrf.mxu0
    %v1651 = vadd.f32 0.0, %v1650
    %1652 = vmatmul.bf16.gmra.mxu0 %v1235
    %v1653 = vpop.f32.mrf.mxu0
    %v1654 = vadd.f32 0.0, %v1653
    %v1655 = vpop.f32.mrf.mxu0
    %v1656 = vadd.f32 0.0, %v1655
    %1657 = vmatmul.bf16.gmra.mxu0 %v1238
    %v1658 = vpop.f32.mrf.mxu0
    %v1659 = vadd.f32 0.0, %v1658
    %v1660 = vpop.f32.mrf.mxu0
    %v1661 = vadd.f32 0.0, %v1660
    %1662 = vmatmul.bf16.gmra.mxu0 %v1241
    %v1663 = vpop.f32.mrf.mxu0
    %v1664 = vadd.f32 0.0, %v1663
    %v1665 = vpop.f32.mrf.mxu0
    %v1666 = vadd.f32 0.0, %v1665
    %1667 = vmatmul.bf16.gmra.mxu0 %v1244
    %v1668 = vpop.f32.mrf.mxu0
    %v1669 = vadd.f32 0.0, %v1668
    %v1670 = vpop.f32.mrf.mxu0
    %v1671 = vadd.f32 0.0, %v1670
    %1672 = vmatmul.bf16.gmra.mxu0 %v1247
    %v1673 = vpop.f32.mrf.mxu0
    %v1674 = vadd.f32 0.0, %v1673
    %v1675 = vpop.f32.mrf.mxu0
    %v1676 = vadd.f32 0.0, %v1675
    %1677 = vmatmul.bf16.gmra.mxu0 %v1250
    %v1678 = vpop.f32.mrf.mxu0
    %v1679 = vadd.f32 0.0, %v1678
    %v1680 = vpop.f32.mrf.mxu0
    %v1681 = vadd.f32 0.0, %v1680
    %1682 = vmatmul.bf16.gmra.mxu0 %v1253
    %v1683 = vpop.f32.mrf.mxu0
    %v1684 = vadd.f32 0.0, %v1683
    %v1685 = vpop.f32.mrf.mxu0
    %v1686 = vadd.f32 0.0, %v1685
    %1687 = vmatmul.bf16.gmra.mxu0 %v1256
    %v1688 = vpop.f32.mrf.mxu0
    %v1689 = vadd.f32 0.0, %v1688
    %v1690 = vpop.f32.mrf.mxu0
    %v1691 = vadd.f32 0.0, %v1690
    %1692 = vmatmul.bf16.gmra.mxu0 %v1259
    %v1693 = vpop.f32.mrf.mxu0
    %v1694 = vadd.f32 0.0, %v1693
    %v1695 = vpop.f32.mrf.mxu0
    %v1696 = vadd.f32 0.0, %v1695
    %1697 = vmatmul.bf16.gmra.mxu0 %v1262
    %v1698 = vpop.f32.mrf.mxu0
    %v1699 = vadd.f32 0.0, %v1698
    %v1700 = vpop.f32.mrf.mxu0
    %v1701 = vadd.f32 0.0, %v1700
    %1702 = vmatmul.bf16.gmra.mxu0 %v1265
    %v1703 = vpop.f32.mrf.mxu0
    %v1704 = vadd.f32 0.0, %v1703
    %v1705 = vpop.f32.mrf.mxu0
    %v1706 = vadd.f32 0.0, %v1705
    %1707 = vmatmul.bf16.gmra.mxu0 %v1268
    %v1708 = vpop.f32.mrf.mxu0
    %v1709 = vadd.f32 0.0, %v1708
    %v1710 = vpop.f32.mrf.mxu0
    %v1711 = vadd.f32 0.0, %v1710
    %1712 = vmatmul.bf16.gmra.mxu0 %v1271
    %v1713 = vpop.f32.mrf.mxu0
    %v1714 = vadd.f32 0.0, %v1713
    %v1715 = vpop.f32.mrf.mxu0
    %v1716 = vadd.f32 0.0, %v1715
    %1717 = vmatmul.bf16.gmra.mxu0 %v1274
    %v1718 = vpop.f32.mrf.mxu0
    %v1719 = vadd.f32 0.0, %v1718
    %v1720 = vpop.f32.mrf.mxu0
    %v1721 = vadd.f32 0.0, %v1720
    %1722 = vmatmul.bf16.gmra.mxu0 %v1277
    %v1723 = vpop.f32.mrf.mxu0
    %v1724 = vadd.f32 0.0, %v1723
    %v1725 = vpop.f32.mrf.mxu0
    %v1726 = vadd.f32 0.0, %v1725
    %1727 = vmatmul.bf16.gmra.mxu0 %v1280
    %v1728 = vpop.f32.mrf.mxu0
    %v1729 = vadd.f32 0.0, %v1728
    %v1730 = vpop.f32.mrf.mxu0
    %v1731 = vadd.f32 0.0, %v1730
    %1732 = vmatmul.bf16.gmra.mxu0 %v1283
    %v1733 = vpop.f32.mrf.mxu0
    %v1734 = vadd.f32 0.0, %v1733
    %v1735 = vpop.f32.mrf.mxu0
    %v1736 = vadd.f32 0.0, %v1735
    %1737 = vmatmul.bf16.gmra.mxu0 %v1286
    %v1738 = vpop.f32.mrf.mxu0
    %v1739 = vadd.f32 0.0, %v1738
    %v1740 = vpop.f32.mrf.mxu0
    %v1741 = vadd.f32 0.0, %v1740
    %1742 = vmatmul.bf16.gmra.mxu0 %v1289
    %v1743 = vpop.f32.mrf.mxu0
    %v1744 = vadd.f32 0.0, %v1743
    %v1745 = vpop.f32.mrf.mxu0
    %v1746 = vadd.f32 0.0, %v1745
    %1747 = vmatmul.bf16.gmra.mxu0 %v1292
    %v1748 = vpop.f32.mrf.mxu0
    %v1749 = vadd.f32 0.0, %v1748
    %v1750 = vpop.f32.mrf.mxu0
    %v1751 = vadd.f32 0.0, %v1750
    %1752 = vmatmul.bf16.gmra.mxu0 %v1295
    %v1753 = vpop.f32.mrf.mxu0
    %v1754 = vadd.f32 0.0, %v1753
    %v1755 = vpop.f32.mrf.mxu0
    %v1756 = vadd.f32 0.0, %v1755
    %1757 = vdwg.mxu0
    %1758 = vmatpush.bf16.msra.mxu0 %v528
    %1759 = vmatpush.bf16.msra.mxu0 %v527
    %1760 = vmatpush.bf16.msra.mxu0 %v526
    %1761 = vmatpush.bf16.msra.mxu0 %v525
    %1762 = vmatpush.bf16.msra.mxu0 %v524
    %1763 = vmatpush.bf16.msra.mxu0 %v523
    %1764 = vmatpush.bf16.msra.mxu0 %v522
    %1765 = vmatpush.bf16.msra.mxu0 %v521
    %1766 = vmatmul.bf16.gmra.mxu0 %v1164
    %v1767 = vpop.f32.mrf.mxu0
    %v1768 = vadd.f32 %v1534, %v1767
    %v1769 = vpop.f32.mrf.mxu0
    %v1770 = vadd.f32 %v1536, %v1769
    %1771 = vmatmul.bf16.gmra.mxu0 %v1167
    %v1772 = vpop.f32.mrf.mxu0
    %v1773 = vadd.f32 %v1539, %v1772
    %v1774 = vpop.f32.mrf.mxu0
    %v1775 = vadd.f32 %v1541, %v1774
    %1776 = vmatmul.bf16.gmra.mxu0 %v1170
    %v1777 = vpop.f32.mrf.mxu0
    %v1778 = vadd.f32 %v1544, %v1777
    %v1779 = vpop.f32.mrf.mxu0
    %v1780 = vadd.f32 %v1546, %v1779
    %1781 = vmatmul.bf16.gmra.mxu0 %v1173
    %v1782 = vpop.f32.mrf.mxu0
    %v1783 = vadd.f32 %v1549, %v1782
    %v1784 = vpop.f32.mrf.mxu0
    %v1785 = vadd.f32 %v1551, %v1784
    %1786 = vmatmul.bf16.gmra.mxu0 %v1176
    %v1787 = vpop.f32.mrf.mxu0
    %v1788 = vadd.f32 %v1554, %v1787
    %v1789 = vpop.f32.mrf.mxu0
    %v1790 = vadd.f32 %v1556, %v1789
    %1791 = vmatmul.bf16.gmra.mxu0 %v1179
    %v1792 = vpop.f32.mrf.mxu0
    %v1793 = vadd.f32 %v1559, %v1792
    %v1794 = vpop.f32.mrf.mxu0
    %v1795 = vadd.f32 %v1561, %v1794
    %1796 = vmatmul.bf16.gmra.mxu0 %v1182
    %v1797 = vpop.f32.mrf.mxu0
    %v1798 = vadd.f32 %v1564, %v1797
    %v1799 = vpop.f32.mrf.mxu0
    %v1800 = vadd.f32 %v1566, %v1799
    %1801 = vmatmul.bf16.gmra.mxu0 %v1185
    %v1802 = vpop.f32.mrf.mxu0
    %v1803 = vadd.f32 %v1569, %v1802
    %v1804 = vpop.f32.mrf.mxu0
    %v1805 = vadd.f32 %v1571, %v1804
    %1806 = vmatmul.bf16.gmra.mxu0 %v1188
    %v1807 = vpop.f32.mrf.mxu0
    %v1808 = vadd.f32 %v1574, %v1807
    %v1809 = vpop.f32.mrf.mxu0
    %v1810 = vadd.f32 %v1576, %v1809
    %1811 = vmatmul.bf16.gmra.mxu0 %v1191
    %v1812 = vpop.f32.mrf.mxu0
    %v1813 = vadd.f32 %v1579, %v1812
    %v1814 = vpop.f32.mrf.mxu0
    %v1815 = vadd.f32 %v1581, %v1814
    %1816 = vmatmul.bf16.gmra.mxu0 %v1194
    %v1817 = vpop.f32.mrf.mxu0
    %v1818 = vadd.f32 %v1584, %v1817
    %v1819 = vpop.f32.mrf.mxu0
    %v1820 = vadd.f32 %v1586, %v1819
    %1821 = vmatmul.bf16.gmra.mxu0 %v1197
    %v1822 = vpop.f32.mrf.mxu0
    %v1823 = vadd.f32 %v1589, %v1822
    %v1824 = vpop.f32.mrf.mxu0
    %v1825 = vadd.f32 %v1591, %v1824
    %1826 = vmatmul.bf16.gmra.mxu0 %v1200
    %v1827 = vpop.f32.mrf.mxu0
    %v1828 = vadd.f32 %v1594, %v1827
    %v1829 = vpop.f32.mrf.mxu0
    %v1830 = vadd.f32 %v1596, %v1829
    %1831 = vmatmul.bf16.gmra.mxu0 %v1203
    %v1832 = vpop.f32.mrf.mxu0
    %v1833 = vadd.f32 %v1599, %v1832
    %v1834 = vpop.f32.mrf.mxu0
    %v1835 = vadd.f32 %v1601, %v1834
    %1836 = vmatmul.bf16.gmra.mxu0 %v1206
    %v1837 = vpop.f32.mrf.mxu0
    %v1838 = vadd.f32 %v1604, %v1837
    %v1839 = vpop.f32.mrf.mxu0
    %v1840 = vadd.f32 %v1606, %v1839
    %1841 = vmatmul.bf16.gmra.mxu0 %v1209
    %v1842 = vpop.f32.mrf.mxu0
    %v1843 = vadd.f32 %v1609, %v1842
    %v1844 = vpop.f32.mrf.mxu0
    %v1845 = vadd.f32 %v1611, %v1844
    %1846 = vmatmul.bf16.gmra.mxu0 %v1212
    %v1847 = vpop.f32.mrf.mxu0
    %v1848 = vadd.f32 %v1614, %v1847
    %v1849 = vpop.f32.mrf.mxu0
    %v1850 = vadd.f32 %v1616, %v1849
    %1851 = vmatmul.bf16.gmra.mxu0 %v1215
    %v1852 = vpop.f32.mrf.mxu0
    %v1853 = vadd.f32 %v1619, %v1852
    %v1854 = vpop.f32.mrf.mxu0
    %v1855 = vadd.f32 %v1621, %v1854
    %1856 = vmatmul.bf16.gmra.mxu0 %v1218
    %v1857 = vpop.f32.mrf.mxu0
    %v1858 = vadd.f32 %v1624, %v1857
    %v1859 = vpop.f32.mrf.mxu0
    %v1860 = vadd.f32 %v1626, %v1859
    %1861 = vmatmul.bf16.gmra.mxu0 %v1221
    %v1862 = vpop.f32.mrf.mxu0
    %v1863 = vadd.f32 %v1629, %v1862
    %v1864 = vpop.f32.mrf.mxu0
    %v1865 = vadd.f32 %v1631, %v1864
    %1866 = vmatmul.bf16.gmra.mxu0 %v1224
    %v1867 = vpop.f32.mrf.mxu0
    %v1868 = vadd.f32 %v1634, %v1867
    %v1869 = vpop.f32.mrf.mxu0
    %v1870 = vadd.f32 %v1636, %v1869
    %1871 = vmatmul.bf16.gmra.mxu0 %v1227
    %v1872 = vpop.f32.mrf.mxu0
    %v1873 = vadd.f32 %v1639, %v1872
    %v1874 = vpop.f32.mrf.mxu0
    %v1875 = vadd.f32 %v1641, %v1874
    %1876 = vmatmul.bf16.gmra.mxu0 %v1230
    %v1877 = vpop.f32.mrf.mxu0
    %v1878 = vadd.f32 %v1644, %v1877
    %v1879 = vpop.f32.mrf.mxu0
    %v1880 = vadd.f32 %v1646, %v1879
    %1881 = vmatmul.bf16.gmra.mxu0 %v1233
    %v1882 = vpop.f32.mrf.mxu0
    %v1883 = vadd.f32 %v1649, %v1882
    %v1884 = vpop.f32.mrf.mxu0
    %v1885 = vadd.f32 %v1651, %v1884
    %1886 = vmatmul.bf16.gmra.mxu0 %v1236
    %v1887 = vpop.f32.mrf.mxu0
    %v1888 = vadd.f32 %v1654, %v1887
    %v1889 = vpop.f32.mrf.mxu0
    %v1890 = vadd.f32 %v1656, %v1889
    %1891 = vmatmul.bf16.gmra.mxu0 %v1239
    %v1892 = vpop.f32.mrf.mxu0
    %v1893 = vadd.f32 %v1659, %v1892
    %v1894 = vpop.f32.mrf.mxu0
    %v1895 = vadd.f32 %v1661, %v1894
    %1896 = vmatmul.bf16.gmra.mxu0 %v1242
    %v1897 = vpop.f32.mrf.mxu0
    %v1898 = vadd.f32 %v1664, %v1897
    %v1899 = vpop.f32.mrf.mxu0
    %v1900 = vadd.f32 %v1666, %v1899
    %1901 = vmatmul.bf16.gmra.mxu0 %v1245
    %v1902 = vpop.f32.mrf.mxu0
    %v1903 = vadd.f32 %v1669, %v1902
    %v1904 = vpop.f32.mrf.mxu0
    %v1905 = vadd.f32 %v1671, %v1904
    %1906 = vmatmul.bf16.gmra.mxu0 %v1248
    %v1907 = vpop.f32.mrf.mxu0
    %v1908 = vadd.f32 %v1674, %v1907
    %v1909 = vpop.f32.mrf.mxu0
    %v1910 = vadd.f32 %v1676, %v1909
    %1911 = vmatmul.bf16.gmra.mxu0 %v1251
    %v1912 = vpop.f32.mrf.mxu0
    %v1913 = vadd.f32 %v1679, %v1912
    %v1914 = vpop.f32.mrf.mxu0
    %v1915 = vadd.f32 %v1681, %v1914
    %1916 = vmatmul.bf16.gmra.mxu0 %v1254
    %v1917 = vpop.f32.mrf.mxu0
    %v1918 = vadd.f32 %v1684, %v1917
    %v1919 = vpop.f32.mrf.mxu0
    %v1920 = vadd.f32 %v1686, %v1919
    %1921 = vmatmul.bf16.gmra.mxu0 %v1257
    %v1922 = vpop.f32.mrf.mxu0
    %v1923 = vadd.f32 %v1689, %v1922
    %v1924 = vpop.f32.mrf.mxu0
    %v1925 = vadd.f32 %v1691, %v1924
    %1926 = vmatmul.bf16.gmra.mxu0 %v1260
    %v1927 = vpop.f32.mrf.mxu0
    %v1928 = vadd.f32 %v1694, %v1927
    %v1929 = vpop.f32.mrf.mxu0
    %v1930 = vadd.f32 %v1696, %v1929
    %1931 = vmatmul.bf16.gmra.mxu0 %v1263
    %v1932 = vpop.f32.mrf.mxu0
    %v1933 = vadd.f32 %v1699, %v1932
    %v1934 = vpop.f32.mrf.mxu0
    %v1935 = vadd.f32 %v1701, %v1934
    %1936 = vmatmul.bf16.gmra.mxu0 %v1266
    %v1937 = vpop.f32.mrf.mxu0
    %v1938 = vadd.f32 %v1704, %v1937
    %v1939 = vpop.f32.mrf.mxu0
    %v1940 = vadd.f32 %v1706, %v1939
    %1941 = vmatmul.bf16.gmra.mxu0 %v1269
    %v1942 = vpop.f32.mrf.mxu0
    %v1943 = vadd.f32 %v1709, %v1942
    %v1944 = vpop.f32.mrf.mxu0
    %v1945 = vadd.f32 %v1711, %v1944
    %1946 = vmatmul.bf16.gmra.mxu0 %v1272
    %v1947 = vpop.f32.mrf.mxu0
    %v1948 = vadd.f32 %v1714, %v1947
    %v1949 = vpop.f32.mrf.mxu0
    %v1950 = vadd.f32 %v1716, %v1949
    %1951 = vmatmul.bf16.gmra.mxu0 %v1275
    %v1952 = vpop.f32.mrf.mxu0
    %v1953 = vadd.f32 %v1719, %v1952
    %v1954 = vpop.f32.mrf.mxu0
    %v1955 = vadd.f32 %v1721, %v1954
    %1956 = vmatmul.bf16.gmra.mxu0 %v1278
    %v1957 = vpop.f32.mrf.mxu0
    %v1958 = vadd.f32 %v1724, %v1957
    %v1959 = vpop.f32.mrf.mxu0
    %v1960 = vadd.f32 %v1726, %v1959
    %1961 = vmatmul.bf16.gmra.mxu0 %v1281
    %v1962 = vpop.f32.mrf.mxu0
    %v1963 = vadd.f32 %v1729, %v1962
    %v1964 = vpop.f32.mrf.mxu0
    %v1965 = vadd.f32 %v1731, %v1964
    %1966 = vmatmul.bf16.gmra.mxu0 %v1284
    %v1967 = vpop.f32.mrf.mxu0
    %v1968 = vadd.f32 %v1734, %v1967
    %v1969 = vpop.f32.mrf.mxu0
    %v1970 = vadd.f32 %v1736, %v1969
    %1971 = vmatmul.bf16.gmra.mxu0 %v1287
    %v1972 = vpop.f32.mrf.mxu0
    %v1973 = vadd.f32 %v1739, %v1972
    %v1974 = vpop.f32.mrf.mxu0
    %v1975 = vadd.f32 %v1741, %v1974
    %1976 = vmatmul.bf16.gmra.mxu0 %v1290
    %v1977 = vpop.f32.mrf.mxu0
    %v1978 = vadd.f32 %v1744, %v1977
    %v1979 = vpop.f32.mrf.mxu0
    %v1980 = vadd.f32 %v1746, %v1979
    %1981 = vmatmul.bf16.gmra.mxu0 %v1293
    %v1982 = vpop.f32.mrf.mxu0
    %v1983 = vadd.f32 %v1749, %v1982
    %v1984 = vpop.f32.mrf.mxu0
    %v1985 = vadd.f32 %v1751, %v1984
    %1986 = vmatmul.bf16.gmra.mxu0 %v1296
    %v1987 = vpop.f32.mrf.mxu0
    %v1988 = vadd.f32 %v1754, %v1987
    %v1989 = vpop.f32.mrf.mxu0
    %v1990 = vadd.f32 %v1756, %v1989
    %1991 = vdwg.mxu0
    %1992 = vmatpush.bf16.msra.mxu0 0
    %1993 = vmatpush.bf16.msra.mxu0 0
    %1994 = vmatpush.bf16.msra.mxu0 0
    %1995 = vmatpush.bf16.msra.mxu0 0
    %1996 = vmatpush.bf16.msra.mxu0 %v532
    %1997 = vmatpush.bf16.msra.mxu0 %v531
    %1998 = vmatpush.bf16.msra.mxu0 %v530
    %1999 = vmatpush.bf16.msra.mxu0 %v529
    %2000 = vmatmul.bf16.gmra.mxu0 %v1390
    %v2001 = vpop.f32.mrf.mxu0
    %v2002 = vadd.f32 %v1768, %v2001
    %v2003 = vpop.f32.mrf.mxu0
    %v2004 = vadd.f32 %v1770, %v2003
    %2005 = vmatmul.bf16.gmra.mxu0 %v1393
    %v2006 = vpop.f32.mrf.mxu0
    %v2007 = vadd.f32 %v1773, %v2006
    %v2008 = vpop.f32.mrf.mxu0
    %v2009 = vadd.f32 %v1775, %v2008
    %2010 = vmatmul.bf16.gmra.mxu0 %v1396
    %v2011 = vpop.f32.mrf.mxu0
    %v2012 = vadd.f32 %v1778, %v2011
    %v2013 = vpop.f32.mrf.mxu0
    %v2014 = vadd.f32 %v1780, %v2013
    %2015 = vmatmul.bf16.gmra.mxu0 %v1399
    %v2016 = vpop.f32.mrf.mxu0
    %v2017 = vadd.f32 %v1783, %v2016
    %v2018 = vpop.f32.mrf.mxu0
    %v2019 = vadd.f32 %v1785, %v2018
    %2020 = vmatmul.bf16.gmra.mxu0 %v1402
    %v2021 = vpop.f32.mrf.mxu0
    %v2022 = vadd.f32 %v1788, %v2021
    %v2023 = vpop.f32.mrf.mxu0
    %v2024 = vadd.f32 %v1790, %v2023
    %2025 = vmatmul.bf16.gmra.mxu0 %v1405
    %v2026 = vpop.f32.mrf.mxu0
    %v2027 = vadd.f32 %v1793, %v2026
    %v2028 = vpop.f32.mrf.mxu0
    %v2029 = vadd.f32 %v1795, %v2028
    %2030 = vmatmul.bf16.gmra.mxu0 %v1408
    %v2031 = vpop.f32.mrf.mxu0
    %v2032 = vadd.f32 %v1798, %v2031
    %v2033 = vpop.f32.mrf.mxu0
    %v2034 = vadd.f32 %v1800, %v2033
    %2035 = vmatmul.bf16.gmra.mxu0 %v1411
    %v2036 = vpop.f32.mrf.mxu0
    %v2037 = vadd.f32 %v1803, %v2036
    %v2038 = vpop.f32.mrf.mxu0
    %v2039 = vadd.f32 %v1805, %v2038
    %2040 = vmatmul.bf16.gmra.mxu0 %v1414
    %v2041 = vpop.f32.mrf.mxu0
    %v2042 = vadd.f32 %v1808, %v2041
    %v2043 = vpop.f32.mrf.mxu0
    %v2044 = vadd.f32 %v1810, %v2043
    %2045 = vmatmul.bf16.gmra.mxu0 %v1417
    %v2046 = vpop.f32.mrf.mxu0
    %v2047 = vadd.f32 %v1813, %v2046
    %v2048 = vpop.f32.mrf.mxu0
    %v2049 = vadd.f32 %v1815, %v2048
    %2050 = vmatmul.bf16.gmra.mxu0 %v1420
    %v2051 = vpop.f32.mrf.mxu0
    %v2052 = vadd.f32 %v1818, %v2051
    %v2053 = vpop.f32.mrf.mxu0
    %v2054 = vadd.f32 %v1820, %v2053
    %2055 = vmatmul.bf16.gmra.mxu0 %v1423
    %v2056 = vpop.f32.mrf.mxu0
    %v2057 = vadd.f32 %v1823, %v2056
    %v2058 = vpop.f32.mrf.mxu0
    %v2059 = vadd.f32 %v1825, %v2058
    %2060 = vmatmul.bf16.gmra.mxu0 %v1426
    %v2061 = vpop.f32.mrf.mxu0
    %v2062 = vadd.f32 %v1828, %v2061
    %v2063 = vpop.f32.mrf.mxu0
    %v2064 = vadd.f32 %v1830, %v2063
    %2065 = vmatmul.bf16.gmra.mxu0 %v1429
    %v2066 = vpop.f32.mrf.mxu0
    %v2067 = vadd.f32 %v1833, %v2066
    %v2068 = vpop.f32.mrf.mxu0
    %v2069 = vadd.f32 %v1835, %v2068
    %2070 = vmatmul.bf16.gmra.mxu0 %v1432
    %v2071 = vpop.f32.mrf.mxu0
    %v2072 = vadd.f32 %v1838, %v2071
    %v2073 = vpop.f32.mrf.mxu0
    %v2074 = vadd.f32 %v1840, %v2073
    %2075 = vmatmul.bf16.gmra.mxu0 %v1435
    %v2076 = vpop.f32.mrf.mxu0
    %v2077 = vadd.f32 %v1843, %v2076
    %v2078 = vpop.f32.mrf.mxu0
    %v2079 = vadd.f32 %v1845, %v2078
    %2080 = vmatmul.bf16.gmra.mxu0 %v1438
    %v2081 = vpop.f32.mrf.mxu0
    %v2082 = vadd.f32 %v1848, %v2081
    %v2083 = vpop.f32.mrf.mxu0
    %v2084 = vadd.f32 %v1850, %v2083
    %2085 = vmatmul.bf16.gmra.mxu0 %v1441
    %v2086 = vpop.f32.mrf.mxu0
    %v2087 = vadd.f32 %v1853, %v2086
    %v2088 = vpop.f32.mrf.mxu0
    %v2089 = vadd.f32 %v1855, %v2088
    %2090 = vmatmul.bf16.gmra.mxu0 %v1444
    %v2091 = vpop.f32.mrf.mxu0
    %v2092 = vadd.f32 %v1858, %v2091
    %v2093 = vpop.f32.mrf.mxu0
    %v2094 = vadd.f32 %v1860, %v2093
    %2095 = vmatmul.bf16.gmra.mxu0 %v1447
    %v2096 = vpop.f32.mrf.mxu0
    %v2097 = vadd.f32 %v1863, %v2096
    %v2098 = vpop.f32.mrf.mxu0
    %v2099 = vadd.f32 %v1865, %v2098
    %2100 = vmatmul.bf16.gmra.mxu0 %v1450
    %v2101 = vpop.f32.mrf.mxu0
    %v2102 = vadd.f32 %v1868, %v2101
    %v2103 = vpop.f32.mrf.mxu0
    %v2104 = vadd.f32 %v1870, %v2103
    %2105 = vmatmul.bf16.gmra.mxu0 %v1453
    %v2106 = vpop.f32.mrf.mxu0
    %v2107 = vadd.f32 %v1873, %v2106
    %v2108 = vpop.f32.mrf.mxu0
    %v2109 = vadd.f32 %v1875, %v2108
    %2110 = vmatmul.bf16.gmra.mxu0 %v1456
    %v2111 = vpop.f32.mrf.mxu0
    %v2112 = vadd.f32 %v1878, %v2111
    %v2113 = vpop.f32.mrf.mxu0
    %v2114 = vadd.f32 %v1880, %v2113
    %2115 = vmatmul.bf16.gmra.mxu0 %v1459
    %v2116 = vpop.f32.mrf.mxu0
    %v2117 = vadd.f32 %v1883, %v2116
    %v2118 = vpop.f32.mrf.mxu0
    %v2119 = vadd.f32 %v1885, %v2118
    %2120 = vmatmul.bf16.gmra.mxu0 %v1462
    %v2121 = vpop.f32.mrf.mxu0
    %v2122 = vadd.f32 %v1888, %v2121
    %v2123 = vpop.f32.mrf.mxu0
    %v2124 = vadd.f32 %v1890, %v2123
    %2125 = vmatmul.bf16.gmra.mxu0 %v1465
    %v2126 = vpop.f32.mrf.mxu0
    %v2127 = vadd.f32 %v1893, %v2126
    %v2128 = vpop.f32.mrf.mxu0
    %v2129 = vadd.f32 %v1895, %v2128
    %2130 = vmatmul.bf16.gmra.mxu0 %v1468
    %v2131 = vpop.f32.mrf.mxu0
    %v2132 = vadd.f32 %v1898, %v2131
    %v2133 = vpop.f32.mrf.mxu0
    %v2134 = vadd.f32 %v1900, %v2133
    %2135 = vmatmul.bf16.gmra.mxu0 %v1471
    %v2136 = vpop.f32.mrf.mxu0
    %v2137 = vadd.f32 %v1903, %v2136
    %v2138 = vpop.f32.mrf.mxu0
    %v2139 = vadd.f32 %v1905, %v2138
    %2140 = vmatmul.bf16.gmra.mxu0 %v1474
    %v2141 = vpop.f32.mrf.mxu0
    %v2142 = vadd.f32 %v1908, %v2141
    %v2143 = vpop.f32.mrf.mxu0
    %v2144 = vadd.f32 %v1910, %v2143
    %2145 = vmatmul.bf16.gmra.mxu0 %v1477
    %v2146 = vpop.f32.mrf.mxu0
    %v2147 = vadd.f32 %v1913, %v2146
    %v2148 = vpop.f32.mrf.mxu0
    %v2149 = vadd.f32 %v1915, %v2148
    %2150 = vmatmul.bf16.gmra.mxu0 %v1480
    %v2151 = vpop.f32.mrf.mxu0
    %v2152 = vadd.f32 %v1918, %v2151
    %v2153 = vpop.f32.mrf.mxu0
    %v2154 = vadd.f32 %v1920, %v2153
    %2155 = vmatmul.bf16.gmra.mxu0 %v1483
    %v2156 = vpop.f32.mrf.mxu0
    %v2157 = vadd.f32 %v1923, %v2156
    %v2158 = vpop.f32.mrf.mxu0
    %v2159 = vadd.f32 %v1925, %v2158
    %2160 = vmatmul.bf16.gmra.mxu0 %v1486
    %v2161 = vpop.f32.mrf.mxu0
    %v2162 = vadd.f32 %v1928, %v2161
    %v2163 = vpop.f32.mrf.mxu0
    %v2164 = vadd.f32 %v1930, %v2163
    %2165 = vmatmul.bf16.gmra.mxu0 %v1489
    %v2166 = vpop.f32.mrf.mxu0
    %v2167 = vadd.f32 %v1933, %v2166
    %v2168 = vpop.f32.mrf.mxu0
    %v2169 = vadd.f32 %v1935, %v2168
    %2170 = vmatmul.bf16.gmra.mxu0 %v1492
    %v2171 = vpop.f32.mrf.mxu0
    %v2172 = vadd.f32 %v1938, %v2171
    %v2173 = vpop.f32.mrf.mxu0
    %v2174 = vadd.f32 %v1940, %v2173
    %2175 = vmatmul.bf16.gmra.mxu0 %v1495
    %v2176 = vpop.f32.mrf.mxu0
    %v2177 = vadd.f32 %v1943, %v2176
    %v2178 = vpop.f32.mrf.mxu0
    %v2179 = vadd.f32 %v1945, %v2178
    %2180 = vmatmul.bf16.gmra.mxu0 %v1498
    %v2181 = vpop.f32.mrf.mxu0
    %v2182 = vadd.f32 %v1948, %v2181
    %v2183 = vpop.f32.mrf.mxu0
    %v2184 = vadd.f32 %v1950, %v2183
    %2185 = vmatmul.bf16.gmra.mxu0 %v1501
    %v2186 = vpop.f32.mrf.mxu0
    %v2187 = vadd.f32 %v1953, %v2186
    %v2188 = vpop.f32.mrf.mxu0
    %v2189 = vadd.f32 %v1955, %v2188
    %2190 = vmatmul.bf16.gmra.mxu0 %v1504
    %v2191 = vpop.f32.mrf.mxu0
    %v2192 = vadd.f32 %v1958, %v2191
    %v2193 = vpop.f32.mrf.mxu0
    %v2194 = vadd.f32 %v1960, %v2193
    %2195 = vmatmul.bf16.gmra.mxu0 %v1507
    %v2196 = vpop.f32.mrf.mxu0
    %v2197 = vadd.f32 %v1963, %v2196
    %v2198 = vpop.f32.mrf.mxu0
    %v2199 = vadd.f32 %v1965, %v2198
    %2200 = vmatmul.bf16.gmra.mxu0 %v1510
    %v2201 = vpop.f32.mrf.mxu0
    %v2202 = vadd.f32 %v1968, %v2201
    %v2203 = vpop.f32.mrf.mxu0
    %v2204 = vadd.f32 %v1970, %v2203
    %2205 = vmatmul.bf16.gmra.mxu0 %v1513
    %v2206 = vpop.f32.mrf.mxu0
    %v2207 = vadd.f32 %v1973, %v2206
    %v2208 = vpop.f32.mrf.mxu0
    %v2209 = vadd.f32 %v1975, %v2208
    %2210 = vmatmul.bf16.gmra.mxu0 %v1516
    %v2211 = vpop.f32.mrf.mxu0
    %v2212 = vadd.f32 %v1978, %v2211
    %v2213 = vpop.f32.mrf.mxu0
    %v2214 = vadd.f32 %v1980, %v2213
    %2215 = vmatmul.bf16.gmra.mxu0 %v1519
    %v2216 = vpop.f32.mrf.mxu0
    %v2217 = vadd.f32 %v1983, %v2216
    %v2218 = vpop.f32.mrf.mxu0
    %v2219 = vadd.f32 %v1985, %v2218
    %2220 = vmatmul.bf16.gmra.mxu0 %v1522
    %v2221 = vpop.f32.mrf.mxu0
    %v2222 = vadd.f32 %v1988, %v2221
    %v2223 = vpop.f32.mrf.mxu0
    %v2224 = vadd.f32 %v1990, %v2223
    %2225 = vdwg.mxu0
    %v2226 = vpack.c.bf16 %v2002, %v2002
    %v2227 = vpack.c.bf16 %v2004, %v2004
    %v2228 = vpack.c.bf16 %v2007, %v2007
    %v2229 = vpack.c.bf16 %v2009, %v2009
    %v2230 = vpack.c.bf16 %v2012, %v2012
    %v2231 = vpack.c.bf16 %v2014, %v2014
    %v2232 = vpack.c.bf16 %v2017, %v2017
    %v2233 = vpack.c.bf16 %v2019, %v2019
    %v2234 = vpack.c.bf16 %v2022, %v2022
    %v2235 = vpack.c.bf16 %v2024, %v2024
    %v2236 = vpack.c.bf16 %v2027, %v2027
    %v2237 = vpack.c.bf16 %v2029, %v2029
    %v2238 = vpack.c.bf16 %v2032, %v2032
    %v2239 = vpack.c.bf16 %v2034, %v2034
    %v2240 = vpack.c.bf16 %v2037, %v2037
    %v2241 = vpack.c.bf16 %v2039, %v2039
    %v2242 = vpack.c.bf16 %v2042, %v2042
    %v2243 = vpack.c.bf16 %v2044, %v2044
    %v2244 = vpack.c.bf16 %v2047, %v2047
    %v2245 = vpack.c.bf16 %v2049, %v2049
    %v2246 = vpack.c.bf16 %v2052, %v2052
    %v2247 = vpack.c.bf16 %v2054, %v2054
    %v2248 = vpack.c.bf16 %v2057, %v2057
    %v2249 = vpack.c.bf16 %v2059, %v2059
    %v2250 = vpack.c.bf16 %v2062, %v2062
    %v2251 = vpack.c.bf16 %v2064, %v2064
    %v2252 = vpack.c.bf16 %v2067, %v2067
    %v2253 = vpack.c.bf16 %v2069, %v2069
    %v2254 = vpack.c.bf16 %v2072, %v2072
    %v2255 = vpack.c.bf16 %v2074, %v2074
    %v2256 = vpack.c.bf16 %v2077, %v2077
    %v2257 = vpack.c.bf16 %v2079, %v2079
    %v2258 = vpack.c.bf16 %v2082, %v2082
    %v2259 = vpack.c.bf16 %v2084, %v2084
    %v2260 = vpack.c.bf16 %v2087, %v2087
    %v2261 = vpack.c.bf16 %v2089, %v2089
    %v2262 = vpack.c.bf16 %v2092, %v2092
    %v2263 = vpack.c.bf16 %v2094, %v2094
    %v2264 = vpack.c.bf16 %v2097, %v2097
    %v2265 = vpack.c.bf16 %v2099, %v2099
    %v2266 = vpack.c.bf16 %v2102, %v2102
    %v2267 = vpack.c.bf16 %v2104, %v2104
    %v2268 = vpack.c.bf16 %v2107, %v2107
    %v2269 = vpack.c.bf16 %v2109, %v2109
    %v2270 = vpack.c.bf16 %v2112, %v2112
    %v2271 = vpack.c.bf16 %v2114, %v2114
    %v2272 = vpack.c.bf16 %v2117, %v2117
    %v2273 = vpack.c.bf16 %v2119, %v2119
    %v2274 = vpack.c.bf16 %v2122, %v2122
    %v2275 = vpack.c.bf16 %v2124, %v2124
    %v2276 = vpack.c.bf16 %v2127, %v2127
    %v2277 = vpack.c.bf16 %v2129, %v2129
    %v2278 = vpack.c.bf16 %v2132, %v2132
    %v2279 = vpack.c.bf16 %v2134, %v2134
    %v2280 = vpack.c.bf16 %v2137, %v2137
    %v2281 = vpack.c.bf16 %v2139, %v2139
    %v2282 = vpack.c.bf16 %v2142, %v2142
    %v2283 = vpack.c.bf16 %v2144, %v2144
    %v2284 = vpack.c.bf16 %v2147, %v2147
    %v2285 = vpack.c.bf16 %v2149, %v2149
    %v2286 = vpack.c.bf16 %v2152, %v2152
    %v2287 = vpack.c.bf16 %v2154, %v2154
    %v2288 = vpack.c.bf16 %v2157, %v2157
    %v2289 = vpack.c.bf16 %v2159, %v2159
    %v2290 = vpack.c.bf16 %v2162, %v2162
    %v2291 = vpack.c.bf16 %v2164, %v2164
    %v2292 = vpack.c.bf16 %v2167, %v2167
    %v2293 = vpack.c.bf16 %v2169, %v2169
    %v2294 = vpack.c.bf16 %v2172, %v2172
    %v2295 = vpack.c.bf16 %v2174, %v2174
    %v2296 = vpack.c.bf16 %v2177, %v2177
    %v2297 = vpack.c.bf16 %v2179, %v2179
    %v2298 = vpack.c.bf16 %v2182, %v2182
    %v2299 = vpack.c.bf16 %v2184, %v2184
    %v2300 = vpack.c.bf16 %v2187, %v2187
    %v2301 = vpack.c.bf16 %v2189, %v2189
    %v2302 = vpack.c.bf16 %v2192, %v2192
    %v2303 = vpack.c.bf16 %v2194, %v2194
    %v2304 = vpack.c.bf16 %v2197, %v2197
    %v2305 = vpack.c.bf16 %v2199, %v2199
    %v2306 = vpack.c.bf16 %v2202, %v2202
    %v2307 = vpack.c.bf16 %v2204, %v2204
    %v2308 = vpack.c.bf16 %v2207, %v2207
    %v2309 = vpack.c.bf16 %v2209, %v2209
    %v2310 = vpack.c.bf16 %v2212, %v2212
    %v2311 = vpack.c.bf16 %v2214, %v2214
    %v2312 = vpack.c.bf16 %v2217, %v2217
    %v2313 = vpack.c.bf16 %v2219, %v2219
    %v2314 = vpack.c.bf16 %v2222, %v2222
    %v2315 = vpack.c.bf16 %v2224, %v2224
    %v2326 = vunpack.c.l.b16 %v2226
    %v2327 = vunpack.c.l.b16 %v2227
    %v2328 = vunpack.c.l.b16 %v2228
    %v2329 = vunpack.c.l.b16 %v2229
    %v2330 = vunpack.c.l.b16 %v2230
    %v2331 = vunpack.c.l.b16 %v2231
    %v2332 = vunpack.c.l.b16 %v2232
    %v2333 = vunpack.c.l.b16 %v2233
    %v2334 = vunpack.c.l.b16 %v2234
    %v2335 = vunpack.c.l.b16 %v2235
    %v2336 = vpack.c.b16 %v2327, %v2326
    %v2337 = vpack.c.b16 %v2329, %v2328
    %v2338 = vpack.c.b16 %v2331, %v2330
    %v2339 = vpack.c.b16 %v2333, %v2332
    %v2340 = vpack.c.b16 %v2335, %v2334
    %v2356 = vunpack.c.l.b16 %v2236
    %v2357 = vunpack.c.l.b16 %v2237
    %v2358 = vunpack.c.l.b16 %v2238
    %v2359 = vunpack.c.l.b16 %v2239
    %v2360 = vunpack.c.l.b16 %v2240
    %v2361 = vunpack.c.l.b16 %v2241
    %v2362 = vunpack.c.l.b16 %v2242
    %v2363 = vunpack.c.l.b16 %v2243
    %v2364 = vunpack.c.l.b16 %v2244
    %v2365 = vunpack.c.l.b16 %v2245
    %v2366 = vpack.c.b16 %v2357, %v2356
    %v2367 = vpack.c.b16 %v2359, %v2358
    %v2368 = vpack.c.b16 %v2361, %v2360
    %v2369 = vpack.c.b16 %v2363, %v2362
    %v2370 = vpack.c.b16 %v2365, %v2364
    %v2386 = vunpack.c.l.b16 %v2246
    %v2387 = vunpack.c.l.b16 %v2247
    %v2388 = vunpack.c.l.b16 %v2248
    %v2389 = vunpack.c.l.b16 %v2249
    %v2390 = vunpack.c.l.b16 %v2250
    %v2391 = vunpack.c.l.b16 %v2251
    %v2392 = vunpack.c.l.b16 %v2252
    %v2393 = vunpack.c.l.b16 %v2253
    %v2394 = vunpack.c.l.b16 %v2254
    %v2395 = vunpack.c.l.b16 %v2255
    %v2396 = vpack.c.b16 %v2387, %v2386
    %v2397 = vpack.c.b16 %v2389, %v2388
    %v2398 = vpack.c.b16 %v2391, %v2390
    %v2399 = vpack.c.b16 %v2393, %v2392
    %v2400 = vpack.c.b16 %v2395, %v2394
    %v2416 = vunpack.c.l.b16 %v2256
    %v2417 = vunpack.c.l.b16 %v2257
    %v2418 = vunpack.c.l.b16 %v2258
    %v2419 = vunpack.c.l.b16 %v2259
    %v2420 = vunpack.c.l.b16 %v2260
    %v2421 = vunpack.c.l.b16 %v2261
    %v2422 = vunpack.c.l.b16 %v2262
    %v2423 = vunpack.c.l.b16 %v2263
    %v2424 = vunpack.c.l.b16 %v2264
    %v2425 = vunpack.c.l.b16 %v2265
    %v2426 = vpack.c.b16 %v2417, %v2416
    %v2427 = vpack.c.b16 %v2419, %v2418
    %v2428 = vpack.c.b16 %v2421, %v2420
    %v2429 = vpack.c.b16 %v2423, %v2422
    %v2430 = vpack.c.b16 %v2425, %v2424
    %v2446 = vunpack.c.l.b16 %v2266
    %v2447 = vunpack.c.l.b16 %v2267
    %v2448 = vunpack.c.l.b16 %v2268
    %v2449 = vunpack.c.l.b16 %v2269
    %v2450 = vunpack.c.l.b16 %v2270
    %v2451 = vunpack.c.l.b16 %v2271
    %v2452 = vunpack.c.l.b16 %v2272
    %v2453 = vunpack.c.l.b16 %v2273
    %v2454 = vunpack.c.l.b16 %v2274
    %v2455 = vunpack.c.l.b16 %v2275
    %v2456 = vpack.c.b16 %v2447, %v2446
    %v2457 = vpack.c.b16 %v2449, %v2448
    %v2458 = vpack.c.b16 %v2451, %v2450
    %v2459 = vpack.c.b16 %v2453, %v2452
    %v2460 = vpack.c.b16 %v2455, %v2454
    %v2476 = vunpack.c.l.b16 %v2276
    %v2477 = vunpack.c.l.b16 %v2277
    %v2478 = vunpack.c.l.b16 %v2278
    %v2479 = vunpack.c.l.b16 %v2279
    %v2480 = vunpack.c.l.b16 %v2280
    %v2481 = vunpack.c.l.b16 %v2281
    %v2482 = vunpack.c.l.b16 %v2282
    %v2483 = vunpack.c.l.b16 %v2283
    %v2484 = vunpack.c.l.b16 %v2284
    %v2485 = vunpack.c.l.b16 %v2285
    %v2486 = vpack.c.b16 %v2477, %v2476
    %v2487 = vpack.c.b16 %v2479, %v2478
    %v2488 = vpack.c.b16 %v2481, %v2480
    %v2489 = vpack.c.b16 %v2483, %v2482
    %v2490 = vpack.c.b16 %v2485, %v2484
    %v2506 = vunpack.c.l.b16 %v2286
    %v2507 = vunpack.c.l.b16 %v2287
    %v2508 = vunpack.c.l.b16 %v2288
    %v2509 = vunpack.c.l.b16 %v2289
    %v2510 = vunpack.c.l.b16 %v2290
    %v2511 = vunpack.c.l.b16 %v2291
    %v2512 = vunpack.c.l.b16 %v2292
    %v2513 = vunpack.c.l.b16 %v2293
    %v2514 = vunpack.c.l.b16 %v2294
    %v2515 = vunpack.c.l.b16 %v2295
    %v2516 = vpack.c.b16 %v2507, %v2506
    %v2517 = vpack.c.b16 %v2509, %v2508
    %v2518 = vpack.c.b16 %v2511, %v2510
    %v2519 = vpack.c.b16 %v2513, %v2512
    %v2520 = vpack.c.b16 %v2515, %v2514
    %v2536 = vunpack.c.l.b16 %v2296
    %v2537 = vunpack.c.l.b16 %v2297
    %v2538 = vunpack.c.l.b16 %v2298
    %v2539 = vunpack.c.l.b16 %v2299
    %v2540 = vunpack.c.l.b16 %v2300
    %v2541 = vunpack.c.l.b16 %v2301
    %v2542 = vunpack.c.l.b16 %v2302
    %v2543 = vunpack.c.l.b16 %v2303
    %v2544 = vunpack.c.l.b16 %v2304
    %v2545 = vunpack.c.l.b16 %v2305
    %v2546 = vpack.c.b16 %v2537, %v2536
    %v2547 = vpack.c.b16 %v2539, %v2538
    %v2548 = vpack.c.b16 %v2541, %v2540
    %v2549 = vpack.c.b16 %v2543, %v2542
    %v2550 = vpack.c.b16 %v2545, %v2544
    %v2566 = vunpack.c.l.b16 %v2306
    %v2567 = vunpack.c.l.b16 %v2307
    %v2568 = vunpack.c.l.b16 %v2308
    %v2569 = vunpack.c.l.b16 %v2309
    %v2570 = vunpack.c.l.b16 %v2310
    %v2571 = vunpack.c.l.b16 %v2311
    %v2572 = vunpack.c.l.b16 %v2312
    %v2573 = vunpack.c.l.b16 %v2313
    %v2574 = vunpack.c.l.b16 %v2314
    %v2575 = vunpack.c.l.b16 %v2315
    %v2576 = vpack.c.b16 %v2567, %v2566
    %v2577 = vpack.c.b16 %v2569, %v2568
    %v2578 = vpack.c.b16 %v2571, %v2570
    %v2579 = vpack.c.b16 %v2573, %v2572
    %v2580 = vpack.c.b16 %v2575, %v2574
    %v2586 = vld [vmem:[#allocation4] sm:$0xf]
    %v2587 = vld [vmem:[#allocation4 + $0x4] sm:$0xf]
    %v2588 = vld [vmem:[#allocation4 + $0x8] sm:$0xf]
    %v2589 = vld [vmem:[#allocation4 + $0xc] sm:$0xf]
    %v2590 = vld [vmem:[#allocation4 + $0x10] sm:$0xf]
    %v2591 = vld [vmem:[#allocation4 + $0x14] sm:$0xf]
    %v2592 = vld [vmem:[#allocation4 + $0x18] sm:$0xf]
    %v2593 = vld [vmem:[#allocation4 + $0x1c] sm:$0xf]
    %v2594 = vld [vmem:[#allocation4 + $0x20] sm:$0xf]
    %v2595 = vld [vmem:[#allocation4 + $0x24] sm:$0xf]
    %v2596 = vld [vmem:[#allocation4 + $0x28] sm:$0xf]
    %v2597 = vld [vmem:[#allocation4 + $0x2c] sm:$0xf]
    %v2598 = vld [vmem:[#allocation4 + $0x30] sm:$0xf]
    %v2599 = vld [vmem:[#allocation4 + $0x34] sm:$0xf]
    %v2600 = vld [vmem:[#allocation4 + $0x38] sm:$0xf]
    %v2601 = vld [vmem:[#allocation4 + $0x3c] sm:$0xf]
    %v2602 = vld [vmem:[#allocation4 + $0x40] sm:$0xf]
    %v2603 = vld [vmem:[#allocation4 + $0x44] sm:$0xf]
    %v2604 = vld [vmem:[#allocation4 + $0x48] sm:$0xf]
    %v2605 = vld [vmem:[#allocation4 + $0x4c] sm:$0xf]
    %v2606 = vld [vmem:[#allocation4 + $0x50] sm:$0xf]
    %v2607 = vld [vmem:[#allocation4 + $0x54] sm:$0xf]
    %v2608 = vld [vmem:[#allocation4 + $0x58] sm:$0xf]
    %v2609 = vld [vmem:[#allocation4 + $0x5c] sm:$0xf]
    %v2610 = vld [vmem:[#allocation4 + $0x60] sm:$0xf]
    %v2611 = vld [vmem:[#allocation4 + $0x64] sm:$0xf]
    %v2612 = vld [vmem:[#allocation4 + $0x68] sm:$0xf]
    %v2613 = vld [vmem:[#allocation4 + $0x6c] sm:$0xf]
    %v2614 = vld [vmem:[#allocation4 + $0x70] sm:$0xf]
    %v2615 = vld [vmem:[#allocation4 + $0x74] sm:$0xf]
    %v2616 = vld [vmem:[#allocation4 + $0x78] sm:$0xf]
    %v2617 = vld [vmem:[#allocation4 + $0x7c] sm:$0xf]
    %v2618 = vld [vmem:[#allocation4 + $0x80] sm:$0xf]
    %v2619 = vld [vmem:[#allocation4 + $0x84] sm:$0xf]
    %v2620 = vld [vmem:[#allocation4 + $0x88] sm:$0xf]
    %v2621 = vld [vmem:[#allocation4 + $0x8c] sm:$0xf]
    %v2622 = vld [vmem:[#allocation4 + $0x90] sm:$0xf]
    %v2623 = vld [vmem:[#allocation4 + $0x94] sm:$0xf]
    %v2624 = vld [vmem:[#allocation4 + $0x98] sm:$0xf]
    %v2625 = vld [vmem:[#allocation4 + $0x9c] sm:$0xf]
    %v2626 = vld [vmem:[#allocation4 + $0xa0] sm:$0xf]
    %v2627 = vld [vmem:[#allocation4 + $0xa4] sm:$0xf]
    %v2628 = vld [vmem:[#allocation4 + $0xa8] sm:$0xf]
    %v2629 = vld [vmem:[#allocation4 + $0xac] sm:$0xf]
    %v2630 = vld [vmem:[#allocation4 + $0xb0] sm:$0xf]
    %v2631 = vld [vmem:[#allocation4 + $0xb4] sm:$0xf]
    %v2632 = vld [vmem:[#allocation4 + $0xb8] sm:$0xf]
    %v2633 = vld [vmem:[#allocation4 + $0xbc] sm:$0xf]
    %v2634 = vld [vmem:[#allocation4 + $0xc0] sm:$0xf]
    %v2635 = vld [vmem:[#allocation4 + $0xc4] sm:$0xf]
    %v2636 = vld [vmem:[#allocation4 + $0xc8] sm:$0xf]
    %v2637 = vld [vmem:[#allocation4 + $0xcc] sm:$0xf]
    %v2638 = vld [vmem:[#allocation4 + $0xd0] sm:$0xf]
    %v2639 = vld [vmem:[#allocation4 + $0xd4] sm:$0xf]
    %v2640 = vld [vmem:[#allocation4 + $0xd8] sm:$0xf]
    %v2641 = vld [vmem:[#allocation4 + $0xdc] sm:$0xf]
    %v2642 = vld [vmem:[#allocation4 + $0xe0] sm:$0xf]
    %v2643 = vld [vmem:[#allocation4 + $0xe4] sm:$0xf]
    %v2644 = vld [vmem:[#allocation4 + $0xe8] sm:$0xf]
    %v2645 = vld [vmem:[#allocation4 + $0xec] sm:$0xf]
    %v2646 = vld [vmem:[#allocation4 + $0xf0] sm:$0xf]
    %v2647 = vld [vmem:[#allocation4 + $0xf4] sm:$0xf]
    %v2648 = vld [vmem:[#allocation4 + $0xf8] sm:$0xf]
    %v2649 = vld [vmem:[#allocation4 + $0xfc] sm:$0xf]
    %v2650 = vld [vmem:[#allocation4 + $0x100] sm:$0xf]
    %v2651 = vld [vmem:[#allocation4 + $0x104] sm:$0xf]
    %v2652 = vld [vmem:[#allocation4 + $0x108] sm:$0xf]
    %v2653 = vld [vmem:[#allocation4 + $0x10c] sm:$0xf]
    %v2654 = vld [vmem:[#allocation4 + $0x110] sm:$0xf]
    %v2655 = vld [vmem:[#allocation4 + $0x114] sm:$0xf]
    %v2656 = vld [vmem:[#allocation4 + $0x118] sm:$0xf]
    %v2657 = vld [vmem:[#allocation4 + $0x11c] sm:$0xf]
    %v2658 = vld [vmem:[#allocation4 + $0x120] sm:$0xf]
    %v2659 = vld [vmem:[#allocation4 + $0x124] sm:$0xf]
    %v2660 = vld [vmem:[#allocation4 + $0x128] sm:$0xf]
    %v2661 = vld [vmem:[#allocation4 + $0x12c] sm:$0xf]
    %v2662 = vld [vmem:[#allocation4 + $0x130] sm:$0xf]
    %v2663 = vld [vmem:[#allocation4 + $0x134] sm:$0xf]
    %v2664 = vld [vmem:[#allocation4 + $0x138] sm:$0xf]
    %v2665 = vld [vmem:[#allocation4 + $0x13c] sm:$0xf]
    %v2666 = vld [vmem:[#allocation4 + $0x140] sm:$0xf]
    %v2667 = vld [vmem:[#allocation4 + $0x144] sm:$0xf]
    %v2668 = vld [vmem:[#allocation4 + $0x148] sm:$0xf]
    %v2669 = vld [vmem:[#allocation4 + $0x14c] sm:$0xf]
    %v2670 = vld [vmem:[#allocation4 + $0x150] sm:$0xf]
    %v2671 = vld [vmem:[#allocation4 + $0x154] sm:$0xf]
    %v2672 = vld [vmem:[#allocation4 + $0x158] sm:$0xf]
    %v2673 = vld [vmem:[#allocation4 + $0x15c] sm:$0xf]
    %v2674 = vld [vmem:[#allocation4 + $0x160] sm:$0xf]
    %v2675 = vld [vmem:[#allocation4 + $0x164] sm:$0xf]
    %v2676 = vld [vmem:[#allocation4 + $0x168] sm:$0xf]
    %v2677 = vld [vmem:[#allocation4 + $0x16c] sm:$0xf]
    %v2678 = vld [vmem:[#allocation4 + $0x170] sm:$0xf]
    %v2679 = vld [vmem:[#allocation4 + $0x174] sm:$0xf]
    %v2680 = vld [vmem:[#allocation4 + $0x178] sm:$0xf]
    %v2681 = vld [vmem:[#allocation4 + $0x17c] sm:$0xf]
    %v2682 = vld [vmem:[#allocation4 + $0x180] sm:$0xf]
    %v2683 = vld [vmem:[#allocation4 + $0x184] sm:$0xf]
    %v2684 = vld [vmem:[#allocation4 + $0x188] sm:$0xf]
    %v2685 = vld [vmem:[#allocation4 + $0x18c] sm:$0xf]
    %v2686 = vld [vmem:[#allocation4 + $0x190] sm:$0xf]
    %v2687 = vld [vmem:[#allocation4 + $0x194] sm:$0xf]
    %v2688 = vld [vmem:[#allocation4 + $0x198] sm:$0xf]
    %v2689 = vld [vmem:[#allocation4 + $0x19c] sm:$0xf]
    %v2690 = vld [vmem:[#allocation4 + $0x1a0] sm:$0xf]
    %v2691 = vld [vmem:[#allocation4 + $0x1a4] sm:$0xf]
    %v2692 = vld [vmem:[#allocation4 + $0x1a8] sm:$0xf]
    %v2693 = vld [vmem:[#allocation4 + $0x1ac] sm:$0xf]
    %v2694 = vld [vmem:[#allocation4 + $0x1b0] sm:$0xf]
    %v2695 = vld [vmem:[#allocation4 + $0x1b4] sm:$0xf]
    %v2696 = vld [vmem:[#allocation4 + $0x1b8] sm:$0xf]
    %v2697 = vld [vmem:[#allocation4 + $0x1bc] sm:$0xf]
    %v2698 = vld [vmem:[#allocation4 + $0x1c0] sm:$0xf]
    %v2699 = vld [vmem:[#allocation4 + $0x1c4] sm:$0xf]
    %v2700 = vld [vmem:[#allocation4 + $0x1c8] sm:$0xf]
    %v2701 = vld [vmem:[#allocation4 + $0x1cc] sm:$0xf]
    %v2702 = vld [vmem:[#allocation4 + $0x1d0] sm:$0xf]
    %v2703 = vld [vmem:[#allocation4 + $0x1d4] sm:$0xf]
    %v2704 = vld [vmem:[#allocation4 + $0x1d8] sm:$0xf]
    %v2705 = vld [vmem:[#allocation4 + $0x1dc] sm:$0xf]
    %v2706 = vld [vmem:[#allocation4 + $0x1e0] sm:$0xf]
    %v2707 = vld [vmem:[#allocation4 + $0x1e4] sm:$0xf]
    %v2708 = vld [vmem:[#allocation4 + $0x1e8] sm:$0xf]
    %v2709 = vld [vmem:[#allocation4 + $0x1ec] sm:$0xf]
    %v2710 = vld [vmem:[#allocation4 + $0x1f0] sm:$0xf]
    %v2711 = vld [vmem:[#allocation4 + $0x1f4] sm:$0xf]
    %v2712 = vld [vmem:[#allocation4 + $0x1f8] sm:$0xf]
    %v2713 = vld [vmem:[#allocation4 + $0x1fc] sm:$0xf]
    %v2714 = vld [vmem:[#allocation4 + $0x200] sm:$0xf]
    %v2715 = vld [vmem:[#allocation4 + $0x204] sm:$0xf]
    %v2716 = vld [vmem:[#allocation4 + $0x208] sm:$0xf]
    %v2717 = vld [vmem:[#allocation4 + $0x20c] sm:$0xf]
    %v2718 = vld [vmem:[#allocation4 + $0x210] sm:$0xf]
    %v2719 = vld [vmem:[#allocation4 + $0x214] sm:$0xf]
    %v2720 = vld [vmem:[#allocation4 + $0x218] sm:$0xf]
    %v2721 = vld [vmem:[#allocation4 + $0x21c] sm:$0xf]
    %v2722 = vld [vmem:[#allocation4 + $0x220] sm:$0xf]
    %v2723 = vld [vmem:[#allocation4 + $0x224] sm:$0xf]
    %v2724 = vld [vmem:[#allocation4 + $0x228] sm:$0xf]
    %v2725 = vld [vmem:[#allocation4 + $0x22c] sm:$0xf]
    %v2726 = vld [vmem:[#allocation4 + $0x230] sm:$0xf]
    %v2727 = vld [vmem:[#allocation4 + $0x234] sm:$0xf]
    %v2728 = vld [vmem:[#allocation4 + $0x238] sm:$0xf]
    %v2729 = vld [vmem:[#allocation4 + $0x23c] sm:$0xf]
    %v2730 = vld [vmem:[%s5] sm:$0x1]
    %v2732 = vperm.slane %v2730, 0
    %v2878 = vunpack.c.l.b16 %v2586
    %v2879 = vunpack.c.l.b16 %v2587
    %v2880 = vunpack.c.l.b16 %v2588
    %v2881 = vunpack.c.l.b16 %v2589
    %v2882 = vunpack.c.l.b16 %v2590
    %v2883 = vunpack.c.l.b16 %v2591
    %v2884 = vunpack.c.l.b16 %v2592
    %v2885 = vunpack.c.l.b16 %v2593
    %v2886 = vunpack.c.l.b16 %v2594
    %v2887 = vunpack.c.l.b16 %v2595
    %v2888 = vunpack.c.l.b16 %v2596
    %v2889 = vunpack.c.l.b16 %v2597
    %v2890 = vunpack.c.l.b16 %v2598
    %v2891 = vunpack.c.l.b16 %v2599
    %v2892 = vunpack.c.l.b16 %v2600
    %v2893 = vunpack.c.l.b16 %v2601
    %v2894 = vunpack.c.l.b16 %v2602
    %v2895 = vunpack.c.l.b16 %v2603
    %v2896 = vunpack.c.l.b16 %v2604
    %v2897 = vunpack.c.l.b16 %v2605
    %v2898 = vunpack.c.l.b16 %v2606
    %v2899 = vunpack.c.l.b16 %v2607
    %v2900 = vunpack.c.l.b16 %v2608
    %v2901 = vunpack.c.l.b16 %v2609
    %v2902 = vunpack.c.l.b16 %v2610
    %v2903 = vunpack.c.l.b16 %v2611
    %v2904 = vunpack.c.l.b16 %v2612
    %v2905 = vunpack.c.l.b16 %v2613
    %v2906 = vunpack.c.l.b16 %v2614
    %v2907 = vunpack.c.l.b16 %v2615
    %v2908 = vunpack.c.l.b16 %v2616
    %v2909 = vunpack.c.l.b16 %v2617
    %v2910 = vunpack.c.l.b16 %v2618
    %v2911 = vunpack.c.l.b16 %v2619
    %v2912 = vunpack.c.l.b16 %v2620
    %v2913 = vunpack.c.l.b16 %v2621
    %v2914 = vunpack.c.l.b16 %v2622
    %v2915 = vunpack.c.l.b16 %v2623
    %v2916 = vunpack.c.l.b16 %v2624
    %v2917 = vunpack.c.l.b16 %v2625
    %v2918 = vunpack.c.l.b16 %v2626
    %v2919 = vunpack.c.l.b16 %v2627
    %v2920 = vunpack.c.l.b16 %v2628
    %v2921 = vunpack.c.l.b16 %v2629
    %v2922 = vunpack.c.l.b16 %v2630
    %v2923 = vunpack.c.l.b16 %v2631
    %v2924 = vunpack.c.l.b16 %v2632
    %v2925 = vunpack.c.l.b16 %v2633
    %v2926 = vunpack.c.l.b16 %v2634
    %v2927 = vunpack.c.l.b16 %v2635
    %v2928 = vunpack.c.l.b16 %v2636
    %v2929 = vunpack.c.l.b16 %v2637
    %v2930 = vunpack.c.l.b16 %v2638
    %v2931 = vunpack.c.l.b16 %v2639
    %v2932 = vunpack.c.l.b16 %v2640
    %v2933 = vunpack.c.l.b16 %v2641
    %v2934 = vunpack.c.l.b16 %v2642
    %v2935 = vunpack.c.l.b16 %v2643
    %v2936 = vunpack.c.l.b16 %v2644
    %v2937 = vunpack.c.l.b16 %v2645
    %v2938 = vunpack.c.l.b16 %v2646
    %v2939 = vunpack.c.l.b16 %v2647
    %v2940 = vunpack.c.l.b16 %v2648
    %v2941 = vunpack.c.l.b16 %v2649
    %v2942 = vunpack.c.l.b16 %v2650
    %v2943 = vunpack.c.l.b16 %v2651
    %v2944 = vunpack.c.l.b16 %v2652
    %v2945 = vunpack.c.l.b16 %v2653
    %v2946 = vunpack.c.l.b16 %v2654
    %v2947 = vunpack.c.l.b16 %v2655
    %v2948 = vunpack.c.l.b16 %v2656
    %v2949 = vunpack.c.l.b16 %v2657
    %v2950 = vunpack.c.l.b16 %v2658
    %v2951 = vunpack.c.l.b16 %v2659
    %v2952 = vunpack.c.l.b16 %v2660
    %v2953 = vunpack.c.l.b16 %v2661
    %v2954 = vunpack.c.l.b16 %v2662
    %v2955 = vunpack.c.l.b16 %v2663
    %v2956 = vunpack.c.l.b16 %v2664
    %v2957 = vunpack.c.l.b16 %v2665
    %v2958 = vunpack.c.l.b16 %v2666
    %v2959 = vunpack.c.l.b16 %v2667
    %v2960 = vunpack.c.l.b16 %v2668
    %v2961 = vunpack.c.l.b16 %v2669
    %v2962 = vunpack.c.l.b16 %v2670
    %v2963 = vunpack.c.l.b16 %v2671
    %v2964 = vunpack.c.l.b16 %v2672
    %v2965 = vunpack.c.l.b16 %v2673
    %v2966 = vunpack.c.l.b16 %v2674
    %v2967 = vunpack.c.l.b16 %v2675
    %v2968 = vunpack.c.l.b16 %v2676
    %v2969 = vunpack.c.l.b16 %v2677
    %v2970 = vunpack.c.l.b16 %v2678
    %v2971 = vunpack.c.l.b16 %v2679
    %v2972 = vunpack.c.l.b16 %v2680
    %v2973 = vunpack.c.l.b16 %v2681
    %v2974 = vunpack.c.l.b16 %v2682
    %v2975 = vunpack.c.l.b16 %v2683
    %v2976 = vunpack.c.l.b16 %v2684
    %v2977 = vunpack.c.l.b16 %v2685
    %v2978 = vunpack.c.l.b16 %v2686
    %v2979 = vunpack.c.l.b16 %v2687
    %v2980 = vunpack.c.l.b16 %v2688
    %v2981 = vunpack.c.l.b16 %v2689
    %v2982 = vunpack.c.l.b16 %v2690
    %v2983 = vunpack.c.l.b16 %v2691
    %v2984 = vunpack.c.l.b16 %v2692
    %v2985 = vunpack.c.l.b16 %v2693
    %v2986 = vunpack.c.l.b16 %v2694
    %v2987 = vunpack.c.l.b16 %v2695
    %v2988 = vunpack.c.l.b16 %v2696
    %v2989 = vunpack.c.l.b16 %v2697
    %v2990 = vunpack.c.l.b16 %v2698
    %v2991 = vunpack.c.l.b16 %v2699
    %v2992 = vunpack.c.l.b16 %v2700
    %v2993 = vunpack.c.l.b16 %v2701
    %v2994 = vunpack.c.l.b16 %v2702
    %v2995 = vunpack.c.l.b16 %v2703
    %v2996 = vunpack.c.l.b16 %v2704
    %v2997 = vunpack.c.l.b16 %v2705
    %v2998 = vunpack.c.l.b16 %v2706
    %v2999 = vunpack.c.l.b16 %v2707
    %v3000 = vunpack.c.l.b16 %v2708
    %v3001 = vunpack.c.l.b16 %v2709
    %v3002 = vunpack.c.l.b16 %v2710
    %v3003 = vunpack.c.l.b16 %v2711
    %v3004 = vunpack.c.l.b16 %v2712
    %v3005 = vunpack.c.l.b16 %v2713
    %v3006 = vunpack.c.l.b16 %v2714
    %v3007 = vunpack.c.l.b16 %v2715
    %v3008 = vunpack.c.l.b16 %v2716
    %v3009 = vunpack.c.l.b16 %v2717
    %v3010 = vunpack.c.l.b16 %v2718
    %v3011 = vunpack.c.l.b16 %v2719
    %v3012 = vunpack.c.l.b16 %v2720
    %v3013 = vunpack.c.l.b16 %v2721
    %v3014 = vunpack.c.l.b16 %v2722
    %v3015 = vunpack.c.l.b16 %v2723
    %v3016 = vunpack.c.l.b16 %v2724
    %v3017 = vunpack.c.l.b16 %v2725
    %v3018 = vunpack.c.l.b16 %v2726
    %v3019 = vunpack.c.l.b16 %v2727
    %v3020 = vunpack.c.l.b16 %v2728
    %v3021 = vunpack.c.l.b16 %v2729
    %v3022 = vpack.c.b16 %v2879, %v2878
    %v3023 = vpack.c.b16 %v2881, %v2880
    %v3024 = vpack.c.b16 %v2883, %v2882
    %v3025 = vpack.c.b16 %v2885, %v2884
    %v3026 = vpack.c.b16 %v2887, %v2886
    %v3027 = vpack.c.b16 %v2889, %v2888
    %v3028 = vpack.c.b16 %v2891, %v2890
    %v3029 = vpack.c.b16 %v2893, %v2892
    %v3030 = vpack.c.b16 %v2895, %v2894
    %v3031 = vpack.c.b16 %v2897, %v2896
    %v3032 = vpack.c.b16 %v2899, %v2898
    %v3033 = vpack.c.b16 %v2901, %v2900
    %v3034 = vpack.c.b16 %v2903, %v2902
    %v3035 = vpack.c.b16 %v2905, %v2904
    %v3036 = vpack.c.b16 %v2907, %v2906
    %v3037 = vpack.c.b16 %v2909, %v2908
    %v3038 = vpack.c.b16 %v2911, %v2910
    %v3039 = vpack.c.b16 %v2913, %v2912
    %v3040 = vpack.c.b16 %v2915, %v2914
    %v3041 = vpack.c.b16 %v2917, %v2916
    %v3042 = vpack.c.b16 %v2919, %v2918
    %v3043 = vpack.c.b16 %v2921, %v2920
    %v3044 = vpack.c.b16 %v2923, %v2922
    %v3045 = vpack.c.b16 %v2925, %v2924
    %v3046 = vpack.c.b16 %v2927, %v2926
    %v3047 = vpack.c.b16 %v2929, %v2928
    %v3048 = vpack.c.b16 %v2931, %v2930
    %v3049 = vpack.c.b16 %v2933, %v2932
    %v3050 = vpack.c.b16 %v2935, %v2934
    %v3051 = vpack.c.b16 %v2937, %v2936
    %v3052 = vpack.c.b16 %v2939, %v2938
    %v3053 = vpack.c.b16 %v2941, %v2940
    %v3054 = vpack.c.b16 %v2943, %v2942
    %v3055 = vpack.c.b16 %v2945, %v2944
    %v3056 = vpack.c.b16 %v2947, %v2946
    %v3057 = vpack.c.b16 %v2949, %v2948
    %v3058 = vpack.c.b16 %v2951, %v2950
    %v3059 = vpack.c.b16 %v2953, %v2952
    %v3060 = vpack.c.b16 %v2955, %v2954
    %v3061 = vpack.c.b16 %v2957, %v2956
    %v3062 = vpack.c.b16 %v2959, %v2958
    %v3063 = vpack.c.b16 %v2961, %v2960
    %v3064 = vpack.c.b16 %v2963, %v2962
    %v3065 = vpack.c.b16 %v2965, %v2964
    %v3066 = vpack.c.b16 %v2967, %v2966
    %v3067 = vpack.c.b16 %v2969, %v2968
    %v3068 = vpack.c.b16 %v2971, %v2970
    %v3069 = vpack.c.b16 %v2973, %v2972
    %v3070 = vpack.c.b16 %v2975, %v2974
    %v3071 = vpack.c.b16 %v2977, %v2976
    %v3072 = vpack.c.b16 %v2979, %v2978
    %v3073 = vpack.c.b16 %v2981, %v2980
    %v3074 = vpack.c.b16 %v2983, %v2982
    %v3075 = vpack.c.b16 %v2985, %v2984
    %v3076 = vpack.c.b16 %v2987, %v2986
    %v3077 = vpack.c.b16 %v2989, %v2988
    %v3078 = vpack.c.b16 %v2991, %v2990
    %v3079 = vpack.c.b16 %v2993, %v2992
    %v3080 = vpack.c.b16 %v2995, %v2994
    %v3081 = vpack.c.b16 %v2997, %v2996
    %v3082 = vpack.c.b16 %v2999, %v2998
    %v3083 = vpack.c.b16 %v3001, %v3000
    %v3084 = vpack.c.b16 %v3003, %v3002
    %v3085 = vpack.c.b16 %v3005, %v3004
    %v3086 = vpack.c.b16 %v3007, %v3006
    %v3087 = vpack.c.b16 %v3009, %v3008
    %v3088 = vpack.c.b16 %v3011, %v3010
    %v3089 = vpack.c.b16 %v3013, %v3012
    %v3090 = vpack.c.b16 %v3015, %v3014
    %v3091 = vpack.c.b16 %v3017, %v3016
    %v3092 = vpack.c.b16 %v3019, %v3018
    %v3093 = vpack.c.b16 %v3021, %v3020
    %3166 = vmatpush.bf16.msra.mxu0 %v3029
    %3167 = vmatpush.bf16.msra.mxu0 %v3028
    %3168 = vmatpush.bf16.msra.mxu0 %v3027
    %3169 = vmatpush.bf16.msra.mxu0 %v3026
    %3170 = vmatpush.bf16.msra.mxu0 %v3025
    %3171 = vmatpush.bf16.msra.mxu0 %v3024
    %3172 = vmatpush.bf16.msra.mxu0 %v3023
    %3173 = vmatpush.bf16.msra.mxu0 %v3022
    %3174 = vmatmul.bf16.gmra.mxu0 %v2336
    %v3175 = vpop.f32.mrf.mxu0
    %v3176 = vadd.f32 %v2732, %v3175
    %v3177 = vpop.f32.mrf.mxu0
    %v3178 = vadd.f32 %v2732, %v3177
    %3179 = vmatmul.bf16.gmra.mxu0 %v2337
    %v3180 = vpop.f32.mrf.mxu0
    %v3181 = vadd.f32 %v2732, %v3180
    %v3182 = vpop.f32.mrf.mxu0
    %v3183 = vadd.f32 %v2732, %v3182
    %3184 = vmatmul.bf16.gmra.mxu0 %v2338
    %v3185 = vpop.f32.mrf.mxu0
    %v3186 = vadd.f32 %v2732, %v3185
    %v3187 = vpop.f32.mrf.mxu0
    %v3188 = vadd.f32 %v2732, %v3187
    %3189 = vmatmul.bf16.gmra.mxu0 %v2339
    %v3190 = vpop.f32.mrf.mxu0
    %v3191 = vadd.f32 %v2732, %v3190
    %v3192 = vpop.f32.mrf.mxu0
    %v3193 = vadd.f32 %v2732, %v3192
    %3194 = vmatmul.bf16.gmra.mxu0 %v2340
    %v3195 = vpop.f32.mrf.mxu0
    %v3196 = vadd.f32 %v2732, %v3195
    %v3197 = vpop.f32.mrf.mxu0
    %v3198 = vadd.f32 %v2732, %v3197
    %3199 = vdwg.mxu0
    %3200 = vmatpush.bf16.msra.mxu0 %v3037
    %3201 = vmatpush.bf16.msra.mxu0 %v3036
    %3202 = vmatpush.bf16.msra.mxu0 %v3035
    %3203 = vmatpush.bf16.msra.mxu0 %v3034
    %3204 = vmatpush.bf16.msra.mxu0 %v3033
    %3205 = vmatpush.bf16.msra.mxu0 %v3032
    %3206 = vmatpush.bf16.msra.mxu0 %v3031
    %3207 = vmatpush.bf16.msra.mxu0 %v3030
    %3208 = vmatmul.bf16.gmra.mxu0 %v2366
    %v3209 = vpop.f32.mrf.mxu0
    %v3210 = vadd.f32 %v3176, %v3209
    %v3211 = vpop.f32.mrf.mxu0
    %v3212 = vadd.f32 %v3178, %v3211
    %3213 = vmatmul.bf16.gmra.mxu0 %v2367
    %v3214 = vpop.f32.mrf.mxu0
    %v3215 = vadd.f32 %v3181, %v3214
    %v3216 = vpop.f32.mrf.mxu0
    %v3217 = vadd.f32 %v3183, %v3216
    %3218 = vmatmul.bf16.gmra.mxu0 %v2368
    %v3219 = vpop.f32.mrf.mxu0
    %v3220 = vadd.f32 %v3186, %v3219
    %v3221 = vpop.f32.mrf.mxu0
    %v3222 = vadd.f32 %v3188, %v3221
    %3223 = vmatmul.bf16.gmra.mxu0 %v2369
    %v3224 = vpop.f32.mrf.mxu0
    %v3225 = vadd.f32 %v3191, %v3224
    %v3226 = vpop.f32.mrf.mxu0
    %v3227 = vadd.f32 %v3193, %v3226
    %3228 = vmatmul.bf16.gmra.mxu0 %v2370
    %v3229 = vpop.f32.mrf.mxu0
    %v3230 = vadd.f32 %v3196, %v3229
    %v3231 = vpop.f32.mrf.mxu0
    %v3232 = vadd.f32 %v3198, %v3231
    %3233 = vdwg.mxu0
    %3234 = vmatpush.bf16.msra.mxu0 %v3045
    %3235 = vmatpush.bf16.msra.mxu0 %v3044
    %3236 = vmatpush.bf16.msra.mxu0 %v3043
    %3237 = vmatpush.bf16.msra.mxu0 %v3042
    %3238 = vmatpush.bf16.msra.mxu0 %v3041
    %3239 = vmatpush.bf16.msra.mxu0 %v3040
    %3240 = vmatpush.bf16.msra.mxu0 %v3039
    %3241 = vmatpush.bf16.msra.mxu0 %v3038
    %3242 = vmatmul.bf16.gmra.mxu0 %v2396
    %v3243 = vpop.f32.mrf.mxu0
    %v3244 = vadd.f32 %v3210, %v3243
    %v3245 = vpop.f32.mrf.mxu0
    %v3246 = vadd.f32 %v3212, %v3245
    %3247 = vmatmul.bf16.gmra.mxu0 %v2397
    %v3248 = vpop.f32.mrf.mxu0
    %v3249 = vadd.f32 %v3215, %v3248
    %v3250 = vpop.f32.mrf.mxu0
    %v3251 = vadd.f32 %v3217, %v3250
    %3252 = vmatmul.bf16.gmra.mxu0 %v2398
    %v3253 = vpop.f32.mrf.mxu0
    %v3254 = vadd.f32 %v3220, %v3253
    %v3255 = vpop.f32.mrf.mxu0
    %v3256 = vadd.f32 %v3222, %v3255
    %3257 = vmatmul.bf16.gmra.mxu0 %v2399
    %v3258 = vpop.f32.mrf.mxu0
    %v3259 = vadd.f32 %v3225, %v3258
    %v3260 = vpop.f32.mrf.mxu0
    %v3261 = vadd.f32 %v3227, %v3260
    %3262 = vmatmul.bf16.gmra.mxu0 %v2400
    %v3263 = vpop.f32.mrf.mxu0
    %v3264 = vadd.f32 %v3230, %v3263
    %v3265 = vpop.f32.mrf.mxu0
    %v3266 = vadd.f32 %v3232, %v3265
    %3267 = vdwg.mxu0
    %3268 = vmatpush.bf16.msra.mxu0 %v3053
    %3269 = vmatpush.bf16.msra.mxu0 %v3052
    %3270 = vmatpush.bf16.msra.mxu0 %v3051
    %3271 = vmatpush.bf16.msra.mxu0 %v3050
    %3272 = vmatpush.bf16.msra.mxu0 %v3049
    %3273 = vmatpush.bf16.msra.mxu0 %v3048
    %3274 = vmatpush.bf16.msra.mxu0 %v3047
    %3275 = vmatpush.bf16.msra.mxu0 %v3046
    %3276 = vmatmul.bf16.gmra.mxu0 %v2426
    %v3277 = vpop.f32.mrf.mxu0
    %v3278 = vadd.f32 %v3244, %v3277
    %v3279 = vpop.f32.mrf.mxu0
    %v3280 = vadd.f32 %v3246, %v3279
    %3281 = vmatmul.bf16.gmra.mxu0 %v2427
    %v3282 = vpop.f32.mrf.mxu0
    %v3283 = vadd.f32 %v3249, %v3282
    %v3284 = vpop.f32.mrf.mxu0
    %v3285 = vadd.f32 %v3251, %v3284
    %3286 = vmatmul.bf16.gmra.mxu0 %v2428
    %v3287 = vpop.f32.mrf.mxu0
    %v3288 = vadd.f32 %v3254, %v3287
    %v3289 = vpop.f32.mrf.mxu0
    %v3290 = vadd.f32 %v3256, %v3289
    %3291 = vmatmul.bf16.gmra.mxu0 %v2429
    %v3292 = vpop.f32.mrf.mxu0
    %v3293 = vadd.f32 %v3259, %v3292
    %v3294 = vpop.f32.mrf.mxu0
    %v3295 = vadd.f32 %v3261, %v3294
    %3296 = vmatmul.bf16.gmra.mxu0 %v2430
    %v3297 = vpop.f32.mrf.mxu0
    %v3298 = vadd.f32 %v3264, %v3297
    %v3299 = vpop.f32.mrf.mxu0
    %v3300 = vadd.f32 %v3266, %v3299
    %3301 = vdwg.mxu0
    %3302 = vmatpush.bf16.msra.mxu0 %v3061
    %3303 = vmatpush.bf16.msra.mxu0 %v3060
    %3304 = vmatpush.bf16.msra.mxu0 %v3059
    %3305 = vmatpush.bf16.msra.mxu0 %v3058
    %3306 = vmatpush.bf16.msra.mxu0 %v3057
    %3307 = vmatpush.bf16.msra.mxu0 %v3056
    %3308 = vmatpush.bf16.msra.mxu0 %v3055
    %3309 = vmatpush.bf16.msra.mxu0 %v3054
    %3310 = vmatmul.bf16.gmra.mxu0 %v2456
    %v3311 = vpop.f32.mrf.mxu0
    %v3312 = vadd.f32 %v3278, %v3311
    %v3313 = vpop.f32.mrf.mxu0
    %v3314 = vadd.f32 %v3280, %v3313
    %3315 = vmatmul.bf16.gmra.mxu0 %v2457
    %v3316 = vpop.f32.mrf.mxu0
    %v3317 = vadd.f32 %v3283, %v3316
    %v3318 = vpop.f32.mrf.mxu0
    %v3319 = vadd.f32 %v3285, %v3318
    %3320 = vmatmul.bf16.gmra.mxu0 %v2458
    %v3321 = vpop.f32.mrf.mxu0
    %v3322 = vadd.f32 %v3288, %v3321
    %v3323 = vpop.f32.mrf.mxu0
    %v3324 = vadd.f32 %v3290, %v3323
    %3325 = vmatmul.bf16.gmra.mxu0 %v2459
    %v3326 = vpop.f32.mrf.mxu0
    %v3327 = vadd.f32 %v3293, %v3326
    %v3328 = vpop.f32.mrf.mxu0
    %v3329 = vadd.f32 %v3295, %v3328
    %3330 = vmatmul.bf16.gmra.mxu0 %v2460
    %v3331 = vpop.f32.mrf.mxu0
    %v3332 = vadd.f32 %v3298, %v3331
    %v3333 = vpop.f32.mrf.mxu0
    %v3334 = vadd.f32 %v3300, %v3333
    %3335 = vdwg.mxu0
    %3336 = vmatpush.bf16.msra.mxu0 %v3069
    %3337 = vmatpush.bf16.msra.mxu0 %v3068
    %3338 = vmatpush.bf16.msra.mxu0 %v3067
    %3339 = vmatpush.bf16.msra.mxu0 %v3066
    %3340 = vmatpush.bf16.msra.mxu0 %v3065
    %3341 = vmatpush.bf16.msra.mxu0 %v3064
    %3342 = vmatpush.bf16.msra.mxu0 %v3063
    %3343 = vmatpush.bf16.msra.mxu0 %v3062
    %3344 = vmatmul.bf16.gmra.mxu0 %v2486
    %v3345 = vpop.f32.mrf.mxu0
    %v3346 = vadd.f32 %v3312, %v3345
    %v3347 = vpop.f32.mrf.mxu0
    %v3348 = vadd.f32 %v3314, %v3347
    %3349 = vmatmul.bf16.gmra.mxu0 %v2487
    %v3350 = vpop.f32.mrf.mxu0
    %v3351 = vadd.f32 %v3317, %v3350
    %v3352 = vpop.f32.mrf.mxu0
    %v3353 = vadd.f32 %v3319, %v3352
    %3354 = vmatmul.bf16.gmra.mxu0 %v2488
    %v3355 = vpop.f32.mrf.mxu0
    %v3356 = vadd.f32 %v3322, %v3355
    %v3357 = vpop.f32.mrf.mxu0
    %v3358 = vadd.f32 %v3324, %v3357
    %3359 = vmatmul.bf16.gmra.mxu0 %v2489
    %v3360 = vpop.f32.mrf.mxu0
    %v3361 = vadd.f32 %v3327, %v3360
    %v3362 = vpop.f32.mrf.mxu0
    %v3363 = vadd.f32 %v3329, %v3362
    %3364 = vmatmul.bf16.gmra.mxu0 %v2490
    %v3365 = vpop.f32.mrf.mxu0
    %v3366 = vadd.f32 %v3332, %v3365
    %v3367 = vpop.f32.mrf.mxu0
    %v3368 = vadd.f32 %v3334, %v3367
    %3369 = vdwg.mxu0
    %3370 = vmatpush.bf16.msra.mxu0 %v3077
    %3371 = vmatpush.bf16.msra.mxu0 %v3076
    %3372 = vmatpush.bf16.msra.mxu0 %v3075
    %3373 = vmatpush.bf16.msra.mxu0 %v3074
    %3374 = vmatpush.bf16.msra.mxu0 %v3073
    %3375 = vmatpush.bf16.msra.mxu0 %v3072
    %3376 = vmatpush.bf16.msra.mxu0 %v3071
    %3377 = vmatpush.bf16.msra.mxu0 %v3070
    %3378 = vmatmul.bf16.gmra.mxu0 %v2516
    %v3379 = vpop.f32.mrf.mxu0
    %v3380 = vadd.f32 %v3346, %v3379
    %v3381 = vpop.f32.mrf.mxu0
    %v3382 = vadd.f32 %v3348, %v3381
    %3383 = vmatmul.bf16.gmra.mxu0 %v2517
    %v3384 = vpop.f32.mrf.mxu0
    %v3385 = vadd.f32 %v3351, %v3384
    %v3386 = vpop.f32.mrf.mxu0
    %v3387 = vadd.f32 %v3353, %v3386
    %3388 = vmatmul.bf16.gmra.mxu0 %v2518
    %v3389 = vpop.f32.mrf.mxu0
    %v3390 = vadd.f32 %v3356, %v3389
    %v3391 = vpop.f32.mrf.mxu0
    %v3392 = vadd.f32 %v3358, %v3391
    %3393 = vmatmul.bf16.gmra.mxu0 %v2519
    %v3394 = vpop.f32.mrf.mxu0
    %v3395 = vadd.f32 %v3361, %v3394
    %v3396 = vpop.f32.mrf.mxu0
    %v3397 = vadd.f32 %v3363, %v3396
    %3398 = vmatmul.bf16.gmra.mxu0 %v2520
    %v3399 = vpop.f32.mrf.mxu0
    %v3400 = vadd.f32 %v3366, %v3399
    %v3401 = vpop.f32.mrf.mxu0
    %v3402 = vadd.f32 %v3368, %v3401
    %3403 = vdwg.mxu0
    %3404 = vmatpush.bf16.msra.mxu0 %v3085
    %3405 = vmatpush.bf16.msra.mxu0 %v3084
    %3406 = vmatpush.bf16.msra.mxu0 %v3083
    %3407 = vmatpush.bf16.msra.mxu0 %v3082
    %3408 = vmatpush.bf16.msra.mxu0 %v3081
    %3409 = vmatpush.bf16.msra.mxu0 %v3080
    %3410 = vmatpush.bf16.msra.mxu0 %v3079
    %3411 = vmatpush.bf16.msra.mxu0 %v3078
    %3412 = vmatmul.bf16.gmra.mxu0 %v2546
    %v3413 = vpop.f32.mrf.mxu0
    %v3414 = vadd.f32 %v3380, %v3413
    %v3415 = vpop.f32.mrf.mxu0
    %v3416 = vadd.f32 %v3382, %v3415
    %3417 = vmatmul.bf16.gmra.mxu0 %v2547
    %v3418 = vpop.f32.mrf.mxu0
    %v3419 = vadd.f32 %v3385, %v3418
    %v3420 = vpop.f32.mrf.mxu0
    %v3421 = vadd.f32 %v3387, %v3420
    %3422 = vmatmul.bf16.gmra.mxu0 %v2548
    %v3423 = vpop.f32.mrf.mxu0
    %v3424 = vadd.f32 %v3390, %v3423
    %v3425 = vpop.f32.mrf.mxu0
    %v3426 = vadd.f32 %v3392, %v3425
    %3427 = vmatmul.bf16.gmra.mxu0 %v2549
    %v3428 = vpop.f32.mrf.mxu0
    %v3429 = vadd.f32 %v3395, %v3428
    %v3430 = vpop.f32.mrf.mxu0
    %v3431 = vadd.f32 %v3397, %v3430
    %3432 = vmatmul.bf16.gmra.mxu0 %v2550
    %v3433 = vpop.f32.mrf.mxu0
    %v3434 = vadd.f32 %v3400, %v3433
    %v3435 = vpop.f32.mrf.mxu0
    %v3436 = vadd.f32 %v3402, %v3435
    %3437 = vdwg.mxu0
    %3438 = vmatpush.bf16.msra.mxu0 %v3093
    %3439 = vmatpush.bf16.msra.mxu0 %v3092
    %3440 = vmatpush.bf16.msra.mxu0 %v3091
    %3441 = vmatpush.bf16.msra.mxu0 %v3090
    %3442 = vmatpush.bf16.msra.mxu0 %v3089
    %3443 = vmatpush.bf16.msra.mxu0 %v3088
    %3444 = vmatpush.bf16.msra.mxu0 %v3087
    %3445 = vmatpush.bf16.msra.mxu0 %v3086
    %3446 = vmatmul.bf16.gmra.mxu0 %v2576
    %v3447 = vpop.f32.mrf.mxu0
    %v3448 = vadd.f32 %v3414, %v3447
    %v3449 = vpop.f32.mrf.mxu0
    %v3450 = vadd.f32 %v3416, %v3449
    %3451 = vmatmul.bf16.gmra.mxu0 %v2577
    %v3452 = vpop.f32.mrf.mxu0
    %v3453 = vadd.f32 %v3419, %v3452
    %v3454 = vpop.f32.mrf.mxu0
    %v3455 = vadd.f32 %v3421, %v3454
    %3456 = vmatmul.bf16.gmra.mxu0 %v2578
    %v3457 = vpop.f32.mrf.mxu0
    %v3458 = vadd.f32 %v3424, %v3457
    %v3459 = vpop.f32.mrf.mxu0
    %v3460 = vadd.f32 %v3426, %v3459
    %3461 = vmatmul.bf16.gmra.mxu0 %v2579
    %v3462 = vpop.f32.mrf.mxu0
    %v3463 = vadd.f32 %v3429, %v3462
    %v3464 = vpop.f32.mrf.mxu0
    %v3465 = vadd.f32 %v3431, %v3464
    %3466 = vmatmul.bf16.gmra.mxu0 %v2580
    %v3467 = vpop.f32.mrf.mxu0
    %v3468 = vadd.f32 %v3434, %v3467
    %v3469 = vpop.f32.mrf.mxu0
    %v3470 = vadd.f32 %v3436, %v3469
    %3471 = vdwg.mxu0
    %vm3472 = vcmp.gt.f32.partialorder %v3448, 0.0
    %vm3473 = vcmp.gt.f32.partialorder %v3450, 0.0
    %vm3474 = vcmp.gt.f32.partialorder %v3453, 0.0
    %vm3475 = vcmp.gt.f32.partialorder %v3455, 0.0
    %vm3476 = vcmp.gt.f32.partialorder %v3458, 0.0
    %vm3477 = vcmp.gt.f32.partialorder %v3460, 0.0
    %vm3478 = vcmp.gt.f32.partialorder %v3463, 0.0
    %vm3479 = vcmp.gt.f32.partialorder %v3465, 0.0
    %vm3480 = vcmp.gt.f32.partialorder %v3468, 0.0
    %vm3481 = vcmp.gt.f32.partialorder %v3470, 0.0
    %v3482 = vmul.f32 %v3448, 0.01
    %v3483 = vmul.f32 %v3450, 0.01
    %v3484 = vmul.f32 %v3453, 0.01
    %v3485 = vmul.f32 %v3455, 0.01
    %v3486 = vmul.f32 %v3458, 0.01
    %v3487 = vmul.f32 %v3460, 0.01
    %v3488 = vmul.f32 %v3463, 0.01
    %v3489 = vmul.f32 %v3465, 0.01
    %v3490 = vmul.f32 %v3468, 0.01
    %v3491 = vmul.f32 %v3470, 0.01
    %v3492 = vsel %vm3472, %v3448, %v3482
    %v3493 = vsel %vm3473, %v3450, %v3483
    %v3494 = vsel %vm3474, %v3453, %v3484
    %v3495 = vsel %vm3475, %v3455, %v3485
    %v3496 = vsel %vm3476, %v3458, %v3486
    %v3497 = vsel %vm3477, %v3460, %v3487
    %v3498 = vsel %vm3478, %v3463, %v3488
    %v3499 = vsel %vm3479, %v3465, %v3489
    %v3500 = vsel %vm3480, %v3468, %v3490
    %v3501 = vsel %vm3481, %v3470, %v3491
    %v3502 = vpack.c.bf16 %v3492, %v3492
    %v3503 = vpack.c.bf16 %v3493, %v3493
    %v3504 = vpack.c.bf16 %v3494, %v3494
    %v3505 = vpack.c.bf16 %v3495, %v3495
    %v3506 = vpack.c.bf16 %v3496, %v3496
    %v3507 = vpack.c.bf16 %v3497, %v3497
    %v3508 = vpack.c.bf16 %v3498, %v3498
    %v3509 = vpack.c.bf16 %v3499, %v3499
    %v3510 = vpack.c.bf16 %v3500, %v3500
    %v3511 = vpack.c.bf16 %v3501, %v3501
    %3512 = vst [vmem:[%s6] sm:$0xf] %v3502
    %3513 = vst [vmem:[%s6 + $0x4] sm:$0xf] %v3503
    %3514 = vst [vmem:[%s6 + $0x8] sm:$0xf] %v3504
    %3515 = vst [vmem:[%s6 + $0xc] sm:$0xf] %v3505
    %3516 = vst [vmem:[%s6 + $0x10] sm:$0xf] %v3506
    %3517 = vst [vmem:[%s6 + $0x14] sm:$0xf] %v3507
    %3518 = vst [vmem:[%s6 + $0x18] sm:$0xf] %v3508
    %3519 = vst [vmem:[%s6 + $0x1c] sm:$0xf] %v3509
    %3520 = vst [vmem:[%s6 + $0x20] sm:$0xf] %v3510
    %3521 = vst [vmem:[%s6 + $0x24] sm:$0xf] %v3511
    // Predicated region
    $region34: #{generator_forward.2} parent=1 // pred_check
      _
    $region35: #{generator_forward.2} parent=1 // pred_check_branch
      %3523 = sbr.rel (0) target = $region37
    $region36: #{generator_forward.2} parent=1 // pred_region
      _
    $region37: #{generator_forward.2} parent=1 // pred_fallthru
      _
    // Predicated region
    $region38: #{generator_forward.2} parent=1 // pred_check
      _
    $region39: #{generator_forward.2} parent=1 // pred_check_branch
      %3525 = sbr.rel (0) target = $region41
    $region40: #{generator_forward.2} parent=1 // pred_region
      _
    $region41: #{generator_forward.2} parent=1 // pred_fallthru
      _
    %3526 = vsyncpa [#allocation3], 1
    %3527 = vsyncpa [#allocation5], 1

// kernel: generator_forward.3
$region0: #{generator_forward.3}
  #allocation0 [shape = 'u32[]', space=smem, size = 0x4, offset = 0x4, fixed_abs, tag = 'smem constant byte address 0x4 - core index']
  #allocation1 [shape = 'u32[72,128]{1,0:T(1,128)}', space=vmem, size = 0x9000, scoped, tag = 'internal scratch']
  %s0 = inlined_call_operand.vmem [shape: bf16[1,2048], index: 0, kind: input, shape index: {}]
  %s1 = inlined_call_operand.vmem [shape: bf16[2,4096], index: 1, kind: input, shape index: {}]
  %s2 = inlined_call_operand.vmem [shape: bf16[2048,256], index: 2, kind: input, shape index: {}]
  %s3 = inlined_call_operand.vmem [shape: f32[1,256], index: 3, kind: input, shape index: {}]
  %s4 = inlined_call_operand.vmem [shape: bf16[256,256], index: 4, kind: input, shape index: {}]
  %s5 = inlined_call_operand.vmem [shape: f32[1,256], index: 5, kind: input, shape index: {}]
  %s6 = inlined_call_operand.vmem [shape: bf16[4096,256], index: 6, kind: input, shape index: {}]
  %s7 = inlined_call_operand.vmem [shape: f32[1,256], index: 7, kind: input, shape index: {}]
  %s8 = inlined_call_operand.hbm [shape: bf16[256,256], index: 8, kind: input, shape index: {}]
  %s9 = inlined_call_operand.vmem [shape: f32[1,256], index: 9, kind: input, shape index: {}]
  %s10 = inlined_call_operand.hbm [shape: bf16[256,256], index: 10, kind: input, shape index: {}]
  %s11 = inlined_call_operand.vmem [shape: f32[1,256], index: 11, kind: input, shape index: {}]
  %s12 = inlined_call_operand.hbm [shape: bf16[256,768], index: 12, kind: input, shape index: {}]
  %s13 = inlined_call_operand.vmem [shape: f32[1,768], index: 13, kind: input, shape index: {}]
  %s14 = inlined_call_operand.vmem [shape: f32[2,256], index: 14, kind: output, shape index: {0}]
  %s15 = inlined_call_operand.vmem [shape: f32[2,256], index: 15, kind: output, shape index: {1}]
  %s16 = inlined_call_operand.vmem [shape: f32[2,256], index: 16, kind: output, shape index: {2}]
  %s17 = inlined_call_operand.vmem [shape: f32[2,768], index: 17, kind: output, shape index: {3}]
  %18 = xla_tuple %s14, %s15, %s16, %s17
  %s19 = sld [smem:[#allocation0]]
  $region102: #{generator_forward.3} parent=0
    _
  %s21 = ssub.s32 1, %s19
  %s22 = scalar_select 0, %s21, %s19
  $region1: #{generator_forward.3} parent=0
    #allocation2 [shape = 'u8[131072]{0}', space=vmem, size = 0x20000, scoped, tag = 'input window, operand 8, single buffered']
    #allocation3 [shape = 's32[1]{0}', space=sflag, size = 0x4, scoped, tag = 'scoped memory for generator_forward.3']
    #allocation4 [shape = 'u8[131072]{0}', space=vmem, size = 0x20000, scoped, tag = 'input window, operand 10, single buffered']
    #allocation5 [shape = 's32[1]{0}', space=sflag, size = 0x4, scoped, tag = 'scoped memory for generator_forward.3']
    #allocation6 [shape = 'u8[393216]{0}', space=vmem, size = 0x60000, scoped, tag = 'input window, operand 12, single buffered']
    %23 = vsyncpa [#allocation3], 0
    %24 = vsyncpa [#allocation5], 0
    // Predicated region
    $region2: #{generator_forward.3} parent=1 // pred_check
      _
    $region3: #{generator_forward.3} parent=1 // pred_check_branch
      %26 = sbr.rel (0) target = $region5
    $region4: #{generator_forward.3} parent=1 // pred_region
      _
    $region5: #{generator_forward.3} parent=1 // pred_fallthru
      _
    // Predicated region
    $region6: #{generator_forward.3} parent=1 // pred_check
      _
    $region7: #{generator_forward.3} parent=1 // pred_check_branch
      %28 = sbr.rel (0) target = $region9
    $region8: #{generator_forward.3} parent=1 // pred_region
      _
    $region9: #{generator_forward.3} parent=1 // pred_fallthru
      _
    // Predicated region
    $region10: #{generator_forward.3} parent=1 // pred_check
      _
    $region11: #{generator_forward.3} parent=1 // pred_check_branch
      %30 = sbr.rel (0) target = $region13
    $region12: #{generator_forward.3} parent=1 // pred_region
      _
    $region13: #{generator_forward.3} parent=1 // pred_fallthru
      _
    // Predicated region
    $region14: #{generator_forward.3} parent=1 // pred_check
      _
    $region15: #{generator_forward.3} parent=1 // pred_check_branch
      %32 = sbr.rel (0) target = $region17
    $region16: #{generator_forward.3} parent=1 // pred_region
      _
    $region17: #{generator_forward.3} parent=1 // pred_fallthru
      _
    // Predicated region
    $region18: #{generator_forward.3} parent=1 // pred_check
      _
    $region19: #{generator_forward.3} parent=1 // pred_check_branch
      %34 = sbr.rel (0) target = $region21
    $region20: #{generator_forward.3} parent=1 // pred_region
      _
    $region21: #{generator_forward.3} parent=1 // pred_fallthru
      _
    // Predicated region
    $region22: #{generator_forward.3} parent=1 // pred_check
      _
    $region23: #{generator_forward.3} parent=1 // pred_check_branch
      %36 = sbr.rel (0) target = $region25
    $region24: #{generator_forward.3} parent=1 // pred_region
      _
    $region25: #{generator_forward.3} parent=1 // pred_fallthru
      _
    // Predicated region
    $region26: #{generator_forward.3} parent=1 // pred_check
      _
    $region27: #{generator_forward.3} parent=1 // pred_check_branch
      %38 = sbr.rel (0) target = $region29
    $region28: #{generator_forward.3} parent=1 // pred_region
      _
    $region29: #{generator_forward.3} parent=1 // pred_fallthru
      _
    // Predicated region
    $region30: #{generator_forward.3} parent=1 // pred_check
      _
    $region31: #{generator_forward.3} parent=1 // pred_check_branch
      %40 = sbr.rel (0) target = $region33
    $region32: #{generator_forward.3} parent=1 // pred_region
      _
    $region33: #{generator_forward.3} parent=1 // pred_fallthru
      _
    // Predicated region
    $region34: #{generator_forward.3} parent=1 // pred_check
      _
    $region35: #{generator_forward.3} parent=1 // pred_check_branch
      %42 = sbr.rel (0) target = $region37
    $region36: #{generator_forward.3} parent=1 // pred_region
      %44 = vsyncadd [#allocation3], 0
      %s45 = sshll.u32 %s8, 4
      %s46 = int_to_ptr.hbm [resolvable:$true] %s45
      %s47 = sshll.u32 [#allocation2], 4
      %s48 = int_to_ptr.vmem [resolvable:$true] %s47
      %53 = dma.hbm_to_vmem [thread:$0]  %s46, 4096, %s48, [#allocation3], 128, 128, 8
    $region37: #{generator_forward.3} parent=1 // pred_fallthru
      _
    // Predicated region
    $region38: #{generator_forward.3} parent=1 // pred_check
      _
    $region39: #{generator_forward.3} parent=1 // pred_check_branch
      %55 = sbr.rel (0) target = $region41
    $region40: #{generator_forward.3} parent=1 // pred_region
      _
    $region41: #{generator_forward.3} parent=1 // pred_fallthru
      _
    // Predicated region
    $region42: #{generator_forward.3} parent=1 // pred_check
      _
    $region43: #{generator_forward.3} parent=1 // pred_check_branch
      %57 = sbr.rel (0) target = $region45
    $region44: #{generator_forward.3} parent=1 // pred_region
      %59 = vsyncadd [#allocation5], 0
      %s60 = sshll.u32 %s10, 4
      %s61 = int_to_ptr.hbm [resolvable:$true] %s60
      %s62 = sshll.u32 [#allocation4], 4
      %s63 = int_to_ptr.vmem [resolvable:$true] %s62
      %68 = dma.hbm_to_vmem [thread:$0]  %s61, 4096, %s63, [#allocation5], 128, 128, 8
    $region45: #{generator_forward.3} parent=1 // pred_fallthru
      _
    // Predicated region
    $region46: #{generator_forward.3} parent=1 // pred_check
      _
    $region47: #{generator_forward.3} parent=1 // pred_check_branch
      %70 = sbr.rel (0) target = $region49
    $region48: #{generator_forward.3} parent=1 // pred_region
      _
    $region49: #{generator_forward.3} parent=1 // pred_fallthru
      _
    // Predicated region
    $region50: #{generator_forward.3} parent=1 // pred_check
      _
    $region51: #{generator_forward.3} parent=1 // pred_check_branch
      %72 = sbr.rel (0) target = $region53
    $region52: #{generator_forward.3} parent=1 // pred_region
      %74 = vsyncadd [#allocation5], 0
      %s75 = sshll.u32 %s12, 4
      %s76 = int_to_ptr.hbm [resolvable:$true] %s75
      %s77 = sshll.u32 [#allocation6], 4
      %s78 = int_to_ptr.vmem [resolvable:$true] %s77
      %83 = dma.hbm_to_vmem [thread:$0]  %s76, 12288, %s78, [#allocation5], 384, 384, 24
    $region53: #{generator_forward.3} parent=1 // pred_fallthru
      _
    // Predicated region
    $region54: #{generator_forward.3} parent=1 // pred_check
      _
    $region55: #{generator_forward.3} parent=1 // pred_check_branch
      %85 = sbr.rel (0) target = $region57
    $region56: #{generator_forward.3} parent=1 // pred_region
      _
    $region57: #{generator_forward.3} parent=1 // pred_fallthru
      _
    // Predicated region
    $region58: #{generator_forward.3} parent=1 // pred_check
      _
    $region59: #{generator_forward.3} parent=1 // pred_check_branch
      %87 = sbr.rel (0) target = $region61
    $region60: #{generator_forward.3} parent=1 // pred_region
      %89 = dma.done [#allocation3], 4096
    $region61: #{generator_forward.3} parent=1 // pred_fallthru
      _
    // Predicated region
    $region62: #{generator_forward.3} parent=1 // pred_check
      _
    $region63: #{generator_forward.3} parent=1 // pred_check_branch
      %91 = sbr.rel (0) target = $region65
    $region64: #{generator_forward.3} parent=1 // pred_region
      %93 = dma.done [#allocation5], 4096
    $region65: #{generator_forward.3} parent=1 // pred_fallthru
      _
    // Predicated region
    $region66: #{generator_forward.3} parent=1 // pred_check
      _
    $region67: #{generator_forward.3} parent=1 // pred_check_branch
      %95 = sbr.rel (0) target = $region69
    $region68: #{generator_forward.3} parent=1 // pred_region
      %97 = dma.done [#allocation5], 12288
    $region69: #{generator_forward.3} parent=1 // pred_fallthru
      _
    %v98 = vld [vmem:[%s0] sm:$0xff]
    %v99 = vld [vmem:[%s0 + $0x8] sm:$0xff]
    %v100 = vld [vmem:[%s2] sm:$0xff]
    %v101 = vld [vmem:[%s2 + $0x8] sm:$0xff]
    %v102 = vld [vmem:[%s2 + $0x10] sm:$0xff]
    %v103 = vld [vmem:[%s2 + $0x18] sm:$0xff]
    %v104 = vld [vmem:[%s2 + $0x20] sm:$0xff]
    %v105 = vld [vmem:[%s2 + $0x28] sm:$0xff]
    %v106 = vld [vmem:[%s2 + $0x30] sm:$0xff]
    %v107 = vld [vmem:[%s2 + $0x38] sm:$0xff]
    %v108 = vld [vmem:[%s2 + $0x40] sm:$0xff]
    %v109 = vld [vmem:[%s2 + $0x48] sm:$0xff]
    %v110 = vld [vmem:[%s2 + $0x50] sm:$0xff]
    %v111 = vld [vmem:[%s2 + $0x58] sm:$0xff]
    %v112 = vld [vmem:[%s2 + $0x60] sm:$0xff]
    %v113 = vld [vmem:[%s2 + $0x68] sm:$0xff]
    %v114 = vld [vmem:[%s2 + $0x70] sm:$0xff]
    %v115 = vld [vmem:[%s2 + $0x78] sm:$0xff]
    %v116 = vld [vmem:[%s2 + $0x80] sm:$0xff]
    %v117 = vld [vmem:[%s2 + $0x88] sm:$0xff]
    %v118 = vld [vmem:[%s2 + $0x90] sm:$0xff]
    %v119 = vld [vmem:[%s2 + $0x98] sm:$0xff]
    %v120 = vld [vmem:[%s2 + $0xa0] sm:$0xff]
    %v121 = vld [vmem:[%s2 + $0xa8] sm:$0xff]
    %v122 = vld [vmem:[%s2 + $0xb0] sm:$0xff]
    %v123 = vld [vmem:[%s2 + $0xb8] sm:$0xff]
    %v124 = vld [vmem:[%s2 + $0xc0] sm:$0xff]
    %v125 = vld [vmem:[%s2 + $0xc8] sm:$0xff]
    %v126 = vld [vmem:[%s2 + $0xd0] sm:$0xff]
    %v127 = vld [vmem:[%s2 + $0xd8] sm:$0xff]
    %v128 = vld [vmem:[%s2 + $0xe0] sm:$0xff]
    %v129 = vld [vmem:[%s2 + $0xe8] sm:$0xff]
    %v130 = vld [vmem:[%s2 + $0xf0] sm:$0xff]
    %v131 = vld [vmem:[%s2 + $0xf8] sm:$0xff]
    %v132 = vld [vmem:[%s2 + $0x100] sm:$0xff]
    %v133 = vld [vmem:[%s2 + $0x108] sm:$0xff]
    %v134 = vld [vmem:[%s2 + $0x110] sm:$0xff]
    %v135 = vld [vmem:[%s2 + $0x118] sm:$0xff]
    %v136 = vld [vmem:[%s2 + $0x120] sm:$0xff]
    %v137 = vld [vmem:[%s2 + $0x128] sm:$0xff]
    %v138 = vld [vmem:[%s2 + $0x130] sm:$0xff]
    %v139 = vld [vmem:[%s2 + $0x138] sm:$0xff]
    %v140 = vld [vmem:[%s2 + $0x140] sm:$0xff]
    %v141 = vld [vmem:[%s2 + $0x148] sm:$0xff]
    %v142 = vld [vmem:[%s2 + $0x150] sm:$0xff]
    %v143 = vld [vmem:[%s2 + $0x158] sm:$0xff]
    %v144 = vld [vmem:[%s2 + $0x160] sm:$0xff]
    %v145 = vld [vmem:[%s2 + $0x168] sm:$0xff]
    %v146 = vld [vmem:[%s2 + $0x170] sm:$0xff]
    %v147 = vld [vmem:[%s2 + $0x178] sm:$0xff]
    %v148 = vld [vmem:[%s2 + $0x180] sm:$0xff]
    %v149 = vld [vmem:[%s2 + $0x188] sm:$0xff]
    %v150 = vld [vmem:[%s2 + $0x190] sm:$0xff]
    %v151 = vld [vmem:[%s2 + $0x198] sm:$0xff]
    %v152 = vld [vmem:[%s2 + $0x1a0] sm:$0xff]
    %v153 = vld [vmem:[%s2 + $0x1a8] sm:$0xff]
    %v154 = vld [vmem:[%s2 + $0x1b0] sm:$0xff]
    %v155 = vld [vmem:[%s2 + $0x1b8] sm:$0xff]
    %v156 = vld [vmem:[%s2 + $0x1c0] sm:$0xff]
    %v157 = vld [vmem:[%s2 + $0x1c8] sm:$0xff]
    %v158 = vld [vmem:[%s2 + $0x1d0] sm:$0xff]
    %v159 = vld [vmem:[%s2 + $0x1d8] sm:$0xff]
    %v160 = vld [vmem:[%s2 + $0x1e0] sm:$0xff]
    %v161 = vld [vmem:[%s2 + $0x1e8] sm:$0xff]
    %v162 = vld [vmem:[%s2 + $0x1f0] sm:$0xff]
    %v163 = vld [vmem:[%s2 + $0x1f8] sm:$0xff]
    %v164 = vld [vmem:[%s2 + $0x200] sm:$0xff]
    %v165 = vld [vmem:[%s2 + $0x208] sm:$0xff]
    %v166 = vld [vmem:[%s2 + $0x210] sm:$0xff]
    %v167 = vld [vmem:[%s2 + $0x218] sm:$0xff]
    %v168 = vld [vmem:[%s2 + $0x220] sm:$0xff]
    %v169 = vld [vmem:[%s2 + $0x228] sm:$0xff]
    %v170 = vld [vmem:[%s2 + $0x230] sm:$0xff]
    %v171 = vld [vmem:[%s2 + $0x238] sm:$0xff]
    %v172 = vld [vmem:[%s2 + $0x240] sm:$0xff]
    %v173 = vld [vmem:[%s2 + $0x248] sm:$0xff]
    %v174 = vld [vmem:[%s2 + $0x250] sm:$0xff]
    %v175 = vld [vmem:[%s2 + $0x258] sm:$0xff]
    %v176 = vld [vmem:[%s2 + $0x260] sm:$0xff]
    %v177 = vld [vmem:[%s2 + $0x268] sm:$0xff]
    %v178 = vld [vmem:[%s2 + $0x270] sm:$0xff]
    %v179 = vld [vmem:[%s2 + $0x278] sm:$0xff]
    %v180 = vld [vmem:[%s2 + $0x280] sm:$0xff]
    %v181 = vld [vmem:[%s2 + $0x288] sm:$0xff]
    %v182 = vld [vmem:[%s2 + $0x290] sm:$0xff]
    %v183 = vld [vmem:[%s2 + $0x298] sm:$0xff]
    %v184 = vld [vmem:[%s2 + $0x2a0] sm:$0xff]
    %v185 = vld [vmem:[%s2 + $0x2a8] sm:$0xff]
    %v186 = vld [vmem:[%s2 + $0x2b0] sm:$0xff]
    %v187 = vld [vmem:[%s2 + $0x2b8] sm:$0xff]
    %v188 = vld [vmem:[%s2 + $0x2c0] sm:$0xff]
    %v189 = vld [vmem:[%s2 + $0x2c8] sm:$0xff]
    %v190 = vld [vmem:[%s2 + $0x2d0] sm:$0xff]
    %v191 = vld [vmem:[%s2 + $0x2d8] sm:$0xff]
    %v192 = vld [vmem:[%s2 + $0x2e0] sm:$0xff]
    %v193 = vld [vmem:[%s2 + $0x2e8] sm:$0xff]
    %v194 = vld [vmem:[%s2 + $0x2f0] sm:$0xff]
    %v195 = vld [vmem:[%s2 + $0x2f8] sm:$0xff]
    %v196 = vld [vmem:[%s2 + $0x300] sm:$0xff]
    %v197 = vld [vmem:[%s2 + $0x308] sm:$0xff]
    %v198 = vld [vmem:[%s2 + $0x310] sm:$0xff]
    %v199 = vld [vmem:[%s2 + $0x318] sm:$0xff]
    %v200 = vld [vmem:[%s2 + $0x320] sm:$0xff]
    %v201 = vld [vmem:[%s2 + $0x328] sm:$0xff]
    %v202 = vld [vmem:[%s2 + $0x330] sm:$0xff]
    %v203 = vld [vmem:[%s2 + $0x338] sm:$0xff]
    %v204 = vld [vmem:[%s2 + $0x340] sm:$0xff]
    %v205 = vld [vmem:[%s2 + $0x348] sm:$0xff]
    %v206 = vld [vmem:[%s2 + $0x350] sm:$0xff]
    %v207 = vld [vmem:[%s2 + $0x358] sm:$0xff]
    %v208 = vld [vmem:[%s2 + $0x360] sm:$0xff]
    %v209 = vld [vmem:[%s2 + $0x368] sm:$0xff]
    %v210 = vld [vmem:[%s2 + $0x370] sm:$0xff]
    %v211 = vld [vmem:[%s2 + $0x378] sm:$0xff]
    %v212 = vld [vmem:[%s2 + $0x380] sm:$0xff]
    %v213 = vld [vmem:[%s2 + $0x388] sm:$0xff]
    %v214 = vld [vmem:[%s2 + $0x390] sm:$0xff]
    %v215 = vld [vmem:[%s2 + $0x398] sm:$0xff]
    %v216 = vld [vmem:[%s2 + $0x3a0] sm:$0xff]
    %v217 = vld [vmem:[%s2 + $0x3a8] sm:$0xff]
    %v218 = vld [vmem:[%s2 + $0x3b0] sm:$0xff]
    %v219 = vld [vmem:[%s2 + $0x3b8] sm:$0xff]
    %v220 = vld [vmem:[%s2 + $0x3c0] sm:$0xff]
    %v221 = vld [vmem:[%s2 + $0x3c8] sm:$0xff]
    %v222 = vld [vmem:[%s2 + $0x3d0] sm:$0xff]
    %v223 = vld [vmem:[%s2 + $0x3d8] sm:$0xff]
    %v224 = vld [vmem:[%s2 + $0x3e0] sm:$0xff]
    %v225 = vld [vmem:[%s2 + $0x3e8] sm:$0xff]
    %v226 = vld [vmem:[%s2 + $0x3f0] sm:$0xff]
    %v227 = vld [vmem:[%s2 + $0x3f8] sm:$0xff]
    %v228 = vld [vmem:[%s2 + $0x400] sm:$0xff]
    %v229 = vld [vmem:[%s2 + $0x408] sm:$0xff]
    %v230 = vld [vmem:[%s2 + $0x410] sm:$0xff]
    %v231 = vld [vmem:[%s2 + $0x418] sm:$0xff]
    %v232 = vld [vmem:[%s2 + $0x420] sm:$0xff]
    %v233 = vld [vmem:[%s2 + $0x428] sm:$0xff]
    %v234 = vld [vmem:[%s2 + $0x430] sm:$0xff]
    %v235 = vld [vmem:[%s2 + $0x438] sm:$0xff]
    %v236 = vld [vmem:[%s2 + $0x440] sm:$0xff]
    %v237 = vld [vmem:[%s2 + $0x448] sm:$0xff]
    %v238 = vld [vmem:[%s2 + $0x450] sm:$0xff]
    %v239 = vld [vmem:[%s2 + $0x458] sm:$0xff]
    %v240 = vld [vmem:[%s2 + $0x460] sm:$0xff]
    %v241 = vld [vmem:[%s2 + $0x468] sm:$0xff]
    %v242 = vld [vmem:[%s2 + $0x470] sm:$0xff]
    %v243 = vld [vmem:[%s2 + $0x478] sm:$0xff]
    %v244 = vld [vmem:[%s2 + $0x480] sm:$0xff]
    %v245 = vld [vmem:[%s2 + $0x488] sm:$0xff]
    %v246 = vld [vmem:[%s2 + $0x490] sm:$0xff]
    %v247 = vld [vmem:[%s2 + $0x498] sm:$0xff]
    %v248 = vld [vmem:[%s2 + $0x4a0] sm:$0xff]
    %v249 = vld [vmem:[%s2 + $0x4a8] sm:$0xff]
    %v250 = vld [vmem:[%s2 + $0x4b0] sm:$0xff]
    %v251 = vld [vmem:[%s2 + $0x4b8] sm:$0xff]
    %v252 = vld [vmem:[%s2 + $0x4c0] sm:$0xff]
    %v253 = vld [vmem:[%s2 + $0x4c8] sm:$0xff]
    %v254 = vld [vmem:[%s2 + $0x4d0] sm:$0xff]
    %v255 = vld [vmem:[%s2 + $0x4d8] sm:$0xff]
    %v256 = vld [vmem:[%s2 + $0x4e0] sm:$0xff]
    %v257 = vld [vmem:[%s2 + $0x4e8] sm:$0xff]
    %v258 = vld [vmem:[%s2 + $0x4f0] sm:$0xff]
    %v259 = vld [vmem:[%s2 + $0x4f8] sm:$0xff]
    %v260 = vld [vmem:[%s2 + $0x500] sm:$0xff]
    %v261 = vld [vmem:[%s2 + $0x508] sm:$0xff]
    %v262 = vld [vmem:[%s2 + $0x510] sm:$0xff]
    %v263 = vld [vmem:[%s2 + $0x518] sm:$0xff]
    %v264 = vld [vmem:[%s2 + $0x520] sm:$0xff]
    %v265 = vld [vmem:[%s2 + $0x528] sm:$0xff]
    %v266 = vld [vmem:[%s2 + $0x530] sm:$0xff]
    %v267 = vld [vmem:[%s2 + $0x538] sm:$0xff]
    %v268 = vld [vmem:[%s2 + $0x540] sm:$0xff]
    %v269 = vld [vmem:[%s2 + $0x548] sm:$0xff]
    %v270 = vld [vmem:[%s2 + $0x550] sm:$0xff]
    %v271 = vld [vmem:[%s2 + $0x558] sm:$0xff]
    %v272 = vld [vmem:[%s2 + $0x560] sm:$0xff]
    %v273 = vld [vmem:[%s2 + $0x568] sm:$0xff]
    %v274 = vld [vmem:[%s2 + $0x570] sm:$0xff]
    %v275 = vld [vmem:[%s2 + $0x578] sm:$0xff]
    %v276 = vld [vmem:[%s2 + $0x580] sm:$0xff]
    %v277 = vld [vmem:[%s2 + $0x588] sm:$0xff]
    %v278 = vld [vmem:[%s2 + $0x590] sm:$0xff]
    %v279 = vld [vmem:[%s2 + $0x598] sm:$0xff]
    %v280 = vld [vmem:[%s2 + $0x5a0] sm:$0xff]
    %v281 = vld [vmem:[%s2 + $0x5a8] sm:$0xff]
    %v282 = vld [vmem:[%s2 + $0x5b0] sm:$0xff]
    %v283 = vld [vmem:[%s2 + $0x5b8] sm:$0xff]
    %v284 = vld [vmem:[%s2 + $0x5c0] sm:$0xff]
    %v285 = vld [vmem:[%s2 + $0x5c8] sm:$0xff]
    %v286 = vld [vmem:[%s2 + $0x5d0] sm:$0xff]
    %v287 = vld [vmem:[%s2 + $0x5d8] sm:$0xff]
    %v288 = vld [vmem:[%s2 + $0x5e0] sm:$0xff]
    %v289 = vld [vmem:[%s2 + $0x5e8] sm:$0xff]
    %v290 = vld [vmem:[%s2 + $0x5f0] sm:$0xff]
    %v291 = vld [vmem:[%s2 + $0x5f8] sm:$0xff]
    %v292 = vld [vmem:[%s2 + $0x600] sm:$0xff]
    %v293 = vld [vmem:[%s2 + $0x608] sm:$0xff]
    %v294 = vld [vmem:[%s2 + $0x610] sm:$0xff]
    %v295 = vld [vmem:[%s2 + $0x618] sm:$0xff]
    %v296 = vld [vmem:[%s2 + $0x620] sm:$0xff]
    %v297 = vld [vmem:[%s2 + $0x628] sm:$0xff]
    %v298 = vld [vmem:[%s2 + $0x630] sm:$0xff]
    %v299 = vld [vmem:[%s2 + $0x638] sm:$0xff]
    %v300 = vld [vmem:[%s2 + $0x640] sm:$0xff]
    %v301 = vld [vmem:[%s2 + $0x648] sm:$0xff]
    %v302 = vld [vmem:[%s2 + $0x650] sm:$0xff]
    %v303 = vld [vmem:[%s2 + $0x658] sm:$0xff]
    %v304 = vld [vmem:[%s2 + $0x660] sm:$0xff]
    %v305 = vld [vmem:[%s2 + $0x668] sm:$0xff]
    %v306 = vld [vmem:[%s2 + $0x670] sm:$0xff]
    %v307 = vld [vmem:[%s2 + $0x678] sm:$0xff]
    %v308 = vld [vmem:[%s2 + $0x680] sm:$0xff]
    %v309 = vld [vmem:[%s2 + $0x688] sm:$0xff]
    %v310 = vld [vmem:[%s2 + $0x690] sm:$0xff]
    %v311 = vld [vmem:[%s2 + $0x698] sm:$0xff]
    %v312 = vld [vmem:[%s2 + $0x6a0] sm:$0xff]
    %v313 = vld [vmem:[%s2 + $0x6a8] sm:$0xff]
    %v314 = vld [vmem:[%s2 + $0x6b0] sm:$0xff]
    %v315 = vld [vmem:[%s2 + $0x6b8] sm:$0xff]
    %v316 = vld [vmem:[%s2 + $0x6c0] sm:$0xff]
    %v317 = vld [vmem:[%s2 + $0x6c8] sm:$0xff]
    %v318 = vld [vmem:[%s2 + $0x6d0] sm:$0xff]
    %v319 = vld [vmem:[%s2 + $0x6d8] sm:$0xff]
    %v320 = vld [vmem:[%s2 + $0x6e0] sm:$0xff]
    %v321 = vld [vmem:[%s2 + $0x6e8] sm:$0xff]
    %v322 = vld [vmem:[%s2 + $0x6f0] sm:$0xff]
    %v323 = vld [vmem:[%s2 + $0x6f8] sm:$0xff]
    %v324 = vld [vmem:[%s2 + $0x700] sm:$0xff]
    %v325 = vld [vmem:[%s2 + $0x708] sm:$0xff]
    %v326 = vld [vmem:[%s2 + $0x710] sm:$0xff]
    %v327 = vld [vmem:[%s2 + $0x718] sm:$0xff]
    %v328 = vld [vmem:[%s2 + $0x720] sm:$0xff]
    %v329 = vld [vmem:[%s2 + $0x728] sm:$0xff]
    %v330 = vld [vmem:[%s2 + $0x730] sm:$0xff]
    %v331 = vld [vmem:[%s2 + $0x738] sm:$0xff]
    %v332 = vld [vmem:[%s2 + $0x740] sm:$0xff]
    %v333 = vld [vmem:[%s2 + $0x748] sm:$0xff]
    %v334 = vld [vmem:[%s2 + $0x750] sm:$0xff]
    %v335 = vld [vmem:[%s2 + $0x758] sm:$0xff]
    %v336 = vld [vmem:[%s2 + $0x760] sm:$0xff]
    %v337 = vld [vmem:[%s2 + $0x768] sm:$0xff]
    %v338 = vld [vmem:[%s2 + $0x770] sm:$0xff]
    %v339 = vld [vmem:[%s2 + $0x778] sm:$0xff]
    %v340 = vld [vmem:[%s2 + $0x780] sm:$0xff]
    %v341 = vld [vmem:[%s2 + $0x788] sm:$0xff]
    %v342 = vld [vmem:[%s2 + $0x790] sm:$0xff]
    %v343 = vld [vmem:[%s2 + $0x798] sm:$0xff]
    %v344 = vld [vmem:[%s2 + $0x7a0] sm:$0xff]
    %v345 = vld [vmem:[%s2 + $0x7a8] sm:$0xff]
    %v346 = vld [vmem:[%s2 + $0x7b0] sm:$0xff]
    %v347 = vld [vmem:[%s2 + $0x7b8] sm:$0xff]
    %v348 = vld [vmem:[%s2 + $0x7c0] sm:$0xff]
    %v349 = vld [vmem:[%s2 + $0x7c8] sm:$0xff]
    %v350 = vld [vmem:[%s2 + $0x7d0] sm:$0xff]
    %v351 = vld [vmem:[%s2 + $0x7d8] sm:$0xff]
    %v352 = vld [vmem:[%s2 + $0x7e0] sm:$0xff]
    %v353 = vld [vmem:[%s2 + $0x7e8] sm:$0xff]
    %v354 = vld [vmem:[%s2 + $0x7f0] sm:$0xff]
    %v355 = vld [vmem:[%s2 + $0x7f8] sm:$0xff]
    %v356 = vld [vmem:[%s3] sm:$0x3]
    %358 = vst [vmem:[#allocation1] ss:$9 sm:$0xff] %v98
    %v359 = vld [vmem:[#allocation1] sm:$0xff]
    %v360 = vld [vmem:[#allocation1 + $0x9] sm:$0xff]
    %v361 = vld [vmem:[#allocation1 + $0x12] sm:$0xff]
    %v362 = vld [vmem:[#allocation1 + $0x1b] sm:$0xff]
    %v363 = vld [vmem:[#allocation1 + $0x24] sm:$0xff]
    %v364 = vld [vmem:[#allocation1 + $0x2d] sm:$0xff]
    %v365 = vld [vmem:[#allocation1 + $0x36] sm:$0xff]
    %v366 = vld [vmem:[#allocation1 + $0x3f] sm:$0xff]
    %368 = vst [vmem:[#allocation1] ss:$9 sm:$0xff] %v99
    %v369 = vld [vmem:[#allocation1] sm:$0xff]
    %v370 = vld [vmem:[#allocation1 + $0x9] sm:$0xff]
    %v371 = vld [vmem:[#allocation1 + $0x12] sm:$0xff]
    %v372 = vld [vmem:[#allocation1 + $0x1b] sm:$0xff]
    %v373 = vld [vmem:[#allocation1 + $0x24] sm:$0xff]
    %v374 = vld [vmem:[#allocation1 + $0x2d] sm:$0xff]
    %v375 = vld [vmem:[#allocation1 + $0x36] sm:$0xff]
    %v376 = vld [vmem:[#allocation1 + $0x3f] sm:$0xff]
    %v649 = vunpack.c.l.b16 %v100
    %v650 = vunpack.c.h.b16 %v100
    %v651 = vunpack.c.l.b16 %v101
    %v652 = vunpack.c.h.b16 %v101
    %v653 = vunpack.c.l.b16 %v102
    %v654 = vunpack.c.h.b16 %v102
    %v655 = vunpack.c.l.b16 %v103
    %v656 = vunpack.c.h.b16 %v103
    %v657 = vunpack.c.l.b16 %v104
    %v658 = vunpack.c.h.b16 %v104
    %v659 = vunpack.c.l.b16 %v105
    %v660 = vunpack.c.h.b16 %v105
    %v661 = vunpack.c.l.b16 %v106
    %v662 = vunpack.c.h.b16 %v106
    %v663 = vunpack.c.l.b16 %v107
    %v664 = vunpack.c.h.b16 %v107
    %v665 = vunpack.c.l.b16 %v108
    %v666 = vunpack.c.h.b16 %v108
    %v667 = vunpack.c.l.b16 %v109
    %v668 = vunpack.c.h.b16 %v109
    %v669 = vunpack.c.l.b16 %v110
    %v670 = vunpack.c.h.b16 %v110
    %v671 = vunpack.c.l.b16 %v111
    %v672 = vunpack.c.h.b16 %v111
    %v673 = vunpack.c.l.b16 %v112
    %v674 = vunpack.c.h.b16 %v112
    %v675 = vunpack.c.l.b16 %v113
    %v676 = vunpack.c.h.b16 %v113
    %v677 = vunpack.c.l.b16 %v114
    %v678 = vunpack.c.h.b16 %v114
    %v679 = vunpack.c.l.b16 %v115
    %v680 = vunpack.c.h.b16 %v115
    %v681 = vunpack.c.l.b16 %v116
    %v682 = vunpack.c.h.b16 %v116
    %v683 = vunpack.c.l.b16 %v117
    %v684 = vunpack.c.h.b16 %v117
    %v685 = vunpack.c.l.b16 %v118
    %v686 = vunpack.c.h.b16 %v118
    %v687 = vunpack.c.l.b16 %v119
    %v688 = vunpack.c.h.b16 %v119
    %v689 = vunpack.c.l.b16 %v120
    %v690 = vunpack.c.h.b16 %v120
    %v691 = vunpack.c.l.b16 %v121
    %v692 = vunpack.c.h.b16 %v121
    %v693 = vunpack.c.l.b16 %v122
    %v694 = vunpack.c.h.b16 %v122
    %v695 = vunpack.c.l.b16 %v123
    %v696 = vunpack.c.h.b16 %v123
    %v697 = vunpack.c.l.b16 %v124
    %v698 = vunpack.c.h.b16 %v124
    %v699 = vunpack.c.l.b16 %v125
    %v700 = vunpack.c.h.b16 %v125
    %v701 = vunpack.c.l.b16 %v126
    %v702 = vunpack.c.h.b16 %v126
    %v703 = vunpack.c.l.b16 %v127
    %v704 = vunpack.c.h.b16 %v127
    %v705 = vunpack.c.l.b16 %v128
    %v706 = vunpack.c.h.b16 %v128
    %v707 = vunpack.c.l.b16 %v129
    %v708 = vunpack.c.h.b16 %v129
    %v709 = vunpack.c.l.b16 %v130
    %v710 = vunpack.c.h.b16 %v130
    %v711 = vunpack.c.l.b16 %v131
    %v712 = vunpack.c.h.b16 %v131
    %v713 = vunpack.c.l.b16 %v132
    %v714 = vunpack.c.h.b16 %v132
    %v715 = vunpack.c.l.b16 %v133
    %v716 = vunpack.c.h.b16 %v133
    %v717 = vunpack.c.l.b16 %v134
    %v718 = vunpack.c.h.b16 %v134
    %v719 = vunpack.c.l.b16 %v135
    %v720 = vunpack.c.h.b16 %v135
    %v721 = vunpack.c.l.b16 %v136
    %v722 = vunpack.c.h.b16 %v136
    %v723 = vunpack.c.l.b16 %v137
    %v724 = vunpack.c.h.b16 %v137
    %v725 = vunpack.c.l.b16 %v138
    %v726 = vunpack.c.h.b16 %v138
    %v727 = vunpack.c.l.b16 %v139
    %v728 = vunpack.c.h.b16 %v139
    %v729 = vunpack.c.l.b16 %v140
    %v730 = vunpack.c.h.b16 %v140
    %v731 = vunpack.c.l.b16 %v141
    %v732 = vunpack.c.h.b16 %v141
    %v733 = vunpack.c.l.b16 %v142
    %v734 = vunpack.c.h.b16 %v142
    %v735 = vunpack.c.l.b16 %v143
    %v736 = vunpack.c.h.b16 %v143
    %v737 = vunpack.c.l.b16 %v144
    %v738 = vunpack.c.h.b16 %v144
    %v739 = vunpack.c.l.b16 %v145
    %v740 = vunpack.c.h.b16 %v145
    %v741 = vunpack.c.l.b16 %v146
    %v742 = vunpack.c.h.b16 %v146
    %v743 = vunpack.c.l.b16 %v147
    %v744 = vunpack.c.h.b16 %v147
    %v745 = vunpack.c.l.b16 %v148
    %v746 = vunpack.c.h.b16 %v148
    %v747 = vunpack.c.l.b16 %v149
    %v748 = vunpack.c.h.b16 %v149
    %v749 = vunpack.c.l.b16 %v150
    %v750 = vunpack.c.h.b16 %v150
    %v751 = vunpack.c.l.b16 %v151
    %v752 = vunpack.c.h.b16 %v151
    %v753 = vunpack.c.l.b16 %v152
    %v754 = vunpack.c.h.b16 %v152
    %v755 = vunpack.c.l.b16 %v153
    %v756 = vunpack.c.h.b16 %v153
    %v757 = vunpack.c.l.b16 %v154
    %v758 = vunpack.c.h.b16 %v154
    %v759 = vunpack.c.l.b16 %v155
    %v760 = vunpack.c.h.b16 %v155
    %v761 = vunpack.c.l.b16 %v156
    %v762 = vunpack.c.h.b16 %v156
    %v763 = vunpack.c.l.b16 %v157
    %v764 = vunpack.c.h.b16 %v157
    %v765 = vunpack.c.l.b16 %v158
    %v766 = vunpack.c.h.b16 %v158
    %v767 = vunpack.c.l.b16 %v159
    %v768 = vunpack.c.h.b16 %v159
    %v769 = vunpack.c.l.b16 %v160
    %v770 = vunpack.c.h.b16 %v160
    %v771 = vunpack.c.l.b16 %v161
    %v772 = vunpack.c.h.b16 %v161
    %v773 = vunpack.c.l.b16 %v162
    %v774 = vunpack.c.h.b16 %v162
    %v775 = vunpack.c.l.b16 %v163
    %v776 = vunpack.c.h.b16 %v163
    %v777 = vunpack.c.l.b16 %v164
    %v778 = vunpack.c.h.b16 %v164
    %v779 = vunpack.c.l.b16 %v165
    %v780 = vunpack.c.h.b16 %v165
    %v781 = vunpack.c.l.b16 %v166
    %v782 = vunpack.c.h.b16 %v166
    %v783 = vunpack.c.l.b16 %v167
    %v784 = vunpack.c.h.b16 %v167
    %v785 = vunpack.c.l.b16 %v168
    %v786 = vunpack.c.h.b16 %v168
    %v787 = vunpack.c.l.b16 %v169
    %v788 = vunpack.c.h.b16 %v169
    %v789 = vunpack.c.l.b16 %v170
    %v790 = vunpack.c.h.b16 %v170
    %v791 = vunpack.c.l.b16 %v171
    %v792 = vunpack.c.h.b16 %v171
    %v793 = vunpack.c.l.b16 %v172
    %v794 = vunpack.c.h.b16 %v172
    %v795 = vunpack.c.l.b16 %v173
    %v796 = vunpack.c.h.b16 %v173
    %v797 = vunpack.c.l.b16 %v174
    %v798 = vunpack.c.h.b16 %v174
    %v799 = vunpack.c.l.b16 %v175
    %v800 = vunpack.c.h.b16 %v175
    %v801 = vunpack.c.l.b16 %v176
    %v802 = vunpack.c.h.b16 %v176
    %v803 = vunpack.c.l.b16 %v177
    %v804 = vunpack.c.h.b16 %v177
    %v805 = vunpack.c.l.b16 %v178
    %v806 = vunpack.c.h.b16 %v178
    %v807 = vunpack.c.l.b16 %v179
    %v808 = vunpack.c.h.b16 %v179
    %v809 = vunpack.c.l.b16 %v180
    %v810 = vunpack.c.h.b16 %v180
    %v811 = vunpack.c.l.b16 %v181
    %v812 = vunpack.c.h.b16 %v181
    %v813 = vunpack.c.l.b16 %v182
    %v814 = vunpack.c.h.b16 %v182
    %v815 = vunpack.c.l.b16 %v183
    %v816 = vunpack.c.h.b16 %v183
    %v817 = vunpack.c.l.b16 %v184
    %v818 = vunpack.c.h.b16 %v184
    %v819 = vunpack.c.l.b16 %v185
    %v820 = vunpack.c.h.b16 %v185
    %v821 = vunpack.c.l.b16 %v186
    %v822 = vunpack.c.h.b16 %v186
    %v823 = vunpack.c.l.b16 %v187
    %v824 = vunpack.c.h.b16 %v187
    %v825 = vunpack.c.l.b16 %v188
    %v826 = vunpack.c.h.b16 %v188
    %v827 = vunpack.c.l.b16 %v189
    %v828 = vunpack.c.h.b16 %v189
    %v829 = vunpack.c.l.b16 %v190
    %v830 = vunpack.c.h.b16 %v190
    %v831 = vunpack.c.l.b16 %v191
    %v832 = vunpack.c.h.b16 %v191
    %v833 = vunpack.c.l.b16 %v192
    %v834 = vunpack.c.h.b16 %v192
    %v835 = vunpack.c.l.b16 %v193
    %v836 = vunpack.c.h.b16 %v193
    %v837 = vunpack.c.l.b16 %v194
    %v838 = vunpack.c.h.b16 %v194
    %v839 = vunpack.c.l.b16 %v195
    %v840 = vunpack.c.h.b16 %v195
    %v841 = vunpack.c.l.b16 %v196
    %v842 = vunpack.c.h.b16 %v196
    %v843 = vunpack.c.l.b16 %v197
    %v844 = vunpack.c.h.b16 %v197
    %v845 = vunpack.c.l.b16 %v198
    %v846 = vunpack.c.h.b16 %v198
    %v847 = vunpack.c.l.b16 %v199
    %v848 = vunpack.c.h.b16 %v199
    %v849 = vunpack.c.l.b16 %v200
    %v850 = vunpack.c.h.b16 %v200
    %v851 = vunpack.c.l.b16 %v201
    %v852 = vunpack.c.h.b16 %v201
    %v853 = vunpack.c.l.b16 %v202
    %v854 = vunpack.c.h.b16 %v202
    %v855 = vunpack.c.l.b16 %v203
    %v856 = vunpack.c.h.b16 %v203
    %v857 = vunpack.c.l.b16 %v204
    %v858 = vunpack.c.h.b16 %v204
    %v859 = vunpack.c.l.b16 %v205
    %v860 = vunpack.c.h.b16 %v205
    %v861 = vunpack.c.l.b16 %v206
    %v862 = vunpack.c.h.b16 %v206
    %v863 = vunpack.c.l.b16 %v207
    %v864 = vunpack.c.h.b16 %v207
    %v865 = vunpack.c.l.b16 %v208
    %v866 = vunpack.c.h.b16 %v208
    %v867 = vunpack.c.l.b16 %v209
    %v868 = vunpack.c.h.b16 %v209
    %v869 = vunpack.c.l.b16 %v210
    %v870 = vunpack.c.h.b16 %v210
    %v871 = vunpack.c.l.b16 %v211
    %v872 = vunpack.c.h.b16 %v211
    %v873 = vunpack.c.l.b16 %v212
    %v874 = vunpack.c.h.b16 %v212
    %v875 = vunpack.c.l.b16 %v213
    %v876 = vunpack.c.h.b16 %v213
    %v877 = vunpack.c.l.b16 %v214
    %v878 = vunpack.c.h.b16 %v214
    %v879 = vunpack.c.l.b16 %v215
    %v880 = vunpack.c.h.b16 %v215
    %v881 = vunpack.c.l.b16 %v216
    %v882 = vunpack.c.h.b16 %v216
    %v883 = vunpack.c.l.b16 %v217
    %v884 = vunpack.c.h.b16 %v217
    %v885 = vunpack.c.l.b16 %v218
    %v886 = vunpack.c.h.b16 %v218
    %v887 = vunpack.c.l.b16 %v219
    %v888 = vunpack.c.h.b16 %v219
    %v889 = vunpack.c.l.b16 %v220
    %v890 = vunpack.c.h.b16 %v220
    %v891 = vunpack.c.l.b16 %v221
    %v892 = vunpack.c.h.b16 %v221
    %v893 = vunpack.c.l.b16 %v222
    %v894 = vunpack.c.h.b16 %v222
    %v895 = vunpack.c.l.b16 %v223
    %v896 = vunpack.c.h.b16 %v223
    %v897 = vunpack.c.l.b16 %v224
    %v898 = vunpack.c.h.b16 %v224
    %v899 = vunpack.c.l.b16 %v225
    %v900 = vunpack.c.h.b16 %v225
    %v901 = vunpack.c.l.b16 %v226
    %v902 = vunpack.c.h.b16 %v226
    %v903 = vunpack.c.l.b16 %v227
    %v904 = vunpack.c.h.b16 %v227
    %v905 = vunpack.c.l.b16 %v228
    %v906 = vunpack.c.h.b16 %v228
    %v907 = vunpack.c.l.b16 %v229
    %v908 = vunpack.c.h.b16 %v229
    %v909 = vunpack.c.l.b16 %v230
    %v910 = vunpack.c.h.b16 %v230
    %v911 = vunpack.c.l.b16 %v231
    %v912 = vunpack.c.h.b16 %v231
    %v913 = vunpack.c.l.b16 %v232
    %v914 = vunpack.c.h.b16 %v232
    %v915 = vunpack.c.l.b16 %v233
    %v916 = vunpack.c.h.b16 %v233
    %v917 = vunpack.c.l.b16 %v234
    %v918 = vunpack.c.h.b16 %v234
    %v919 = vunpack.c.l.b16 %v235
    %v920 = vunpack.c.h.b16 %v235
    %v921 = vunpack.c.l.b16 %v236
    %v922 = vunpack.c.h.b16 %v236
    %v923 = vunpack.c.l.b16 %v237
    %v924 = vunpack.c.h.b16 %v237
    %v925 = vunpack.c.l.b16 %v238
    %v926 = vunpack.c.h.b16 %v238
    %v927 = vunpack.c.l.b16 %v239
    %v928 = vunpack.c.h.b16 %v239
    %v929 = vunpack.c.l.b16 %v240
    %v930 = vunpack.c.h.b16 %v240
    %v931 = vunpack.c.l.b16 %v241
    %v932 = vunpack.c.h.b16 %v241
    %v933 = vunpack.c.l.b16 %v242
    %v934 = vunpack.c.h.b16 %v242
    %v935 = vunpack.c.l.b16 %v243
    %v936 = vunpack.c.h.b16 %v243
    %v937 = vunpack.c.l.b16 %v244
    %v938 = vunpack.c.h.b16 %v244
    %v939 = vunpack.c.l.b16 %v245
    %v940 = vunpack.c.h.b16 %v245
    %v941 = vunpack.c.l.b16 %v246
    %v942 = vunpack.c.h.b16 %v246
    %v943 = vunpack.c.l.b16 %v247
    %v944 = vunpack.c.h.b16 %v247
    %v945 = vunpack.c.l.b16 %v248
    %v946 = vunpack.c.h.b16 %v248
    %v947 = vunpack.c.l.b16 %v249
    %v948 = vunpack.c.h.b16 %v249
    %v949 = vunpack.c.l.b16 %v250
    %v950 = vunpack.c.h.b16 %v250
    %v951 = vunpack.c.l.b16 %v251
    %v952 = vunpack.c.h.b16 %v251
    %v953 = vunpack.c.l.b16 %v252
    %v954 = vunpack.c.h.b16 %v252
    %v955 = vunpack.c.l.b16 %v253
    %v956 = vunpack.c.h.b16 %v253
    %v957 = vunpack.c.l.b16 %v254
    %v958 = vunpack.c.h.b16 %v254
    %v959 = vunpack.c.l.b16 %v255
    %v960 = vunpack.c.h.b16 %v255
    %v961 = vunpack.c.l.b16 %v256
    %v962 = vunpack.c.h.b16 %v256
    %v963 = vunpack.c.l.b16 %v257
    %v964 = vunpack.c.h.b16 %v257
    %v965 = vunpack.c.l.b16 %v258
    %v966 = vunpack.c.h.b16 %v258
    %v967 = vunpack.c.l.b16 %v259
    %v968 = vunpack.c.h.b16 %v259
    %v969 = vunpack.c.l.b16 %v260
    %v970 = vunpack.c.h.b16 %v260
    %v971 = vunpack.c.l.b16 %v261
    %v972 = vunpack.c.h.b16 %v261
    %v973 = vunpack.c.l.b16 %v262
    %v974 = vunpack.c.h.b16 %v262
    %v975 = vunpack.c.l.b16 %v263
    %v976 = vunpack.c.h.b16 %v263
    %v977 = vunpack.c.l.b16 %v264
    %v978 = vunpack.c.h.b16 %v264
    %v979 = vunpack.c.l.b16 %v265
    %v980 = vunpack.c.h.b16 %v265
    %v981 = vunpack.c.l.b16 %v266
    %v982 = vunpack.c.h.b16 %v266
    %v983 = vunpack.c.l.b16 %v267
    %v984 = vunpack.c.h.b16 %v267
    %v985 = vunpack.c.l.b16 %v268
    %v986 = vunpack.c.h.b16 %v268
    %v987 = vunpack.c.l.b16 %v269
    %v988 = vunpack.c.h.b16 %v269
    %v989 = vunpack.c.l.b16 %v270
    %v990 = vunpack.c.h.b16 %v270
    %v991 = vunpack.c.l.b16 %v271
    %v992 = vunpack.c.h.b16 %v271
    %v993 = vunpack.c.l.b16 %v272
    %v994 = vunpack.c.h.b16 %v272
    %v995 = vunpack.c.l.b16 %v273
    %v996 = vunpack.c.h.b16 %v273
    %v997 = vunpack.c.l.b16 %v274
    %v998 = vunpack.c.h.b16 %v274
    %v999 = vunpack.c.l.b16 %v275
    %v1000 = vunpack.c.h.b16 %v275
    %v1001 = vunpack.c.l.b16 %v276
    %v1002 = vunpack.c.h.b16 %v276
    %v1003 = vunpack.c.l.b16 %v277
    %v1004 = vunpack.c.h.b16 %v277
    %v1005 = vunpack.c.l.b16 %v278
    %v1006 = vunpack.c.h.b16 %v278
    %v1007 = vunpack.c.l.b16 %v279
    %v1008 = vunpack.c.h.b16 %v279
    %v1009 = vunpack.c.l.b16 %v280
    %v1010 = vunpack.c.h.b16 %v280
    %v1011 = vunpack.c.l.b16 %v281
    %v1012 = vunpack.c.h.b16 %v281
    %v1013 = vunpack.c.l.b16 %v282
    %v1014 = vunpack.c.h.b16 %v282
    %v1015 = vunpack.c.l.b16 %v283
    %v1016 = vunpack.c.h.b16 %v283
    %v1017 = vunpack.c.l.b16 %v284
    %v1018 = vunpack.c.h.b16 %v284
    %v1019 = vunpack.c.l.b16 %v285
    %v1020 = vunpack.c.h.b16 %v285
    %v1021 = vunpack.c.l.b16 %v286
    %v1022 = vunpack.c.h.b16 %v286
    %v1023 = vunpack.c.l.b16 %v287
    %v1024 = vunpack.c.h.b16 %v287
    %v1025 = vunpack.c.l.b16 %v288
    %v1026 = vunpack.c.h.b16 %v288
    %v1027 = vunpack.c.l.b16 %v289
    %v1028 = vunpack.c.h.b16 %v289
    %v1029 = vunpack.c.l.b16 %v290
    %v1030 = vunpack.c.h.b16 %v290
    %v1031 = vunpack.c.l.b16 %v291
    %v1032 = vunpack.c.h.b16 %v291
    %v1033 = vunpack.c.l.b16 %v292
    %v1034 = vunpack.c.h.b16 %v292
    %v1035 = vunpack.c.l.b16 %v293
    %v1036 = vunpack.c.h.b16 %v293
    %v1037 = vunpack.c.l.b16 %v294
    %v1038 = vunpack.c.h.b16 %v294
    %v1039 = vunpack.c.l.b16 %v295
    %v1040 = vunpack.c.h.b16 %v295
    %v1041 = vunpack.c.l.b16 %v296
    %v1042 = vunpack.c.h.b16 %v296
    %v1043 = vunpack.c.l.b16 %v297
    %v1044 = vunpack.c.h.b16 %v297
    %v1045 = vunpack.c.l.b16 %v298
    %v1046 = vunpack.c.h.b16 %v298
    %v1047 = vunpack.c.l.b16 %v299
    %v1048 = vunpack.c.h.b16 %v299
    %v1049 = vunpack.c.l.b16 %v300
    %v1050 = vunpack.c.h.b16 %v300
    %v1051 = vunpack.c.l.b16 %v301
    %v1052 = vunpack.c.h.b16 %v301
    %v1053 = vunpack.c.l.b16 %v302
    %v1054 = vunpack.c.h.b16 %v302
    %v1055 = vunpack.c.l.b16 %v303
    %v1056 = vunpack.c.h.b16 %v303
    %v1057 = vunpack.c.l.b16 %v304
    %v1058 = vunpack.c.h.b16 %v304
    %v1059 = vunpack.c.l.b16 %v305
    %v1060 = vunpack.c.h.b16 %v305
    %v1061 = vunpack.c.l.b16 %v306
    %v1062 = vunpack.c.h.b16 %v306
    %v1063 = vunpack.c.l.b16 %v307
    %v1064 = vunpack.c.h.b16 %v307
    %v1065 = vunpack.c.l.b16 %v308
    %v1066 = vunpack.c.h.b16 %v308
    %v1067 = vunpack.c.l.b16 %v309
    %v1068 = vunpack.c.h.b16 %v309
    %v1069 = vunpack.c.l.b16 %v310
    %v1070 = vunpack.c.h.b16 %v310
    %v1071 = vunpack.c.l.b16 %v311
    %v1072 = vunpack.c.h.b16 %v311
    %v1073 = vunpack.c.l.b16 %v312
    %v1074 = vunpack.c.h.b16 %v312
    %v1075 = vunpack.c.l.b16 %v313
    %v1076 = vunpack.c.h.b16 %v313
    %v1077 = vunpack.c.l.b16 %v314
    %v1078 = vunpack.c.h.b16 %v314
    %v1079 = vunpack.c.l.b16 %v315
    %v1080 = vunpack.c.h.b16 %v315
    %v1081 = vunpack.c.l.b16 %v316
    %v1082 = vunpack.c.h.b16 %v316
    %v1083 = vunpack.c.l.b16 %v317
    %v1084 = vunpack.c.h.b16 %v317
    %v1085 = vunpack.c.l.b16 %v318
    %v1086 = vunpack.c.h.b16 %v318
    %v1087 = vunpack.c.l.b16 %v319
    %v1088 = vunpack.c.h.b16 %v319
    %v1089 = vunpack.c.l.b16 %v320
    %v1090 = vunpack.c.h.b16 %v320
    %v1091 = vunpack.c.l.b16 %v321
    %v1092 = vunpack.c.h.b16 %v321
    %v1093 = vunpack.c.l.b16 %v322
    %v1094 = vunpack.c.h.b16 %v322
    %v1095 = vunpack.c.l.b16 %v323
    %v1096 = vunpack.c.h.b16 %v323
    %v1097 = vunpack.c.l.b16 %v324
    %v1098 = vunpack.c.h.b16 %v324
    %v1099 = vunpack.c.l.b16 %v325
    %v1100 = vunpack.c.h.b16 %v325
    %v1101 = vunpack.c.l.b16 %v326
    %v1102 = vunpack.c.h.b16 %v326
    %v1103 = vunpack.c.l.b16 %v327
    %v1104 = vunpack.c.h.b16 %v327
    %v1105 = vunpack.c.l.b16 %v328
    %v1106 = vunpack.c.h.b16 %v328
    %v1107 = vunpack.c.l.b16 %v329
    %v1108 = vunpack.c.h.b16 %v329
    %v1109 = vunpack.c.l.b16 %v330
    %v1110 = vunpack.c.h.b16 %v330
    %v1111 = vunpack.c.l.b16 %v331
    %v1112 = vunpack.c.h.b16 %v331
    %v1113 = vunpack.c.l.b16 %v332
    %v1114 = vunpack.c.h.b16 %v332
    %v1115 = vunpack.c.l.b16 %v333
    %v1116 = vunpack.c.h.b16 %v333
    %v1117 = vunpack.c.l.b16 %v334
    %v1118 = vunpack.c.h.b16 %v334
    %v1119 = vunpack.c.l.b16 %v335
    %v1120 = vunpack.c.h.b16 %v335
    %v1121 = vunpack.c.l.b16 %v336
    %v1122 = vunpack.c.h.b16 %v336
    %v1123 = vunpack.c.l.b16 %v337
    %v1124 = vunpack.c.h.b16 %v337
    %v1125 = vunpack.c.l.b16 %v338
    %v1126 = vunpack.c.h.b16 %v338
    %v1127 = vunpack.c.l.b16 %v339
    %v1128 = vunpack.c.h.b16 %v339
    %v1129 = vunpack.c.l.b16 %v340
    %v1130 = vunpack.c.h.b16 %v340
    %v1131 = vunpack.c.l.b16 %v341
    %v1132 = vunpack.c.h.b16 %v341
    %v1133 = vunpack.c.l.b16 %v342
    %v1134 = vunpack.c.h.b16 %v342
    %v1135 = vunpack.c.l.b16 %v343
    %v1136 = vunpack.c.h.b16 %v343
    %v1137 = vunpack.c.l.b16 %v344
    %v1138 = vunpack.c.h.b16 %v344
    %v1139 = vunpack.c.l.b16 %v345
    %v1140 = vunpack.c.h.b16 %v345
    %v1141 = vunpack.c.l.b16 %v346
    %v1142 = vunpack.c.h.b16 %v346
    %v1143 = vunpack.c.l.b16 %v347
    %v1144 = vunpack.c.h.b16 %v347
    %v1145 = vunpack.c.l.b16 %v348
    %v1146 = vunpack.c.h.b16 %v348
    %v1147 = vunpack.c.l.b16 %v349
    %v1148 = vunpack.c.h.b16 %v349
    %v1149 = vunpack.c.l.b16 %v350
    %v1150 = vunpack.c.h.b16 %v350
    %v1151 = vunpack.c.l.b16 %v351
    %v1152 = vunpack.c.h.b16 %v351
    %v1153 = vunpack.c.l.b16 %v352
    %v1154 = vunpack.c.h.b16 %v352
    %v1155 = vunpack.c.l.b16 %v353
    %v1156 = vunpack.c.h.b16 %v353
    %v1157 = vunpack.c.l.b16 %v354
    %v1158 = vunpack.c.h.b16 %v354
    %v1159 = vunpack.c.l.b16 %v355
    %v1160 = vunpack.c.h.b16 %v355
    %v1161 = vpack.c.b16 %v651, %v649
    %v1162 = vpack.c.b16 %v652, %v650
    %v1163 = vpack.c.b16 %v655, %v653
    %v1164 = vpack.c.b16 %v656, %v654
    %v1165 = vpack.c.b16 %v659, %v657
    %v1166 = vpack.c.b16 %v660, %v658
    %v1167 = vpack.c.b16 %v663, %v661
    %v1168 = vpack.c.b16 %v664, %v662
    %v1169 = vpack.c.b16 %v667, %v665
    %v1170 = vpack.c.b16 %v668, %v666
    %v1171 = vpack.c.b16 %v671, %v669
    %v1172 = vpack.c.b16 %v672, %v670
    %v1173 = vpack.c.b16 %v675, %v673
    %v1174 = vpack.c.b16 %v676, %v674
    %v1175 = vpack.c.b16 %v679, %v677
    %v1176 = vpack.c.b16 %v680, %v678
    %v1177 = vpack.c.b16 %v683, %v681
    %v1178 = vpack.c.b16 %v684, %v682
    %v1179 = vpack.c.b16 %v687, %v685
    %v1180 = vpack.c.b16 %v688, %v686
    %v1181 = vpack.c.b16 %v691, %v689
    %v1182 = vpack.c.b16 %v692, %v690
    %v1183 = vpack.c.b16 %v695, %v693
    %v1184 = vpack.c.b16 %v696, %v694
    %v1185 = vpack.c.b16 %v699, %v697
    %v1186 = vpack.c.b16 %v700, %v698
    %v1187 = vpack.c.b16 %v703, %v701
    %v1188 = vpack.c.b16 %v704, %v702
    %v1189 = vpack.c.b16 %v707, %v705
    %v1190 = vpack.c.b16 %v708, %v706
    %v1191 = vpack.c.b16 %v711, %v709
    %v1192 = vpack.c.b16 %v712, %v710
    %v1193 = vpack.c.b16 %v715, %v713
    %v1194 = vpack.c.b16 %v716, %v714
    %v1195 = vpack.c.b16 %v719, %v717
    %v1196 = vpack.c.b16 %v720, %v718
    %v1197 = vpack.c.b16 %v723, %v721
    %v1198 = vpack.c.b16 %v724, %v722
    %v1199 = vpack.c.b16 %v727, %v725
    %v1200 = vpack.c.b16 %v728, %v726
    %v1201 = vpack.c.b16 %v731, %v729
    %v1202 = vpack.c.b16 %v732, %v730
    %v1203 = vpack.c.b16 %v735, %v733
    %v1204 = vpack.c.b16 %v736, %v734
    %v1205 = vpack.c.b16 %v739, %v737
    %v1206 = vpack.c.b16 %v740, %v738
    %v1207 = vpack.c.b16 %v743, %v741
    %v1208 = vpack.c.b16 %v744, %v742
    %v1209 = vpack.c.b16 %v747, %v745
    %v1210 = vpack.c.b16 %v748, %v746
    %v1211 = vpack.c.b16 %v751, %v749
    %v1212 = vpack.c.b16 %v752, %v750
    %v1213 = vpack.c.b16 %v755, %v753
    %v1214 = vpack.c.b16 %v756, %v754
    %v1215 = vpack.c.b16 %v759, %v757
    %v1216 = vpack.c.b16 %v760, %v758
    %v1217 = vpack.c.b16 %v763, %v761
    %v1218 = vpack.c.b16 %v764, %v762
    %v1219 = vpack.c.b16 %v767, %v765
    %v1220 = vpack.c.b16 %v768, %v766
    %v1221 = vpack.c.b16 %v771, %v769
    %v1222 = vpack.c.b16 %v772, %v770
    %v1223 = vpack.c.b16 %v775, %v773
    %v1224 = vpack.c.b16 %v776, %v774
    %v1225 = vpack.c.b16 %v779, %v777
    %v1226 = vpack.c.b16 %v780, %v778
    %v1227 = vpack.c.b16 %v783, %v781
    %v1228 = vpack.c.b16 %v784, %v782
    %v1229 = vpack.c.b16 %v787, %v785
    %v1230 = vpack.c.b16 %v788, %v786
    %v1231 = vpack.c.b16 %v791, %v789
    %v1232 = vpack.c.b16 %v792, %v790
    %v1233 = vpack.c.b16 %v795, %v793
    %v1234 = vpack.c.b16 %v796, %v794
    %v1235 = vpack.c.b16 %v799, %v797
    %v1236 = vpack.c.b16 %v800, %v798
    %v1237 = vpack.c.b16 %v803, %v801
    %v1238 = vpack.c.b16 %v804, %v802
    %v1239 = vpack.c.b16 %v807, %v805
    %v1240 = vpack.c.b16 %v808, %v806
    %v1241 = vpack.c.b16 %v811, %v809
    %v1242 = vpack.c.b16 %v812, %v810
    %v1243 = vpack.c.b16 %v815, %v813
    %v1244 = vpack.c.b16 %v816, %v814
    %v1245 = vpack.c.b16 %v819, %v817
    %v1246 = vpack.c.b16 %v820, %v818
    %v1247 = vpack.c.b16 %v823, %v821
    %v1248 = vpack.c.b16 %v824, %v822
    %v1249 = vpack.c.b16 %v827, %v825
    %v1250 = vpack.c.b16 %v828, %v826
    %v1251 = vpack.c.b16 %v831, %v829
    %v1252 = vpack.c.b16 %v832, %v830
    %v1253 = vpack.c.b16 %v835, %v833
    %v1254 = vpack.c.b16 %v836, %v834
    %v1255 = vpack.c.b16 %v839, %v837
    %v1256 = vpack.c.b16 %v840, %v838
    %v1257 = vpack.c.b16 %v843, %v841
    %v1258 = vpack.c.b16 %v844, %v842
    %v1259 = vpack.c.b16 %v847, %v845
    %v1260 = vpack.c.b16 %v848, %v846
    %v1261 = vpack.c.b16 %v851, %v849
    %v1262 = vpack.c.b16 %v852, %v850
    %v1263 = vpack.c.b16 %v855, %v853
    %v1264 = vpack.c.b16 %v856, %v854
    %v1265 = vpack.c.b16 %v859, %v857
    %v1266 = vpack.c.b16 %v860, %v858
    %v1267 = vpack.c.b16 %v863, %v861
    %v1268 = vpack.c.b16 %v864, %v862
    %v1269 = vpack.c.b16 %v867, %v865
    %v1270 = vpack.c.b16 %v868, %v866
    %v1271 = vpack.c.b16 %v871, %v869
    %v1272 = vpack.c.b16 %v872, %v870
    %v1273 = vpack.c.b16 %v875, %v873
    %v1274 = vpack.c.b16 %v876, %v874
    %v1275 = vpack.c.b16 %v879, %v877
    %v1276 = vpack.c.b16 %v880, %v878
    %v1277 = vpack.c.b16 %v883, %v881
    %v1278 = vpack.c.b16 %v884, %v882
    %v1279 = vpack.c.b16 %v887, %v885
    %v1280 = vpack.c.b16 %v888, %v886
    %v1281 = vpack.c.b16 %v891, %v889
    %v1282 = vpack.c.b16 %v892, %v890
    %v1283 = vpack.c.b16 %v895, %v893
    %v1284 = vpack.c.b16 %v896, %v894
    %v1285 = vpack.c.b16 %v899, %v897
    %v1286 = vpack.c.b16 %v900, %v898
    %v1287 = vpack.c.b16 %v903, %v901
    %v1288 = vpack.c.b16 %v904, %v902
    %v1289 = vpack.c.b16 %v907, %v905
    %v1290 = vpack.c.b16 %v908, %v906
    %v1291 = vpack.c.b16 %v911, %v909
    %v1292 = vpack.c.b16 %v912, %v910
    %v1293 = vpack.c.b16 %v915, %v913
    %v1294 = vpack.c.b16 %v916, %v914
    %v1295 = vpack.c.b16 %v919, %v917
    %v1296 = vpack.c.b16 %v920, %v918
    %v1297 = vpack.c.b16 %v923, %v921
    %v1298 = vpack.c.b16 %v924, %v922
    %v1299 = vpack.c.b16 %v927, %v925
    %v1300 = vpack.c.b16 %v928, %v926
    %v1301 = vpack.c.b16 %v931, %v929
    %v1302 = vpack.c.b16 %v932, %v930
    %v1303 = vpack.c.b16 %v935, %v933
    %v1304 = vpack.c.b16 %v936, %v934
    %v1305 = vpack.c.b16 %v939, %v937
    %v1306 = vpack.c.b16 %v940, %v938
    %v1307 = vpack.c.b16 %v943, %v941
    %v1308 = vpack.c.b16 %v944, %v942
    %v1309 = vpack.c.b16 %v947, %v945
    %v1310 = vpack.c.b16 %v948, %v946
    %v1311 = vpack.c.b16 %v951, %v949
    %v1312 = vpack.c.b16 %v952, %v950
    %v1313 = vpack.c.b16 %v955, %v953
    %v1314 = vpack.c.b16 %v956, %v954
    %v1315 = vpack.c.b16 %v959, %v957
    %v1316 = vpack.c.b16 %v960, %v958
    %v1317 = vpack.c.b16 %v963, %v961
    %v1318 = vpack.c.b16 %v964, %v962
    %v1319 = vpack.c.b16 %v967, %v965
    %v1320 = vpack.c.b16 %v968, %v966
    %v1321 = vpack.c.b16 %v971, %v969
    %v1322 = vpack.c.b16 %v972, %v970
    %v1323 = vpack.c.b16 %v975, %v973
    %v1324 = vpack.c.b16 %v976, %v974
    %v1325 = vpack.c.b16 %v979, %v977
    %v1326 = vpack.c.b16 %v980, %v978
    %v1327 = vpack.c.b16 %v983, %v981
    %v1328 = vpack.c.b16 %v984, %v982
    %v1329 = vpack.c.b16 %v987, %v985
    %v1330 = vpack.c.b16 %v988, %v986
    %v1331 = vpack.c.b16 %v991, %v989
    %v1332 = vpack.c.b16 %v992, %v990
    %v1333 = vpack.c.b16 %v995, %v993
    %v1334 = vpack.c.b16 %v996, %v994
    %v1335 = vpack.c.b16 %v999, %v997
    %v1336 = vpack.c.b16 %v1000, %v998
    %v1337 = vpack.c.b16 %v1003, %v1001
    %v1338 = vpack.c.b16 %v1004, %v1002
    %v1339 = vpack.c.b16 %v1007, %v1005
    %v1340 = vpack.c.b16 %v1008, %v1006
    %v1341 = vpack.c.b16 %v1011, %v1009
    %v1342 = vpack.c.b16 %v1012, %v1010
    %v1343 = vpack.c.b16 %v1015, %v1013
    %v1344 = vpack.c.b16 %v1016, %v1014
    %v1345 = vpack.c.b16 %v1019, %v1017
    %v1346 = vpack.c.b16 %v1020, %v1018
    %v1347 = vpack.c.b16 %v1023, %v1021
    %v1348 = vpack.c.b16 %v1024, %v1022
    %v1349 = vpack.c.b16 %v1027, %v1025
    %v1350 = vpack.c.b16 %v1028, %v1026
    %v1351 = vpack.c.b16 %v1031, %v1029
    %v1352 = vpack.c.b16 %v1032, %v1030
    %v1353 = vpack.c.b16 %v1035, %v1033
    %v1354 = vpack.c.b16 %v1036, %v1034
    %v1355 = vpack.c.b16 %v1039, %v1037
    %v1356 = vpack.c.b16 %v1040, %v1038
    %v1357 = vpack.c.b16 %v1043, %v1041
    %v1358 = vpack.c.b16 %v1044, %v1042
    %v1359 = vpack.c.b16 %v1047, %v1045
    %v1360 = vpack.c.b16 %v1048, %v1046
    %v1361 = vpack.c.b16 %v1051, %v1049
    %v1362 = vpack.c.b16 %v1052, %v1050
    %v1363 = vpack.c.b16 %v1055, %v1053
    %v1364 = vpack.c.b16 %v1056, %v1054
    %v1365 = vpack.c.b16 %v1059, %v1057
    %v1366 = vpack.c.b16 %v1060, %v1058
    %v1367 = vpack.c.b16 %v1063, %v1061
    %v1368 = vpack.c.b16 %v1064, %v1062
    %v1369 = vpack.c.b16 %v1067, %v1065
    %v1370 = vpack.c.b16 %v1068, %v1066
    %v1371 = vpack.c.b16 %v1071, %v1069
    %v1372 = vpack.c.b16 %v1072, %v1070
    %v1373 = vpack.c.b16 %v1075, %v1073
    %v1374 = vpack.c.b16 %v1076, %v1074
    %v1375 = vpack.c.b16 %v1079, %v1077
    %v1376 = vpack.c.b16 %v1080, %v1078
    %v1377 = vpack.c.b16 %v1083, %v1081
    %v1378 = vpack.c.b16 %v1084, %v1082
    %v1379 = vpack.c.b16 %v1087, %v1085
    %v1380 = vpack.c.b16 %v1088, %v1086
    %v1381 = vpack.c.b16 %v1091, %v1089
    %v1382 = vpack.c.b16 %v1092, %v1090
    %v1383 = vpack.c.b16 %v1095, %v1093
    %v1384 = vpack.c.b16 %v1096, %v1094
    %v1385 = vpack.c.b16 %v1099, %v1097
    %v1386 = vpack.c.b16 %v1100, %v1098
    %v1387 = vpack.c.b16 %v1103, %v1101
    %v1388 = vpack.c.b16 %v1104, %v1102
    %v1389 = vpack.c.b16 %v1107, %v1105
    %v1390 = vpack.c.b16 %v1108, %v1106
    %v1391 = vpack.c.b16 %v1111, %v1109
    %v1392 = vpack.c.b16 %v1112, %v1110
    %v1393 = vpack.c.b16 %v1115, %v1113
    %v1394 = vpack.c.b16 %v1116, %v1114
    %v1395 = vpack.c.b16 %v1119, %v1117
    %v1396 = vpack.c.b16 %v1120, %v1118
    %v1397 = vpack.c.b16 %v1123, %v1121
    %v1398 = vpack.c.b16 %v1124, %v1122
    %v1399 = vpack.c.b16 %v1127, %v1125
    %v1400 = vpack.c.b16 %v1128, %v1126
    %v1401 = vpack.c.b16 %v1131, %v1129
    %v1402 = vpack.c.b16 %v1132, %v1130
    %v1403 = vpack.c.b16 %v1135, %v1133
    %v1404 = vpack.c.b16 %v1136, %v1134
    %v1405 = vpack.c.b16 %v1139, %v1137
    %v1406 = vpack.c.b16 %v1140, %v1138
    %v1407 = vpack.c.b16 %v1143, %v1141
    %v1408 = vpack.c.b16 %v1144, %v1142
    %v1409 = vpack.c.b16 %v1147, %v1145
    %v1410 = vpack.c.b16 %v1148, %v1146
    %v1411 = vpack.c.b16 %v1151, %v1149
    %v1412 = vpack.c.b16 %v1152, %v1150
    %v1413 = vpack.c.b16 %v1155, %v1153
    %v1414 = vpack.c.b16 %v1156, %v1154
    %v1415 = vpack.c.b16 %v1159, %v1157
    %v1416 = vpack.c.b16 %v1160, %v1158
    %v1674 = vperm.slane %v356, 0
    %v1675 = vperm.slane %v356, 1
    %1678 = vmatpush.bf16.msra.mxu0 %v1175
    %1679 = vmatpush.bf16.msra.mxu0 %v1173
    %1680 = vmatpush.bf16.msra.mxu0 %v1171
    %1681 = vmatpush.bf16.msra.mxu0 %v1169
    %1682 = vmatpush.bf16.msra.mxu0 %v1167
    %1683 = vmatpush.bf16.msra.mxu0 %v1165
    %1684 = vmatpush.bf16.msra.mxu0 %v1163
    %1685 = vmatpush.bf16.msra.mxu0 %v1161
    %1686 = vmatmul.bf16.gmra.mxu0 %v359
    %v1687 = vpop.f32.mrf.mxu0
    %v1688 = vadd.f32 %v1674, %v1687
    %v1689 = vpop.f32.mrf.mxu0
    %1690 = vdwg.mxu0
    %1691 = vmatpush.bf16.msra.mxu0 %v1191
    %1692 = vmatpush.bf16.msra.mxu0 %v1189
    %1693 = vmatpush.bf16.msra.mxu0 %v1187
    %1694 = vmatpush.bf16.msra.mxu0 %v1185
    %1695 = vmatpush.bf16.msra.mxu0 %v1183
    %1696 = vmatpush.bf16.msra.mxu0 %v1181
    %1697 = vmatpush.bf16.msra.mxu0 %v1179
    %1698 = vmatpush.bf16.msra.mxu0 %v1177
    %1699 = vmatmul.bf16.gmra.mxu0 %v360
    %v1700 = vpop.f32.mrf.mxu0
    %v1701 = vadd.f32 %v1688, %v1700
    %v1702 = vpop.f32.mrf.mxu0
    %1703 = vdwg.mxu0
    %1704 = vmatpush.bf16.msra.mxu0 %v1207
    %1705 = vmatpush.bf16.msra.mxu0 %v1205
    %1706 = vmatpush.bf16.msra.mxu0 %v1203
    %1707 = vmatpush.bf16.msra.mxu0 %v1201
    %1708 = vmatpush.bf16.msra.mxu0 %v1199
    %1709 = vmatpush.bf16.msra.mxu0 %v1197
    %1710 = vmatpush.bf16.msra.mxu0 %v1195
    %1711 = vmatpush.bf16.msra.mxu0 %v1193
    %1712 = vmatmul.bf16.gmra.mxu0 %v361
    %v1713 = vpop.f32.mrf.mxu0
    %v1714 = vadd.f32 %v1701, %v1713
    %v1715 = vpop.f32.mrf.mxu0
    %1716 = vdwg.mxu0
    %1717 = vmatpush.bf16.msra.mxu0 %v1223
    %1718 = vmatpush.bf16.msra.mxu0 %v1221
    %1719 = vmatpush.bf16.msra.mxu0 %v1219
    %1720 = vmatpush.bf16.msra.mxu0 %v1217
    %1721 = vmatpush.bf16.msra.mxu0 %v1215
    %1722 = vmatpush.bf16.msra.mxu0 %v1213
    %1723 = vmatpush.bf16.msra.mxu0 %v1211
    %1724 = vmatpush.bf16.msra.mxu0 %v1209
    %1725 = vmatmul.bf16.gmra.mxu0 %v362
    %v1726 = vpop.f32.mrf.mxu0
    %v1727 = vadd.f32 %v1714, %v1726
    %v1728 = vpop.f32.mrf.mxu0
    %1729 = vdwg.mxu0
    %1730 = vmatpush.bf16.msra.mxu0 %v1239
    %1731 = vmatpush.bf16.msra.mxu0 %v1237
    %1732 = vmatpush.bf16.msra.mxu0 %v1235
    %1733 = vmatpush.bf16.msra.mxu0 %v1233
    %1734 = vmatpush.bf16.msra.mxu0 %v1231
    %1735 = vmatpush.bf16.msra.mxu0 %v1229
    %1736 = vmatpush.bf16.msra.mxu0 %v1227
    %1737 = vmatpush.bf16.msra.mxu0 %v1225
    %1738 = vmatmul.bf16.gmra.mxu0 %v363
    %v1739 = vpop.f32.mrf.mxu0
    %v1740 = vadd.f32 %v1727, %v1739
    %v1741 = vpop.f32.mrf.mxu0
    %1742 = vdwg.mxu0
    %1743 = vmatpush.bf16.msra.mxu0 %v1255
    %1744 = vmatpush.bf16.msra.mxu0 %v1253
    %1745 = vmatpush.bf16.msra.mxu0 %v1251
    %1746 = vmatpush.bf16.msra.mxu0 %v1249
    %1747 = vmatpush.bf16.msra.mxu0 %v1247
    %1748 = vmatpush.bf16.msra.mxu0 %v1245
    %1749 = vmatpush.bf16.msra.mxu0 %v1243
    %1750 = vmatpush.bf16.msra.mxu0 %v1241
    %1751 = vmatmul.bf16.gmra.mxu0 %v364
    %v1752 = vpop.f32.mrf.mxu0
    %v1753 = vadd.f32 %v1740, %v1752
    %v1754 = vpop.f32.mrf.mxu0
    %1755 = vdwg.mxu0
    %1756 = vmatpush.bf16.msra.mxu0 %v1271
    %1757 = vmatpush.bf16.msra.mxu0 %v1269
    %1758 = vmatpush.bf16.msra.mxu0 %v1267
    %1759 = vmatpush.bf16.msra.mxu0 %v1265
    %1760 = vmatpush.bf16.msra.mxu0 %v1263
    %1761 = vmatpush.bf16.msra.mxu0 %v1261
    %1762 = vmatpush.bf16.msra.mxu0 %v1259
    %1763 = vmatpush.bf16.msra.mxu0 %v1257
    %1764 = vmatmul.bf16.gmra.mxu0 %v365
    %v1765 = vpop.f32.mrf.mxu0
    %v1766 = vadd.f32 %v1753, %v1765
    %v1767 = vpop.f32.mrf.mxu0
    %1768 = vdwg.mxu0
    %1769 = vmatpush.bf16.msra.mxu0 %v1287
    %1770 = vmatpush.bf16.msra.mxu0 %v1285
    %1771 = vmatpush.bf16.msra.mxu0 %v1283
    %1772 = vmatpush.bf16.msra.mxu0 %v1281
    %1773 = vmatpush.bf16.msra.mxu0 %v1279
    %1774 = vmatpush.bf16.msra.mxu0 %v1277
    %1775 = vmatpush.bf16.msra.mxu0 %v1275
    %1776 = vmatpush.bf16.msra.mxu0 %v1273
    %1777 = vmatmul.bf16.gmra.mxu0 %v366
    %v1778 = vpop.f32.mrf.mxu0
    %v1779 = vadd.f32 %v1766, %v1778
    %v1780 = vpop.f32.mrf.mxu0
    %1781 = vdwg.mxu0
    %1782 = vmatpush.bf16.msra.mxu0 %v1303
    %1783 = vmatpush.bf16.msra.mxu0 %v1301
    %1784 = vmatpush.bf16.msra.mxu0 %v1299
    %1785 = vmatpush.bf16.msra.mxu0 %v1297
    %1786 = vmatpush.bf16.msra.mxu0 %v1295
    %1787 = vmatpush.bf16.msra.mxu0 %v1293
    %1788 = vmatpush.bf16.msra.mxu0 %v1291
    %1789 = vmatpush.bf16.msra.mxu0 %v1289
    %1790 = vmatmul.bf16.gmra.mxu0 %v369
    %v1791 = vpop.f32.mrf.mxu0
    %v1792 = vadd.f32 %v1779, %v1791
    %v1793 = vpop.f32.mrf.mxu0
    %1794 = vdwg.mxu0
    %1795 = vmatpush.bf16.msra.mxu0 %v1319
    %1796 = vmatpush.bf16.msra.mxu0 %v1317
    %1797 = vmatpush.bf16.msra.mxu0 %v1315
    %1798 = vmatpush.bf16.msra.mxu0 %v1313
    %1799 = vmatpush.bf16.msra.mxu0 %v1311
    %1800 = vmatpush.bf16.msra.mxu0 %v1309
    %1801 = vmatpush.bf16.msra.mxu0 %v1307
    %1802 = vmatpush.bf16.msra.mxu0 %v1305
    %1803 = vmatmul.bf16.gmra.mxu0 %v370
    %v1804 = vpop.f32.mrf.mxu0
    %v1805 = vadd.f32 %v1792, %v1804
    %v1806 = vpop.f32.mrf.mxu0
    %1807 = vdwg.mxu0
    %1808 = vmatpush.bf16.msra.mxu0 %v1335
    %1809 = vmatpush.bf16.msra.mxu0 %v1333
    %1810 = vmatpush.bf16.msra.mxu0 %v1331
    %1811 = vmatpush.bf16.msra.mxu0 %v1329
    %1812 = vmatpush.bf16.msra.mxu0 %v1327
    %1813 = vmatpush.bf16.msra.mxu0 %v1325
    %1814 = vmatpush.bf16.msra.mxu0 %v1323
    %1815 = vmatpush.bf16.msra.mxu0 %v1321
    %1816 = vmatmul.bf16.gmra.mxu0 %v371
    %v1817 = vpop.f32.mrf.mxu0
    %v1818 = vadd.f32 %v1805, %v1817
    %v1819 = vpop.f32.mrf.mxu0
    %1820 = vdwg.mxu0
    %1821 = vmatpush.bf16.msra.mxu0 %v1351
    %1822 = vmatpush.bf16.msra.mxu0 %v1349
    %1823 = vmatpush.bf16.msra.mxu0 %v1347
    %1824 = vmatpush.bf16.msra.mxu0 %v1345
    %1825 = vmatpush.bf16.msra.mxu0 %v1343
    %1826 = vmatpush.bf16.msra.mxu0 %v1341
    %1827 = vmatpush.bf16.msra.mxu0 %v1339
    %1828 = vmatpush.bf16.msra.mxu0 %v1337
    %1829 = vmatmul.bf16.gmra.mxu0 %v372
    %v1830 = vpop.f32.mrf.mxu0
    %v1831 = vadd.f32 %v1818, %v1830
    %v1832 = vpop.f32.mrf.mxu0
    %1833 = vdwg.mxu0
    %1834 = vmatpush.bf16.msra.mxu0 %v1367
    %1835 = vmatpush.bf16.msra.mxu0 %v1365
    %1836 = vmatpush.bf16.msra.mxu0 %v1363
    %1837 = vmatpush.bf16.msra.mxu0 %v1361
    %1838 = vmatpush.bf16.msra.mxu0 %v1359
    %1839 = vmatpush.bf16.msra.mxu0 %v1357
    %1840 = vmatpush.bf16.msra.mxu0 %v1355
    %1841 = vmatpush.bf16.msra.mxu0 %v1353
    %1842 = vmatmul.bf16.gmra.mxu0 %v373
    %v1843 = vpop.f32.mrf.mxu0
    %v1844 = vadd.f32 %v1831, %v1843
    %v1845 = vpop.f32.mrf.mxu0
    %1846 = vdwg.mxu0
    %1847 = vmatpush.bf16.msra.mxu0 %v1383
    %1848 = vmatpush.bf16.msra.mxu0 %v1381
    %1849 = vmatpush.bf16.msra.mxu0 %v1379
    %1850 = vmatpush.bf16.msra.mxu0 %v1377
    %1851 = vmatpush.bf16.msra.mxu0 %v1375
    %1852 = vmatpush.bf16.msra.mxu0 %v1373
    %1853 = vmatpush.bf16.msra.mxu0 %v1371
    %1854 = vmatpush.bf16.msra.mxu0 %v1369
    %1855 = vmatmul.bf16.gmra.mxu0 %v374
    %v1856 = vpop.f32.mrf.mxu0
    %v1857 = vadd.f32 %v1844, %v1856
    %v1858 = vpop.f32.mrf.mxu0
    %1859 = vdwg.mxu0
    %1860 = vmatpush.bf16.msra.mxu0 %v1399
    %1861 = vmatpush.bf16.msra.mxu0 %v1397
    %1862 = vmatpush.bf16.msra.mxu0 %v1395
    %1863 = vmatpush.bf16.msra.mxu0 %v1393
    %1864 = vmatpush.bf16.msra.mxu0 %v1391
    %1865 = vmatpush.bf16.msra.mxu0 %v1389
    %1866 = vmatpush.bf16.msra.mxu0 %v1387
    %1867 = vmatpush.bf16.msra.mxu0 %v1385
    %1868 = vmatmul.bf16.gmra.mxu0 %v375
    %v1869 = vpop.f32.mrf.mxu0
    %v1870 = vadd.f32 %v1857, %v1869
    %v1871 = vpop.f32.mrf.mxu0
    %1872 = vdwg.mxu0
    %1873 = vmatpush.bf16.msra.mxu0 %v1415
    %1874 = vmatpush.bf16.msra.mxu0 %v1413
    %1875 = vmatpush.bf16.msra.mxu0 %v1411
    %1876 = vmatpush.bf16.msra.mxu0 %v1409
    %1877 = vmatpush.bf16.msra.mxu0 %v1407
    %1878 = vmatpush.bf16.msra.mxu0 %v1405
    %1879 = vmatpush.bf16.msra.mxu0 %v1403
    %1880 = vmatpush.bf16.msra.mxu0 %v1401
    %1881 = vmatmul.bf16.gmra.mxu0 %v376
    %v1882 = vpop.f32.mrf.mxu0
    %v1883 = vadd.f32 %v1870, %v1882
    %v1884 = vpop.f32.mrf.mxu0
    %1885 = vdwg.mxu0
    %1886 = vmatpush.bf16.msra.mxu0 %v1176
    %1887 = vmatpush.bf16.msra.mxu0 %v1174
    %1888 = vmatpush.bf16.msra.mxu0 %v1172
    %1889 = vmatpush.bf16.msra.mxu0 %v1170
    %1890 = vmatpush.bf16.msra.mxu0 %v1168
    %1891 = vmatpush.bf16.msra.mxu0 %v1166
    %1892 = vmatpush.bf16.msra.mxu0 %v1164
    %1893 = vmatpush.bf16.msra.mxu0 %v1162
    %1894 = vmatmul.bf16.gmra.mxu0 %v359
    %v1895 = vpop.f32.mrf.mxu0
    %v1896 = vadd.f32 %v1675, %v1895
    %v1897 = vpop.f32.mrf.mxu0
    %1898 = vdwg.mxu0
    %1899 = vmatpush.bf16.msra.mxu0 %v1192
    %1900 = vmatpush.bf16.msra.mxu0 %v1190
    %1901 = vmatpush.bf16.msra.mxu0 %v1188
    %1902 = vmatpush.bf16.msra.mxu0 %v1186
    %1903 = vmatpush.bf16.msra.mxu0 %v1184
    %1904 = vmatpush.bf16.msra.mxu0 %v1182
    %1905 = vmatpush.bf16.msra.mxu0 %v1180
    %1906 = vmatpush.bf16.msra.mxu0 %v1178
    %1907 = vmatmul.bf16.gmra.mxu0 %v360
    %v1908 = vpop.f32.mrf.mxu0
    %v1909 = vadd.f32 %v1896, %v1908
    %v1910 = vpop.f32.mrf.mxu0
    %1911 = vdwg.mxu0
    %1912 = vmatpush.bf16.msra.mxu0 %v1208
    %1913 = vmatpush.bf16.msra.mxu0 %v1206
    %1914 = vmatpush.bf16.msra.mxu0 %v1204
    %1915 = vmatpush.bf16.msra.mxu0 %v1202
    %1916 = vmatpush.bf16.msra.mxu0 %v1200
    %1917 = vmatpush.bf16.msra.mxu0 %v1198
    %1918 = vmatpush.bf16.msra.mxu0 %v1196
    %1919 = vmatpush.bf16.msra.mxu0 %v1194
    %1920 = vmatmul.bf16.gmra.mxu0 %v361
    %v1921 = vpop.f32.mrf.mxu0
    %v1922 = vadd.f32 %v1909, %v1921
    %v1923 = vpop.f32.mrf.mxu0
    %1924 = vdwg.mxu0
    %1925 = vmatpush.bf16.msra.mxu0 %v1224
    %1926 = vmatpush.bf16.msra.mxu0 %v1222
    %1927 = vmatpush.bf16.msra.mxu0 %v1220
    %1928 = vmatpush.bf16.msra.mxu0 %v1218
    %1929 = vmatpush.bf16.msra.mxu0 %v1216
    %1930 = vmatpush.bf16.msra.mxu0 %v1214
    %1931 = vmatpush.bf16.msra.mxu0 %v1212
    %1932 = vmatpush.bf16.msra.mxu0 %v1210
    %1933 = vmatmul.bf16.gmra.mxu0 %v362
    %v1934 = vpop.f32.mrf.mxu0
    %v1935 = vadd.f32 %v1922, %v1934
    %v1936 = vpop.f32.mrf.mxu0
    %1937 = vdwg.mxu0
    %1938 = vmatpush.bf16.msra.mxu0 %v1240
    %1939 = vmatpush.bf16.msra.mxu0 %v1238
    %1940 = vmatpush.bf16.msra.mxu0 %v1236
    %1941 = vmatpush.bf16.msra.mxu0 %v1234
    %1942 = vmatpush.bf16.msra.mxu0 %v1232
    %1943 = vmatpush.bf16.msra.mxu0 %v1230
    %1944 = vmatpush.bf16.msra.mxu0 %v1228
    %1945 = vmatpush.bf16.msra.mxu0 %v1226
    %1946 = vmatmul.bf16.gmra.mxu0 %v363
    %v1947 = vpop.f32.mrf.mxu0
    %v1948 = vadd.f32 %v1935, %v1947
    %v1949 = vpop.f32.mrf.mxu0
    %1950 = vdwg.mxu0
    %1951 = vmatpush.bf16.msra.mxu0 %v1256
    %1952 = vmatpush.bf16.msra.mxu0 %v1254
    %1953 = vmatpush.bf16.msra.mxu0 %v1252
    %1954 = vmatpush.bf16.msra.mxu0 %v1250
    %1955 = vmatpush.bf16.msra.mxu0 %v1248
    %1956 = vmatpush.bf16.msra.mxu0 %v1246
    %1957 = vmatpush.bf16.msra.mxu0 %v1244
    %1958 = vmatpush.bf16.msra.mxu0 %v1242
    %1959 = vmatmul.bf16.gmra.mxu0 %v364
    %v1960 = vpop.f32.mrf.mxu0
    %v1961 = vadd.f32 %v1948, %v1960
    %v1962 = vpop.f32.mrf.mxu0
    %1963 = vdwg.mxu0
    %1964 = vmatpush.bf16.msra.mxu0 %v1272
    %1965 = vmatpush.bf16.msra.mxu0 %v1270
    %1966 = vmatpush.bf16.msra.mxu0 %v1268
    %1967 = vmatpush.bf16.msra.mxu0 %v1266
    %1968 = vmatpush.bf16.msra.mxu0 %v1264
    %1969 = vmatpush.bf16.msra.mxu0 %v1262
    %1970 = vmatpush.bf16.msra.mxu0 %v1260
    %1971 = vmatpush.bf16.msra.mxu0 %v1258
    %1972 = vmatmul.bf16.gmra.mxu0 %v365
    %v1973 = vpop.f32.mrf.mxu0
    %v1974 = vadd.f32 %v1961, %v1973
    %v1975 = vpop.f32.mrf.mxu0
    %1976 = vdwg.mxu0
    %1977 = vmatpush.bf16.msra.mxu0 %v1288
    %1978 = vmatpush.bf16.msra.mxu0 %v1286
    %1979 = vmatpush.bf16.msra.mxu0 %v1284
    %1980 = vmatpush.bf16.msra.mxu0 %v1282
    %1981 = vmatpush.bf16.msra.mxu0 %v1280
    %1982 = vmatpush.bf16.msra.mxu0 %v1278
    %1983 = vmatpush.bf16.msra.mxu0 %v1276
    %1984 = vmatpush.bf16.msra.mxu0 %v1274
    %1985 = vmatmul.bf16.gmra.mxu0 %v366
    %v1986 = vpop.f32.mrf.mxu0
    %v1987 = vadd.f32 %v1974, %v1986
    %v1988 = vpop.f32.mrf.mxu0
    %1989 = vdwg.mxu0
    %1990 = vmatpush.bf16.msra.mxu0 %v1304
    %1991 = vmatpush.bf16.msra.mxu0 %v1302
    %1992 = vmatpush.bf16.msra.mxu0 %v1300
    %1993 = vmatpush.bf16.msra.mxu0 %v1298
    %1994 = vmatpush.bf16.msra.mxu0 %v1296
    %1995 = vmatpush.bf16.msra.mxu0 %v1294
    %1996 = vmatpush.bf16.msra.mxu0 %v1292
    %1997 = vmatpush.bf16.msra.mxu0 %v1290
    %1998 = vmatmul.bf16.gmra.mxu0 %v369
    %v1999 = vpop.f32.mrf.mxu0
    %v2000 = vadd.f32 %v1987, %v1999
    %v2001 = vpop.f32.mrf.mxu0
    %2002 = vdwg.mxu0
    %2003 = vmatpush.bf16.msra.mxu0 %v1320
    %2004 = vmatpush.bf16.msra.mxu0 %v1318
    %2005 = vmatpush.bf16.msra.mxu0 %v1316
    %2006 = vmatpush.bf16.msra.mxu0 %v1314
    %2007 = vmatpush.bf16.msra.mxu0 %v1312
    %2008 = vmatpush.bf16.msra.mxu0 %v1310
    %2009 = vmatpush.bf16.msra.mxu0 %v1308
    %2010 = vmatpush.bf16.msra.mxu0 %v1306
    %2011 = vmatmul.bf16.gmra.mxu0 %v370
    %v2012 = vpop.f32.mrf.mxu0
    %v2013 = vadd.f32 %v2000, %v2012
    %v2014 = vpop.f32.mrf.mxu0
    %2015 = vdwg.mxu0
    %2016 = vmatpush.bf16.msra.mxu0 %v1336
    %2017 = vmatpush.bf16.msra.mxu0 %v1334
    %2018 = vmatpush.bf16.msra.mxu0 %v1332
    %2019 = vmatpush.bf16.msra.mxu0 %v1330
    %2020 = vmatpush.bf16.msra.mxu0 %v1328
    %2021 = vmatpush.bf16.msra.mxu0 %v1326
    %2022 = vmatpush.bf16.msra.mxu0 %v1324
    %2023 = vmatpush.bf16.msra.mxu0 %v1322
    %2024 = vmatmul.bf16.gmra.mxu0 %v371
    %v2025 = vpop.f32.mrf.mxu0
    %v2026 = vadd.f32 %v2013, %v2025
    %v2027 = vpop.f32.mrf.mxu0
    %2028 = vdwg.mxu0
    %2029 = vmatpush.bf16.msra.mxu0 %v1352
    %2030 = vmatpush.bf16.msra.mxu0 %v1350
    %2031 = vmatpush.bf16.msra.mxu0 %v1348
    %2032 = vmatpush.bf16.msra.mxu0 %v1346
    %2033 = vmatpush.bf16.msra.mxu0 %v1344
    %2034 = vmatpush.bf16.msra.mxu0 %v1342
    %2035 = vmatpush.bf16.msra.mxu0 %v1340
    %2036 = vmatpush.bf16.msra.mxu0 %v1338
    %2037 = vmatmul.bf16.gmra.mxu0 %v372
    %v2038 = vpop.f32.mrf.mxu0
    %v2039 = vadd.f32 %v2026, %v2038
    %v2040 = vpop.f32.mrf.mxu0
    %2041 = vdwg.mxu0
    %2042 = vmatpush.bf16.msra.mxu0 %v1368
    %2043 = vmatpush.bf16.msra.mxu0 %v1366
    %2044 = vmatpush.bf16.msra.mxu0 %v1364
    %2045 = vmatpush.bf16.msra.mxu0 %v1362
    %2046 = vmatpush.bf16.msra.mxu0 %v1360
    %2047 = vmatpush.bf16.msra.mxu0 %v1358
    %2048 = vmatpush.bf16.msra.mxu0 %v1356
    %2049 = vmatpush.bf16.msra.mxu0 %v1354
    %2050 = vmatmul.bf16.gmra.mxu0 %v373
    %v2051 = vpop.f32.mrf.mxu0
    %v2052 = vadd.f32 %v2039, %v2051
    %v2053 = vpop.f32.mrf.mxu0
    %2054 = vdwg.mxu0
    %2055 = vmatpush.bf16.msra.mxu0 %v1384
    %2056 = vmatpush.bf16.msra.mxu0 %v1382
    %2057 = vmatpush.bf16.msra.mxu0 %v1380
    %2058 = vmatpush.bf16.msra.mxu0 %v1378
    %2059 = vmatpush.bf16.msra.mxu0 %v1376
    %2060 = vmatpush.bf16.msra.mxu0 %v1374
    %2061 = vmatpush.bf16.msra.mxu0 %v1372
    %2062 = vmatpush.bf16.msra.mxu0 %v1370
    %2063 = vmatmul.bf16.gmra.mxu0 %v374
    %v2064 = vpop.f32.mrf.mxu0
    %v2065 = vadd.f32 %v2052, %v2064
    %v2066 = vpop.f32.mrf.mxu0
    %2067 = vdwg.mxu0
    %2068 = vmatpush.bf16.msra.mxu0 %v1400
    %2069 = vmatpush.bf16.msra.mxu0 %v1398
    %2070 = vmatpush.bf16.msra.mxu0 %v1396
    %2071 = vmatpush.bf16.msra.mxu0 %v1394
    %2072 = vmatpush.bf16.msra.mxu0 %v1392
    %2073 = vmatpush.bf16.msra.mxu0 %v1390
    %2074 = vmatpush.bf16.msra.mxu0 %v1388
    %2075 = vmatpush.bf16.msra.mxu0 %v1386
    %2076 = vmatmul.bf16.gmra.mxu0 %v375
    %v2077 = vpop.f32.mrf.mxu0
    %v2078 = vadd.f32 %v2065, %v2077
    %v2079 = vpop.f32.mrf.mxu0
    %2080 = vdwg.mxu0
    %2081 = vmatpush.bf16.msra.mxu0 %v1416
    %2082 = vmatpush.bf16.msra.mxu0 %v1414
    %2083 = vmatpush.bf16.msra.mxu0 %v1412
    %2084 = vmatpush.bf16.msra.mxu0 %v1410
    %2085 = vmatpush.bf16.msra.mxu0 %v1408
    %2086 = vmatpush.bf16.msra.mxu0 %v1406
    %2087 = vmatpush.bf16.msra.mxu0 %v1404
    %2088 = vmatpush.bf16.msra.mxu0 %v1402
    %2089 = vmatmul.bf16.gmra.mxu0 %v376
    %v2090 = vpop.f32.mrf.mxu0
    %v2091 = vadd.f32 %v2078, %v2090
    %v2092 = vpop.f32.mrf.mxu0
    %2093 = vdwg.mxu0
    %vm2094 = vcmp.gt.f32.partialorder %v1883, 0.0
    %vm2095 = vcmp.gt.f32.partialorder %v2091, 0.0
    %v2096 = vmul.f32 %v1883, 0.01
    %v2097 = vmul.f32 %v2091, 0.01
    %v2098 = vsel %vm2094, %v1883, %v2096
    %v2099 = vsel %vm2095, %v2091, %v2097
    %v2100 = vpack.c.bf16 %v2098, %v2098
    %v2101 = vpack.c.bf16 %v2099, %v2099
    %v2102 = vld [vmem:[%s4] sm:$0xff]
    %v2103 = vld [vmem:[%s4 + $0x8] sm:$0xff]
    %v2104 = vld [vmem:[%s4 + $0x10] sm:$0xff]
    %v2105 = vld [vmem:[%s4 + $0x18] sm:$0xff]
    %v2106 = vld [vmem:[%s4 + $0x20] sm:$0xff]
    %v2107 = vld [vmem:[%s4 + $0x28] sm:$0xff]
    %v2108 = vld [vmem:[%s4 + $0x30] sm:$0xff]
    %v2109 = vld [vmem:[%s4 + $0x38] sm:$0xff]
    %v2110 = vld [vmem:[%s4 + $0x40] sm:$0xff]
    %v2111 = vld [vmem:[%s4 + $0x48] sm:$0xff]
    %v2112 = vld [vmem:[%s4 + $0x50] sm:$0xff]
    %v2113 = vld [vmem:[%s4 + $0x58] sm:$0xff]
    %v2114 = vld [vmem:[%s4 + $0x60] sm:$0xff]
    %v2115 = vld [vmem:[%s4 + $0x68] sm:$0xff]
    %v2116 = vld [vmem:[%s4 + $0x70] sm:$0xff]
    %v2117 = vld [vmem:[%s4 + $0x78] sm:$0xff]
    %v2118 = vld [vmem:[%s4 + $0x80] sm:$0xff]
    %v2119 = vld [vmem:[%s4 + $0x88] sm:$0xff]
    %v2120 = vld [vmem:[%s4 + $0x90] sm:$0xff]
    %v2121 = vld [vmem:[%s4 + $0x98] sm:$0xff]
    %v2122 = vld [vmem:[%s4 + $0xa0] sm:$0xff]
    %v2123 = vld [vmem:[%s4 + $0xa8] sm:$0xff]
    %v2124 = vld [vmem:[%s4 + $0xb0] sm:$0xff]
    %v2125 = vld [vmem:[%s4 + $0xb8] sm:$0xff]
    %v2126 = vld [vmem:[%s4 + $0xc0] sm:$0xff]
    %v2127 = vld [vmem:[%s4 + $0xc8] sm:$0xff]
    %v2128 = vld [vmem:[%s4 + $0xd0] sm:$0xff]
    %v2129 = vld [vmem:[%s4 + $0xd8] sm:$0xff]
    %v2130 = vld [vmem:[%s4 + $0xe0] sm:$0xff]
    %v2131 = vld [vmem:[%s4 + $0xe8] sm:$0xff]
    %v2132 = vld [vmem:[%s4 + $0xf0] sm:$0xff]
    %v2133 = vld [vmem:[%s4 + $0xf8] sm:$0xff]
    %v2134 = vld [vmem:[%s5] sm:$0x3]
    %v2167 = vunpack.c.l.b16 %v2102
    %v2168 = vunpack.c.h.b16 %v2102
    %v2169 = vunpack.c.l.b16 %v2103
    %v2170 = vunpack.c.h.b16 %v2103
    %v2171 = vunpack.c.l.b16 %v2104
    %v2172 = vunpack.c.h.b16 %v2104
    %v2173 = vunpack.c.l.b16 %v2105
    %v2174 = vunpack.c.h.b16 %v2105
    %v2175 = vunpack.c.l.b16 %v2106
    %v2176 = vunpack.c.h.b16 %v2106
    %v2177 = vunpack.c.l.b16 %v2107
    %v2178 = vunpack.c.h.b16 %v2107
    %v2179 = vunpack.c.l.b16 %v2108
    %v2180 = vunpack.c.h.b16 %v2108
    %v2181 = vunpack.c.l.b16 %v2109
    %v2182 = vunpack.c.h.b16 %v2109
    %v2183 = vunpack.c.l.b16 %v2110
    %v2184 = vunpack.c.h.b16 %v2110
    %v2185 = vunpack.c.l.b16 %v2111
    %v2186 = vunpack.c.h.b16 %v2111
    %v2187 = vunpack.c.l.b16 %v2112
    %v2188 = vunpack.c.h.b16 %v2112
    %v2189 = vunpack.c.l.b16 %v2113
    %v2190 = vunpack.c.h.b16 %v2113
    %v2191 = vunpack.c.l.b16 %v2114
    %v2192 = vunpack.c.h.b16 %v2114
    %v2193 = vunpack.c.l.b16 %v2115
    %v2194 = vunpack.c.h.b16 %v2115
    %v2195 = vunpack.c.l.b16 %v2116
    %v2196 = vunpack.c.h.b16 %v2116
    %v2197 = vunpack.c.l.b16 %v2117
    %v2198 = vunpack.c.h.b16 %v2117
    %v2199 = vunpack.c.l.b16 %v2118
    %v2200 = vunpack.c.h.b16 %v2118
    %v2201 = vunpack.c.l.b16 %v2119
    %v2202 = vunpack.c.h.b16 %v2119
    %v2203 = vunpack.c.l.b16 %v2120
    %v2204 = vunpack.c.h.b16 %v2120
    %v2205 = vunpack.c.l.b16 %v2121
    %v2206 = vunpack.c.h.b16 %v2121
    %v2207 = vunpack.c.l.b16 %v2122
    %v2208 = vunpack.c.h.b16 %v2122
    %v2209 = vunpack.c.l.b16 %v2123
    %v2210 = vunpack.c.h.b16 %v2123
    %v2211 = vunpack.c.l.b16 %v2124
    %v2212 = vunpack.c.h.b16 %v2124
    %v2213 = vunpack.c.l.b16 %v2125
    %v2214 = vunpack.c.h.b16 %v2125
    %v2215 = vunpack.c.l.b16 %v2126
    %v2216 = vunpack.c.h.b16 %v2126
    %v2217 = vunpack.c.l.b16 %v2127
    %v2218 = vunpack.c.h.b16 %v2127
    %v2219 = vunpack.c.l.b16 %v2128
    %v2220 = vunpack.c.h.b16 %v2128
    %v2221 = vunpack.c.l.b16 %v2129
    %v2222 = vunpack.c.h.b16 %v2129
    %v2223 = vunpack.c.l.b16 %v2130
    %v2224 = vunpack.c.h.b16 %v2130
    %v2225 = vunpack.c.l.b16 %v2131
    %v2226 = vunpack.c.h.b16 %v2131
    %v2227 = vunpack.c.l.b16 %v2132
    %v2228 = vunpack.c.h.b16 %v2132
    %v2229 = vunpack.c.l.b16 %v2133
    %v2230 = vunpack.c.h.b16 %v2133
    %v2231 = vpack.c.b16 %v2169, %v2167
    %v2232 = vpack.c.b16 %v2170, %v2168
    %v2233 = vpack.c.b16 %v2173, %v2171
    %v2234 = vpack.c.b16 %v2174, %v2172
    %v2235 = vpack.c.b16 %v2177, %v2175
    %v2236 = vpack.c.b16 %v2178, %v2176
    %v2237 = vpack.c.b16 %v2181, %v2179
    %v2238 = vpack.c.b16 %v2182, %v2180
    %v2239 = vpack.c.b16 %v2185, %v2183
    %v2240 = vpack.c.b16 %v2186, %v2184
    %v2241 = vpack.c.b16 %v2189, %v2187
    %v2242 = vpack.c.b16 %v2190, %v2188
    %v2243 = vpack.c.b16 %v2193, %v2191
    %v2244 = vpack.c.b16 %v2194, %v2192
    %v2245 = vpack.c.b16 %v2197, %v2195
    %v2246 = vpack.c.b16 %v2198, %v2196
    %v2247 = vpack.c.b16 %v2201, %v2199
    %v2248 = vpack.c.b16 %v2202, %v2200
    %v2249 = vpack.c.b16 %v2205, %v2203
    %v2250 = vpack.c.b16 %v2206, %v2204
    %v2251 = vpack.c.b16 %v2209, %v2207
    %v2252 = vpack.c.b16 %v2210, %v2208
    %v2253 = vpack.c.b16 %v2213, %v2211
    %v2254 = vpack.c.b16 %v2214, %v2212
    %v2255 = vpack.c.b16 %v2217, %v2215
    %v2256 = vpack.c.b16 %v2218, %v2216
    %v2257 = vpack.c.b16 %v2221, %v2219
    %v2258 = vpack.c.b16 %v2222, %v2220
    %v2259 = vpack.c.b16 %v2225, %v2223
    %v2260 = vpack.c.b16 %v2226, %v2224
    %v2261 = vpack.c.b16 %v2229, %v2227
    %v2262 = vpack.c.b16 %v2230, %v2228
    %v2296 = vperm.slane %v2134, 0
    %v2297 = vperm.slane %v2134, 1
    %2300 = vmatpush.bf16.msra.mxu0 %v2245
    %2301 = vmatpush.bf16.msra.mxu0 %v2243
    %2302 = vmatpush.bf16.msra.mxu0 %v2241
    %2303 = vmatpush.bf16.msra.mxu0 %v2239
    %2304 = vmatpush.bf16.msra.mxu0 %v2237
    %2305 = vmatpush.bf16.msra.mxu0 %v2235
    %2306 = vmatpush.bf16.msra.mxu0 %v2233
    %2307 = vmatpush.bf16.msra.mxu0 %v2231
    %2308 = vmatmul.bf16.gmra.mxu0 %v2100
    %v2309 = vpop.f32.mrf.mxu0
    %v2310 = vadd.f32 %v2296, %v2309
    %v2311 = vpop.f32.mrf.mxu0
    %2312 = vdwg.mxu0
    %2313 = vmatpush.bf16.msra.mxu0 %v2261
    %2314 = vmatpush.bf16.msra.mxu0 %v2259
    %2315 = vmatpush.bf16.msra.mxu0 %v2257
    %2316 = vmatpush.bf16.msra.mxu0 %v2255
    %2317 = vmatpush.bf16.msra.mxu0 %v2253
    %2318 = vmatpush.bf16.msra.mxu0 %v2251
    %2319 = vmatpush.bf16.msra.mxu0 %v2249
    %2320 = vmatpush.bf16.msra.mxu0 %v2247
    %2321 = vmatmul.bf16.gmra.mxu0 %v2101
    %v2322 = vpop.f32.mrf.mxu0
    %v2323 = vadd.f32 %v2310, %v2322
    %v2324 = vpop.f32.mrf.mxu0
    %2325 = vdwg.mxu0
    %2326 = vmatpush.bf16.msra.mxu0 %v2246
    %2327 = vmatpush.bf16.msra.mxu0 %v2244
    %2328 = vmatpush.bf16.msra.mxu0 %v2242
    %2329 = vmatpush.bf16.msra.mxu0 %v2240
    %2330 = vmatpush.bf16.msra.mxu0 %v2238
    %2331 = vmatpush.bf16.msra.mxu0 %v2236
    %2332 = vmatpush.bf16.msra.mxu0 %v2234
    %2333 = vmatpush.bf16.msra.mxu0 %v2232
    %2334 = vmatmul.bf16.gmra.mxu0 %v2100
    %v2335 = vpop.f32.mrf.mxu0
    %v2336 = vadd.f32 %v2297, %v2335
    %v2337 = vpop.f32.mrf.mxu0
    %2338 = vdwg.mxu0
    %2339 = vmatpush.bf16.msra.mxu0 %v2262
    %2340 = vmatpush.bf16.msra.mxu0 %v2260
    %2341 = vmatpush.bf16.msra.mxu0 %v2258
    %2342 = vmatpush.bf16.msra.mxu0 %v2256
    %2343 = vmatpush.bf16.msra.mxu0 %v2254
    %2344 = vmatpush.bf16.msra.mxu0 %v2252
    %2345 = vmatpush.bf16.msra.mxu0 %v2250
    %2346 = vmatpush.bf16.msra.mxu0 %v2248
    %2347 = vmatmul.bf16.gmra.mxu0 %v2101
    %v2348 = vpop.f32.mrf.mxu0
    %v2349 = vadd.f32 %v2336, %v2348
    %v2350 = vpop.f32.mrf.mxu0
    %2351 = vdwg.mxu0
    %v2352 = vld [vmem:[%s1] sm:$0xff]
    %v2353 = vld [vmem:[%s1 + $0x8] sm:$0xff]
    %v2354 = vld [vmem:[%s1 + $0x10] sm:$0xff]
    %v2355 = vld [vmem:[%s1 + $0x18] sm:$0xff]
    %v2356 = vld [vmem:[%s6] sm:$0xff]
    %v2357 = vld [vmem:[%s6 + $0x8] sm:$0xff]
    %v2358 = vld [vmem:[%s6 + $0x10] sm:$0xff]
    %v2359 = vld [vmem:[%s6 + $0x18] sm:$0xff]
    %v2360 = vld [vmem:[%s6 + $0x20] sm:$0xff]
    %v2361 = vld [vmem:[%s6 + $0x28] sm:$0xff]
    %v2362 = vld [vmem:[%s6 + $0x30] sm:$0xff]
    %v2363 = vld [vmem:[%s6 + $0x38] sm:$0xff]
    %v2364 = vld [vmem:[%s6 + $0x40] sm:$0xff]
    %v2365 = vld [vmem:[%s6 + $0x48] sm:$0xff]
    %v2366 = vld [vmem:[%s6 + $0x50] sm:$0xff]
    %v2367 = vld [vmem:[%s6 + $0x58] sm:$0xff]
    %v2368 = vld [vmem:[%s6 + $0x60] sm:$0xff]
    %v2369 = vld [vmem:[%s6 + $0x68] sm:$0xff]
    %v2370 = vld [vmem:[%s6 + $0x70] sm:$0xff]
    %v2371 = vld [vmem:[%s6 + $0x78] sm:$0xff]
    %v2372 = vld [vmem:[%s6 + $0x80] sm:$0xff]
    %v2373 = vld [vmem:[%s6 + $0x88] sm:$0xff]
    %v2374 = vld [vmem:[%s6 + $0x90] sm:$0xff]
    %v2375 = vld [vmem:[%s6 + $0x98] sm:$0xff]
    %v2376 = vld [vmem:[%s6 + $0xa0] sm:$0xff]
    %v2377 = vld [vmem:[%s6 + $0xa8] sm:$0xff]
    %v2378 = vld [vmem:[%s6 + $0xb0] sm:$0xff]
    %v2379 = vld [vmem:[%s6 + $0xb8] sm:$0xff]
    %v2380 = vld [vmem:[%s6 + $0xc0] sm:$0xff]
    %v2381 = vld [vmem:[%s6 + $0xc8] sm:$0xff]
    %v2382 = vld [vmem:[%s6 + $0xd0] sm:$0xff]
    %v2383 = vld [vmem:[%s6 + $0xd8] sm:$0xff]
    %v2384 = vld [vmem:[%s6 + $0xe0] sm:$0xff]
    %v2385 = vld [vmem:[%s6 + $0xe8] sm:$0xff]
    %v2386 = vld [vmem:[%s6 + $0xf0] sm:$0xff]
    %v2387 = vld [vmem:[%s6 + $0xf8] sm:$0xff]
    %v2388 = vld [vmem:[%s6 + $0x100] sm:$0xff]
    %v2389 = vld [vmem:[%s6 + $0x108] sm:$0xff]
    %v2390 = vld [vmem:[%s6 + $0x110] sm:$0xff]
    %v2391 = vld [vmem:[%s6 + $0x118] sm:$0xff]
    %v2392 = vld [vmem:[%s6 + $0x120] sm:$0xff]
    %v2393 = vld [vmem:[%s6 + $0x128] sm:$0xff]
    %v2394 = vld [vmem:[%s6 + $0x130] sm:$0xff]
    %v2395 = vld [vmem:[%s6 + $0x138] sm:$0xff]
    %v2396 = vld [vmem:[%s6 + $0x140] sm:$0xff]
    %v2397 = vld [vmem:[%s6 + $0x148] sm:$0xff]
    %v2398 = vld [vmem:[%s6 + $0x150] sm:$0xff]
    %v2399 = vld [vmem:[%s6 + $0x158] sm:$0xff]
    %v2400 = vld [vmem:[%s6 + $0x160] sm:$0xff]
    %v2401 = vld [vmem:[%s6 + $0x168] sm:$0xff]
    %v2402 = vld [vmem:[%s6 + $0x170] sm:$0xff]
    %v2403 = vld [vmem:[%s6 + $0x178] sm:$0xff]
    %v2404 = vld [vmem:[%s6 + $0x180] sm:$0xff]
    %v2405 = vld [vmem:[%s6 + $0x188] sm:$0xff]
    %v2406 = vld [vmem:[%s6 + $0x190] sm:$0xff]
    %v2407 = vld [vmem:[%s6 + $0x198] sm:$0xff]
    %v2408 = vld [vmem:[%s6 + $0x1a0] sm:$0xff]
    %v2409 = vld [vmem:[%s6 + $0x1a8] sm:$0xff]
    %v2410 = vld [vmem:[%s6 + $0x1b0] sm:$0xff]
    %v2411 = vld [vmem:[%s6 + $0x1b8] sm:$0xff]
    %v2412 = vld [vmem:[%s6 + $0x1c0] sm:$0xff]
    %v2413 = vld [vmem:[%s6 + $0x1c8] sm:$0xff]
    %v2414 = vld [vmem:[%s6 + $0x1d0] sm:$0xff]
    %v2415 = vld [vmem:[%s6 + $0x1d8] sm:$0xff]
    %v2416 = vld [vmem:[%s6 + $0x1e0] sm:$0xff]
    %v2417 = vld [vmem:[%s6 + $0x1e8] sm:$0xff]
    %v2418 = vld [vmem:[%s6 + $0x1f0] sm:$0xff]
    %v2419 = vld [vmem:[%s6 + $0x1f8] sm:$0xff]
    %v2420 = vld [vmem:[%s6 + $0x200] sm:$0xff]
    %v2421 = vld [vmem:[%s6 + $0x208] sm:$0xff]
    %v2422 = vld [vmem:[%s6 + $0x210] sm:$0xff]
    %v2423 = vld [vmem:[%s6 + $0x218] sm:$0xff]
    %v2424 = vld [vmem:[%s6 + $0x220] sm:$0xff]
    %v2425 = vld [vmem:[%s6 + $0x228] sm:$0xff]
    %v2426 = vld [vmem:[%s6 + $0x230] sm:$0xff]
    %v2427 = vld [vmem:[%s6 + $0x238] sm:$0xff]
    %v2428 = vld [vmem:[%s6 + $0x240] sm:$0xff]
    %v2429 = vld [vmem:[%s6 + $0x248] sm:$0xff]
    %v2430 = vld [vmem:[%s6 + $0x250] sm:$0xff]
    %v2431 = vld [vmem:[%s6 + $0x258] sm:$0xff]
    %v2432 = vld [vmem:[%s6 + $0x260] sm:$0xff]
    %v2433 = vld [vmem:[%s6 + $0x268] sm:$0xff]
    %v2434 = vld [vmem:[%s6 + $0x270] sm:$0xff]
    %v2435 = vld [vmem:[%s6 + $0x278] sm:$0xff]
    %v2436 = vld [vmem:[%s6 + $0x280] sm:$0xff]
    %v2437 = vld [vmem:[%s6 + $0x288] sm:$0xff]
    %v2438 = vld [vmem:[%s6 + $0x290] sm:$0xff]
    %v2439 = vld [vmem:[%s6 + $0x298] sm:$0xff]
    %v2440 = vld [vmem:[%s6 + $0x2a0] sm:$0xff]
    %v2441 = vld [vmem:[%s6 + $0x2a8] sm:$0xff]
    %v2442 = vld [vmem:[%s6 + $0x2b0] sm:$0xff]
    %v2443 = vld [vmem:[%s6 + $0x2b8] sm:$0xff]
    %v2444 = vld [vmem:[%s6 + $0x2c0] sm:$0xff]
    %v2445 = vld [vmem:[%s6 + $0x2c8] sm:$0xff]
    %v2446 = vld [vmem:[%s6 + $0x2d0] sm:$0xff]
    %v2447 = vld [vmem:[%s6 + $0x2d8] sm:$0xff]
    %v2448 = vld [vmem:[%s6 + $0x2e0] sm:$0xff]
    %v2449 = vld [vmem:[%s6 + $0x2e8] sm:$0xff]
    %v2450 = vld [vmem:[%s6 + $0x2f0] sm:$0xff]
    %v2451 = vld [vmem:[%s6 + $0x2f8] sm:$0xff]
    %v2452 = vld [vmem:[%s6 + $0x300] sm:$0xff]
    %v2453 = vld [vmem:[%s6 + $0x308] sm:$0xff]
    %v2454 = vld [vmem:[%s6 + $0x310] sm:$0xff]
    %v2455 = vld [vmem:[%s6 + $0x318] sm:$0xff]
    %v2456 = vld [vmem:[%s6 + $0x320] sm:$0xff]
    %v2457 = vld [vmem:[%s6 + $0x328] sm:$0xff]
    %v2458 = vld [vmem:[%s6 + $0x330] sm:$0xff]
    %v2459 = vld [vmem:[%s6 + $0x338] sm:$0xff]
    %v2460 = vld [vmem:[%s6 + $0x340] sm:$0xff]
    %v2461 = vld [vmem:[%s6 + $0x348] sm:$0xff]
    %v2462 = vld [vmem:[%s6 + $0x350] sm:$0xff]
    %v2463 = vld [vmem:[%s6 + $0x358] sm:$0xff]
    %v2464 = vld [vmem:[%s6 + $0x360] sm:$0xff]
    %v2465 = vld [vmem:[%s6 + $0x368] sm:$0xff]
    %v2466 = vld [vmem:[%s6 + $0x370] sm:$0xff]
    %v2467 = vld [vmem:[%s6 + $0x378] sm:$0xff]
    %v2468 = vld [vmem:[%s6 + $0x380] sm:$0xff]
    %v2469 = vld [vmem:[%s6 + $0x388] sm:$0xff]
    %v2470 = vld [vmem:[%s6 + $0x390] sm:$0xff]
    %v2471 = vld [vmem:[%s6 + $0x398] sm:$0xff]
    %v2472 = vld [vmem:[%s6 + $0x3a0] sm:$0xff]
    %v2473 = vld [vmem:[%s6 + $0x3a8] sm:$0xff]
    %v2474 = vld [vmem:[%s6 + $0x3b0] sm:$0xff]
    %v2475 = vld [vmem:[%s6 + $0x3b8] sm:$0xff]
    %v2476 = vld [vmem:[%s6 + $0x3c0] sm:$0xff]
    %v2477 = vld [vmem:[%s6 + $0x3c8] sm:$0xff]
    %v2478 = vld [vmem:[%s6 + $0x3d0] sm:$0xff]
    %v2479 = vld [vmem:[%s6 + $0x3d8] sm:$0xff]
    %v2480 = vld [vmem:[%s6 + $0x3e0] sm:$0xff]
    %v2481 = vld [vmem:[%s6 + $0x3e8] sm:$0xff]
    %v2482 = vld [vmem:[%s6 + $0x3f0] sm:$0xff]
    %v2483 = vld [vmem:[%s6 + $0x3f8] sm:$0xff]
    %v2484 = vld [vmem:[%s6 + $0x400] sm:$0xff]
    %v2485 = vld [vmem:[%s6 + $0x408] sm:$0xff]
    %v2486 = vld [vmem:[%s6 + $0x410] sm:$0xff]
    %v2487 = vld [vmem:[%s6 + $0x418] sm:$0xff]
    %v2488 = vld [vmem:[%s6 + $0x420] sm:$0xff]
    %v2489 = vld [vmem:[%s6 + $0x428] sm:$0xff]
    %v2490 = vld [vmem:[%s6 + $0x430] sm:$0xff]
    %v2491 = vld [vmem:[%s6 + $0x438] sm:$0xff]
    %v2492 = vld [vmem:[%s6 + $0x440] sm:$0xff]
    %v2493 = vld [vmem:[%s6 + $0x448] sm:$0xff]
    %v2494 = vld [vmem:[%s6 + $0x450] sm:$0xff]
    %v2495 = vld [vmem:[%s6 + $0x458] sm:$0xff]
    %v2496 = vld [vmem:[%s6 + $0x460] sm:$0xff]
    %v2497 = vld [vmem:[%s6 + $0x468] sm:$0xff]
    %v2498 = vld [vmem:[%s6 + $0x470] sm:$0xff]
    %v2499 = vld [vmem:[%s6 + $0x478] sm:$0xff]
    %v2500 = vld [vmem:[%s6 + $0x480] sm:$0xff]
    %v2501 = vld [vmem:[%s6 + $0x488] sm:$0xff]
    %v2502 = vld [vmem:[%s6 + $0x490] sm:$0xff]
    %v2503 = vld [vmem:[%s6 + $0x498] sm:$0xff]
    %v2504 = vld [vmem:[%s6 + $0x4a0] sm:$0xff]
    %v2505 = vld [vmem:[%s6 + $0x4a8] sm:$0xff]
    %v2506 = vld [vmem:[%s6 + $0x4b0] sm:$0xff]
    %v2507 = vld [vmem:[%s6 + $0x4b8] sm:$0xff]
    %v2508 = vld [vmem:[%s6 + $0x4c0] sm:$0xff]
    %v2509 = vld [vmem:[%s6 + $0x4c8] sm:$0xff]
    %v2510 = vld [vmem:[%s6 + $0x4d0] sm:$0xff]
    %v2511 = vld [vmem:[%s6 + $0x4d8] sm:$0xff]
    %v2512 = vld [vmem:[%s6 + $0x4e0] sm:$0xff]
    %v2513 = vld [vmem:[%s6 + $0x4e8] sm:$0xff]
    %v2514 = vld [vmem:[%s6 + $0x4f0] sm:$0xff]
    %v2515 = vld [vmem:[%s6 + $0x4f8] sm:$0xff]
    %v2516 = vld [vmem:[%s6 + $0x500] sm:$0xff]
    %v2517 = vld [vmem:[%s6 + $0x508] sm:$0xff]
    %v2518 = vld [vmem:[%s6 + $0x510] sm:$0xff]
    %v2519 = vld [vmem:[%s6 + $0x518] sm:$0xff]
    %v2520 = vld [vmem:[%s6 + $0x520] sm:$0xff]
    %v2521 = vld [vmem:[%s6 + $0x528] sm:$0xff]
    %v2522 = vld [vmem:[%s6 + $0x530] sm:$0xff]
    %v2523 = vld [vmem:[%s6 + $0x538] sm:$0xff]
    %v2524 = vld [vmem:[%s6 + $0x540] sm:$0xff]
    %v2525 = vld [vmem:[%s6 + $0x548] sm:$0xff]
    %v2526 = vld [vmem:[%s6 + $0x550] sm:$0xff]
    %v2527 = vld [vmem:[%s6 + $0x558] sm:$0xff]
    %v2528 = vld [vmem:[%s6 + $0x560] sm:$0xff]
    %v2529 = vld [vmem:[%s6 + $0x568] sm:$0xff]
    %v2530 = vld [vmem:[%s6 + $0x570] sm:$0xff]
    %v2531 = vld [vmem:[%s6 + $0x578] sm:$0xff]
    %v2532 = vld [vmem:[%s6 + $0x580] sm:$0xff]
    %v2533 = vld [vmem:[%s6 + $0x588] sm:$0xff]
    %v2534 = vld [vmem:[%s6 + $0x590] sm:$0xff]
    %v2535 = vld [vmem:[%s6 + $0x598] sm:$0xff]
    %v2536 = vld [vmem:[%s6 + $0x5a0] sm:$0xff]
    %v2537 = vld [vmem:[%s6 + $0x5a8] sm:$0xff]
    %v2538 = vld [vmem:[%s6 + $0x5b0] sm:$0xff]
    %v2539 = vld [vmem:[%s6 + $0x5b8] sm:$0xff]
    %v2540 = vld [vmem:[%s6 + $0x5c0] sm:$0xff]
    %v2541 = vld [vmem:[%s6 + $0x5c8] sm:$0xff]
    %v2542 = vld [vmem:[%s6 + $0x5d0] sm:$0xff]
    %v2543 = vld [vmem:[%s6 + $0x5d8] sm:$0xff]
    %v2544 = vld [vmem:[%s6 + $0x5e0] sm:$0xff]
    %v2545 = vld [vmem:[%s6 + $0x5e8] sm:$0xff]
    %v2546 = vld [vmem:[%s6 + $0x5f0] sm:$0xff]
    %v2547 = vld [vmem:[%s6 + $0x5f8] sm:$0xff]
    %v2548 = vld [vmem:[%s6 + $0x600] sm:$0xff]
    %v2549 = vld [vmem:[%s6 + $0x608] sm:$0xff]
    %v2550 = vld [vmem:[%s6 + $0x610] sm:$0xff]
    %v2551 = vld [vmem:[%s6 + $0x618] sm:$0xff]
    %v2552 = vld [vmem:[%s6 + $0x620] sm:$0xff]
    %v2553 = vld [vmem:[%s6 + $0x628] sm:$0xff]
    %v2554 = vld [vmem:[%s6 + $0x630] sm:$0xff]
    %v2555 = vld [vmem:[%s6 + $0x638] sm:$0xff]
    %v2556 = vld [vmem:[%s6 + $0x640] sm:$0xff]
    %v2557 = vld [vmem:[%s6 + $0x648] sm:$0xff]
    %v2558 = vld [vmem:[%s6 + $0x650] sm:$0xff]
    %v2559 = vld [vmem:[%s6 + $0x658] sm:$0xff]
    %v2560 = vld [vmem:[%s6 + $0x660] sm:$0xff]
    %v2561 = vld [vmem:[%s6 + $0x668] sm:$0xff]
    %v2562 = vld [vmem:[%s6 + $0x670] sm:$0xff]
    %v2563 = vld [vmem:[%s6 + $0x678] sm:$0xff]
    %v2564 = vld [vmem:[%s6 + $0x680] sm:$0xff]
    %v2565 = vld [vmem:[%s6 + $0x688] sm:$0xff]
    %v2566 = vld [vmem:[%s6 + $0x690] sm:$0xff]
    %v2567 = vld [vmem:[%s6 + $0x698] sm:$0xff]
    %v2568 = vld [vmem:[%s6 + $0x6a0] sm:$0xff]
    %v2569 = vld [vmem:[%s6 + $0x6a8] sm:$0xff]
    %v2570 = vld [vmem:[%s6 + $0x6b0] sm:$0xff]
    %v2571 = vld [vmem:[%s6 + $0x6b8] sm:$0xff]
    %v2572 = vld [vmem:[%s6 + $0x6c0] sm:$0xff]
    %v2573 = vld [vmem:[%s6 + $0x6c8] sm:$0xff]
    %v2574 = vld [vmem:[%s6 + $0x6d0] sm:$0xff]
    %v2575 = vld [vmem:[%s6 + $0x6d8] sm:$0xff]
    %v2576 = vld [vmem:[%s6 + $0x6e0] sm:$0xff]
    %v2577 = vld [vmem:[%s6 + $0x6e8] sm:$0xff]
    %v2578 = vld [vmem:[%s6 + $0x6f0] sm:$0xff]
    %v2579 = vld [vmem:[%s6 + $0x6f8] sm:$0xff]
    %v2580 = vld [vmem:[%s6 + $0x700] sm:$0xff]
    %v2581 = vld [vmem:[%s6 + $0x708] sm:$0xff]
    %v2582 = vld [vmem:[%s6 + $0x710] sm:$0xff]
    %v2583 = vld [vmem:[%s6 + $0x718] sm:$0xff]
    %v2584 = vld [vmem:[%s6 + $0x720] sm:$0xff]
    %v2585 = vld [vmem:[%s6 + $0x728] sm:$0xff]
    %v2586 = vld [vmem:[%s6 + $0x730] sm:$0xff]
    %v2587 = vld [vmem:[%s6 + $0x738] sm:$0xff]
    %v2588 = vld [vmem:[%s6 + $0x740] sm:$0xff]
    %v2589 = vld [vmem:[%s6 + $0x748] sm:$0xff]
    %v2590 = vld [vmem:[%s6 + $0x750] sm:$0xff]
    %v2591 = vld [vmem:[%s6 + $0x758] sm:$0xff]
    %v2592 = vld [vmem:[%s6 + $0x760] sm:$0xff]
    %v2593 = vld [vmem:[%s6 + $0x768] sm:$0xff]
    %v2594 = vld [vmem:[%s6 + $0x770] sm:$0xff]
    %v2595 = vld [vmem:[%s6 + $0x778] sm:$0xff]
    %v2596 = vld [vmem:[%s6 + $0x780] sm:$0xff]
    %v2597 = vld [vmem:[%s6 + $0x788] sm:$0xff]
    %v2598 = vld [vmem:[%s6 + $0x790] sm:$0xff]
    %v2599 = vld [vmem:[%s6 + $0x798] sm:$0xff]
    %v2600 = vld [vmem:[%s6 + $0x7a0] sm:$0xff]
    %v2601 = vld [vmem:[%s6 + $0x7a8] sm:$0xff]
    %v2602 = vld [vmem:[%s6 + $0x7b0] sm:$0xff]
    %v2603 = vld [vmem:[%s6 + $0x7b8] sm:$0xff]
    %v2604 = vld [vmem:[%s6 + $0x7c0] sm:$0xff]
    %v2605 = vld [vmem:[%s6 + $0x7c8] sm:$0xff]
    %v2606 = vld [vmem:[%s6 + $0x7d0] sm:$0xff]
    %v2607 = vld [vmem:[%s6 + $0x7d8] sm:$0xff]
    %v2608 = vld [vmem:[%s6 + $0x7e0] sm:$0xff]
    %v2609 = vld [vmem:[%s6 + $0x7e8] sm:$0xff]
    %v2610 = vld [vmem:[%s6 + $0x7f0] sm:$0xff]
    %v2611 = vld [vmem:[%s6 + $0x7f8] sm:$0xff]
    %v2612 = vld [vmem:[%s6 + $0x800] sm:$0xff]
    %v2613 = vld [vmem:[%s6 + $0x808] sm:$0xff]
    %v2614 = vld [vmem:[%s6 + $0x810] sm:$0xff]
    %v2615 = vld [vmem:[%s6 + $0x818] sm:$0xff]
    %v2616 = vld [vmem:[%s6 + $0x820] sm:$0xff]
    %v2617 = vld [vmem:[%s6 + $0x828] sm:$0xff]
    %v2618 = vld [vmem:[%s6 + $0x830] sm:$0xff]
    %v2619 = vld [vmem:[%s6 + $0x838] sm:$0xff]
    %v2620 = vld [vmem:[%s6 + $0x840] sm:$0xff]
    %v2621 = vld [vmem:[%s6 + $0x848] sm:$0xff]
    %v2622 = vld [vmem:[%s6 + $0x850] sm:$0xff]
    %v2623 = vld [vmem:[%s6 + $0x858] sm:$0xff]
    %v2624 = vld [vmem:[%s6 + $0x860] sm:$0xff]
    %v2625 = vld [vmem:[%s6 + $0x868] sm:$0xff]
    %v2626 = vld [vmem:[%s6 + $0x870] sm:$0xff]
    %v2627 = vld [vmem:[%s6 + $0x878] sm:$0xff]
    %v2628 = vld [vmem:[%s6 + $0x880] sm:$0xff]
    %v2629 = vld [vmem:[%s6 + $0x888] sm:$0xff]
    %v2630 = vld [vmem:[%s6 + $0x890] sm:$0xff]
    %v2631 = vld [vmem:[%s6 + $0x898] sm:$0xff]
    %v2632 = vld [vmem:[%s6 + $0x8a0] sm:$0xff]
    %v2633 = vld [vmem:[%s6 + $0x8a8] sm:$0xff]
    %v2634 = vld [vmem:[%s6 + $0x8b0] sm:$0xff]
    %v2635 = vld [vmem:[%s6 + $0x8b8] sm:$0xff]
    %v2636 = vld [vmem:[%s6 + $0x8c0] sm:$0xff]
    %v2637 = vld [vmem:[%s6 + $0x8c8] sm:$0xff]
    %v2638 = vld [vmem:[%s6 + $0x8d0] sm:$0xff]
    %v2639 = vld [vmem:[%s6 + $0x8d8] sm:$0xff]
    %v2640 = vld [vmem:[%s6 + $0x8e0] sm:$0xff]
    %v2641 = vld [vmem:[%s6 + $0x8e8] sm:$0xff]
    %v2642 = vld [vmem:[%s6 + $0x8f0] sm:$0xff]
    %v2643 = vld [vmem:[%s6 + $0x8f8] sm:$0xff]
    %v2644 = vld [vmem:[%s6 + $0x900] sm:$0xff]
    %v2645 = vld [vmem:[%s6 + $0x908] sm:$0xff]
    %v2646 = vld [vmem:[%s6 + $0x910] sm:$0xff]
    %v2647 = vld [vmem:[%s6 + $0x918] sm:$0xff]
    %v2648 = vld [vmem:[%s6 + $0x920] sm:$0xff]
    %v2649 = vld [vmem:[%s6 + $0x928] sm:$0xff]
    %v2650 = vld [vmem:[%s6 + $0x930] sm:$0xff]
    %v2651 = vld [vmem:[%s6 + $0x938] sm:$0xff]
    %v2652 = vld [vmem:[%s6 + $0x940] sm:$0xff]
    %v2653 = vld [vmem:[%s6 + $0x948] sm:$0xff]
    %v2654 = vld [vmem:[%s6 + $0x950] sm:$0xff]
    %v2655 = vld [vmem:[%s6 + $0x958] sm:$0xff]
    %v2656 = vld [vmem:[%s6 + $0x960] sm:$0xff]
    %v2657 = vld [vmem:[%s6 + $0x968] sm:$0xff]
    %v2658 = vld [vmem:[%s6 + $0x970] sm:$0xff]
    %v2659 = vld [vmem:[%s6 + $0x978] sm:$0xff]
    %v2660 = vld [vmem:[%s6 + $0x980] sm:$0xff]
    %v2661 = vld [vmem:[%s6 + $0x988] sm:$0xff]
    %v2662 = vld [vmem:[%s6 + $0x990] sm:$0xff]
    %v2663 = vld [vmem:[%s6 + $0x998] sm:$0xff]
    %v2664 = vld [vmem:[%s6 + $0x9a0] sm:$0xff]
    %v2665 = vld [vmem:[%s6 + $0x9a8] sm:$0xff]
    %v2666 = vld [vmem:[%s6 + $0x9b0] sm:$0xff]
    %v2667 = vld [vmem:[%s6 + $0x9b8] sm:$0xff]
    %v2668 = vld [vmem:[%s6 + $0x9c0] sm:$0xff]
    %v2669 = vld [vmem:[%s6 + $0x9c8] sm:$0xff]
    %v2670 = vld [vmem:[%s6 + $0x9d0] sm:$0xff]
    %v2671 = vld [vmem:[%s6 + $0x9d8] sm:$0xff]
    %v2672 = vld [vmem:[%s6 + $0x9e0] sm:$0xff]
    %v2673 = vld [vmem:[%s6 + $0x9e8] sm:$0xff]
    %v2674 = vld [vmem:[%s6 + $0x9f0] sm:$0xff]
    %v2675 = vld [vmem:[%s6 + $0x9f8] sm:$0xff]
    %v2676 = vld [vmem:[%s6 + $0xa00] sm:$0xff]
    %v2677 = vld [vmem:[%s6 + $0xa08] sm:$0xff]
    %v2678 = vld [vmem:[%s6 + $0xa10] sm:$0xff]
    %v2679 = vld [vmem:[%s6 + $0xa18] sm:$0xff]
    %v2680 = vld [vmem:[%s6 + $0xa20] sm:$0xff]
    %v2681 = vld [vmem:[%s6 + $0xa28] sm:$0xff]
    %v2682 = vld [vmem:[%s6 + $0xa30] sm:$0xff]
    %v2683 = vld [vmem:[%s6 + $0xa38] sm:$0xff]
    %v2684 = vld [vmem:[%s6 + $0xa40] sm:$0xff]
    %v2685 = vld [vmem:[%s6 + $0xa48] sm:$0xff]
    %v2686 = vld [vmem:[%s6 + $0xa50] sm:$0xff]
    %v2687 = vld [vmem:[%s6 + $0xa58] sm:$0xff]
    %v2688 = vld [vmem:[%s6 + $0xa60] sm:$0xff]
    %v2689 = vld [vmem:[%s6 + $0xa68] sm:$0xff]
    %v2690 = vld [vmem:[%s6 + $0xa70] sm:$0xff]
    %v2691 = vld [vmem:[%s6 + $0xa78] sm:$0xff]
    %v2692 = vld [vmem:[%s6 + $0xa80] sm:$0xff]
    %v2693 = vld [vmem:[%s6 + $0xa88] sm:$0xff]
    %v2694 = vld [vmem:[%s6 + $0xa90] sm:$0xff]
    %v2695 = vld [vmem:[%s6 + $0xa98] sm:$0xff]
    %v2696 = vld [vmem:[%s6 + $0xaa0] sm:$0xff]
    %v2697 = vld [vmem:[%s6 + $0xaa8] sm:$0xff]
    %v2698 = vld [vmem:[%s6 + $0xab0] sm:$0xff]
    %v2699 = vld [vmem:[%s6 + $0xab8] sm:$0xff]
    %v2700 = vld [vmem:[%s6 + $0xac0] sm:$0xff]
    %v2701 = vld [vmem:[%s6 + $0xac8] sm:$0xff]
    %v2702 = vld [vmem:[%s6 + $0xad0] sm:$0xff]
    %v2703 = vld [vmem:[%s6 + $0xad8] sm:$0xff]
    %v2704 = vld [vmem:[%s6 + $0xae0] sm:$0xff]
    %v2705 = vld [vmem:[%s6 + $0xae8] sm:$0xff]
    %v2706 = vld [vmem:[%s6 + $0xaf0] sm:$0xff]
    %v2707 = vld [vmem:[%s6 + $0xaf8] sm:$0xff]
    %v2708 = vld [vmem:[%s6 + $0xb00] sm:$0xff]
    %v2709 = vld [vmem:[%s6 + $0xb08] sm:$0xff]
    %v2710 = vld [vmem:[%s6 + $0xb10] sm:$0xff]
    %v2711 = vld [vmem:[%s6 + $0xb18] sm:$0xff]
    %v2712 = vld [vmem:[%s6 + $0xb20] sm:$0xff]
    %v2713 = vld [vmem:[%s6 + $0xb28] sm:$0xff]
    %v2714 = vld [vmem:[%s6 + $0xb30] sm:$0xff]
    %v2715 = vld [vmem:[%s6 + $0xb38] sm:$0xff]
    %v2716 = vld [vmem:[%s6 + $0xb40] sm:$0xff]
    %v2717 = vld [vmem:[%s6 + $0xb48] sm:$0xff]
    %v2718 = vld [vmem:[%s6 + $0xb50] sm:$0xff]
    %v2719 = vld [vmem:[%s6 + $0xb58] sm:$0xff]
    %v2720 = vld [vmem:[%s6 + $0xb60] sm:$0xff]
    %v2721 = vld [vmem:[%s6 + $0xb68] sm:$0xff]
    %v2722 = vld [vmem:[%s6 + $0xb70] sm:$0xff]
    %v2723 = vld [vmem:[%s6 + $0xb78] sm:$0xff]
    %v2724 = vld [vmem:[%s6 + $0xb80] sm:$0xff]
    %v2725 = vld [vmem:[%s6 + $0xb88] sm:$0xff]
    %v2726 = vld [vmem:[%s6 + $0xb90] sm:$0xff]
    %v2727 = vld [vmem:[%s6 + $0xb98] sm:$0xff]
    %v2728 = vld [vmem:[%s6 + $0xba0] sm:$0xff]
    %v2729 = vld [vmem:[%s6 + $0xba8] sm:$0xff]
    %v2730 = vld [vmem:[%s6 + $0xbb0] sm:$0xff]
    %v2731 = vld [vmem:[%s6 + $0xbb8] sm:$0xff]
    %v2732 = vld [vmem:[%s6 + $0xbc0] sm:$0xff]
    %v2733 = vld [vmem:[%s6 + $0xbc8] sm:$0xff]
    %v2734 = vld [vmem:[%s6 + $0xbd0] sm:$0xff]
    %v2735 = vld [vmem:[%s6 + $0xbd8] sm:$0xff]
    %v2736 = vld [vmem:[%s6 + $0xbe0] sm:$0xff]
    %v2737 = vld [vmem:[%s6 + $0xbe8] sm:$0xff]
    %v2738 = vld [vmem:[%s6 + $0xbf0] sm:$0xff]
    %v2739 = vld [vmem:[%s6 + $0xbf8] sm:$0xff]
    %v2740 = vld [vmem:[%s6 + $0xc00] sm:$0xff]
    %v2741 = vld [vmem:[%s6 + $0xc08] sm:$0xff]
    %v2742 = vld [vmem:[%s6 + $0xc10] sm:$0xff]
    %v2743 = vld [vmem:[%s6 + $0xc18] sm:$0xff]
    %v2744 = vld [vmem:[%s6 + $0xc20] sm:$0xff]
    %v2745 = vld [vmem:[%s6 + $0xc28] sm:$0xff]
    %v2746 = vld [vmem:[%s6 + $0xc30] sm:$0xff]
    %v2747 = vld [vmem:[%s6 + $0xc38] sm:$0xff]
    %v2748 = vld [vmem:[%s6 + $0xc40] sm:$0xff]
    %v2749 = vld [vmem:[%s6 + $0xc48] sm:$0xff]
    %v2750 = vld [vmem:[%s6 + $0xc50] sm:$0xff]
    %v2751 = vld [vmem:[%s6 + $0xc58] sm:$0xff]
    %v2752 = vld [vmem:[%s6 + $0xc60] sm:$0xff]
    %v2753 = vld [vmem:[%s6 + $0xc68] sm:$0xff]
    %v2754 = vld [vmem:[%s6 + $0xc70] sm:$0xff]
    %v2755 = vld [vmem:[%s6 + $0xc78] sm:$0xff]
    %v2756 = vld [vmem:[%s6 + $0xc80] sm:$0xff]
    %v2757 = vld [vmem:[%s6 + $0xc88] sm:$0xff]
    %v2758 = vld [vmem:[%s6 + $0xc90] sm:$0xff]
    %v2759 = vld [vmem:[%s6 + $0xc98] sm:$0xff]
    %v2760 = vld [vmem:[%s6 + $0xca0] sm:$0xff]
    %v2761 = vld [vmem:[%s6 + $0xca8] sm:$0xff]
    %v2762 = vld [vmem:[%s6 + $0xcb0] sm:$0xff]
    %v2763 = vld [vmem:[%s6 + $0xcb8] sm:$0xff]
    %v2764 = vld [vmem:[%s6 + $0xcc0] sm:$0xff]
    %v2765 = vld [vmem:[%s6 + $0xcc8] sm:$0xff]
    %v2766 = vld [vmem:[%s6 + $0xcd0] sm:$0xff]
    %v2767 = vld [vmem:[%s6 + $0xcd8] sm:$0xff]
    %v2768 = vld [vmem:[%s6 + $0xce0] sm:$0xff]
    %v2769 = vld [vmem:[%s6 + $0xce8] sm:$0xff]
    %v2770 = vld [vmem:[%s6 + $0xcf0] sm:$0xff]
    %v2771 = vld [vmem:[%s6 + $0xcf8] sm:$0xff]
    %v2772 = vld [vmem:[%s6 + $0xd00] sm:$0xff]
    %v2773 = vld [vmem:[%s6 + $0xd08] sm:$0xff]
    %v2774 = vld [vmem:[%s6 + $0xd10] sm:$0xff]
    %v2775 = vld [vmem:[%s6 + $0xd18] sm:$0xff]
    %v2776 = vld [vmem:[%s6 + $0xd20] sm:$0xff]
    %v2777 = vld [vmem:[%s6 + $0xd28] sm:$0xff]
    %v2778 = vld [vmem:[%s6 + $0xd30] sm:$0xff]
    %v2779 = vld [vmem:[%s6 + $0xd38] sm:$0xff]
    %v2780 = vld [vmem:[%s6 + $0xd40] sm:$0xff]
    %v2781 = vld [vmem:[%s6 + $0xd48] sm:$0xff]
    %v2782 = vld [vmem:[%s6 + $0xd50] sm:$0xff]
    %v2783 = vld [vmem:[%s6 + $0xd58] sm:$0xff]
    %v2784 = vld [vmem:[%s6 + $0xd60] sm:$0xff]
    %v2785 = vld [vmem:[%s6 + $0xd68] sm:$0xff]
    %v2786 = vld [vmem:[%s6 + $0xd70] sm:$0xff]
    %v2787 = vld [vmem:[%s6 + $0xd78] sm:$0xff]
    %v2788 = vld [vmem:[%s6 + $0xd80] sm:$0xff]
    %v2789 = vld [vmem:[%s6 + $0xd88] sm:$0xff]
    %v2790 = vld [vmem:[%s6 + $0xd90] sm:$0xff]
    %v2791 = vld [vmem:[%s6 + $0xd98] sm:$0xff]
    %v2792 = vld [vmem:[%s6 + $0xda0] sm:$0xff]
    %v2793 = vld [vmem:[%s6 + $0xda8] sm:$0xff]
    %v2794 = vld [vmem:[%s6 + $0xdb0] sm:$0xff]
    %v2795 = vld [vmem:[%s6 + $0xdb8] sm:$0xff]
    %v2796 = vld [vmem:[%s6 + $0xdc0] sm:$0xff]
    %v2797 = vld [vmem:[%s6 + $0xdc8] sm:$0xff]
    %v2798 = vld [vmem:[%s6 + $0xdd0] sm:$0xff]
    %v2799 = vld [vmem:[%s6 + $0xdd8] sm:$0xff]
    %v2800 = vld [vmem:[%s6 + $0xde0] sm:$0xff]
    %v2801 = vld [vmem:[%s6 + $0xde8] sm:$0xff]
    %v2802 = vld [vmem:[%s6 + $0xdf0] sm:$0xff]
    %v2803 = vld [vmem:[%s6 + $0xdf8] sm:$0xff]
    %v2804 = vld [vmem:[%s6 + $0xe00] sm:$0xff]
    %v2805 = vld [vmem:[%s6 + $0xe08] sm:$0xff]
    %v2806 = vld [vmem:[%s6 + $0xe10] sm:$0xff]
    %v2807 = vld [vmem:[%s6 + $0xe18] sm:$0xff]
    %v2808 = vld [vmem:[%s6 + $0xe20] sm:$0xff]
    %v2809 = vld [vmem:[%s6 + $0xe28] sm:$0xff]
    %v2810 = vld [vmem:[%s6 + $0xe30] sm:$0xff]
    %v2811 = vld [vmem:[%s6 + $0xe38] sm:$0xff]
    %v2812 = vld [vmem:[%s6 + $0xe40] sm:$0xff]
    %v2813 = vld [vmem:[%s6 + $0xe48] sm:$0xff]
    %v2814 = vld [vmem:[%s6 + $0xe50] sm:$0xff]
    %v2815 = vld [vmem:[%s6 + $0xe58] sm:$0xff]
    %v2816 = vld [vmem:[%s6 + $0xe60] sm:$0xff]
    %v2817 = vld [vmem:[%s6 + $0xe68] sm:$0xff]
    %v2818 = vld [vmem:[%s6 + $0xe70] sm:$0xff]
    %v2819 = vld [vmem:[%s6 + $0xe78] sm:$0xff]
    %v2820 = vld [vmem:[%s6 + $0xe80] sm:$0xff]
    %v2821 = vld [vmem:[%s6 + $0xe88] sm:$0xff]
    %v2822 = vld [vmem:[%s6 + $0xe90] sm:$0xff]
    %v2823 = vld [vmem:[%s6 + $0xe98] sm:$0xff]
    %v2824 = vld [vmem:[%s6 + $0xea0] sm:$0xff]
    %v2825 = vld [vmem:[%s6 + $0xea8] sm:$0xff]
    %v2826 = vld [vmem:[%s6 + $0xeb0] sm:$0xff]
    %v2827 = vld [vmem:[%s6 + $0xeb8] sm:$0xff]
    %v2828 = vld [vmem:[%s6 + $0xec0] sm:$0xff]
    %v2829 = vld [vmem:[%s6 + $0xec8] sm:$0xff]
    %v2830 = vld [vmem:[%s6 + $0xed0] sm:$0xff]
    %v2831 = vld [vmem:[%s6 + $0xed8] sm:$0xff]
    %v2832 = vld [vmem:[%s6 + $0xee0] sm:$0xff]
    %v2833 = vld [vmem:[%s6 + $0xee8] sm:$0xff]
    %v2834 = vld [vmem:[%s6 + $0xef0] sm:$0xff]
    %v2835 = vld [vmem:[%s6 + $0xef8] sm:$0xff]
    %v2836 = vld [vmem:[%s6 + $0xf00] sm:$0xff]
    %v2837 = vld [vmem:[%s6 + $0xf08] sm:$0xff]
    %v2838 = vld [vmem:[%s6 + $0xf10] sm:$0xff]
    %v2839 = vld [vmem:[%s6 + $0xf18] sm:$0xff]
    %v2840 = vld [vmem:[%s6 + $0xf20] sm:$0xff]
    %v2841 = vld [vmem:[%s6 + $0xf28] sm:$0xff]
    %v2842 = vld [vmem:[%s6 + $0xf30] sm:$0xff]
    %v2843 = vld [vmem:[%s6 + $0xf38] sm:$0xff]
    %v2844 = vld [vmem:[%s6 + $0xf40] sm:$0xff]
    %v2845 = vld [vmem:[%s6 + $0xf48] sm:$0xff]
    %v2846 = vld [vmem:[%s6 + $0xf50] sm:$0xff]
    %v2847 = vld [vmem:[%s6 + $0xf58] sm:$0xff]
    %v2848 = vld [vmem:[%s6 + $0xf60] sm:$0xff]
    %v2849 = vld [vmem:[%s6 + $0xf68] sm:$0xff]
    %v2850 = vld [vmem:[%s6 + $0xf70] sm:$0xff]
    %v2851 = vld [vmem:[%s6 + $0xf78] sm:$0xff]
    %v2852 = vld [vmem:[%s6 + $0xf80] sm:$0xff]
    %v2853 = vld [vmem:[%s6 + $0xf88] sm:$0xff]
    %v2854 = vld [vmem:[%s6 + $0xf90] sm:$0xff]
    %v2855 = vld [vmem:[%s6 + $0xf98] sm:$0xff]
    %v2856 = vld [vmem:[%s6 + $0xfa0] sm:$0xff]
    %v2857 = vld [vmem:[%s6 + $0xfa8] sm:$0xff]
    %v2858 = vld [vmem:[%s6 + $0xfb0] sm:$0xff]
    %v2859 = vld [vmem:[%s6 + $0xfb8] sm:$0xff]
    %v2860 = vld [vmem:[%s6 + $0xfc0] sm:$0xff]
    %v2861 = vld [vmem:[%s6 + $0xfc8] sm:$0xff]
    %v2862 = vld [vmem:[%s6 + $0xfd0] sm:$0xff]
    %v2863 = vld [vmem:[%s6 + $0xfd8] sm:$0xff]
    %v2864 = vld [vmem:[%s6 + $0xfe0] sm:$0xff]
    %v2865 = vld [vmem:[%s6 + $0xfe8] sm:$0xff]
    %v2866 = vld [vmem:[%s6 + $0xff0] sm:$0xff]
    %v2867 = vld [vmem:[%s6 + $0xff8] sm:$0xff]
    %v2868 = vld [vmem:[%s7] sm:$0x3]
    %v2870 = vperm.slane %v2868, 0
    %v2871 = vperm.slane %v2868, 1
    %2875 = vst [vmem:[#allocation1] ss:$9 sm:$0xff] %v2352
    %v2876 = vld [vmem:[#allocation1] sm:$0xff]
    %v2877 = vld [vmem:[#allocation1 + $0x9] sm:$0xff]
    %v2878 = vld [vmem:[#allocation1 + $0x12] sm:$0xff]
    %v2879 = vld [vmem:[#allocation1 + $0x1b] sm:$0xff]
    %v2880 = vld [vmem:[#allocation1 + $0x24] sm:$0xff]
    %v2881 = vld [vmem:[#allocation1 + $0x2d] sm:$0xff]
    %v2882 = vld [vmem:[#allocation1 + $0x36] sm:$0xff]
    %v2883 = vld [vmem:[#allocation1 + $0x3f] sm:$0xff]
    %2885 = vst [vmem:[#allocation1] ss:$9 sm:$0xff] %v2353
    %v2886 = vld [vmem:[#allocation1] sm:$0xff]
    %v2887 = vld [vmem:[#allocation1 + $0x9] sm:$0xff]
    %v2888 = vld [vmem:[#allocation1 + $0x12] sm:$0xff]
    %v2889 = vld [vmem:[#allocation1 + $0x1b] sm:$0xff]
    %v2890 = vld [vmem:[#allocation1 + $0x24] sm:$0xff]
    %v2891 = vld [vmem:[#allocation1 + $0x2d] sm:$0xff]
    %v2892 = vld [vmem:[#allocation1 + $0x36] sm:$0xff]
    %v2893 = vld [vmem:[#allocation1 + $0x3f] sm:$0xff]
    %2895 = vst [vmem:[#allocation1] ss:$9 sm:$0xff] %v2354
    %v2896 = vld [vmem:[#allocation1] sm:$0xff]
    %v2897 = vld [vmem:[#allocation1 + $0x9] sm:$0xff]
    %v2898 = vld [vmem:[#allocation1 + $0x12] sm:$0xff]
    %v2899 = vld [vmem:[#allocation1 + $0x1b] sm:$0xff]
    %v2900 = vld [vmem:[#allocation1 + $0x24] sm:$0xff]
    %v2901 = vld [vmem:[#allocation1 + $0x2d] sm:$0xff]
    %v2902 = vld [vmem:[#allocation1 + $0x36] sm:$0xff]
    %v2903 = vld [vmem:[#allocation1 + $0x3f] sm:$0xff]
    %2905 = vst [vmem:[#allocation1] ss:$9 sm:$0xff] %v2355
    %v2906 = vld [vmem:[#allocation1] sm:$0xff]
    %v2907 = vld [vmem:[#allocation1 + $0x9] sm:$0xff]
    %v2908 = vld [vmem:[#allocation1 + $0x12] sm:$0xff]
    %v2909 = vld [vmem:[#allocation1 + $0x1b] sm:$0xff]
    %v2910 = vld [vmem:[#allocation1 + $0x24] sm:$0xff]
    %v2911 = vld [vmem:[#allocation1 + $0x2d] sm:$0xff]
    %v2912 = vld [vmem:[#allocation1 + $0x36] sm:$0xff]
    %v2913 = vld [vmem:[#allocation1 + $0x3f] sm:$0xff]
    %v3458 = vunpack.c.l.b16 %v2356
    %v3459 = vunpack.c.h.b16 %v2356
    %v3460 = vunpack.c.l.b16 %v2357
    %v3461 = vunpack.c.h.b16 %v2357
    %v3462 = vunpack.c.l.b16 %v2358
    %v3463 = vunpack.c.h.b16 %v2358
    %v3464 = vunpack.c.l.b16 %v2359
    %v3465 = vunpack.c.h.b16 %v2359
    %v3466 = vunpack.c.l.b16 %v2360
    %v3467 = vunpack.c.h.b16 %v2360
    %v3468 = vunpack.c.l.b16 %v2361
    %v3469 = vunpack.c.h.b16 %v2361
    %v3470 = vunpack.c.l.b16 %v2362
    %v3471 = vunpack.c.h.b16 %v2362
    %v3472 = vunpack.c.l.b16 %v2363
    %v3473 = vunpack.c.h.b16 %v2363
    %v3474 = vunpack.c.l.b16 %v2364
    %v3475 = vunpack.c.h.b16 %v2364
    %v3476 = vunpack.c.l.b16 %v2365
    %v3477 = vunpack.c.h.b16 %v2365
    %v3478 = vunpack.c.l.b16 %v2366
    %v3479 = vunpack.c.h.b16 %v2366
    %v3480 = vunpack.c.l.b16 %v2367
    %v3481 = vunpack.c.h.b16 %v2367
    %v3482 = vunpack.c.l.b16 %v2368
    %v3483 = vunpack.c.h.b16 %v2368
    %v3484 = vunpack.c.l.b16 %v2369
    %v3485 = vunpack.c.h.b16 %v2369
    %v3486 = vunpack.c.l.b16 %v2370
    %v3487 = vunpack.c.h.b16 %v2370
    %v3488 = vunpack.c.l.b16 %v2371
    %v3489 = vunpack.c.h.b16 %v2371
    %v3490 = vunpack.c.l.b16 %v2372
    %v3491 = vunpack.c.h.b16 %v2372
    %v3492 = vunpack.c.l.b16 %v2373
    %v3493 = vunpack.c.h.b16 %v2373
    %v3494 = vunpack.c.l.b16 %v2374
    %v3495 = vunpack.c.h.b16 %v2374
    %v3496 = vunpack.c.l.b16 %v2375
    %v3497 = vunpack.c.h.b16 %v2375
    %v3498 = vunpack.c.l.b16 %v2376
    %v3499 = vunpack.c.h.b16 %v2376
    %v3500 = vunpack.c.l.b16 %v2377
    %v3501 = vunpack.c.h.b16 %v2377
    %v3502 = vunpack.c.l.b16 %v2378
    %v3503 = vunpack.c.h.b16 %v2378
    %v3504 = vunpack.c.l.b16 %v2379
    %v3505 = vunpack.c.h.b16 %v2379
    %v3506 = vunpack.c.l.b16 %v2380
    %v3507 = vunpack.c.h.b16 %v2380
    %v3508 = vunpack.c.l.b16 %v2381
    %v3509 = vunpack.c.h.b16 %v2381
    %v3510 = vunpack.c.l.b16 %v2382
    %v3511 = vunpack.c.h.b16 %v2382
    %v3512 = vunpack.c.l.b16 %v2383
    %v3513 = vunpack.c.h.b16 %v2383
    %v3514 = vunpack.c.l.b16 %v2384
    %v3515 = vunpack.c.h.b16 %v2384
    %v3516 = vunpack.c.l.b16 %v2385
    %v3517 = vunpack.c.h.b16 %v2385
    %v3518 = vunpack.c.l.b16 %v2386
    %v3519 = vunpack.c.h.b16 %v2386
    %v3520 = vunpack.c.l.b16 %v2387
    %v3521 = vunpack.c.h.b16 %v2387
    %v3522 = vunpack.c.l.b16 %v2388
    %v3523 = vunpack.c.h.b16 %v2388
    %v3524 = vunpack.c.l.b16 %v2389
    %v3525 = vunpack.c.h.b16 %v2389
    %v3526 = vunpack.c.l.b16 %v2390
    %v3527 = vunpack.c.h.b16 %v2390
    %v3528 = vunpack.c.l.b16 %v2391
    %v3529 = vunpack.c.h.b16 %v2391
    %v3530 = vunpack.c.l.b16 %v2392
    %v3531 = vunpack.c.h.b16 %v2392
    %v3532 = vunpack.c.l.b16 %v2393
    %v3533 = vunpack.c.h.b16 %v2393
    %v3534 = vunpack.c.l.b16 %v2394
    %v3535 = vunpack.c.h.b16 %v2394
    %v3536 = vunpack.c.l.b16 %v2395
    %v3537 = vunpack.c.h.b16 %v2395
    %v3538 = vunpack.c.l.b16 %v2396
    %v3539 = vunpack.c.h.b16 %v2396
    %v3540 = vunpack.c.l.b16 %v2397
    %v3541 = vunpack.c.h.b16 %v2397
    %v3542 = vunpack.c.l.b16 %v2398
    %v3543 = vunpack.c.h.b16 %v2398
    %v3544 = vunpack.c.l.b16 %v2399
    %v3545 = vunpack.c.h.b16 %v2399
    %v3546 = vunpack.c.l.b16 %v2400
    %v3547 = vunpack.c.h.b16 %v2400
    %v3548 = vunpack.c.l.b16 %v2401
    %v3549 = vunpack.c.h.b16 %v2401
    %v3550 = vunpack.c.l.b16 %v2402
    %v3551 = vunpack.c.h.b16 %v2402
    %v3552 = vunpack.c.l.b16 %v2403
    %v3553 = vunpack.c.h.b16 %v2403
    %v3554 = vunpack.c.l.b16 %v2404
    %v3555 = vunpack.c.h.b16 %v2404
    %v3556 = vunpack.c.l.b16 %v2405
    %v3557 = vunpack.c.h.b16 %v2405
    %v3558 = vunpack.c.l.b16 %v2406
    %v3559 = vunpack.c.h.b16 %v2406
    %v3560 = vunpack.c.l.b16 %v2407
    %v3561 = vunpack.c.h.b16 %v2407
    %v3562 = vunpack.c.l.b16 %v2408
    %v3563 = vunpack.c.h.b16 %v2408
    %v3564 = vunpack.c.l.b16 %v2409
    %v3565 = vunpack.c.h.b16 %v2409
    %v3566 = vunpack.c.l.b16 %v2410
    %v3567 = vunpack.c.h.b16 %v2410
    %v3568 = vunpack.c.l.b16 %v2411
    %v3569 = vunpack.c.h.b16 %v2411
    %v3570 = vunpack.c.l.b16 %v2412
    %v3571 = vunpack.c.h.b16 %v2412
    %v3572 = vunpack.c.l.b16 %v2413
    %v3573 = vunpack.c.h.b16 %v2413
    %v3574 = vunpack.c.l.b16 %v2414
    %v3575 = vunpack.c.h.b16 %v2414
    %v3576 = vunpack.c.l.b16 %v2415
    %v3577 = vunpack.c.h.b16 %v2415
    %v3578 = vunpack.c.l.b16 %v2416
    %v3579 = vunpack.c.h.b16 %v2416
    %v3580 = vunpack.c.l.b16 %v2417
    %v3581 = vunpack.c.h.b16 %v2417
    %v3582 = vunpack.c.l.b16 %v2418
    %v3583 = vunpack.c.h.b16 %v2418
    %v3584 = vunpack.c.l.b16 %v2419
    %v3585 = vunpack.c.h.b16 %v2419
    %v3586 = vunpack.c.l.b16 %v2420
    %v3587 = vunpack.c.h.b16 %v2420
    %v3588 = vunpack.c.l.b16 %v2421
    %v3589 = vunpack.c.h.b16 %v2421
    %v3590 = vunpack.c.l.b16 %v2422
    %v3591 = vunpack.c.h.b16 %v2422
    %v3592 = vunpack.c.l.b16 %v2423
    %v3593 = vunpack.c.h.b16 %v2423
    %v3594 = vunpack.c.l.b16 %v2424
    %v3595 = vunpack.c.h.b16 %v2424
    %v3596 = vunpack.c.l.b16 %v2425
    %v3597 = vunpack.c.h.b16 %v2425
    %v3598 = vunpack.c.l.b16 %v2426
    %v3599 = vunpack.c.h.b16 %v2426
    %v3600 = vunpack.c.l.b16 %v2427
    %v3601 = vunpack.c.h.b16 %v2427
    %v3602 = vunpack.c.l.b16 %v2428
    %v3603 = vunpack.c.h.b16 %v2428
    %v3604 = vunpack.c.l.b16 %v2429
    %v3605 = vunpack.c.h.b16 %v2429
    %v3606 = vunpack.c.l.b16 %v2430
    %v3607 = vunpack.c.h.b16 %v2430
    %v3608 = vunpack.c.l.b16 %v2431
    %v3609 = vunpack.c.h.b16 %v2431
    %v3610 = vunpack.c.l.b16 %v2432
    %v3611 = vunpack.c.h.b16 %v2432
    %v3612 = vunpack.c.l.b16 %v2433
    %v3613 = vunpack.c.h.b16 %v2433
    %v3614 = vunpack.c.l.b16 %v2434
    %v3615 = vunpack.c.h.b16 %v2434
    %v3616 = vunpack.c.l.b16 %v2435
    %v3617 = vunpack.c.h.b16 %v2435
    %v3618 = vunpack.c.l.b16 %v2436
    %v3619 = vunpack.c.h.b16 %v2436
    %v3620 = vunpack.c.l.b16 %v2437
    %v3621 = vunpack.c.h.b16 %v2437
    %v3622 = vunpack.c.l.b16 %v2438
    %v3623 = vunpack.c.h.b16 %v2438
    %v3624 = vunpack.c.l.b16 %v2439
    %v3625 = vunpack.c.h.b16 %v2439
    %v3626 = vunpack.c.l.b16 %v2440
    %v3627 = vunpack.c.h.b16 %v2440
    %v3628 = vunpack.c.l.b16 %v2441
    %v3629 = vunpack.c.h.b16 %v2441
    %v3630 = vunpack.c.l.b16 %v2442
    %v3631 = vunpack.c.h.b16 %v2442
    %v3632 = vunpack.c.l.b16 %v2443
    %v3633 = vunpack.c.h.b16 %v2443
    %v3634 = vunpack.c.l.b16 %v2444
    %v3635 = vunpack.c.h.b16 %v2444
    %v3636 = vunpack.c.l.b16 %v2445
    %v3637 = vunpack.c.h.b16 %v2445
    %v3638 = vunpack.c.l.b16 %v2446
    %v3639 = vunpack.c.h.b16 %v2446
    %v3640 = vunpack.c.l.b16 %v2447
    %v3641 = vunpack.c.h.b16 %v2447
    %v3642 = vunpack.c.l.b16 %v2448
    %v3643 = vunpack.c.h.b16 %v2448
    %v3644 = vunpack.c.l.b16 %v2449
    %v3645 = vunpack.c.h.b16 %v2449
    %v3646 = vunpack.c.l.b16 %v2450
    %v3647 = vunpack.c.h.b16 %v2450
    %v3648 = vunpack.c.l.b16 %v2451
    %v3649 = vunpack.c.h.b16 %v2451
    %v3650 = vunpack.c.l.b16 %v2452
    %v3651 = vunpack.c.h.b16 %v2452
    %v3652 = vunpack.c.l.b16 %v2453
    %v3653 = vunpack.c.h.b16 %v2453
    %v3654 = vunpack.c.l.b16 %v2454
    %v3655 = vunpack.c.h.b16 %v2454
    %v3656 = vunpack.c.l.b16 %v2455
    %v3657 = vunpack.c.h.b16 %v2455
    %v3658 = vunpack.c.l.b16 %v2456
    %v3659 = vunpack.c.h.b16 %v2456
    %v3660 = vunpack.c.l.b16 %v2457
    %v3661 = vunpack.c.h.b16 %v2457
    %v3662 = vunpack.c.l.b16 %v2458
    %v3663 = vunpack.c.h.b16 %v2458
    %v3664 = vunpack.c.l.b16 %v2459
    %v3665 = vunpack.c.h.b16 %v2459
    %v3666 = vunpack.c.l.b16 %v2460
    %v3667 = vunpack.c.h.b16 %v2460
    %v3668 = vunpack.c.l.b16 %v2461
    %v3669 = vunpack.c.h.b16 %v2461
    %v3670 = vunpack.c.l.b16 %v2462
    %v3671 = vunpack.c.h.b16 %v2462
    %v3672 = vunpack.c.l.b16 %v2463
    %v3673 = vunpack.c.h.b16 %v2463
    %v3674 = vunpack.c.l.b16 %v2464
    %v3675 = vunpack.c.h.b16 %v2464
    %v3676 = vunpack.c.l.b16 %v2465
    %v3677 = vunpack.c.h.b16 %v2465
    %v3678 = vunpack.c.l.b16 %v2466
    %v3679 = vunpack.c.h.b16 %v2466
    %v3680 = vunpack.c.l.b16 %v2467
    %v3681 = vunpack.c.h.b16 %v2467
    %v3682 = vunpack.c.l.b16 %v2468
    %v3683 = vunpack.c.h.b16 %v2468
    %v3684 = vunpack.c.l.b16 %v2469
    %v3685 = vunpack.c.h.b16 %v2469
    %v3686 = vunpack.c.l.b16 %v2470
    %v3687 = vunpack.c.h.b16 %v2470
    %v3688 = vunpack.c.l.b16 %v2471
    %v3689 = vunpack.c.h.b16 %v2471
    %v3690 = vunpack.c.l.b16 %v2472
    %v3691 = vunpack.c.h.b16 %v2472
    %v3692 = vunpack.c.l.b16 %v2473
    %v3693 = vunpack.c.h.b16 %v2473
    %v3694 = vunpack.c.l.b16 %v2474
    %v3695 = vunpack.c.h.b16 %v2474
    %v3696 = vunpack.c.l.b16 %v2475
    %v3697 = vunpack.c.h.b16 %v2475
    %v3698 = vunpack.c.l.b16 %v2476
    %v3699 = vunpack.c.h.b16 %v2476
    %v3700 = vunpack.c.l.b16 %v2477
    %v3701 = vunpack.c.h.b16 %v2477
    %v3702 = vunpack.c.l.b16 %v2478
    %v3703 = vunpack.c.h.b16 %v2478
    %v3704 = vunpack.c.l.b16 %v2479
    %v3705 = vunpack.c.h.b16 %v2479
    %v3706 = vunpack.c.l.b16 %v2480
    %v3707 = vunpack.c.h.b16 %v2480
    %v3708 = vunpack.c.l.b16 %v2481
    %v3709 = vunpack.c.h.b16 %v2481
    %v3710 = vunpack.c.l.b16 %v2482
    %v3711 = vunpack.c.h.b16 %v2482
    %v3712 = vunpack.c.l.b16 %v2483
    %v3713 = vunpack.c.h.b16 %v2483
    %v3714 = vunpack.c.l.b16 %v2484
    %v3715 = vunpack.c.h.b16 %v2484
    %v3716 = vunpack.c.l.b16 %v2485
    %v3717 = vunpack.c.h.b16 %v2485
    %v3718 = vunpack.c.l.b16 %v2486
    %v3719 = vunpack.c.h.b16 %v2486
    %v3720 = vunpack.c.l.b16 %v2487
    %v3721 = vunpack.c.h.b16 %v2487
    %v3722 = vunpack.c.l.b16 %v2488
    %v3723 = vunpack.c.h.b16 %v2488
    %v3724 = vunpack.c.l.b16 %v2489
    %v3725 = vunpack.c.h.b16 %v2489
    %v3726 = vunpack.c.l.b16 %v2490
    %v3727 = vunpack.c.h.b16 %v2490
    %v3728 = vunpack.c.l.b16 %v2491
    %v3729 = vunpack.c.h.b16 %v2491
    %v3730 = vunpack.c.l.b16 %v2492
    %v3731 = vunpack.c.h.b16 %v2492
    %v3732 = vunpack.c.l.b16 %v2493
    %v3733 = vunpack.c.h.b16 %v2493
    %v3734 = vunpack.c.l.b16 %v2494
    %v3735 = vunpack.c.h.b16 %v2494
    %v3736 = vunpack.c.l.b16 %v2495
    %v3737 = vunpack.c.h.b16 %v2495
    %v3738 = vunpack.c.l.b16 %v2496
    %v3739 = vunpack.c.h.b16 %v2496
    %v3740 = vunpack.c.l.b16 %v2497
    %v3741 = vunpack.c.h.b16 %v2497
    %v3742 = vunpack.c.l.b16 %v2498
    %v3743 = vunpack.c.h.b16 %v2498
    %v3744 = vunpack.c.l.b16 %v2499
    %v3745 = vunpack.c.h.b16 %v2499
    %v3746 = vunpack.c.l.b16 %v2500
    %v3747 = vunpack.c.h.b16 %v2500
    %v3748 = vunpack.c.l.b16 %v2501
    %v3749 = vunpack.c.h.b16 %v2501
    %v3750 = vunpack.c.l.b16 %v2502
    %v3751 = vunpack.c.h.b16 %v2502
    %v3752 = vunpack.c.l.b16 %v2503
    %v3753 = vunpack.c.h.b16 %v2503
    %v3754 = vunpack.c.l.b16 %v2504
    %v3755 = vunpack.c.h.b16 %v2504
    %v3756 = vunpack.c.l.b16 %v2505
    %v3757 = vunpack.c.h.b16 %v2505
    %v3758 = vunpack.c.l.b16 %v2506
    %v3759 = vunpack.c.h.b16 %v2506
    %v3760 = vunpack.c.l.b16 %v2507
    %v3761 = vunpack.c.h.b16 %v2507
    %v3762 = vunpack.c.l.b16 %v2508
    %v3763 = vunpack.c.h.b16 %v2508
    %v3764 = vunpack.c.l.b16 %v2509
    %v3765 = vunpack.c.h.b16 %v2509
    %v3766 = vunpack.c.l.b16 %v2510
    %v3767 = vunpack.c.h.b16 %v2510
    %v3768 = vunpack.c.l.b16 %v2511
    %v3769 = vunpack.c.h.b16 %v2511
    %v3770 = vunpack.c.l.b16 %v2512
    %v3771 = vunpack.c.h.b16 %v2512
    %v3772 = vunpack.c.l.b16 %v2513
    %v3773 = vunpack.c.h.b16 %v2513
    %v3774 = vunpack.c.l.b16 %v2514
    %v3775 = vunpack.c.h.b16 %v2514
    %v3776 = vunpack.c.l.b16 %v2515
    %v3777 = vunpack.c.h.b16 %v2515
    %v3778 = vunpack.c.l.b16 %v2516
    %v3779 = vunpack.c.h.b16 %v2516
    %v3780 = vunpack.c.l.b16 %v2517
    %v3781 = vunpack.c.h.b16 %v2517
    %v3782 = vunpack.c.l.b16 %v2518
    %v3783 = vunpack.c.h.b16 %v2518
    %v3784 = vunpack.c.l.b16 %v2519
    %v3785 = vunpack.c.h.b16 %v2519
    %v3786 = vunpack.c.l.b16 %v2520
    %v3787 = vunpack.c.h.b16 %v2520
    %v3788 = vunpack.c.l.b16 %v2521
    %v3789 = vunpack.c.h.b16 %v2521
    %v3790 = vunpack.c.l.b16 %v2522
    %v3791 = vunpack.c.h.b16 %v2522
    %v3792 = vunpack.c.l.b16 %v2523
    %v3793 = vunpack.c.h.b16 %v2523
    %v3794 = vunpack.c.l.b16 %v2524
    %v3795 = vunpack.c.h.b16 %v2524
    %v3796 = vunpack.c.l.b16 %v2525
    %v3797 = vunpack.c.h.b16 %v2525
    %v3798 = vunpack.c.l.b16 %v2526
    %v3799 = vunpack.c.h.b16 %v2526
    %v3800 = vunpack.c.l.b16 %v2527
    %v3801 = vunpack.c.h.b16 %v2527
    %v3802 = vunpack.c.l.b16 %v2528
    %v3803 = vunpack.c.h.b16 %v2528
    %v3804 = vunpack.c.l.b16 %v2529
    %v3805 = vunpack.c.h.b16 %v2529
    %v3806 = vunpack.c.l.b16 %v2530
    %v3807 = vunpack.c.h.b16 %v2530
    %v3808 = vunpack.c.l.b16 %v2531
    %v3809 = vunpack.c.h.b16 %v2531
    %v3810 = vunpack.c.l.b16 %v2532
    %v3811 = vunpack.c.h.b16 %v2532
    %v3812 = vunpack.c.l.b16 %v2533
    %v3813 = vunpack.c.h.b16 %v2533
    %v3814 = vunpack.c.l.b16 %v2534
    %v3815 = vunpack.c.h.b16 %v2534
    %v3816 = vunpack.c.l.b16 %v2535
    %v3817 = vunpack.c.h.b16 %v2535
    %v3818 = vunpack.c.l.b16 %v2536
    %v3819 = vunpack.c.h.b16 %v2536
    %v3820 = vunpack.c.l.b16 %v2537
    %v3821 = vunpack.c.h.b16 %v2537
    %v3822 = vunpack.c.l.b16 %v2538
    %v3823 = vunpack.c.h.b16 %v2538
    %v3824 = vunpack.c.l.b16 %v2539
    %v3825 = vunpack.c.h.b16 %v2539
    %v3826 = vunpack.c.l.b16 %v2540
    %v3827 = vunpack.c.h.b16 %v2540
    %v3828 = vunpack.c.l.b16 %v2541
    %v3829 = vunpack.c.h.b16 %v2541
    %v3830 = vunpack.c.l.b16 %v2542
    %v3831 = vunpack.c.h.b16 %v2542
    %v3832 = vunpack.c.l.b16 %v2543
    %v3833 = vunpack.c.h.b16 %v2543
    %v3834 = vunpack.c.l.b16 %v2544
    %v3835 = vunpack.c.h.b16 %v2544
    %v3836 = vunpack.c.l.b16 %v2545
    %v3837 = vunpack.c.h.b16 %v2545
    %v3838 = vunpack.c.l.b16 %v2546
    %v3839 = vunpack.c.h.b16 %v2546
    %v3840 = vunpack.c.l.b16 %v2547
    %v3841 = vunpack.c.h.b16 %v2547
    %v3842 = vunpack.c.l.b16 %v2548
    %v3843 = vunpack.c.h.b16 %v2548
    %v3844 = vunpack.c.l.b16 %v2549
    %v3845 = vunpack.c.h.b16 %v2549
    %v3846 = vunpack.c.l.b16 %v2550
    %v3847 = vunpack.c.h.b16 %v2550
    %v3848 = vunpack.c.l.b16 %v2551
    %v3849 = vunpack.c.h.b16 %v2551
    %v3850 = vunpack.c.l.b16 %v2552
    %v3851 = vunpack.c.h.b16 %v2552
    %v3852 = vunpack.c.l.b16 %v2553
    %v3853 = vunpack.c.h.b16 %v2553
    %v3854 = vunpack.c.l.b16 %v2554
    %v3855 = vunpack.c.h.b16 %v2554
    %v3856 = vunpack.c.l.b16 %v2555
    %v3857 = vunpack.c.h.b16 %v2555
    %v3858 = vunpack.c.l.b16 %v2556
    %v3859 = vunpack.c.h.b16 %v2556
    %v3860 = vunpack.c.l.b16 %v2557
    %v3861 = vunpack.c.h.b16 %v2557
    %v3862 = vunpack.c.l.b16 %v2558
    %v3863 = vunpack.c.h.b16 %v2558
    %v3864 = vunpack.c.l.b16 %v2559
    %v3865 = vunpack.c.h.b16 %v2559
    %v3866 = vunpack.c.l.b16 %v2560
    %v3867 = vunpack.c.h.b16 %v2560
    %v3868 = vunpack.c.l.b16 %v2561
    %v3869 = vunpack.c.h.b16 %v2561
    %v3870 = vunpack.c.l.b16 %v2562
    %v3871 = vunpack.c.h.b16 %v2562
    %v3872 = vunpack.c.l.b16 %v2563
    %v3873 = vunpack.c.h.b16 %v2563
    %v3874 = vunpack.c.l.b16 %v2564
    %v3875 = vunpack.c.h.b16 %v2564
    %v3876 = vunpack.c.l.b16 %v2565
    %v3877 = vunpack.c.h.b16 %v2565
    %v3878 = vunpack.c.l.b16 %v2566
    %v3879 = vunpack.c.h.b16 %v2566
    %v3880 = vunpack.c.l.b16 %v2567
    %v3881 = vunpack.c.h.b16 %v2567
    %v3882 = vunpack.c.l.b16 %v2568
    %v3883 = vunpack.c.h.b16 %v2568
    %v3884 = vunpack.c.l.b16 %v2569
    %v3885 = vunpack.c.h.b16 %v2569
    %v3886 = vunpack.c.l.b16 %v2570
    %v3887 = vunpack.c.h.b16 %v2570
    %v3888 = vunpack.c.l.b16 %v2571
    %v3889 = vunpack.c.h.b16 %v2571
    %v3890 = vunpack.c.l.b16 %v2572
    %v3891 = vunpack.c.h.b16 %v2572
    %v3892 = vunpack.c.l.b16 %v2573
    %v3893 = vunpack.c.h.b16 %v2573
    %v3894 = vunpack.c.l.b16 %v2574
    %v3895 = vunpack.c.h.b16 %v2574
    %v3896 = vunpack.c.l.b16 %v2575
    %v3897 = vunpack.c.h.b16 %v2575
    %v3898 = vunpack.c.l.b16 %v2576
    %v3899 = vunpack.c.h.b16 %v2576
    %v3900 = vunpack.c.l.b16 %v2577
    %v3901 = vunpack.c.h.b16 %v2577
    %v3902 = vunpack.c.l.b16 %v2578
    %v3903 = vunpack.c.h.b16 %v2578
    %v3904 = vunpack.c.l.b16 %v2579
    %v3905 = vunpack.c.h.b16 %v2579
    %v3906 = vunpack.c.l.b16 %v2580
    %v3907 = vunpack.c.h.b16 %v2580
    %v3908 = vunpack.c.l.b16 %v2581
    %v3909 = vunpack.c.h.b16 %v2581
    %v3910 = vunpack.c.l.b16 %v2582
    %v3911 = vunpack.c.h.b16 %v2582
    %v3912 = vunpack.c.l.b16 %v2583
    %v3913 = vunpack.c.h.b16 %v2583
    %v3914 = vunpack.c.l.b16 %v2584
    %v3915 = vunpack.c.h.b16 %v2584
    %v3916 = vunpack.c.l.b16 %v2585
    %v3917 = vunpack.c.h.b16 %v2585
    %v3918 = vunpack.c.l.b16 %v2586
    %v3919 = vunpack.c.h.b16 %v2586
    %v3920 = vunpack.c.l.b16 %v2587
    %v3921 = vunpack.c.h.b16 %v2587
    %v3922 = vunpack.c.l.b16 %v2588
    %v3923 = vunpack.c.h.b16 %v2588
    %v3924 = vunpack.c.l.b16 %v2589
    %v3925 = vunpack.c.h.b16 %v2589
    %v3926 = vunpack.c.l.b16 %v2590
    %v3927 = vunpack.c.h.b16 %v2590
    %v3928 = vunpack.c.l.b16 %v2591
    %v3929 = vunpack.c.h.b16 %v2591
    %v3930 = vunpack.c.l.b16 %v2592
    %v3931 = vunpack.c.h.b16 %v2592
    %v3932 = vunpack.c.l.b16 %v2593
    %v3933 = vunpack.c.h.b16 %v2593
    %v3934 = vunpack.c.l.b16 %v2594
    %v3935 = vunpack.c.h.b16 %v2594
    %v3936 = vunpack.c.l.b16 %v2595
    %v3937 = vunpack.c.h.b16 %v2595
    %v3938 = vunpack.c.l.b16 %v2596
    %v3939 = vunpack.c.h.b16 %v2596
    %v3940 = vunpack.c.l.b16 %v2597
    %v3941 = vunpack.c.h.b16 %v2597
    %v3942 = vunpack.c.l.b16 %v2598
    %v3943 = vunpack.c.h.b16 %v2598
    %v3944 = vunpack.c.l.b16 %v2599
    %v3945 = vunpack.c.h.b16 %v2599
    %v3946 = vunpack.c.l.b16 %v2600
    %v3947 = vunpack.c.h.b16 %v2600
    %v3948 = vunpack.c.l.b16 %v2601
    %v3949 = vunpack.c.h.b16 %v2601
    %v3950 = vunpack.c.l.b16 %v2602
    %v3951 = vunpack.c.h.b16 %v2602
    %v3952 = vunpack.c.l.b16 %v2603
    %v3953 = vunpack.c.h.b16 %v2603
    %v3954 = vunpack.c.l.b16 %v2604
    %v3955 = vunpack.c.h.b16 %v2604
    %v3956 = vunpack.c.l.b16 %v2605
    %v3957 = vunpack.c.h.b16 %v2605
    %v3958 = vunpack.c.l.b16 %v2606
    %v3959 = vunpack.c.h.b16 %v2606
    %v3960 = vunpack.c.l.b16 %v2607
    %v3961 = vunpack.c.h.b16 %v2607
    %v3962 = vunpack.c.l.b16 %v2608
    %v3963 = vunpack.c.h.b16 %v2608
    %v3964 = vunpack.c.l.b16 %v2609
    %v3965 = vunpack.c.h.b16 %v2609
    %v3966 = vunpack.c.l.b16 %v2610
    %v3967 = vunpack.c.h.b16 %v2610
    %v3968 = vunpack.c.l.b16 %v2611
    %v3969 = vunpack.c.h.b16 %v2611
    %v3970 = vunpack.c.l.b16 %v2612
    %v3971 = vunpack.c.h.b16 %v2612
    %v3972 = vunpack.c.l.b16 %v2613
    %v3973 = vunpack.c.h.b16 %v2613
    %v3974 = vunpack.c.l.b16 %v2614
    %v3975 = vunpack.c.h.b16 %v2614
    %v3976 = vunpack.c.l.b16 %v2615
    %v3977 = vunpack.c.h.b16 %v2615
    %v3978 = vunpack.c.l.b16 %v2616
    %v3979 = vunpack.c.h.b16 %v2616
    %v3980 = vunpack.c.l.b16 %v2617
    %v3981 = vunpack.c.h.b16 %v2617
    %v3982 = vunpack.c.l.b16 %v2618
    %v3983 = vunpack.c.h.b16 %v2618
    %v3984 = vunpack.c.l.b16 %v2619
    %v3985 = vunpack.c.h.b16 %v2619
    %v3986 = vunpack.c.l.b16 %v2620
    %v3987 = vunpack.c.h.b16 %v2620
    %v3988 = vunpack.c.l.b16 %v2621
    %v3989 = vunpack.c.h.b16 %v2621
    %v3990 = vunpack.c.l.b16 %v2622
    %v3991 = vunpack.c.h.b16 %v2622
    %v3992 = vunpack.c.l.b16 %v2623
    %v3993 = vunpack.c.h.b16 %v2623
    %v3994 = vunpack.c.l.b16 %v2624
    %v3995 = vunpack.c.h.b16 %v2624
    %v3996 = vunpack.c.l.b16 %v2625
    %v3997 = vunpack.c.h.b16 %v2625
    %v3998 = vunpack.c.l.b16 %v2626
    %v3999 = vunpack.c.h.b16 %v2626
    %v4000 = vunpack.c.l.b16 %v2627
    %v4001 = vunpack.c.h.b16 %v2627
    %v4002 = vunpack.c.l.b16 %v2628
    %v4003 = vunpack.c.h.b16 %v2628
    %v4004 = vunpack.c.l.b16 %v2629
    %v4005 = vunpack.c.h.b16 %v2629
    %v4006 = vunpack.c.l.b16 %v2630
    %v4007 = vunpack.c.h.b16 %v2630
    %v4008 = vunpack.c.l.b16 %v2631
    %v4009 = vunpack.c.h.b16 %v2631
    %v4010 = vunpack.c.l.b16 %v2632
    %v4011 = vunpack.c.h.b16 %v2632
    %v4012 = vunpack.c.l.b16 %v2633
    %v4013 = vunpack.c.h.b16 %v2633
    %v4014 = vunpack.c.l.b16 %v2634
    %v4015 = vunpack.c.h.b16 %v2634
    %v4016 = vunpack.c.l.b16 %v2635
    %v4017 = vunpack.c.h.b16 %v2635
    %v4018 = vunpack.c.l.b16 %v2636
    %v4019 = vunpack.c.h.b16 %v2636
    %v4020 = vunpack.c.l.b16 %v2637
    %v4021 = vunpack.c.h.b16 %v2637
    %v4022 = vunpack.c.l.b16 %v2638
    %v4023 = vunpack.c.h.b16 %v2638
    %v4024 = vunpack.c.l.b16 %v2639
    %v4025 = vunpack.c.h.b16 %v2639
    %v4026 = vunpack.c.l.b16 %v2640
    %v4027 = vunpack.c.h.b16 %v2640
    %v4028 = vunpack.c.l.b16 %v2641
    %v4029 = vunpack.c.h.b16 %v2641
    %v4030 = vunpack.c.l.b16 %v2642
    %v4031 = vunpack.c.h.b16 %v2642
    %v4032 = vunpack.c.l.b16 %v2643
    %v4033 = vunpack.c.h.b16 %v2643
    %v4034 = vunpack.c.l.b16 %v2644
    %v4035 = vunpack.c.h.b16 %v2644
    %v4036 = vunpack.c.l.b16 %v2645
    %v4037 = vunpack.c.h.b16 %v2645
    %v4038 = vunpack.c.l.b16 %v2646
    %v4039 = vunpack.c.h.b16 %v2646
    %v4040 = vunpack.c.l.b16 %v2647
    %v4041 = vunpack.c.h.b16 %v2647
    %v4042 = vunpack.c.l.b16 %v2648
    %v4043 = vunpack.c.h.b16 %v2648
    %v4044 = vunpack.c.l.b16 %v2649
    %v4045 = vunpack.c.h.b16 %v2649
    %v4046 = vunpack.c.l.b16 %v2650
    %v4047 = vunpack.c.h.b16 %v2650
    %v4048 = vunpack.c.l.b16 %v2651
    %v4049 = vunpack.c.h.b16 %v2651
    %v4050 = vunpack.c.l.b16 %v2652
    %v4051 = vunpack.c.h.b16 %v2652
    %v4052 = vunpack.c.l.b16 %v2653
    %v4053 = vunpack.c.h.b16 %v2653
    %v4054 = vunpack.c.l.b16 %v2654
    %v4055 = vunpack.c.h.b16 %v2654
    %v4056 = vunpack.c.l.b16 %v2655
    %v4057 = vunpack.c.h.b16 %v2655
    %v4058 = vunpack.c.l.b16 %v2656
    %v4059 = vunpack.c.h.b16 %v2656
    %v4060 = vunpack.c.l.b16 %v2657
    %v4061 = vunpack.c.h.b16 %v2657
    %v4062 = vunpack.c.l.b16 %v2658
    %v4063 = vunpack.c.h.b16 %v2658
    %v4064 = vunpack.c.l.b16 %v2659
    %v4065 = vunpack.c.h.b16 %v2659
    %v4066 = vunpack.c.l.b16 %v2660
    %v4067 = vunpack.c.h.b16 %v2660
    %v4068 = vunpack.c.l.b16 %v2661
    %v4069 = vunpack.c.h.b16 %v2661
    %v4070 = vunpack.c.l.b16 %v2662
    %v4071 = vunpack.c.h.b16 %v2662
    %v4072 = vunpack.c.l.b16 %v2663
    %v4073 = vunpack.c.h.b16 %v2663
    %v4074 = vunpack.c.l.b16 %v2664
    %v4075 = vunpack.c.h.b16 %v2664
    %v4076 = vunpack.c.l.b16 %v2665
    %v4077 = vunpack.c.h.b16 %v2665
    %v4078 = vunpack.c.l.b16 %v2666
    %v4079 = vunpack.c.h.b16 %v2666
    %v4080 = vunpack.c.l.b16 %v2667
    %v4081 = vunpack.c.h.b16 %v2667
    %v4082 = vunpack.c.l.b16 %v2668
    %v4083 = vunpack.c.h.b16 %v2668
    %v4084 = vunpack.c.l.b16 %v2669
    %v4085 = vunpack.c.h.b16 %v2669
    %v4086 = vunpack.c.l.b16 %v2670
    %v4087 = vunpack.c.h.b16 %v2670
    %v4088 = vunpack.c.l.b16 %v2671
    %v4089 = vunpack.c.h.b16 %v2671
    %v4090 = vunpack.c.l.b16 %v2672
    %v4091 = vunpack.c.h.b16 %v2672
    %v4092 = vunpack.c.l.b16 %v2673
    %v4093 = vunpack.c.h.b16 %v2673
    %v4094 = vunpack.c.l.b16 %v2674
    %v4095 = vunpack.c.h.b16 %v2674
    %v4096 = vunpack.c.l.b16 %v2675
    %v4097 = vunpack.c.h.b16 %v2675
    %v4098 = vunpack.c.l.b16 %v2676
    %v4099 = vunpack.c.h.b16 %v2676
    %v4100 = vunpack.c.l.b16 %v2677
    %v4101 = vunpack.c.h.b16 %v2677
    %v4102 = vunpack.c.l.b16 %v2678
    %v4103 = vunpack.c.h.b16 %v2678
    %v4104 = vunpack.c.l.b16 %v2679
    %v4105 = vunpack.c.h.b16 %v2679
    %v4106 = vunpack.c.l.b16 %v2680
    %v4107 = vunpack.c.h.b16 %v2680
    %v4108 = vunpack.c.l.b16 %v2681
    %v4109 = vunpack.c.h.b16 %v2681
    %v4110 = vunpack.c.l.b16 %v2682
    %v4111 = vunpack.c.h.b16 %v2682
    %v4112 = vunpack.c.l.b16 %v2683
    %v4113 = vunpack.c.h.b16 %v2683
    %v4114 = vunpack.c.l.b16 %v2684
    %v4115 = vunpack.c.h.b16 %v2684
    %v4116 = vunpack.c.l.b16 %v2685
    %v4117 = vunpack.c.h.b16 %v2685
    %v4118 = vunpack.c.l.b16 %v2686
    %v4119 = vunpack.c.h.b16 %v2686
    %v4120 = vunpack.c.l.b16 %v2687
    %v4121 = vunpack.c.h.b16 %v2687
    %v4122 = vunpack.c.l.b16 %v2688
    %v4123 = vunpack.c.h.b16 %v2688
    %v4124 = vunpack.c.l.b16 %v2689
    %v4125 = vunpack.c.h.b16 %v2689
    %v4126 = vunpack.c.l.b16 %v2690
    %v4127 = vunpack.c.h.b16 %v2690
    %v4128 = vunpack.c.l.b16 %v2691
    %v4129 = vunpack.c.h.b16 %v2691
    %v4130 = vunpack.c.l.b16 %v2692
    %v4131 = vunpack.c.h.b16 %v2692
    %v4132 = vunpack.c.l.b16 %v2693
    %v4133 = vunpack.c.h.b16 %v2693
    %v4134 = vunpack.c.l.b16 %v2694
    %v4135 = vunpack.c.h.b16 %v2694
    %v4136 = vunpack.c.l.b16 %v2695
    %v4137 = vunpack.c.h.b16 %v2695
    %v4138 = vunpack.c.l.b16 %v2696
    %v4139 = vunpack.c.h.b16 %v2696
    %v4140 = vunpack.c.l.b16 %v2697
    %v4141 = vunpack.c.h.b16 %v2697
    %v4142 = vunpack.c.l.b16 %v2698
    %v4143 = vunpack.c.h.b16 %v2698
    %v4144 = vunpack.c.l.b16 %v2699
    %v4145 = vunpack.c.h.b16 %v2699
    %v4146 = vunpack.c.l.b16 %v2700
    %v4147 = vunpack.c.h.b16 %v2700
    %v4148 = vunpack.c.l.b16 %v2701
    %v4149 = vunpack.c.h.b16 %v2701
    %v4150 = vunpack.c.l.b16 %v2702
    %v4151 = vunpack.c.h.b16 %v2702
    %v4152 = vunpack.c.l.b16 %v2703
    %v4153 = vunpack.c.h.b16 %v2703
    %v4154 = vunpack.c.l.b16 %v2704
    %v4155 = vunpack.c.h.b16 %v2704
    %v4156 = vunpack.c.l.b16 %v2705
    %v4157 = vunpack.c.h.b16 %v2705
    %v4158 = vunpack.c.l.b16 %v2706
    %v4159 = vunpack.c.h.b16 %v2706
    %v4160 = vunpack.c.l.b16 %v2707
    %v4161 = vunpack.c.h.b16 %v2707
    %v4162 = vunpack.c.l.b16 %v2708
    %v4163 = vunpack.c.h.b16 %v2708
    %v4164 = vunpack.c.l.b16 %v2709
    %v4165 = vunpack.c.h.b16 %v2709
    %v4166 = vunpack.c.l.b16 %v2710
    %v4167 = vunpack.c.h.b16 %v2710
    %v4168 = vunpack.c.l.b16 %v2711
    %v4169 = vunpack.c.h.b16 %v2711
    %v4170 = vunpack.c.l.b16 %v2712
    %v4171 = vunpack.c.h.b16 %v2712
    %v4172 = vunpack.c.l.b16 %v2713
    %v4173 = vunpack.c.h.b16 %v2713
    %v4174 = vunpack.c.l.b16 %v2714
    %v4175 = vunpack.c.h.b16 %v2714
    %v4176 = vunpack.c.l.b16 %v2715
    %v4177 = vunpack.c.h.b16 %v2715
    %v4178 = vunpack.c.l.b16 %v2716
    %v4179 = vunpack.c.h.b16 %v2716
    %v4180 = vunpack.c.l.b16 %v2717
    %v4181 = vunpack.c.h.b16 %v2717
    %v4182 = vunpack.c.l.b16 %v2718
    %v4183 = vunpack.c.h.b16 %v2718
    %v4184 = vunpack.c.l.b16 %v2719
    %v4185 = vunpack.c.h.b16 %v2719
    %v4186 = vunpack.c.l.b16 %v2720
    %v4187 = vunpack.c.h.b16 %v2720
    %v4188 = vunpack.c.l.b16 %v2721
    %v4189 = vunpack.c.h.b16 %v2721
    %v4190 = vunpack.c.l.b16 %v2722
    %v4191 = vunpack.c.h.b16 %v2722
    %v4192 = vunpack.c.l.b16 %v2723
    %v4193 = vunpack.c.h.b16 %v2723
    %v4194 = vunpack.c.l.b16 %v2724
    %v4195 = vunpack.c.h.b16 %v2724
    %v4196 = vunpack.c.l.b16 %v2725
    %v4197 = vunpack.c.h.b16 %v2725
    %v4198 = vunpack.c.l.b16 %v2726
    %v4199 = vunpack.c.h.b16 %v2726
    %v4200 = vunpack.c.l.b16 %v2727
    %v4201 = vunpack.c.h.b16 %v2727
    %v4202 = vunpack.c.l.b16 %v2728
    %v4203 = vunpack.c.h.b16 %v2728
    %v4204 = vunpack.c.l.b16 %v2729
    %v4205 = vunpack.c.h.b16 %v2729
    %v4206 = vunpack.c.l.b16 %v2730
    %v4207 = vunpack.c.h.b16 %v2730
    %v4208 = vunpack.c.l.b16 %v2731
    %v4209 = vunpack.c.h.b16 %v2731
    %v4210 = vunpack.c.l.b16 %v2732
    %v4211 = vunpack.c.h.b16 %v2732
    %v4212 = vunpack.c.l.b16 %v2733
    %v4213 = vunpack.c.h.b16 %v2733
    %v4214 = vunpack.c.l.b16 %v2734
    %v4215 = vunpack.c.h.b16 %v2734
    %v4216 = vunpack.c.l.b16 %v2735
    %v4217 = vunpack.c.h.b16 %v2735
    %v4218 = vunpack.c.l.b16 %v2736
    %v4219 = vunpack.c.h.b16 %v2736
    %v4220 = vunpack.c.l.b16 %v2737
    %v4221 = vunpack.c.h.b16 %v2737
    %v4222 = vunpack.c.l.b16 %v2738
    %v4223 = vunpack.c.h.b16 %v2738
    %v4224 = vunpack.c.l.b16 %v2739
    %v4225 = vunpack.c.h.b16 %v2739
    %v4226 = vunpack.c.l.b16 %v2740
    %v4227 = vunpack.c.h.b16 %v2740
    %v4228 = vunpack.c.l.b16 %v2741
    %v4229 = vunpack.c.h.b16 %v2741
    %v4230 = vunpack.c.l.b16 %v2742
    %v4231 = vunpack.c.h.b16 %v2742
    %v4232 = vunpack.c.l.b16 %v2743
    %v4233 = vunpack.c.h.b16 %v2743
    %v4234 = vunpack.c.l.b16 %v2744
    %v4235 = vunpack.c.h.b16 %v2744
    %v4236 = vunpack.c.l.b16 %v2745
    %v4237 = vunpack.c.h.b16 %v2745
    %v4238 = vunpack.c.l.b16 %v2746
    %v4239 = vunpack.c.h.b16 %v2746
    %v4240 = vunpack.c.l.b16 %v2747
    %v4241 = vunpack.c.h.b16 %v2747
    %v4242 = vunpack.c.l.b16 %v2748
    %v4243 = vunpack.c.h.b16 %v2748
    %v4244 = vunpack.c.l.b16 %v2749
    %v4245 = vunpack.c.h.b16 %v2749
    %v4246 = vunpack.c.l.b16 %v2750
    %v4247 = vunpack.c.h.b16 %v2750
    %v4248 = vunpack.c.l.b16 %v2751
    %v4249 = vunpack.c.h.b16 %v2751
    %v4250 = vunpack.c.l.b16 %v2752
    %v4251 = vunpack.c.h.b16 %v2752
    %v4252 = vunpack.c.l.b16 %v2753
    %v4253 = vunpack.c.h.b16 %v2753
    %v4254 = vunpack.c.l.b16 %v2754
    %v4255 = vunpack.c.h.b16 %v2754
    %v4256 = vunpack.c.l.b16 %v2755
    %v4257 = vunpack.c.h.b16 %v2755
    %v4258 = vunpack.c.l.b16 %v2756
    %v4259 = vunpack.c.h.b16 %v2756
    %v4260 = vunpack.c.l.b16 %v2757
    %v4261 = vunpack.c.h.b16 %v2757
    %v4262 = vunpack.c.l.b16 %v2758
    %v4263 = vunpack.c.h.b16 %v2758
    %v4264 = vunpack.c.l.b16 %v2759
    %v4265 = vunpack.c.h.b16 %v2759
    %v4266 = vunpack.c.l.b16 %v2760
    %v4267 = vunpack.c.h.b16 %v2760
    %v4268 = vunpack.c.l.b16 %v2761
    %v4269 = vunpack.c.h.b16 %v2761
    %v4270 = vunpack.c.l.b16 %v2762
    %v4271 = vunpack.c.h.b16 %v2762
    %v4272 = vunpack.c.l.b16 %v2763
    %v4273 = vunpack.c.h.b16 %v2763
    %v4274 = vunpack.c.l.b16 %v2764
    %v4275 = vunpack.c.h.b16 %v2764
    %v4276 = vunpack.c.l.b16 %v2765
    %v4277 = vunpack.c.h.b16 %v2765
    %v4278 = vunpack.c.l.b16 %v2766
    %v4279 = vunpack.c.h.b16 %v2766
    %v4280 = vunpack.c.l.b16 %v2767
    %v4281 = vunpack.c.h.b16 %v2767
    %v4282 = vunpack.c.l.b16 %v2768
    %v4283 = vunpack.c.h.b16 %v2768
    %v4284 = vunpack.c.l.b16 %v2769
    %v4285 = vunpack.c.h.b16 %v2769
    %v4286 = vunpack.c.l.b16 %v2770
    %v4287 = vunpack.c.h.b16 %v2770
    %v4288 = vunpack.c.l.b16 %v2771
    %v4289 = vunpack.c.h.b16 %v2771
    %v4290 = vunpack.c.l.b16 %v2772
    %v4291 = vunpack.c.h.b16 %v2772
    %v4292 = vunpack.c.l.b16 %v2773
    %v4293 = vunpack.c.h.b16 %v2773
    %v4294 = vunpack.c.l.b16 %v2774
    %v4295 = vunpack.c.h.b16 %v2774
    %v4296 = vunpack.c.l.b16 %v2775
    %v4297 = vunpack.c.h.b16 %v2775
    %v4298 = vunpack.c.l.b16 %v2776
    %v4299 = vunpack.c.h.b16 %v2776
    %v4300 = vunpack.c.l.b16 %v2777
    %v4301 = vunpack.c.h.b16 %v2777
    %v4302 = vunpack.c.l.b16 %v2778
    %v4303 = vunpack.c.h.b16 %v2778
    %v4304 = vunpack.c.l.b16 %v2779
    %v4305 = vunpack.c.h.b16 %v2779
    %v4306 = vunpack.c.l.b16 %v2780
    %v4307 = vunpack.c.h.b16 %v2780
    %v4308 = vunpack.c.l.b16 %v2781
    %v4309 = vunpack.c.h.b16 %v2781
    %v4310 = vunpack.c.l.b16 %v2782
    %v4311 = vunpack.c.h.b16 %v2782
    %v4312 = vunpack.c.l.b16 %v2783
    %v4313 = vunpack.c.h.b16 %v2783
    %v4314 = vunpack.c.l.b16 %v2784
    %v4315 = vunpack.c.h.b16 %v2784
    %v4316 = vunpack.c.l.b16 %v2785
    %v4317 = vunpack.c.h.b16 %v2785
    %v4318 = vunpack.c.l.b16 %v2786
    %v4319 = vunpack.c.h.b16 %v2786
    %v4320 = vunpack.c.l.b16 %v2787
    %v4321 = vunpack.c.h.b16 %v2787
    %v4322 = vunpack.c.l.b16 %v2788
    %v4323 = vunpack.c.h.b16 %v2788
    %v4324 = vunpack.c.l.b16 %v2789
    %v4325 = vunpack.c.h.b16 %v2789
    %v4326 = vunpack.c.l.b16 %v2790
    %v4327 = vunpack.c.h.b16 %v2790
    %v4328 = vunpack.c.l.b16 %v2791
    %v4329 = vunpack.c.h.b16 %v2791
    %v4330 = vunpack.c.l.b16 %v2792
    %v4331 = vunpack.c.h.b16 %v2792
    %v4332 = vunpack.c.l.b16 %v2793
    %v4333 = vunpack.c.h.b16 %v2793
    %v4334 = vunpack.c.l.b16 %v2794
    %v4335 = vunpack.c.h.b16 %v2794
    %v4336 = vunpack.c.l.b16 %v2795
    %v4337 = vunpack.c.h.b16 %v2795
    %v4338 = vunpack.c.l.b16 %v2796
    %v4339 = vunpack.c.h.b16 %v2796
    %v4340 = vunpack.c.l.b16 %v2797
    %v4341 = vunpack.c.h.b16 %v2797
    %v4342 = vunpack.c.l.b16 %v2798
    %v4343 = vunpack.c.h.b16 %v2798
    %v4344 = vunpack.c.l.b16 %v2799
    %v4345 = vunpack.c.h.b16 %v2799
    %v4346 = vunpack.c.l.b16 %v2800
    %v4347 = vunpack.c.h.b16 %v2800
    %v4348 = vunpack.c.l.b16 %v2801
    %v4349 = vunpack.c.h.b16 %v2801
    %v4350 = vunpack.c.l.b16 %v2802
    %v4351 = vunpack.c.h.b16 %v2802
    %v4352 = vunpack.c.l.b16 %v2803
    %v4353 = vunpack.c.h.b16 %v2803
    %v4354 = vunpack.c.l.b16 %v2804
    %v4355 = vunpack.c.h.b16 %v2804
    %v4356 = vunpack.c.l.b16 %v2805
    %v4357 = vunpack.c.h.b16 %v2805
    %v4358 = vunpack.c.l.b16 %v2806
    %v4359 = vunpack.c.h.b16 %v2806
    %v4360 = vunpack.c.l.b16 %v2807
    %v4361 = vunpack.c.h.b16 %v2807
    %v4362 = vunpack.c.l.b16 %v2808
    %v4363 = vunpack.c.h.b16 %v2808
    %v4364 = vunpack.c.l.b16 %v2809
    %v4365 = vunpack.c.h.b16 %v2809
    %v4366 = vunpack.c.l.b16 %v2810
    %v4367 = vunpack.c.h.b16 %v2810
    %v4368 = vunpack.c.l.b16 %v2811
    %v4369 = vunpack.c.h.b16 %v2811
    %v4370 = vunpack.c.l.b16 %v2812
    %v4371 = vunpack.c.h.b16 %v2812
    %v4372 = vunpack.c.l.b16 %v2813
    %v4373 = vunpack.c.h.b16 %v2813
    %v4374 = vunpack.c.l.b16 %v2814
    %v4375 = vunpack.c.h.b16 %v2814
    %v4376 = vunpack.c.l.b16 %v2815
    %v4377 = vunpack.c.h.b16 %v2815
    %v4378 = vunpack.c.l.b16 %v2816
    %v4379 = vunpack.c.h.b16 %v2816
    %v4380 = vunpack.c.l.b16 %v2817
    %v4381 = vunpack.c.h.b16 %v2817
    %v4382 = vunpack.c.l.b16 %v2818
    %v4383 = vunpack.c.h.b16 %v2818
    %v4384 = vunpack.c.l.b16 %v2819
    %v4385 = vunpack.c.h.b16 %v2819
    %v4386 = vunpack.c.l.b16 %v2820
    %v4387 = vunpack.c.h.b16 %v2820
    %v4388 = vunpack.c.l.b16 %v2821
    %v4389 = vunpack.c.h.b16 %v2821
    %v4390 = vunpack.c.l.b16 %v2822
    %v4391 = vunpack.c.h.b16 %v2822
    %v4392 = vunpack.c.l.b16 %v2823
    %v4393 = vunpack.c.h.b16 %v2823
    %v4394 = vunpack.c.l.b16 %v2824
    %v4395 = vunpack.c.h.b16 %v2824
    %v4396 = vunpack.c.l.b16 %v2825
    %v4397 = vunpack.c.h.b16 %v2825
    %v4398 = vunpack.c.l.b16 %v2826
    %v4399 = vunpack.c.h.b16 %v2826
    %v4400 = vunpack.c.l.b16 %v2827
    %v4401 = vunpack.c.h.b16 %v2827
    %v4402 = vunpack.c.l.b16 %v2828
    %v4403 = vunpack.c.h.b16 %v2828
    %v4404 = vunpack.c.l.b16 %v2829
    %v4405 = vunpack.c.h.b16 %v2829
    %v4406 = vunpack.c.l.b16 %v2830
    %v4407 = vunpack.c.h.b16 %v2830
    %v4408 = vunpack.c.l.b16 %v2831
    %v4409 = vunpack.c.h.b16 %v2831
    %v4410 = vunpack.c.l.b16 %v2832
    %v4411 = vunpack.c.h.b16 %v2832
    %v4412 = vunpack.c.l.b16 %v2833
    %v4413 = vunpack.c.h.b16 %v2833
    %v4414 = vunpack.c.l.b16 %v2834
    %v4415 = vunpack.c.h.b16 %v2834
    %v4416 = vunpack.c.l.b16 %v2835
    %v4417 = vunpack.c.h.b16 %v2835
    %v4418 = vunpack.c.l.b16 %v2836
    %v4419 = vunpack.c.h.b16 %v2836
    %v4420 = vunpack.c.l.b16 %v2837
    %v4421 = vunpack.c.h.b16 %v2837
    %v4422 = vunpack.c.l.b16 %v2838
    %v4423 = vunpack.c.h.b16 %v2838
    %v4424 = vunpack.c.l.b16 %v2839
    %v4425 = vunpack.c.h.b16 %v2839
    %v4426 = vunpack.c.l.b16 %v2840
    %v4427 = vunpack.c.h.b16 %v2840
    %v4428 = vunpack.c.l.b16 %v2841
    %v4429 = vunpack.c.h.b16 %v2841
    %v4430 = vunpack.c.l.b16 %v2842
    %v4431 = vunpack.c.h.b16 %v2842
    %v4432 = vunpack.c.l.b16 %v2843
    %v4433 = vunpack.c.h.b16 %v2843
    %v4434 = vunpack.c.l.b16 %v2844
    %v4435 = vunpack.c.h.b16 %v2844
    %v4436 = vunpack.c.l.b16 %v2845
    %v4437 = vunpack.c.h.b16 %v2845
    %v4438 = vunpack.c.l.b16 %v2846
    %v4439 = vunpack.c.h.b16 %v2846
    %v4440 = vunpack.c.l.b16 %v2847
    %v4441 = vunpack.c.h.b16 %v2847
    %v4442 = vunpack.c.l.b16 %v2848
    %v4443 = vunpack.c.h.b16 %v2848
    %v4444 = vunpack.c.l.b16 %v2849
    %v4445 = vunpack.c.h.b16 %v2849
    %v4446 = vunpack.c.l.b16 %v2850
    %v4447 = vunpack.c.h.b16 %v2850
    %v4448 = vunpack.c.l.b16 %v2851
    %v4449 = vunpack.c.h.b16 %v2851
    %v4450 = vunpack.c.l.b16 %v2852
    %v4451 = vunpack.c.h.b16 %v2852
    %v4452 = vunpack.c.l.b16 %v2853
    %v4453 = vunpack.c.h.b16 %v2853
    %v4454 = vunpack.c.l.b16 %v2854
    %v4455 = vunpack.c.h.b16 %v2854
    %v4456 = vunpack.c.l.b16 %v2855
    %v4457 = vunpack.c.h.b16 %v2855
    %v4458 = vunpack.c.l.b16 %v2856
    %v4459 = vunpack.c.h.b16 %v2856
    %v4460 = vunpack.c.l.b16 %v2857
    %v4461 = vunpack.c.h.b16 %v2857
    %v4462 = vunpack.c.l.b16 %v2858
    %v4463 = vunpack.c.h.b16 %v2858
    %v4464 = vunpack.c.l.b16 %v2859
    %v4465 = vunpack.c.h.b16 %v2859
    %v4466 = vunpack.c.l.b16 %v2860
    %v4467 = vunpack.c.h.b16 %v2860
    %v4468 = vunpack.c.l.b16 %v2861
    %v4469 = vunpack.c.h.b16 %v2861
    %v4470 = vunpack.c.l.b16 %v2862
    %v4471 = vunpack.c.h.b16 %v2862
    %v4472 = vunpack.c.l.b16 %v2863
    %v4473 = vunpack.c.h.b16 %v2863
    %v4474 = vunpack.c.l.b16 %v2864
    %v4475 = vunpack.c.h.b16 %v2864
    %v4476 = vunpack.c.l.b16 %v2865
    %v4477 = vunpack.c.h.b16 %v2865
    %v4478 = vunpack.c.l.b16 %v2866
    %v4479 = vunpack.c.h.b16 %v2866
    %v4480 = vunpack.c.l.b16 %v2867
    %v4481 = vunpack.c.h.b16 %v2867
    %v4482 = vpack.c.b16 %v3460, %v3458
    %v4483 = vpack.c.b16 %v3461, %v3459
    %v4484 = vpack.c.b16 %v3464, %v3462
    %v4485 = vpack.c.b16 %v3465, %v3463
    %v4486 = vpack.c.b16 %v3468, %v3466
    %v4487 = vpack.c.b16 %v3469, %v3467
    %v4488 = vpack.c.b16 %v3472, %v3470
    %v4489 = vpack.c.b16 %v3473, %v3471
    %v4490 = vpack.c.b16 %v3476, %v3474
    %v4491 = vpack.c.b16 %v3477, %v3475
    %v4492 = vpack.c.b16 %v3480, %v3478
    %v4493 = vpack.c.b16 %v3481, %v3479
    %v4494 = vpack.c.b16 %v3484, %v3482
    %v4495 = vpack.c.b16 %v3485, %v3483
    %v4496 = vpack.c.b16 %v3488, %v3486
    %v4497 = vpack.c.b16 %v3489, %v3487
    %v4498 = vpack.c.b16 %v3492, %v3490
    %v4499 = vpack.c.b16 %v3493, %v3491
    %v4500 = vpack.c.b16 %v3496, %v3494
    %v4501 = vpack.c.b16 %v3497, %v3495
    %v4502 = vpack.c.b16 %v3500, %v3498
    %v4503 = vpack.c.b16 %v3501, %v3499
    %v4504 = vpack.c.b16 %v3504, %v3502
    %v4505 = vpack.c.b16 %v3505, %v3503
    %v4506 = vpack.c.b16 %v3508, %v3506
    %v4507 = vpack.c.b16 %v3509, %v3507
    %v4508 = vpack.c.b16 %v3512, %v3510
    %v4509 = vpack.c.b16 %v3513, %v3511
    %v4510 = vpack.c.b16 %v3516, %v3514
    %v4511 = vpack.c.b16 %v3517, %v3515
    %v4512 = vpack.c.b16 %v3520, %v3518
    %v4513 = vpack.c.b16 %v3521, %v3519
    %v4514 = vpack.c.b16 %v3524, %v3522
    %v4515 = vpack.c.b16 %v3525, %v3523
    %v4516 = vpack.c.b16 %v3528, %v3526
    %v4517 = vpack.c.b16 %v3529, %v3527
    %v4518 = vpack.c.b16 %v3532, %v3530
    %v4519 = vpack.c.b16 %v3533, %v3531
    %v4520 = vpack.c.b16 %v3536, %v3534
    %v4521 = vpack.c.b16 %v3537, %v3535
    %v4522 = vpack.c.b16 %v3540, %v3538
    %v4523 = vpack.c.b16 %v3541, %v3539
    %v4524 = vpack.c.b16 %v3544, %v3542
    %v4525 = vpack.c.b16 %v3545, %v3543
    %v4526 = vpack.c.b16 %v3548, %v3546
    %v4527 = vpack.c.b16 %v3549, %v3547
    %v4528 = vpack.c.b16 %v3552, %v3550
    %v4529 = vpack.c.b16 %v3553, %v3551
    %v4530 = vpack.c.b16 %v3556, %v3554
    %v4531 = vpack.c.b16 %v3557, %v3555
    %v4532 = vpack.c.b16 %v3560, %v3558
    %v4533 = vpack.c.b16 %v3561, %v3559
    %v4534 = vpack.c.b16 %v3564, %v3562
    %v4535 = vpack.c.b16 %v3565, %v3563
    %v4536 = vpack.c.b16 %v3568, %v3566
    %v4537 = vpack.c.b16 %v3569, %v3567
    %v4538 = vpack.c.b16 %v3572, %v3570
    %v4539 = vpack.c.b16 %v3573, %v3571
    %v4540 = vpack.c.b16 %v3576, %v3574
    %v4541 = vpack.c.b16 %v3577, %v3575
    %v4542 = vpack.c.b16 %v3580, %v3578
    %v4543 = vpack.c.b16 %v3581, %v3579
    %v4544 = vpack.c.b16 %v3584, %v3582
    %v4545 = vpack.c.b16 %v3585, %v3583
    %v4546 = vpack.c.b16 %v3588, %v3586
    %v4547 = vpack.c.b16 %v3589, %v3587
    %v4548 = vpack.c.b16 %v3592, %v3590
    %v4549 = vpack.c.b16 %v3593, %v3591
    %v4550 = vpack.c.b16 %v3596, %v3594
    %v4551 = vpack.c.b16 %v3597, %v3595
    %v4552 = vpack.c.b16 %v3600, %v3598
    %v4553 = vpack.c.b16 %v3601, %v3599
    %v4554 = vpack.c.b16 %v3604, %v3602
    %v4555 = vpack.c.b16 %v3605, %v3603
    %v4556 = vpack.c.b16 %v3608, %v3606
    %v4557 = vpack.c.b16 %v3609, %v3607
    %v4558 = vpack.c.b16 %v3612, %v3610
    %v4559 = vpack.c.b16 %v3613, %v3611
    %v4560 = vpack.c.b16 %v3616, %v3614
    %v4561 = vpack.c.b16 %v3617, %v3615
    %v4562 = vpack.c.b16 %v3620, %v3618
    %v4563 = vpack.c.b16 %v3621, %v3619
    %v4564 = vpack.c.b16 %v3624, %v3622
    %v4565 = vpack.c.b16 %v3625, %v3623
    %v4566 = vpack.c.b16 %v3628, %v3626
    %v4567 = vpack.c.b16 %v3629, %v3627
    %v4568 = vpack.c.b16 %v3632, %v3630
    %v4569 = vpack.c.b16 %v3633, %v3631
    %v4570 = vpack.c.b16 %v3636, %v3634
    %v4571 = vpack.c.b16 %v3637, %v3635
    %v4572 = vpack.c.b16 %v3640, %v3638
    %v4573 = vpack.c.b16 %v3641, %v3639
    %v4574 = vpack.c.b16 %v3644, %v3642
    %v4575 = vpack.c.b16 %v3645, %v3643
    %v4576 = vpack.c.b16 %v3648, %v3646
    %v4577 = vpack.c.b16 %v3649, %v3647
    %v4578 = vpack.c.b16 %v3652, %v3650
    %v4579 = vpack.c.b16 %v3653, %v3651
    %v4580 = vpack.c.b16 %v3656, %v3654
    %v4581 = vpack.c.b16 %v3657, %v3655
    %v4582 = vpack.c.b16 %v3660, %v3658
    %v4583 = vpack.c.b16 %v3661, %v3659
    %v4584 = vpack.c.b16 %v3664, %v3662
    %v4585 = vpack.c.b16 %v3665, %v3663
    %v4586 = vpack.c.b16 %v3668, %v3666
    %v4587 = vpack.c.b16 %v3669, %v3667
    %v4588 = vpack.c.b16 %v3672, %v3670
    %v4589 = vpack.c.b16 %v3673, %v3671
    %v4590 = vpack.c.b16 %v3676, %v3674
    %v4591 = vpack.c.b16 %v3677, %v3675
    %v4592 = vpack.c.b16 %v3680, %v3678
    %v4593 = vpack.c.b16 %v3681, %v3679
    %v4594 = vpack.c.b16 %v3684, %v3682
    %v4595 = vpack.c.b16 %v3685, %v3683
    %v4596 = vpack.c.b16 %v3688, %v3686
    %v4597 = vpack.c.b16 %v3689, %v3687
    %v4598 = vpack.c.b16 %v3692, %v3690
    %v4599 = vpack.c.b16 %v3693, %v3691
    %v4600 = vpack.c.b16 %v3696, %v3694
    %v4601 = vpack.c.b16 %v3697, %v3695
    %v4602 = vpack.c.b16 %v3700, %v3698
    %v4603 = vpack.c.b16 %v3701, %v3699
    %v4604 = vpack.c.b16 %v3704, %v3702
    %v4605 = vpack.c.b16 %v3705, %v3703
    %v4606 = vpack.c.b16 %v3708, %v3706
    %v4607 = vpack.c.b16 %v3709, %v3707
    %v4608 = vpack.c.b16 %v3712, %v3710
    %v4609 = vpack.c.b16 %v3713, %v3711
    %v4610 = vpack.c.b16 %v3716, %v3714
    %v4611 = vpack.c.b16 %v3717, %v3715
    %v4612 = vpack.c.b16 %v3720, %v3718
    %v4613 = vpack.c.b16 %v3721, %v3719
    %v4614 = vpack.c.b16 %v3724, %v3722
    %v4615 = vpack.c.b16 %v3725, %v3723
    %v4616 = vpack.c.b16 %v3728, %v3726
    %v4617 = vpack.c.b16 %v3729, %v3727
    %v4618 = vpack.c.b16 %v3732, %v3730
    %v4619 = vpack.c.b16 %v3733, %v3731
    %v4620 = vpack.c.b16 %v3736, %v3734
    %v4621 = vpack.c.b16 %v3737, %v3735
    %v4622 = vpack.c.b16 %v3740, %v3738
    %v4623 = vpack.c.b16 %v3741, %v3739
    %v4624 = vpack.c.b16 %v3744, %v3742
    %v4625 = vpack.c.b16 %v3745, %v3743
    %v4626 = vpack.c.b16 %v3748, %v3746
    %v4627 = vpack.c.b16 %v3749, %v3747
    %v4628 = vpack.c.b16 %v3752, %v3750
    %v4629 = vpack.c.b16 %v3753, %v3751
    %v4630 = vpack.c.b16 %v3756, %v3754
    %v4631 = vpack.c.b16 %v3757, %v3755
    %v4632 = vpack.c.b16 %v3760, %v3758
    %v4633 = vpack.c.b16 %v3761, %v3759
    %v4634 = vpack.c.b16 %v3764, %v3762
    %v4635 = vpack.c.b16 %v3765, %v3763
    %v4636 = vpack.c.b16 %v3768, %v3766
    %v4637 = vpack.c.b16 %v3769, %v3767
    %v4638 = vpack.c.b16 %v3772, %v3770
    %v4639 = vpack.c.b16 %v3773, %v3771
    %v4640 = vpack.c.b16 %v3776, %v3774
    %v4641 = vpack.c.b16 %v3777, %v3775
    %v4642 = vpack.c.b16 %v3780, %v3778
    %v4643 = vpack.c.b16 %v3781, %v3779
    %v4644 = vpack.c.b16 %v3784, %v3782
    %v4645 = vpack.c.b16 %v3785, %v3783
    %v4646 = vpack.c.b16 %v3788, %v3786
    %v4647 = vpack.c.b16 %v3789, %v3787
    %v4648 = vpack.c.b16 %v3792, %v3790
    %v4649 = vpack.c.b16 %v3793, %v3791
    %v4650 = vpack.c.b16 %v3796, %v3794
    %v4651 = vpack.c.b16 %v3797, %v3795
    %v4652 = vpack.c.b16 %v3800, %v3798
    %v4653 = vpack.c.b16 %v3801, %v3799
    %v4654 = vpack.c.b16 %v3804, %v3802
    %v4655 = vpack.c.b16 %v3805, %v3803
    %v4656 = vpack.c.b16 %v3808, %v3806
    %v4657 = vpack.c.b16 %v3809, %v3807
    %v4658 = vpack.c.b16 %v3812, %v3810
    %v4659 = vpack.c.b16 %v3813, %v3811
    %v4660 = vpack.c.b16 %v3816, %v3814
    %v4661 = vpack.c.b16 %v3817, %v3815
    %v4662 = vpack.c.b16 %v3820, %v3818
    %v4663 = vpack.c.b16 %v3821, %v3819
    %v4664 = vpack.c.b16 %v3824, %v3822
    %v4665 = vpack.c.b16 %v3825, %v3823
    %v4666 = vpack.c.b16 %v3828, %v3826
    %v4667 = vpack.c.b16 %v3829, %v3827
    %v4668 = vpack.c.b16 %v3832, %v3830
    %v4669 = vpack.c.b16 %v3833, %v3831
    %v4670 = vpack.c.b16 %v3836, %v3834
    %v4671 = vpack.c.b16 %v3837, %v3835
    %v4672 = vpack.c.b16 %v3840, %v3838
    %v4673 = vpack.c.b16 %v3841, %v3839
    %v4674 = vpack.c.b16 %v3844, %v3842
    %v4675 = vpack.c.b16 %v3845, %v3843
    %v4676 = vpack.c.b16 %v3848, %v3846
    %v4677 = vpack.c.b16 %v3849, %v3847
    %v4678 = vpack.c.b16 %v3852, %v3850
    %v4679 = vpack.c.b16 %v3853, %v3851
    %v4680 = vpack.c.b16 %v3856, %v3854
    %v4681 = vpack.c.b16 %v3857, %v3855
    %v4682 = vpack.c.b16 %v3860, %v3858
    %v4683 = vpack.c.b16 %v3861, %v3859
    %v4684 = vpack.c.b16 %v3864, %v3862
    %v4685 = vpack.c.b16 %v3865, %v3863
    %v4686 = vpack.c.b16 %v3868, %v3866
    %v4687 = vpack.c.b16 %v3869, %v3867
    %v4688 = vpack.c.b16 %v3872, %v3870
    %v4689 = vpack.c.b16 %v3873, %v3871
    %v4690 = vpack.c.b16 %v3876, %v3874
    %v4691 = vpack.c.b16 %v3877, %v3875
    %v4692 = vpack.c.b16 %v3880, %v3878
    %v4693 = vpack.c.b16 %v3881, %v3879
    %v4694 = vpack.c.b16 %v3884, %v3882
    %v4695 = vpack.c.b16 %v3885, %v3883
    %v4696 = vpack.c.b16 %v3888, %v3886
    %v4697 = vpack.c.b16 %v3889, %v3887
    %v4698 = vpack.c.b16 %v3892, %v3890
    %v4699 = vpack.c.b16 %v3893, %v3891
    %v4700 = vpack.c.b16 %v3896, %v3894
    %v4701 = vpack.c.b16 %v3897, %v3895
    %v4702 = vpack.c.b16 %v3900, %v3898
    %v4703 = vpack.c.b16 %v3901, %v3899
    %v4704 = vpack.c.b16 %v3904, %v3902
    %v4705 = vpack.c.b16 %v3905, %v3903
    %v4706 = vpack.c.b16 %v3908, %v3906
    %v4707 = vpack.c.b16 %v3909, %v3907
    %v4708 = vpack.c.b16 %v3912, %v3910
    %v4709 = vpack.c.b16 %v3913, %v3911
    %v4710 = vpack.c.b16 %v3916, %v3914
    %v4711 = vpack.c.b16 %v3917, %v3915
    %v4712 = vpack.c.b16 %v3920, %v3918
    %v4713 = vpack.c.b16 %v3921, %v3919
    %v4714 = vpack.c.b16 %v3924, %v3922
    %v4715 = vpack.c.b16 %v3925, %v3923
    %v4716 = vpack.c.b16 %v3928, %v3926
    %v4717 = vpack.c.b16 %v3929, %v3927
    %v4718 = vpack.c.b16 %v3932, %v3930
    %v4719 = vpack.c.b16 %v3933, %v3931
    %v4720 = vpack.c.b16 %v3936, %v3934
    %v4721 = vpack.c.b16 %v3937, %v3935
    %v4722 = vpack.c.b16 %v3940, %v3938
    %v4723 = vpack.c.b16 %v3941, %v3939
    %v4724 = vpack.c.b16 %v3944, %v3942
    %v4725 = vpack.c.b16 %v3945, %v3943
    %v4726 = vpack.c.b16 %v3948, %v3946
    %v4727 = vpack.c.b16 %v3949, %v3947
    %v4728 = vpack.c.b16 %v3952, %v3950
    %v4729 = vpack.c.b16 %v3953, %v3951
    %v4730 = vpack.c.b16 %v3956, %v3954
    %v4731 = vpack.c.b16 %v3957, %v3955
    %v4732 = vpack.c.b16 %v3960, %v3958
    %v4733 = vpack.c.b16 %v3961, %v3959
    %v4734 = vpack.c.b16 %v3964, %v3962
    %v4735 = vpack.c.b16 %v3965, %v3963
    %v4736 = vpack.c.b16 %v3968, %v3966
    %v4737 = vpack.c.b16 %v3969, %v3967
    %v4738 = vpack.c.b16 %v3972, %v3970
    %v4739 = vpack.c.b16 %v3973, %v3971
    %v4740 = vpack.c.b16 %v3976, %v3974
    %v4741 = vpack.c.b16 %v3977, %v3975
    %v4742 = vpack.c.b16 %v3980, %v3978
    %v4743 = vpack.c.b16 %v3981, %v3979
    %v4744 = vpack.c.b16 %v3984, %v3982
    %v4745 = vpack.c.b16 %v3985, %v3983
    %v4746 = vpack.c.b16 %v3988, %v3986
    %v4747 = vpack.c.b16 %v3989, %v3987
    %v4748 = vpack.c.b16 %v3992, %v3990
    %v4749 = vpack.c.b16 %v3993, %v3991
    %v4750 = vpack.c.b16 %v3996, %v3994
    %v4751 = vpack.c.b16 %v3997, %v3995
    %v4752 = vpack.c.b16 %v4000, %v3998
    %v4753 = vpack.c.b16 %v4001, %v3999
    %v4754 = vpack.c.b16 %v4004, %v4002
    %v4755 = vpack.c.b16 %v4005, %v4003
    %v4756 = vpack.c.b16 %v4008, %v4006
    %v4757 = vpack.c.b16 %v4009, %v4007
    %v4758 = vpack.c.b16 %v4012, %v4010
    %v4759 = vpack.c.b16 %v4013, %v4011
    %v4760 = vpack.c.b16 %v4016, %v4014
    %v4761 = vpack.c.b16 %v4017, %v4015
    %v4762 = vpack.c.b16 %v4020, %v4018
    %v4763 = vpack.c.b16 %v4021, %v4019
    %v4764 = vpack.c.b16 %v4024, %v4022
    %v4765 = vpack.c.b16 %v4025, %v4023
    %v4766 = vpack.c.b16 %v4028, %v4026
    %v4767 = vpack.c.b16 %v4029, %v4027
    %v4768 = vpack.c.b16 %v4032, %v4030
    %v4769 = vpack.c.b16 %v4033, %v4031
    %v4770 = vpack.c.b16 %v4036, %v4034
    %v4771 = vpack.c.b16 %v4037, %v4035
    %v4772 = vpack.c.b16 %v4040, %v4038
    %v4773 = vpack.c.b16 %v4041, %v4039
    %v4774 = vpack.c.b16 %v4044, %v4042
    %v4775 = vpack.c.b16 %v4045, %v4043
    %v4776 = vpack.c.b16 %v4048, %v4046
    %v4777 = vpack.c.b16 %v4049, %v4047
    %v4778 = vpack.c.b16 %v4052, %v4050
    %v4779 = vpack.c.b16 %v4053, %v4051
    %v4780 = vpack.c.b16 %v4056, %v4054
    %v4781 = vpack.c.b16 %v4057, %v4055
    %v4782 = vpack.c.b16 %v4060, %v4058
    %v4783 = vpack.c.b16 %v4061, %v4059
    %v4784 = vpack.c.b16 %v4064, %v4062
    %v4785 = vpack.c.b16 %v4065, %v4063
    %v4786 = vpack.c.b16 %v4068, %v4066
    %v4787 = vpack.c.b16 %v4069, %v4067
    %v4788 = vpack.c.b16 %v4072, %v4070
    %v4789 = vpack.c.b16 %v4073, %v4071
    %v4790 = vpack.c.b16 %v4076, %v4074
    %v4791 = vpack.c.b16 %v4077, %v4075
    %v4792 = vpack.c.b16 %v4080, %v4078
    %v4793 = vpack.c.b16 %v4081, %v4079
    %v4794 = vpack.c.b16 %v4084, %v4082
    %v4795 = vpack.c.b16 %v4085, %v4083
    %v4796 = vpack.c.b16 %v4088, %v4086
    %v4797 = vpack.c.b16 %v4089, %v4087
    %v4798 = vpack.c.b16 %v4092, %v4090
    %v4799 = vpack.c.b16 %v4093, %v4091
    %v4800 = vpack.c.b16 %v4096, %v4094
    %v4801 = vpack.c.b16 %v4097, %v4095
    %v4802 = vpack.c.b16 %v4100, %v4098
    %v4803 = vpack.c.b16 %v4101, %v4099
    %v4804 = vpack.c.b16 %v4104, %v4102
    %v4805 = vpack.c.b16 %v4105, %v4103
    %v4806 = vpack.c.b16 %v4108, %v4106
    %v4807 = vpack.c.b16 %v4109, %v4107
    %v4808 = vpack.c.b16 %v4112, %v4110
    %v4809 = vpack.c.b16 %v4113, %v4111
    %v4810 = vpack.c.b16 %v4116, %v4114
    %v4811 = vpack.c.b16 %v4117, %v4115
    %v4812 = vpack.c.b16 %v4120, %v4118
    %v4813 = vpack.c.b16 %v4121, %v4119
    %v4814 = vpack.c.b16 %v4124, %v4122
    %v4815 = vpack.c.b16 %v4125, %v4123
    %v4816 = vpack.c.b16 %v4128, %v4126
    %v4817 = vpack.c.b16 %v4129, %v4127
    %v4818 = vpack.c.b16 %v4132, %v4130
    %v4819 = vpack.c.b16 %v4133, %v4131
    %v4820 = vpack.c.b16 %v4136, %v4134
    %v4821 = vpack.c.b16 %v4137, %v4135
    %v4822 = vpack.c.b16 %v4140, %v4138
    %v4823 = vpack.c.b16 %v4141, %v4139
    %v4824 = vpack.c.b16 %v4144, %v4142
    %v4825 = vpack.c.b16 %v4145, %v4143
    %v4826 = vpack.c.b16 %v4148, %v4146
    %v4827 = vpack.c.b16 %v4149, %v4147
    %v4828 = vpack.c.b16 %v4152, %v4150
    %v4829 = vpack.c.b16 %v4153, %v4151
    %v4830 = vpack.c.b16 %v4156, %v4154
    %v4831 = vpack.c.b16 %v4157, %v4155
    %v4832 = vpack.c.b16 %v4160, %v4158
    %v4833 = vpack.c.b16 %v4161, %v4159
    %v4834 = vpack.c.b16 %v4164, %v4162
    %v4835 = vpack.c.b16 %v4165, %v4163
    %v4836 = vpack.c.b16 %v4168, %v4166
    %v4837 = vpack.c.b16 %v4169, %v4167
    %v4838 = vpack.c.b16 %v4172, %v4170
    %v4839 = vpack.c.b16 %v4173, %v4171
    %v4840 = vpack.c.b16 %v4176, %v4174
    %v4841 = vpack.c.b16 %v4177, %v4175
    %v4842 = vpack.c.b16 %v4180, %v4178
    %v4843 = vpack.c.b16 %v4181, %v4179
    %v4844 = vpack.c.b16 %v4184, %v4182
    %v4845 = vpack.c.b16 %v4185, %v4183
    %v4846 = vpack.c.b16 %v4188, %v4186
    %v4847 = vpack.c.b16 %v4189, %v4187
    %v4848 = vpack.c.b16 %v4192, %v4190
    %v4849 = vpack.c.b16 %v4193, %v4191
    %v4850 = vpack.c.b16 %v4196, %v4194
    %v4851 = vpack.c.b16 %v4197, %v4195
    %v4852 = vpack.c.b16 %v4200, %v4198
    %v4853 = vpack.c.b16 %v4201, %v4199
    %v4854 = vpack.c.b16 %v4204, %v4202
    %v4855 = vpack.c.b16 %v4205, %v4203
    %v4856 = vpack.c.b16 %v4208, %v4206
    %v4857 = vpack.c.b16 %v4209, %v4207
    %v4858 = vpack.c.b16 %v4212, %v4210
    %v4859 = vpack.c.b16 %v4213, %v4211
    %v4860 = vpack.c.b16 %v4216, %v4214
    %v4861 = vpack.c.b16 %v4217, %v4215
    %v4862 = vpack.c.b16 %v4220, %v4218
    %v4863 = vpack.c.b16 %v4221, %v4219
    %v4864 = vpack.c.b16 %v4224, %v4222
    %v4865 = vpack.c.b16 %v4225, %v4223
    %v4866 = vpack.c.b16 %v4228, %v4226
    %v4867 = vpack.c.b16 %v4229, %v4227
    %v4868 = vpack.c.b16 %v4232, %v4230
    %v4869 = vpack.c.b16 %v4233, %v4231
    %v4870 = vpack.c.b16 %v4236, %v4234
    %v4871 = vpack.c.b16 %v4237, %v4235
    %v4872 = vpack.c.b16 %v4240, %v4238
    %v4873 = vpack.c.b16 %v4241, %v4239
    %v4874 = vpack.c.b16 %v4244, %v4242
    %v4875 = vpack.c.b16 %v4245, %v4243
    %v4876 = vpack.c.b16 %v4248, %v4246
    %v4877 = vpack.c.b16 %v4249, %v4247
    %v4878 = vpack.c.b16 %v4252, %v4250
    %v4879 = vpack.c.b16 %v4253, %v4251
    %v4880 = vpack.c.b16 %v4256, %v4254
    %v4881 = vpack.c.b16 %v4257, %v4255
    %v4882 = vpack.c.b16 %v4260, %v4258
    %v4883 = vpack.c.b16 %v4261, %v4259
    %v4884 = vpack.c.b16 %v4264, %v4262
    %v4885 = vpack.c.b16 %v4265, %v4263
    %v4886 = vpack.c.b16 %v4268, %v4266
    %v4887 = vpack.c.b16 %v4269, %v4267
    %v4888 = vpack.c.b16 %v4272, %v4270
    %v4889 = vpack.c.b16 %v4273, %v4271
    %v4890 = vpack.c.b16 %v4276, %v4274
    %v4891 = vpack.c.b16 %v4277, %v4275
    %v4892 = vpack.c.b16 %v4280, %v4278
    %v4893 = vpack.c.b16 %v4281, %v4279
    %v4894 = vpack.c.b16 %v4284, %v4282
    %v4895 = vpack.c.b16 %v4285, %v4283
    %v4896 = vpack.c.b16 %v4288, %v4286
    %v4897 = vpack.c.b16 %v4289, %v4287
    %v4898 = vpack.c.b16 %v4292, %v4290
    %v4899 = vpack.c.b16 %v4293, %v4291
    %v4900 = vpack.c.b16 %v4296, %v4294
    %v4901 = vpack.c.b16 %v4297, %v4295
    %v4902 = vpack.c.b16 %v4300, %v4298
    %v4903 = vpack.c.b16 %v4301, %v4299
    %v4904 = vpack.c.b16 %v4304, %v4302
    %v4905 = vpack.c.b16 %v4305, %v4303
    %v4906 = vpack.c.b16 %v4308, %v4306
    %v4907 = vpack.c.b16 %v4309, %v4307
    %v4908 = vpack.c.b16 %v4312, %v4310
    %v4909 = vpack.c.b16 %v4313, %v4311
    %v4910 = vpack.c.b16 %v4316, %v4314
    %v4911 = vpack.c.b16 %v4317, %v4315
    %v4912 = vpack.c.b16 %v4320, %v4318
    %v4913 = vpack.c.b16 %v4321, %v4319
    %v4914 = vpack.c.b16 %v4324, %v4322
    %v4915 = vpack.c.b16 %v4325, %v4323
    %v4916 = vpack.c.b16 %v4328, %v4326
    %v4917 = vpack.c.b16 %v4329, %v4327
    %v4918 = vpack.c.b16 %v4332, %v4330
    %v4919 = vpack.c.b16 %v4333, %v4331
    %v4920 = vpack.c.b16 %v4336, %v4334
    %v4921 = vpack.c.b16 %v4337, %v4335
    %v4922 = vpack.c.b16 %v4340, %v4338
    %v4923 = vpack.c.b16 %v4341, %v4339
    %v4924 = vpack.c.b16 %v4344, %v4342
    %v4925 = vpack.c.b16 %v4345, %v4343
    %v4926 = vpack.c.b16 %v4348, %v4346
    %v4927 = vpack.c.b16 %v4349, %v4347
    %v4928 = vpack.c.b16 %v4352, %v4350
    %v4929 = vpack.c.b16 %v4353, %v4351
    %v4930 = vpack.c.b16 %v4356, %v4354
    %v4931 = vpack.c.b16 %v4357, %v4355
    %v4932 = vpack.c.b16 %v4360, %v4358
    %v4933 = vpack.c.b16 %v4361, %v4359
    %v4934 = vpack.c.b16 %v4364, %v4362
    %v4935 = vpack.c.b16 %v4365, %v4363
    %v4936 = vpack.c.b16 %v4368, %v4366
    %v4937 = vpack.c.b16 %v4369, %v4367
    %v4938 = vpack.c.b16 %v4372, %v4370
    %v4939 = vpack.c.b16 %v4373, %v4371
    %v4940 = vpack.c.b16 %v4376, %v4374
    %v4941 = vpack.c.b16 %v4377, %v4375
    %v4942 = vpack.c.b16 %v4380, %v4378
    %v4943 = vpack.c.b16 %v4381, %v4379
    %v4944 = vpack.c.b16 %v4384, %v4382
    %v4945 = vpack.c.b16 %v4385, %v4383
    %v4946 = vpack.c.b16 %v4388, %v4386
    %v4947 = vpack.c.b16 %v4389, %v4387
    %v4948 = vpack.c.b16 %v4392, %v4390
    %v4949 = vpack.c.b16 %v4393, %v4391
    %v4950 = vpack.c.b16 %v4396, %v4394
    %v4951 = vpack.c.b16 %v4397, %v4395
    %v4952 = vpack.c.b16 %v4400, %v4398
    %v4953 = vpack.c.b16 %v4401, %v4399
    %v4954 = vpack.c.b16 %v4404, %v4402
    %v4955 = vpack.c.b16 %v4405, %v4403
    %v4956 = vpack.c.b16 %v4408, %v4406
    %v4957 = vpack.c.b16 %v4409, %v4407
    %v4958 = vpack.c.b16 %v4412, %v4410
    %v4959 = vpack.c.b16 %v4413, %v4411
    %v4960 = vpack.c.b16 %v4416, %v4414
    %v4961 = vpack.c.b16 %v4417, %v4415
    %v4962 = vpack.c.b16 %v4420, %v4418
    %v4963 = vpack.c.b16 %v4421, %v4419
    %v4964 = vpack.c.b16 %v4424, %v4422
    %v4965 = vpack.c.b16 %v4425, %v4423
    %v4966 = vpack.c.b16 %v4428, %v4426
    %v4967 = vpack.c.b16 %v4429, %v4427
    %v4968 = vpack.c.b16 %v4432, %v4430
    %v4969 = vpack.c.b16 %v4433, %v4431
    %v4970 = vpack.c.b16 %v4436, %v4434
    %v4971 = vpack.c.b16 %v4437, %v4435
    %v4972 = vpack.c.b16 %v4440, %v4438
    %v4973 = vpack.c.b16 %v4441, %v4439
    %v4974 = vpack.c.b16 %v4444, %v4442
    %v4975 = vpack.c.b16 %v4445, %v4443
    %v4976 = vpack.c.b16 %v4448, %v4446
    %v4977 = vpack.c.b16 %v4449, %v4447
    %v4978 = vpack.c.b16 %v4452, %v4450
    %v4979 = vpack.c.b16 %v4453, %v4451
    %v4980 = vpack.c.b16 %v4456, %v4454
    %v4981 = vpack.c.b16 %v4457, %v4455
    %v4982 = vpack.c.b16 %v4460, %v4458
    %v4983 = vpack.c.b16 %v4461, %v4459
    %v4984 = vpack.c.b16 %v4464, %v4462
    %v4985 = vpack.c.b16 %v4465, %v4463
    %v4986 = vpack.c.b16 %v4468, %v4466
    %v4987 = vpack.c.b16 %v4469, %v4467
    %v4988 = vpack.c.b16 %v4472, %v4470
    %v4989 = vpack.c.b16 %v4473, %v4471
    %v4990 = vpack.c.b16 %v4476, %v4474
    %v4991 = vpack.c.b16 %v4477, %v4475
    %v4992 = vpack.c.b16 %v4480, %v4478
    %v4993 = vpack.c.b16 %v4481, %v4479
    %5506 = vmatpush.bf16.msra.mxu0 %v4496
    %5507 = vmatpush.bf16.msra.mxu0 %v4494
    %5508 = vmatpush.bf16.msra.mxu0 %v4492
    %5509 = vmatpush.bf16.msra.mxu0 %v4490
    %5510 = vmatpush.bf16.msra.mxu0 %v4488
    %5511 = vmatpush.bf16.msra.mxu0 %v4486
    %5512 = vmatpush.bf16.msra.mxu0 %v4484
    %5513 = vmatpush.bf16.msra.mxu0 %v4482
    %5514 = vmatmul.bf16.gmra.mxu0 %v2876
    %v5515 = vpop.f32.mrf.mxu0
    %v5516 = vadd.f32 %v2870, %v5515
    %v5517 = vpop.f32.mrf.mxu0
    %5518 = vdwg.mxu0
    %5519 = vmatpush.bf16.msra.mxu0 %v4512
    %5520 = vmatpush.bf16.msra.mxu0 %v4510
    %5521 = vmatpush.bf16.msra.mxu0 %v4508
    %5522 = vmatpush.bf16.msra.mxu0 %v4506
    %5523 = vmatpush.bf16.msra.mxu0 %v4504
    %5524 = vmatpush.bf16.msra.mxu0 %v4502
    %5525 = vmatpush.bf16.msra.mxu0 %v4500
    %5526 = vmatpush.bf16.msra.mxu0 %v4498
    %5527 = vmatmul.bf16.gmra.mxu0 %v2877
    %v5528 = vpop.f32.mrf.mxu0
    %v5529 = vadd.f32 %v5516, %v5528
    %v5530 = vpop.f32.mrf.mxu0
    %5531 = vdwg.mxu0
    %5532 = vmatpush.bf16.msra.mxu0 %v4528
    %5533 = vmatpush.bf16.msra.mxu0 %v4526
    %5534 = vmatpush.bf16.msra.mxu0 %v4524
    %5535 = vmatpush.bf16.msra.mxu0 %v4522
    %5536 = vmatpush.bf16.msra.mxu0 %v4520
    %5537 = vmatpush.bf16.msra.mxu0 %v4518
    %5538 = vmatpush.bf16.msra.mxu0 %v4516
    %5539 = vmatpush.bf16.msra.mxu0 %v4514
    %5540 = vmatmul.bf16.gmra.mxu0 %v2878
    %v5541 = vpop.f32.mrf.mxu0
    %v5542 = vadd.f32 %v5529, %v5541
    %v5543 = vpop.f32.mrf.mxu0
    %5544 = vdwg.mxu0
    %5545 = vmatpush.bf16.msra.mxu0 %v4544
    %5546 = vmatpush.bf16.msra.mxu0 %v4542
    %5547 = vmatpush.bf16.msra.mxu0 %v4540
    %5548 = vmatpush.bf16.msra.mxu0 %v4538
    %5549 = vmatpush.bf16.msra.mxu0 %v4536
    %5550 = vmatpush.bf16.msra.mxu0 %v4534
    %5551 = vmatpush.bf16.msra.mxu0 %v4532
    %5552 = vmatpush.bf16.msra.mxu0 %v4530
    %5553 = vmatmul.bf16.gmra.mxu0 %v2879
    %v5554 = vpop.f32.mrf.mxu0
    %v5555 = vadd.f32 %v5542, %v5554
    %v5556 = vpop.f32.mrf.mxu0
    %5557 = vdwg.mxu0
    %5558 = vmatpush.bf16.msra.mxu0 %v4560
    %5559 = vmatpush.bf16.msra.mxu0 %v4558
    %5560 = vmatpush.bf16.msra.mxu0 %v4556
    %5561 = vmatpush.bf16.msra.mxu0 %v4554
    %5562 = vmatpush.bf16.msra.mxu0 %v4552
    %5563 = vmatpush.bf16.msra.mxu0 %v4550
    %5564 = vmatpush.bf16.msra.mxu0 %v4548
    %5565 = vmatpush.bf16.msra.mxu0 %v4546
    %5566 = vmatmul.bf16.gmra.mxu0 %v2880
    %v5567 = vpop.f32.mrf.mxu0
    %v5568 = vadd.f32 %v5555, %v5567
    %v5569 = vpop.f32.mrf.mxu0
    %5570 = vdwg.mxu0
    %5571 = vmatpush.bf16.msra.mxu0 %v4576
    %5572 = vmatpush.bf16.msra.mxu0 %v4574
    %5573 = vmatpush.bf16.msra.mxu0 %v4572
    %5574 = vmatpush.bf16.msra.mxu0 %v4570
    %5575 = vmatpush.bf16.msra.mxu0 %v4568
    %5576 = vmatpush.bf16.msra.mxu0 %v4566
    %5577 = vmatpush.bf16.msra.mxu0 %v4564
    %5578 = vmatpush.bf16.msra.mxu0 %v4562
    %5579 = vmatmul.bf16.gmra.mxu0 %v2881
    %v5580 = vpop.f32.mrf.mxu0
    %v5581 = vadd.f32 %v5568, %v5580
    %v5582 = vpop.f32.mrf.mxu0
    %5583 = vdwg.mxu0
    %5584 = vmatpush.bf16.msra.mxu0 %v4592
    %5585 = vmatpush.bf16.msra.mxu0 %v4590
    %5586 = vmatpush.bf16.msra.mxu0 %v4588
    %5587 = vmatpush.bf16.msra.mxu0 %v4586
    %5588 = vmatpush.bf16.msra.mxu0 %v4584
    %5589 = vmatpush.bf16.msra.mxu0 %v4582
    %5590 = vmatpush.bf16.msra.mxu0 %v4580
    %5591 = vmatpush.bf16.msra.mxu0 %v4578
    %5592 = vmatmul.bf16.gmra.mxu0 %v2882
    %v5593 = vpop.f32.mrf.mxu0
    %v5594 = vadd.f32 %v5581, %v5593
    %v5595 = vpop.f32.mrf.mxu0
    %5596 = vdwg.mxu0
    %5597 = vmatpush.bf16.msra.mxu0 %v4608
    %5598 = vmatpush.bf16.msra.mxu0 %v4606
    %5599 = vmatpush.bf16.msra.mxu0 %v4604
    %5600 = vmatpush.bf16.msra.mxu0 %v4602
    %5601 = vmatpush.bf16.msra.mxu0 %v4600
    %5602 = vmatpush.bf16.msra.mxu0 %v4598
    %5603 = vmatpush.bf16.msra.mxu0 %v4596
    %5604 = vmatpush.bf16.msra.mxu0 %v4594
    %5605 = vmatmul.bf16.gmra.mxu0 %v2883
    %v5606 = vpop.f32.mrf.mxu0
    %v5607 = vadd.f32 %v5594, %v5606
    %v5608 = vpop.f32.mrf.mxu0
    %5609 = vdwg.mxu0
    %5610 = vmatpush.bf16.msra.mxu0 %v4624
    %5611 = vmatpush.bf16.msra.mxu0 %v4622
    %5612 = vmatpush.bf16.msra.mxu0 %v4620
    %5613 = vmatpush.bf16.msra.mxu0 %v4618
    %5614 = vmatpush.bf16.msra.mxu0 %v4616
    %5615 = vmatpush.bf16.msra.mxu0 %v4614
    %5616 = vmatpush.bf16.msra.mxu0 %v4612
    %5617 = vmatpush.bf16.msra.mxu0 %v4610
    %5618 = vmatmul.bf16.gmra.mxu0 %v2886
    %v5619 = vpop.f32.mrf.mxu0
    %v5620 = vadd.f32 %v5607, %v5619
    %v5621 = vpop.f32.mrf.mxu0
    %5622 = vdwg.mxu0
    %5623 = vmatpush.bf16.msra.mxu0 %v4640
    %5624 = vmatpush.bf16.msra.mxu0 %v4638
    %5625 = vmatpush.bf16.msra.mxu0 %v4636
    %5626 = vmatpush.bf16.msra.mxu0 %v4634
    %5627 = vmatpush.bf16.msra.mxu0 %v4632
    %5628 = vmatpush.bf16.msra.mxu0 %v4630
    %5629 = vmatpush.bf16.msra.mxu0 %v4628
    %5630 = vmatpush.bf16.msra.mxu0 %v4626
    %5631 = vmatmul.bf16.gmra.mxu0 %v2887
    %v5632 = vpop.f32.mrf.mxu0
    %v5633 = vadd.f32 %v5620, %v5632
    %v5634 = vpop.f32.mrf.mxu0
    %5635 = vdwg.mxu0
    %5636 = vmatpush.bf16.msra.mxu0 %v4656
    %5637 = vmatpush.bf16.msra.mxu0 %v4654
    %5638 = vmatpush.bf16.msra.mxu0 %v4652
    %5639 = vmatpush.bf16.msra.mxu0 %v4650
    %5640 = vmatpush.bf16.msra.mxu0 %v4648
    %5641 = vmatpush.bf16.msra.mxu0 %v4646
    %5642 = vmatpush.bf16.msra.mxu0 %v4644
    %5643 = vmatpush.bf16.msra.mxu0 %v4642
    %5644 = vmatmul.bf16.gmra.mxu0 %v2888
    %v5645 = vpop.f32.mrf.mxu0
    %v5646 = vadd.f32 %v5633, %v5645
    %v5647 = vpop.f32.mrf.mxu0
    %5648 = vdwg.mxu0
    %5649 = vmatpush.bf16.msra.mxu0 %v4672
    %5650 = vmatpush.bf16.msra.mxu0 %v4670
    %5651 = vmatpush.bf16.msra.mxu0 %v4668
    %5652 = vmatpush.bf16.msra.mxu0 %v4666
    %5653 = vmatpush.bf16.msra.mxu0 %v4664
    %5654 = vmatpush.bf16.msra.mxu0 %v4662
    %5655 = vmatpush.bf16.msra.mxu0 %v4660
    %5656 = vmatpush.bf16.msra.mxu0 %v4658
    %5657 = vmatmul.bf16.gmra.mxu0 %v2889
    %v5658 = vpop.f32.mrf.mxu0
    %v5659 = vadd.f32 %v5646, %v5658
    %v5660 = vpop.f32.mrf.mxu0
    %5661 = vdwg.mxu0
    %5662 = vmatpush.bf16.msra.mxu0 %v4688
    %5663 = vmatpush.bf16.msra.mxu0 %v4686
    %5664 = vmatpush.bf16.msra.mxu0 %v4684
    %5665 = vmatpush.bf16.msra.mxu0 %v4682
    %5666 = vmatpush.bf16.msra.mxu0 %v4680
    %5667 = vmatpush.bf16.msra.mxu0 %v4678
    %5668 = vmatpush.bf16.msra.mxu0 %v4676
    %5669 = vmatpush.bf16.msra.mxu0 %v4674
    %5670 = vmatmul.bf16.gmra.mxu0 %v2890
    %v5671 = vpop.f32.mrf.mxu0
    %v5672 = vadd.f32 %v5659, %v5671
    %v5673 = vpop.f32.mrf.mxu0
    %5674 = vdwg.mxu0
    %5675 = vmatpush.bf16.msra.mxu0 %v4704
    %5676 = vmatpush.bf16.msra.mxu0 %v4702
    %5677 = vmatpush.bf16.msra.mxu0 %v4700
    %5678 = vmatpush.bf16.msra.mxu0 %v4698
    %5679 = vmatpush.bf16.msra.mxu0 %v4696
    %5680 = vmatpush.bf16.msra.mxu0 %v4694
    %5681 = vmatpush.bf16.msra.mxu0 %v4692
    %5682 = vmatpush.bf16.msra.mxu0 %v4690
    %5683 = vmatmul.bf16.gmra.mxu0 %v2891
    %v5684 = vpop.f32.mrf.mxu0
    %v5685 = vadd.f32 %v5672, %v5684
    %v5686 = vpop.f32.mrf.mxu0
    %5687 = vdwg.mxu0
    %5688 = vmatpush.bf16.msra.mxu0 %v4720
    %5689 = vmatpush.bf16.msra.mxu0 %v4718
    %5690 = vmatpush.bf16.msra.mxu0 %v4716
    %5691 = vmatpush.bf16.msra.mxu0 %v4714
    %5692 = vmatpush.bf16.msra.mxu0 %v4712
    %5693 = vmatpush.bf16.msra.mxu0 %v4710
    %5694 = vmatpush.bf16.msra.mxu0 %v4708
    %5695 = vmatpush.bf16.msra.mxu0 %v4706
    %5696 = vmatmul.bf16.gmra.mxu0 %v2892
    %v5697 = vpop.f32.mrf.mxu0
    %v5698 = vadd.f32 %v5685, %v5697
    %v5699 = vpop.f32.mrf.mxu0
    %5700 = vdwg.mxu0
    %5701 = vmatpush.bf16.msra.mxu0 %v4736
    %5702 = vmatpush.bf16.msra.mxu0 %v4734
    %5703 = vmatpush.bf16.msra.mxu0 %v4732
    %5704 = vmatpush.bf16.msra.mxu0 %v4730
    %5705 = vmatpush.bf16.msra.mxu0 %v4728
    %5706 = vmatpush.bf16.msra.mxu0 %v4726
    %5707 = vmatpush.bf16.msra.mxu0 %v4724
    %5708 = vmatpush.bf16.msra.mxu0 %v4722
    %5709 = vmatmul.bf16.gmra.mxu0 %v2893
    %v5710 = vpop.f32.mrf.mxu0
    %v5711 = vadd.f32 %v5698, %v5710
    %v5712 = vpop.f32.mrf.mxu0
    %5713 = vdwg.mxu0
    %5714 = vmatpush.bf16.msra.mxu0 %v4752
    %5715 = vmatpush.bf16.msra.mxu0 %v4750
    %5716 = vmatpush.bf16.msra.mxu0 %v4748
    %5717 = vmatpush.bf16.msra.mxu0 %v4746
    %5718 = vmatpush.bf16.msra.mxu0 %v4744
    %5719 = vmatpush.bf16.msra.mxu0 %v4742
    %5720 = vmatpush.bf16.msra.mxu0 %v4740
    %5721 = vmatpush.bf16.msra.mxu0 %v4738
    %5722 = vmatmul.bf16.gmra.mxu0 %v2896
    %v5723 = vpop.f32.mrf.mxu0
    %v5724 = vadd.f32 %v5711, %v5723
    %v5725 = vpop.f32.mrf.mxu0
    %5726 = vdwg.mxu0
    %5727 = vmatpush.bf16.msra.mxu0 %v4768
    %5728 = vmatpush.bf16.msra.mxu0 %v4766
    %5729 = vmatpush.bf16.msra.mxu0 %v4764
    %5730 = vmatpush.bf16.msra.mxu0 %v4762
    %5731 = vmatpush.bf16.msra.mxu0 %v4760
    %5732 = vmatpush.bf16.msra.mxu0 %v4758
    %5733 = vmatpush.bf16.msra.mxu0 %v4756
    %5734 = vmatpush.bf16.msra.mxu0 %v4754
    %5735 = vmatmul.bf16.gmra.mxu0 %v2897
    %v5736 = vpop.f32.mrf.mxu0
    %v5737 = vadd.f32 %v5724, %v5736
    %v5738 = vpop.f32.mrf.mxu0
    %5739 = vdwg.mxu0
    %5740 = vmatpush.bf16.msra.mxu0 %v4784
    %5741 = vmatpush.bf16.msra.mxu0 %v4782
    %5742 = vmatpush.bf16.msra.mxu0 %v4780
    %5743 = vmatpush.bf16.msra.mxu0 %v4778
    %5744 = vmatpush.bf16.msra.mxu0 %v4776
    %5745 = vmatpush.bf16.msra.mxu0 %v4774
    %5746 = vmatpush.bf16.msra.mxu0 %v4772
    %5747 = vmatpush.bf16.msra.mxu0 %v4770
    %5748 = vmatmul.bf16.gmra.mxu0 %v2898
    %v5749 = vpop.f32.mrf.mxu0
    %v5750 = vadd.f32 %v5737, %v5749
    %v5751 = vpop.f32.mrf.mxu0
    %5752 = vdwg.mxu0
    %5753 = vmatpush.bf16.msra.mxu0 %v4800
    %5754 = vmatpush.bf16.msra.mxu0 %v4798
    %5755 = vmatpush.bf16.msra.mxu0 %v4796
    %5756 = vmatpush.bf16.msra.mxu0 %v4794
    %5757 = vmatpush.bf16.msra.mxu0 %v4792
    %5758 = vmatpush.bf16.msra.mxu0 %v4790
    %5759 = vmatpush.bf16.msra.mxu0 %v4788
    %5760 = vmatpush.bf16.msra.mxu0 %v4786
    %5761 = vmatmul.bf16.gmra.mxu0 %v2899
    %v5762 = vpop.f32.mrf.mxu0
    %v5763 = vadd.f32 %v5750, %v5762
    %v5764 = vpop.f32.mrf.mxu0
    %5765 = vdwg.mxu0
    %5766 = vmatpush.bf16.msra.mxu0 %v4816
    %5767 = vmatpush.bf16.msra.mxu0 %v4814
    %5768 = vmatpush.bf16.msra.mxu0 %v4812
    %5769 = vmatpush.bf16.msra.mxu0 %v4810
    %5770 = vmatpush.bf16.msra.mxu0 %v4808
    %5771 = vmatpush.bf16.msra.mxu0 %v4806
    %5772 = vmatpush.bf16.msra.mxu0 %v4804
    %5773 = vmatpush.bf16.msra.mxu0 %v4802
    %5774 = vmatmul.bf16.gmra.mxu0 %v2900
    %v5775 = vpop.f32.mrf.mxu0
    %v5776 = vadd.f32 %v5763, %v5775
    %v5777 = vpop.f32.mrf.mxu0
    %5778 = vdwg.mxu0
    %5779 = vmatpush.bf16.msra.mxu0 %v4832
    %5780 = vmatpush.bf16.msra.mxu0 %v4830
    %5781 = vmatpush.bf16.msra.mxu0 %v4828
    %5782 = vmatpush.bf16.msra.mxu0 %v4826
    %5783 = vmatpush.bf16.msra.mxu0 %v4824
    %5784 = vmatpush.bf16.msra.mxu0 %v4822
    %5785 = vmatpush.bf16.msra.mxu0 %v4820
    %5786 = vmatpush.bf16.msra.mxu0 %v4818
    %5787 = vmatmul.bf16.gmra.mxu0 %v2901
    %v5788 = vpop.f32.mrf.mxu0
    %v5789 = vadd.f32 %v5776, %v5788
    %v5790 = vpop.f32.mrf.mxu0
    %5791 = vdwg.mxu0
    %5792 = vmatpush.bf16.msra.mxu0 %v4848
    %5793 = vmatpush.bf16.msra.mxu0 %v4846
    %5794 = vmatpush.bf16.msra.mxu0 %v4844
    %5795 = vmatpush.bf16.msra.mxu0 %v4842
    %5796 = vmatpush.bf16.msra.mxu0 %v4840
    %5797 = vmatpush.bf16.msra.mxu0 %v4838
    %5798 = vmatpush.bf16.msra.mxu0 %v4836
    %5799 = vmatpush.bf16.msra.mxu0 %v4834
    %5800 = vmatmul.bf16.gmra.mxu0 %v2902
    %v5801 = vpop.f32.mrf.mxu0
    %v5802 = vadd.f32 %v5789, %v5801
    %v5803 = vpop.f32.mrf.mxu0
    %5804 = vdwg.mxu0
    %5805 = vmatpush.bf16.msra.mxu0 %v4864
    %5806 = vmatpush.bf16.msra.mxu0 %v4862
    %5807 = vmatpush.bf16.msra.mxu0 %v4860
    %5808 = vmatpush.bf16.msra.mxu0 %v4858
    %5809 = vmatpush.bf16.msra.mxu0 %v4856
    %5810 = vmatpush.bf16.msra.mxu0 %v4854
    %5811 = vmatpush.bf16.msra.mxu0 %v4852
    %5812 = vmatpush.bf16.msra.mxu0 %v4850
    %5813 = vmatmul.bf16.gmra.mxu0 %v2903
    %v5814 = vpop.f32.mrf.mxu0
    %v5815 = vadd.f32 %v5802, %v5814
    %v5816 = vpop.f32.mrf.mxu0
    %5817 = vdwg.mxu0
    %5818 = vmatpush.bf16.msra.mxu0 %v4880
    %5819 = vmatpush.bf16.msra.mxu0 %v4878
    %5820 = vmatpush.bf16.msra.mxu0 %v4876
    %5821 = vmatpush.bf16.msra.mxu0 %v4874
    %5822 = vmatpush.bf16.msra.mxu0 %v4872
    %5823 = vmatpush.bf16.msra.mxu0 %v4870
    %5824 = vmatpush.bf16.msra.mxu0 %v4868
    %5825 = vmatpush.bf16.msra.mxu0 %v4866
    %5826 = vmatmul.bf16.gmra.mxu0 %v2906
    %v5827 = vpop.f32.mrf.mxu0
    %v5828 = vadd.f32 %v5815, %v5827
    %v5829 = vpop.f32.mrf.mxu0
    %5830 = vdwg.mxu0
    %5831 = vmatpush.bf16.msra.mxu0 %v4896
    %5832 = vmatpush.bf16.msra.mxu0 %v4894
    %5833 = vmatpush.bf16.msra.mxu0 %v4892
    %5834 = vmatpush.bf16.msra.mxu0 %v4890
    %5835 = vmatpush.bf16.msra.mxu0 %v4888
    %5836 = vmatpush.bf16.msra.mxu0 %v4886
    %5837 = vmatpush.bf16.msra.mxu0 %v4884
    %5838 = vmatpush.bf16.msra.mxu0 %v4882
    %5839 = vmatmul.bf16.gmra.mxu0 %v2907
    %v5840 = vpop.f32.mrf.mxu0
    %v5841 = vadd.f32 %v5828, %v5840
    %v5842 = vpop.f32.mrf.mxu0
    %5843 = vdwg.mxu0
    %5844 = vmatpush.bf16.msra.mxu0 %v4912
    %5845 = vmatpush.bf16.msra.mxu0 %v4910
    %5846 = vmatpush.bf16.msra.mxu0 %v4908
    %5847 = vmatpush.bf16.msra.mxu0 %v4906
    %5848 = vmatpush.bf16.msra.mxu0 %v4904
    %5849 = vmatpush.bf16.msra.mxu0 %v4902
    %5850 = vmatpush.bf16.msra.mxu0 %v4900
    %5851 = vmatpush.bf16.msra.mxu0 %v4898
    %5852 = vmatmul.bf16.gmra.mxu0 %v2908
    %v5853 = vpop.f32.mrf.mxu0
    %v5854 = vadd.f32 %v5841, %v5853
    %v5855 = vpop.f32.mrf.mxu0
    %5856 = vdwg.mxu0
    %5857 = vmatpush.bf16.msra.mxu0 %v4928
    %5858 = vmatpush.bf16.msra.mxu0 %v4926
    %5859 = vmatpush.bf16.msra.mxu0 %v4924
    %5860 = vmatpush.bf16.msra.mxu0 %v4922
    %5861 = vmatpush.bf16.msra.mxu0 %v4920
    %5862 = vmatpush.bf16.msra.mxu0 %v4918
    %5863 = vmatpush.bf16.msra.mxu0 %v4916
    %5864 = vmatpush.bf16.msra.mxu0 %v4914
    %5865 = vmatmul.bf16.gmra.mxu0 %v2909
    %v5866 = vpop.f32.mrf.mxu0
    %v5867 = vadd.f32 %v5854, %v5866
    %v5868 = vpop.f32.mrf.mxu0
    %5869 = vdwg.mxu0
    %5870 = vmatpush.bf16.msra.mxu0 %v4944
    %5871 = vmatpush.bf16.msra.mxu0 %v4942
    %5872 = vmatpush.bf16.msra.mxu0 %v4940
    %5873 = vmatpush.bf16.msra.mxu0 %v4938
    %5874 = vmatpush.bf16.msra.mxu0 %v4936
    %5875 = vmatpush.bf16.msra.mxu0 %v4934
    %5876 = vmatpush.bf16.msra.mxu0 %v4932
    %5877 = vmatpush.bf16.msra.mxu0 %v4930
    %5878 = vmatmul.bf16.gmra.mxu0 %v2910
    %v5879 = vpop.f32.mrf.mxu0
    %v5880 = vadd.f32 %v5867, %v5879
    %v5881 = vpop.f32.mrf.mxu0
    %5882 = vdwg.mxu0
    %5883 = vmatpush.bf16.msra.mxu0 %v4960
    %5884 = vmatpush.bf16.msra.mxu0 %v4958
    %5885 = vmatpush.bf16.msra.mxu0 %v4956
    %5886 = vmatpush.bf16.msra.mxu0 %v4954
    %5887 = vmatpush.bf16.msra.mxu0 %v4952
    %5888 = vmatpush.bf16.msra.mxu0 %v4950
    %5889 = vmatpush.bf16.msra.mxu0 %v4948
    %5890 = vmatpush.bf16.msra.mxu0 %v4946
    %5891 = vmatmul.bf16.gmra.mxu0 %v2911
    %v5892 = vpop.f32.mrf.mxu0
    %v5893 = vadd.f32 %v5880, %v5892
    %v5894 = vpop.f32.mrf.mxu0
    %5895 = vdwg.mxu0
    %5896 = vmatpush.bf16.msra.mxu0 %v4976
    %5897 = vmatpush.bf16.msra.mxu0 %v4974
    %5898 = vmatpush.bf16.msra.mxu0 %v4972
    %5899 = vmatpush.bf16.msra.mxu0 %v4970
    %5900 = vmatpush.bf16.msra.mxu0 %v4968
    %5901 = vmatpush.bf16.msra.mxu0 %v4966
    %5902 = vmatpush.bf16.msra.mxu0 %v4964
    %5903 = vmatpush.bf16.msra.mxu0 %v4962
    %5904 = vmatmul.bf16.gmra.mxu0 %v2912
    %v5905 = vpop.f32.mrf.mxu0
    %v5906 = vadd.f32 %v5893, %v5905
    %v5907 = vpop.f32.mrf.mxu0
    %5908 = vdwg.mxu0
    %5909 = vmatpush.bf16.msra.mxu0 %v4992
    %5910 = vmatpush.bf16.msra.mxu0 %v4990
    %5911 = vmatpush.bf16.msra.mxu0 %v4988
    %5912 = vmatpush.bf16.msra.mxu0 %v4986
    %5913 = vmatpush.bf16.msra.mxu0 %v4984
    %5914 = vmatpush.bf16.msra.mxu0 %v4982
    %5915 = vmatpush.bf16.msra.mxu0 %v4980
    %5916 = vmatpush.bf16.msra.mxu0 %v4978
    %5917 = vmatmul.bf16.gmra.mxu0 %v2913
    %v5918 = vpop.f32.mrf.mxu0
    %v5919 = vadd.f32 %v5906, %v5918
    %v5920 = vpop.f32.mrf.mxu0
    %5921 = vdwg.mxu0
    %5922 = vmatpush.bf16.msra.mxu0 %v4497
    %5923 = vmatpush.bf16.msra.mxu0 %v4495
    %5924 = vmatpush.bf16.msra.mxu0 %v4493
    %5925 = vmatpush.bf16.msra.mxu0 %v4491
    %5926 = vmatpush.bf16.msra.mxu0 %v4489
    %5927 = vmatpush.bf16.msra.mxu0 %v4487
    %5928 = vmatpush.bf16.msra.mxu0 %v4485
    %5929 = vmatpush.bf16.msra.mxu0 %v4483
    %5930 = vmatmul.bf16.gmra.mxu0 %v2876
    %v5931 = vpop.f32.mrf.mxu0
    %v5932 = vadd.f32 %v2871, %v5931
    %v5933 = vpop.f32.mrf.mxu0
    %5934 = vdwg.mxu0
    %5935 = vmatpush.bf16.msra.mxu0 %v4513
    %5936 = vmatpush.bf16.msra.mxu0 %v4511
    %5937 = vmatpush.bf16.msra.mxu0 %v4509
    %5938 = vmatpush.bf16.msra.mxu0 %v4507
    %5939 = vmatpush.bf16.msra.mxu0 %v4505
    %5940 = vmatpush.bf16.msra.mxu0 %v4503
    %5941 = vmatpush.bf16.msra.mxu0 %v4501
    %5942 = vmatpush.bf16.msra.mxu0 %v4499
    %5943 = vmatmul.bf16.gmra.mxu0 %v2877
    %v5944 = vpop.f32.mrf.mxu0
    %v5945 = vadd.f32 %v5932, %v5944
    %v5946 = vpop.f32.mrf.mxu0
    %5947 = vdwg.mxu0
    %5948 = vmatpush.bf16.msra.mxu0 %v4529
    %5949 = vmatpush.bf16.msra.mxu0 %v4527
    %5950 = vmatpush.bf16.msra.mxu0 %v4525
    %5951 = vmatpush.bf16.msra.mxu0 %v4523
    %5952 = vmatpush.bf16.msra.mxu0 %v4521
    %5953 = vmatpush.bf16.msra.mxu0 %v4519
    %5954 = vmatpush.bf16.msra.mxu0 %v4517
    %5955 = vmatpush.bf16.msra.mxu0 %v4515
    %5956 = vmatmul.bf16.gmra.mxu0 %v2878
    %v5957 = vpop.f32.mrf.mxu0
    %v5958 = vadd.f32 %v5945, %v5957
    %v5959 = vpop.f32.mrf.mxu0
    %5960 = vdwg.mxu0
    %5961 = vmatpush.bf16.msra.mxu0 %v4545
    %5962 = vmatpush.bf16.msra.mxu0 %v4543
    %5963 = vmatpush.bf16.msra.mxu0 %v4541
    %5964 = vmatpush.bf16.msra.mxu0 %v4539
    %5965 = vmatpush.bf16.msra.mxu0 %v4537
    %5966 = vmatpush.bf16.msra.mxu0 %v4535
    %5967 = vmatpush.bf16.msra.mxu0 %v4533
    %5968 = vmatpush.bf16.msra.mxu0 %v4531
    %5969 = vmatmul.bf16.gmra.mxu0 %v2879
    %v5970 = vpop.f32.mrf.mxu0
    %v5971 = vadd.f32 %v5958, %v5970
    %v5972 = vpop.f32.mrf.mxu0
    %5973 = vdwg.mxu0
    %5974 = vmatpush.bf16.msra.mxu0 %v4561
    %5975 = vmatpush.bf16.msra.mxu0 %v4559
    %5976 = vmatpush.bf16.msra.mxu0 %v4557
    %5977 = vmatpush.bf16.msra.mxu0 %v4555
    %5978 = vmatpush.bf16.msra.mxu0 %v4553
    %5979 = vmatpush.bf16.msra.mxu0 %v4551
    %5980 = vmatpush.bf16.msra.mxu0 %v4549
    %5981 = vmatpush.bf16.msra.mxu0 %v4547
    %5982 = vmatmul.bf16.gmra.mxu0 %v2880
    %v5983 = vpop.f32.mrf.mxu0
    %v5984 = vadd.f32 %v5971, %v5983
    %v5985 = vpop.f32.mrf.mxu0
    %5986 = vdwg.mxu0
    %5987 = vmatpush.bf16.msra.mxu0 %v4577
    %5988 = vmatpush.bf16.msra.mxu0 %v4575
    %5989 = vmatpush.bf16.msra.mxu0 %v4573
    %5990 = vmatpush.bf16.msra.mxu0 %v4571
    %5991 = vmatpush.bf16.msra.mxu0 %v4569
    %5992 = vmatpush.bf16.msra.mxu0 %v4567
    %5993 = vmatpush.bf16.msra.mxu0 %v4565
    %5994 = vmatpush.bf16.msra.mxu0 %v4563
    %5995 = vmatmul.bf16.gmra.mxu0 %v2881
    %v5996 = vpop.f32.mrf.mxu0
    %v5997 = vadd.f32 %v5984, %v5996
    %v5998 = vpop.f32.mrf.mxu0
    %5999 = vdwg.mxu0
    %6000 = vmatpush.bf16.msra.mxu0 %v4593
    %6001 = vmatpush.bf16.msra.mxu0 %v4591
    %6002 = vmatpush.bf16.msra.mxu0 %v4589
    %6003 = vmatpush.bf16.msra.mxu0 %v4587
    %6004 = vmatpush.bf16.msra.mxu0 %v4585
    %6005 = vmatpush.bf16.msra.mxu0 %v4583
    %6006 = vmatpush.bf16.msra.mxu0 %v4581
    %6007 = vmatpush.bf16.msra.mxu0 %v4579
    %6008 = vmatmul.bf16.gmra.mxu0 %v2882
    %v6009 = vpop.f32.mrf.mxu0
    %v6010 = vadd.f32 %v5997, %v6009
    %v6011 = vpop.f32.mrf.mxu0
    %6012 = vdwg.mxu0
    %6013 = vmatpush.bf16.msra.mxu0 %v4609
    %6014 = vmatpush.bf16.msra.mxu0 %v4607
    %6015 = vmatpush.bf16.msra.mxu0 %v4605
    %6016 = vmatpush.bf16.msra.mxu0 %v4603
    %6017 = vmatpush.bf16.msra.mxu0 %v4601
    %6018 = vmatpush.bf16.msra.mxu0 %v4599
    %6019 = vmatpush.bf16.msra.mxu0 %v4597
    %6020 = vmatpush.bf16.msra.mxu0 %v4595
    %6021 = vmatmul.bf16.gmra.mxu0 %v2883
    %v6022 = vpop.f32.mrf.mxu0
    %v6023 = vadd.f32 %v6010, %v6022
    %v6024 = vpop.f32.mrf.mxu0
    %6025 = vdwg.mxu0
    %6026 = vmatpush.bf16.msra.mxu0 %v4625
    %6027 = vmatpush.bf16.msra.mxu0 %v4623
    %6028 = vmatpush.bf16.msra.mxu0 %v4621
    %6029 = vmatpush.bf16.msra.mxu0 %v4619
    %6030 = vmatpush.bf16.msra.mxu0 %v4617
    %6031 = vmatpush.bf16.msra.mxu0 %v4615
    %6032 = vmatpush.bf16.msra.mxu0 %v4613
    %6033 = vmatpush.bf16.msra.mxu0 %v4611
    %6034 = vmatmul.bf16.gmra.mxu0 %v2886
    %v6035 = vpop.f32.mrf.mxu0
    %v6036 = vadd.f32 %v6023, %v6035
    %v6037 = vpop.f32.mrf.mxu0
    %6038 = vdwg.mxu0
    %6039 = vmatpush.bf16.msra.mxu0 %v4641
    %6040 = vmatpush.bf16.msra.mxu0 %v4639
    %6041 = vmatpush.bf16.msra.mxu0 %v4637
    %6042 = vmatpush.bf16.msra.mxu0 %v4635
    %6043 = vmatpush.bf16.msra.mxu0 %v4633
    %6044 = vmatpush.bf16.msra.mxu0 %v4631
    %6045 = vmatpush.bf16.msra.mxu0 %v4629
    %6046 = vmatpush.bf16.msra.mxu0 %v4627
    %6047 = vmatmul.bf16.gmra.mxu0 %v2887
    %v6048 = vpop.f32.mrf.mxu0
    %v6049 = vadd.f32 %v6036, %v6048
    %v6050 = vpop.f32.mrf.mxu0
    %6051 = vdwg.mxu0
    %6052 = vmatpush.bf16.msra.mxu0 %v4657
    %6053 = vmatpush.bf16.msra.mxu0 %v4655
    %6054 = vmatpush.bf16.msra.mxu0 %v4653
    %6055 = vmatpush.bf16.msra.mxu0 %v4651
    %6056 = vmatpush.bf16.msra.mxu0 %v4649
    %6057 = vmatpush.bf16.msra.mxu0 %v4647
    %6058 = vmatpush.bf16.msra.mxu0 %v4645
    %6059 = vmatpush.bf16.msra.mxu0 %v4643
    %6060 = vmatmul.bf16.gmra.mxu0 %v2888
    %v6061 = vpop.f32.mrf.mxu0
    %v6062 = vadd.f32 %v6049, %v6061
    %v6063 = vpop.f32.mrf.mxu0
    %6064 = vdwg.mxu0
    %6065 = vmatpush.bf16.msra.mxu0 %v4673
    %6066 = vmatpush.bf16.msra.mxu0 %v4671
    %6067 = vmatpush.bf16.msra.mxu0 %v4669
    %6068 = vmatpush.bf16.msra.mxu0 %v4667
    %6069 = vmatpush.bf16.msra.mxu0 %v4665
    %6070 = vmatpush.bf16.msra.mxu0 %v4663
    %6071 = vmatpush.bf16.msra.mxu0 %v4661
    %6072 = vmatpush.bf16.msra.mxu0 %v4659
    %6073 = vmatmul.bf16.gmra.mxu0 %v2889
    %v6074 = vpop.f32.mrf.mxu0
    %v6075 = vadd.f32 %v6062, %v6074
    %v6076 = vpop.f32.mrf.mxu0
    %6077 = vdwg.mxu0
    %6078 = vmatpush.bf16.msra.mxu0 %v4689
    %6079 = vmatpush.bf16.msra.mxu0 %v4687
    %6080 = vmatpush.bf16.msra.mxu0 %v4685
    %6081 = vmatpush.bf16.msra.mxu0 %v4683
    %6082 = vmatpush.bf16.msra.mxu0 %v4681
    %6083 = vmatpush.bf16.msra.mxu0 %v4679
    %6084 = vmatpush.bf16.msra.mxu0 %v4677
    %6085 = vmatpush.bf16.msra.mxu0 %v4675
    %6086 = vmatmul.bf16.gmra.mxu0 %v2890
    %v6087 = vpop.f32.mrf.mxu0
    %v6088 = vadd.f32 %v6075, %v6087
    %v6089 = vpop.f32.mrf.mxu0
    %6090 = vdwg.mxu0
    %6091 = vmatpush.bf16.msra.mxu0 %v4705
    %6092 = vmatpush.bf16.msra.mxu0 %v4703
    %6093 = vmatpush.bf16.msra.mxu0 %v4701
    %6094 = vmatpush.bf16.msra.mxu0 %v4699
    %6095 = vmatpush.bf16.msra.mxu0 %v4697
    %6096 = vmatpush.bf16.msra.mxu0 %v4695
    %6097 = vmatpush.bf16.msra.mxu0 %v4693
    %6098 = vmatpush.bf16.msra.mxu0 %v4691
    %6099 = vmatmul.bf16.gmra.mxu0 %v2891
    %v6100 = vpop.f32.mrf.mxu0
    %v6101 = vadd.f32 %v6088, %v6100
    %v6102 = vpop.f32.mrf.mxu0
    %6103 = vdwg.mxu0
    %6104 = vmatpush.bf16.msra.mxu0 %v4721
    %6105 = vmatpush.bf16.msra.mxu0 %v4719
    %6106 = vmatpush.bf16.msra.mxu0 %v4717
    %6107 = vmatpush.bf16.msra.mxu0 %v4715
    %6108 = vmatpush.bf16.msra.mxu0 %v4713
    %6109 = vmatpush.bf16.msra.mxu0 %v4711
    %6110 = vmatpush.bf16.msra.mxu0 %v4709
    %6111 = vmatpush.bf16.msra.mxu0 %v4707
    %6112 = vmatmul.bf16.gmra.mxu0 %v2892
    %v6113 = vpop.f32.mrf.mxu0
    %v6114 = vadd.f32 %v6101, %v6113
    %v6115 = vpop.f32.mrf.mxu0
    %6116 = vdwg.mxu0
    %6117 = vmatpush.bf16.msra.mxu0 %v4737
    %6118 = vmatpush.bf16.msra.mxu0 %v4735
    %6119 = vmatpush.bf16.msra.mxu0 %v4733
    %6120 = vmatpush.bf16.msra.mxu0 %v4731
    %6121 = vmatpush.bf16.msra.mxu0 %v4729
    %6122 = vmatpush.bf16.msra.mxu0 %v4727
    %6123 = vmatpush.bf16.msra.mxu0 %v4725
    %6124 = vmatpush.bf16.msra.mxu0 %v4723
    %6125 = vmatmul.bf16.gmra.mxu0 %v2893
    %v6126 = vpop.f32.mrf.mxu0
    %v6127 = vadd.f32 %v6114, %v6126
    %v6128 = vpop.f32.mrf.mxu0
    %6129 = vdwg.mxu0
    %6130 = vmatpush.bf16.msra.mxu0 %v4753
    %6131 = vmatpush.bf16.msra.mxu0 %v4751
    %6132 = vmatpush.bf16.msra.mxu0 %v4749
    %6133 = vmatpush.bf16.msra.mxu0 %v4747
    %6134 = vmatpush.bf16.msra.mxu0 %v4745
    %6135 = vmatpush.bf16.msra.mxu0 %v4743
    %6136 = vmatpush.bf16.msra.mxu0 %v4741
    %6137 = vmatpush.bf16.msra.mxu0 %v4739
    %6138 = vmatmul.bf16.gmra.mxu0 %v2896
    %v6139 = vpop.f32.mrf.mxu0
    %v6140 = vadd.f32 %v6127, %v6139
    %v6141 = vpop.f32.mrf.mxu0
    %6142 = vdwg.mxu0
    %6143 = vmatpush.bf16.msra.mxu0 %v4769
    %6144 = vmatpush.bf16.msra.mxu0 %v4767
    %6145 = vmatpush.bf16.msra.mxu0 %v4765
    %6146 = vmatpush.bf16.msra.mxu0 %v4763
    %6147 = vmatpush.bf16.msra.mxu0 %v4761
    %6148 = vmatpush.bf16.msra.mxu0 %v4759
    %6149 = vmatpush.bf16.msra.mxu0 %v4757
    %6150 = vmatpush.bf16.msra.mxu0 %v4755
    %6151 = vmatmul.bf16.gmra.mxu0 %v2897
    %v6152 = vpop.f32.mrf.mxu0
    %v6153 = vadd.f32 %v6140, %v6152
    %v6154 = vpop.f32.mrf.mxu0
    %6155 = vdwg.mxu0
    %6156 = vmatpush.bf16.msra.mxu0 %v4785
    %6157 = vmatpush.bf16.msra.mxu0 %v4783
    %6158 = vmatpush.bf16.msra.mxu0 %v4781
    %6159 = vmatpush.bf16.msra.mxu0 %v4779
    %6160 = vmatpush.bf16.msra.mxu0 %v4777
    %6161 = vmatpush.bf16.msra.mxu0 %v4775
    %6162 = vmatpush.bf16.msra.mxu0 %v4773
    %6163 = vmatpush.bf16.msra.mxu0 %v4771
    %6164 = vmatmul.bf16.gmra.mxu0 %v2898
    %v6165 = vpop.f32.mrf.mxu0
    %v6166 = vadd.f32 %v6153, %v6165
    %v6167 = vpop.f32.mrf.mxu0
    %6168 = vdwg.mxu0
    %6169 = vmatpush.bf16.msra.mxu0 %v4801
    %6170 = vmatpush.bf16.msra.mxu0 %v4799
    %6171 = vmatpush.bf16.msra.mxu0 %v4797
    %6172 = vmatpush.bf16.msra.mxu0 %v4795
    %6173 = vmatpush.bf16.msra.mxu0 %v4793
    %6174 = vmatpush.bf16.msra.mxu0 %v4791
    %6175 = vmatpush.bf16.msra.mxu0 %v4789
    %6176 = vmatpush.bf16.msra.mxu0 %v4787
    %6177 = vmatmul.bf16.gmra.mxu0 %v2899
    %v6178 = vpop.f32.mrf.mxu0
    %v6179 = vadd.f32 %v6166, %v6178
    %v6180 = vpop.f32.mrf.mxu0
    %6181 = vdwg.mxu0
    %6182 = vmatpush.bf16.msra.mxu0 %v4817
    %6183 = vmatpush.bf16.msra.mxu0 %v4815
    %6184 = vmatpush.bf16.msra.mxu0 %v4813
    %6185 = vmatpush.bf16.msra.mxu0 %v4811
    %6186 = vmatpush.bf16.msra.mxu0 %v4809
    %6187 = vmatpush.bf16.msra.mxu0 %v4807
    %6188 = vmatpush.bf16.msra.mxu0 %v4805
    %6189 = vmatpush.bf16.msra.mxu0 %v4803
    %6190 = vmatmul.bf16.gmra.mxu0 %v2900
    %v6191 = vpop.f32.mrf.mxu0
    %v6192 = vadd.f32 %v6179, %v6191
    %v6193 = vpop.f32.mrf.mxu0
    %6194 = vdwg.mxu0
    %6195 = vmatpush.bf16.msra.mxu0 %v4833
    %6196 = vmatpush.bf16.msra.mxu0 %v4831
    %6197 = vmatpush.bf16.msra.mxu0 %v4829
    %6198 = vmatpush.bf16.msra.mxu0 %v4827
    %6199 = vmatpush.bf16.msra.mxu0 %v4825
    %6200 = vmatpush.bf16.msra.mxu0 %v4823
    %6201 = vmatpush.bf16.msra.mxu0 %v4821
    %6202 = vmatpush.bf16.msra.mxu0 %v4819
    %6203 = vmatmul.bf16.gmra.mxu0 %v2901
    %v6204 = vpop.f32.mrf.mxu0
    %v6205 = vadd.f32 %v6192, %v6204
    %v6206 = vpop.f32.mrf.mxu0
    %6207 = vdwg.mxu0
    %6208 = vmatpush.bf16.msra.mxu0 %v4849
    %6209 = vmatpush.bf16.msra.mxu0 %v4847
    %6210 = vmatpush.bf16.msra.mxu0 %v4845
    %6211 = vmatpush.bf16.msra.mxu0 %v4843
    %6212 = vmatpush.bf16.msra.mxu0 %v4841
    %6213 = vmatpush.bf16.msra.mxu0 %v4839
    %6214 = vmatpush.bf16.msra.mxu0 %v4837
    %6215 = vmatpush.bf16.msra.mxu0 %v4835
    %6216 = vmatmul.bf16.gmra.mxu0 %v2902
    %v6217 = vpop.f32.mrf.mxu0
    %v6218 = vadd.f32 %v6205, %v6217
    %v6219 = vpop.f32.mrf.mxu0
    %6220 = vdwg.mxu0
    %6221 = vmatpush.bf16.msra.mxu0 %v4865
    %6222 = vmatpush.bf16.msra.mxu0 %v4863
    %6223 = vmatpush.bf16.msra.mxu0 %v4861
    %6224 = vmatpush.bf16.msra.mxu0 %v4859
    %6225 = vmatpush.bf16.msra.mxu0 %v4857
    %6226 = vmatpush.bf16.msra.mxu0 %v4855
    %6227 = vmatpush.bf16.msra.mxu0 %v4853
    %6228 = vmatpush.bf16.msra.mxu0 %v4851
    %6229 = vmatmul.bf16.gmra.mxu0 %v2903
    %v6230 = vpop.f32.mrf.mxu0
    %v6231 = vadd.f32 %v6218, %v6230
    %v6232 = vpop.f32.mrf.mxu0
    %6233 = vdwg.mxu0
    %6234 = vmatpush.bf16.msra.mxu0 %v4881
    %6235 = vmatpush.bf16.msra.mxu0 %v4879
    %6236 = vmatpush.bf16.msra.mxu0 %v4877
    %6237 = vmatpush.bf16.msra.mxu0 %v4875
    %6238 = vmatpush.bf16.msra.mxu0 %v4873
    %6239 = vmatpush.bf16.msra.mxu0 %v4871
    %6240 = vmatpush.bf16.msra.mxu0 %v4869
    %6241 = vmatpush.bf16.msra.mxu0 %v4867
    %6242 = vmatmul.bf16.gmra.mxu0 %v2906
    %v6243 = vpop.f32.mrf.mxu0
    %v6244 = vadd.f32 %v6231, %v6243
    %v6245 = vpop.f32.mrf.mxu0
    %6246 = vdwg.mxu0
    %6247 = vmatpush.bf16.msra.mxu0 %v4897
    %6248 = vmatpush.bf16.msra.mxu0 %v4895
    %6249 = vmatpush.bf16.msra.mxu0 %v4893
    %6250 = vmatpush.bf16.msra.mxu0 %v4891
    %6251 = vmatpush.bf16.msra.mxu0 %v4889
    %6252 = vmatpush.bf16.msra.mxu0 %v4887
    %6253 = vmatpush.bf16.msra.mxu0 %v4885
    %6254 = vmatpush.bf16.msra.mxu0 %v4883
    %6255 = vmatmul.bf16.gmra.mxu0 %v2907
    %v6256 = vpop.f32.mrf.mxu0
    %v6257 = vadd.f32 %v6244, %v6256
    %v6258 = vpop.f32.mrf.mxu0
    %6259 = vdwg.mxu0
    %6260 = vmatpush.bf16.msra.mxu0 %v4913
    %6261 = vmatpush.bf16.msra.mxu0 %v4911
    %6262 = vmatpush.bf16.msra.mxu0 %v4909
    %6263 = vmatpush.bf16.msra.mxu0 %v4907
    %6264 = vmatpush.bf16.msra.mxu0 %v4905
    %6265 = vmatpush.bf16.msra.mxu0 %v4903
    %6266 = vmatpush.bf16.msra.mxu0 %v4901
    %6267 = vmatpush.bf16.msra.mxu0 %v4899
    %6268 = vmatmul.bf16.gmra.mxu0 %v2908
    %v6269 = vpop.f32.mrf.mxu0
    %v6270 = vadd.f32 %v6257, %v6269
    %v6271 = vpop.f32.mrf.mxu0
    %6272 = vdwg.mxu0
    %6273 = vmatpush.bf16.msra.mxu0 %v4929
    %6274 = vmatpush.bf16.msra.mxu0 %v4927
    %6275 = vmatpush.bf16.msra.mxu0 %v4925
    %6276 = vmatpush.bf16.msra.mxu0 %v4923
    %6277 = vmatpush.bf16.msra.mxu0 %v4921
    %6278 = vmatpush.bf16.msra.mxu0 %v4919
    %6279 = vmatpush.bf16.msra.mxu0 %v4917
    %6280 = vmatpush.bf16.msra.mxu0 %v4915
    %6281 = vmatmul.bf16.gmra.mxu0 %v2909
    %v6282 = vpop.f32.mrf.mxu0
    %v6283 = vadd.f32 %v6270, %v6282
    %v6284 = vpop.f32.mrf.mxu0
    %6285 = vdwg.mxu0
    %6286 = vmatpush.bf16.msra.mxu0 %v4945
    %6287 = vmatpush.bf16.msra.mxu0 %v4943
    %6288 = vmatpush.bf16.msra.mxu0 %v4941
    %6289 = vmatpush.bf16.msra.mxu0 %v4939
    %6290 = vmatpush.bf16.msra.mxu0 %v4937
    %6291 = vmatpush.bf16.msra.mxu0 %v4935
    %6292 = vmatpush.bf16.msra.mxu0 %v4933
    %6293 = vmatpush.bf16.msra.mxu0 %v4931
    %6294 = vmatmul.bf16.gmra.mxu0 %v2910
    %v6295 = vpop.f32.mrf.mxu0
    %v6296 = vadd.f32 %v6283, %v6295
    %v6297 = vpop.f32.mrf.mxu0
    %6298 = vdwg.mxu0
    %6299 = vmatpush.bf16.msra.mxu0 %v4961
    %6300 = vmatpush.bf16.msra.mxu0 %v4959
    %6301 = vmatpush.bf16.msra.mxu0 %v4957
    %6302 = vmatpush.bf16.msra.mxu0 %v4955
    %6303 = vmatpush.bf16.msra.mxu0 %v4953
    %6304 = vmatpush.bf16.msra.mxu0 %v4951
    %6305 = vmatpush.bf16.msra.mxu0 %v4949
    %6306 = vmatpush.bf16.msra.mxu0 %v4947
    %6307 = vmatmul.bf16.gmra.mxu0 %v2911
    %v6308 = vpop.f32.mrf.mxu0
    %v6309 = vadd.f32 %v6296, %v6308
    %v6310 = vpop.f32.mrf.mxu0
    %6311 = vdwg.mxu0
    %6312 = vmatpush.bf16.msra.mxu0 %v4977
    %6313 = vmatpush.bf16.msra.mxu0 %v4975
    %6314 = vmatpush.bf16.msra.mxu0 %v4973
    %6315 = vmatpush.bf16.msra.mxu0 %v4971
    %6316 = vmatpush.bf16.msra.mxu0 %v4969
    %6317 = vmatpush.bf16.msra.mxu0 %v4967
    %6318 = vmatpush.bf16.msra.mxu0 %v4965
    %6319 = vmatpush.bf16.msra.mxu0 %v4963
    %6320 = vmatmul.bf16.gmra.mxu0 %v2912
    %v6321 = vpop.f32.mrf.mxu0
    %v6322 = vadd.f32 %v6309, %v6321
    %v6323 = vpop.f32.mrf.mxu0
    %6324 = vdwg.mxu0
    %6325 = vmatpush.bf16.msra.mxu0 %v4993
    %6326 = vmatpush.bf16.msra.mxu0 %v4991
    %6327 = vmatpush.bf16.msra.mxu0 %v4989
    %6328 = vmatpush.bf16.msra.mxu0 %v4987
    %6329 = vmatpush.bf16.msra.mxu0 %v4985
    %6330 = vmatpush.bf16.msra.mxu0 %v4983
    %6331 = vmatpush.bf16.msra.mxu0 %v4981
    %6332 = vmatpush.bf16.msra.mxu0 %v4979
    %6333 = vmatmul.bf16.gmra.mxu0 %v2913
    %v6334 = vpop.f32.mrf.mxu0
    %v6335 = vadd.f32 %v6322, %v6334
    %v6336 = vpop.f32.mrf.mxu0
    %6337 = vdwg.mxu0
    %vm6338 = vcmp.gt.f32.partialorder %v5919, 0.0
    %vm6339 = vcmp.gt.f32.partialorder %v6335, 0.0
    %v6340 = vmul.f32 %v5919, 0.01
    %v6341 = vmul.f32 %v6335, 0.01
    %v6342 = vsel %vm6338, %v5919, %v6340
    %v6343 = vsel %vm6339, %v6335, %v6341
    %v6344 = vpack.c.bf16 %v6342, %v6342
    %v6345 = vpack.c.bf16 %v6343, %v6343
    %v6346 = vld [vmem:[#allocation2] sm:$0xff]
    %v6347 = vld [vmem:[#allocation2 + $0x8] sm:$0xff]
    %v6348 = vld [vmem:[#allocation2 + $0x10] sm:$0xff]
    %v6349 = vld [vmem:[#allocation2 + $0x18] sm:$0xff]
    %v6350 = vld [vmem:[#allocation2 + $0x20] sm:$0xff]
    %v6351 = vld [vmem:[#allocation2 + $0x28] sm:$0xff]
    %v6352 = vld [vmem:[#allocation2 + $0x30] sm:$0xff]
    %v6353 = vld [vmem:[#allocation2 + $0x38] sm:$0xff]
    %v6354 = vld [vmem:[#allocation2 + $0x40] sm:$0xff]
    %v6355 = vld [vmem:[#allocation2 + $0x48] sm:$0xff]
    %v6356 = vld [vmem:[#allocation2 + $0x50] sm:$0xff]
    %v6357 = vld [vmem:[#allocation2 + $0x58] sm:$0xff]
    %v6358 = vld [vmem:[#allocation2 + $0x60] sm:$0xff]
    %v6359 = vld [vmem:[#allocation2 + $0x68] sm:$0xff]
    %v6360 = vld [vmem:[#allocation2 + $0x70] sm:$0xff]
    %v6361 = vld [vmem:[#allocation2 + $0x78] sm:$0xff]
    %v6362 = vld [vmem:[#allocation2 + $0x80] sm:$0xff]
    %v6363 = vld [vmem:[#allocation2 + $0x88] sm:$0xff]
    %v6364 = vld [vmem:[#allocation2 + $0x90] sm:$0xff]
    %v6365 = vld [vmem:[#allocation2 + $0x98] sm:$0xff]
    %v6366 = vld [vmem:[#allocation2 + $0xa0] sm:$0xff]
    %v6367 = vld [vmem:[#allocation2 + $0xa8] sm:$0xff]
    %v6368 = vld [vmem:[#allocation2 + $0xb0] sm:$0xff]
    %v6369 = vld [vmem:[#allocation2 + $0xb8] sm:$0xff]
    %v6370 = vld [vmem:[#allocation2 + $0xc0] sm:$0xff]
    %v6371 = vld [vmem:[#allocation2 + $0xc8] sm:$0xff]
    %v6372 = vld [vmem:[#allocation2 + $0xd0] sm:$0xff]
    %v6373 = vld [vmem:[#allocation2 + $0xd8] sm:$0xff]
    %v6374 = vld [vmem:[#allocation2 + $0xe0] sm:$0xff]
    %v6375 = vld [vmem:[#allocation2 + $0xe8] sm:$0xff]
    %v6376 = vld [vmem:[#allocation2 + $0xf0] sm:$0xff]
    %v6377 = vld [vmem:[#allocation2 + $0xf8] sm:$0xff]
    %v6378 = vld [vmem:[%s9] sm:$0x3]
    %v6380 = vperm.slane %v6378, 0
    %v6381 = vperm.slane %v6378, 1
    %v6416 = vunpack.c.l.b16 %v6346
    %v6417 = vunpack.c.h.b16 %v6346
    %v6418 = vunpack.c.l.b16 %v6347
    %v6419 = vunpack.c.h.b16 %v6347
    %v6420 = vunpack.c.l.b16 %v6348
    %v6421 = vunpack.c.h.b16 %v6348
    %v6422 = vunpack.c.l.b16 %v6349
    %v6423 = vunpack.c.h.b16 %v6349
    %v6424 = vunpack.c.l.b16 %v6350
    %v6425 = vunpack.c.h.b16 %v6350
    %v6426 = vunpack.c.l.b16 %v6351
    %v6427 = vunpack.c.h.b16 %v6351
    %v6428 = vunpack.c.l.b16 %v6352
    %v6429 = vunpack.c.h.b16 %v6352
    %v6430 = vunpack.c.l.b16 %v6353
    %v6431 = vunpack.c.h.b16 %v6353
    %v6432 = vunpack.c.l.b16 %v6354
    %v6433 = vunpack.c.h.b16 %v6354
    %v6434 = vunpack.c.l.b16 %v6355
    %v6435 = vunpack.c.h.b16 %v6355
    %v6436 = vunpack.c.l.b16 %v6356
    %v6437 = vunpack.c.h.b16 %v6356
    %v6438 = vunpack.c.l.b16 %v6357
    %v6439 = vunpack.c.h.b16 %v6357
    %v6440 = vunpack.c.l.b16 %v6358
    %v6441 = vunpack.c.h.b16 %v6358
    %v6442 = vunpack.c.l.b16 %v6359
    %v6443 = vunpack.c.h.b16 %v6359
    %v6444 = vunpack.c.l.b16 %v6360
    %v6445 = vunpack.c.h.b16 %v6360
    %v6446 = vunpack.c.l.b16 %v6361
    %v6447 = vunpack.c.h.b16 %v6361
    %v6448 = vunpack.c.l.b16 %v6362
    %v6449 = vunpack.c.h.b16 %v6362
    %v6450 = vunpack.c.l.b16 %v6363
    %v6451 = vunpack.c.h.b16 %v6363
    %v6452 = vunpack.c.l.b16 %v6364
    %v6453 = vunpack.c.h.b16 %v6364
    %v6454 = vunpack.c.l.b16 %v6365
    %v6455 = vunpack.c.h.b16 %v6365
    %v6456 = vunpack.c.l.b16 %v6366
    %v6457 = vunpack.c.h.b16 %v6366
    %v6458 = vunpack.c.l.b16 %v6367
    %v6459 = vunpack.c.h.b16 %v6367
    %v6460 = vunpack.c.l.b16 %v6368
    %v6461 = vunpack.c.h.b16 %v6368
    %v6462 = vunpack.c.l.b16 %v6369
    %v6463 = vunpack.c.h.b16 %v6369
    %v6464 = vunpack.c.l.b16 %v6370
    %v6465 = vunpack.c.h.b16 %v6370
    %v6466 = vunpack.c.l.b16 %v6371
    %v6467 = vunpack.c.h.b16 %v6371
    %v6468 = vunpack.c.l.b16 %v6372
    %v6469 = vunpack.c.h.b16 %v6372
    %v6470 = vunpack.c.l.b16 %v6373
    %v6471 = vunpack.c.h.b16 %v6373
    %v6472 = vunpack.c.l.b16 %v6374
    %v6473 = vunpack.c.h.b16 %v6374
    %v6474 = vunpack.c.l.b16 %v6375
    %v6475 = vunpack.c.h.b16 %v6375
    %v6476 = vunpack.c.l.b16 %v6376
    %v6477 = vunpack.c.h.b16 %v6376
    %v6478 = vunpack.c.l.b16 %v6377
    %v6479 = vunpack.c.h.b16 %v6377
    %v6480 = vpack.c.b16 %v6418, %v6416
    %v6481 = vpack.c.b16 %v6419, %v6417
    %v6482 = vpack.c.b16 %v6422, %v6420
    %v6483 = vpack.c.b16 %v6423, %v6421
    %v6484 = vpack.c.b16 %v6426, %v6424
    %v6485 = vpack.c.b16 %v6427, %v6425
    %v6486 = vpack.c.b16 %v6430, %v6428
    %v6487 = vpack.c.b16 %v6431, %v6429
    %v6488 = vpack.c.b16 %v6434, %v6432
    %v6489 = vpack.c.b16 %v6435, %v6433
    %v6490 = vpack.c.b16 %v6438, %v6436
    %v6491 = vpack.c.b16 %v6439, %v6437
    %v6492 = vpack.c.b16 %v6442, %v6440
    %v6493 = vpack.c.b16 %v6443, %v6441
    %v6494 = vpack.c.b16 %v6446, %v6444
    %v6495 = vpack.c.b16 %v6447, %v6445
    %v6496 = vpack.c.b16 %v6450, %v6448
    %v6497 = vpack.c.b16 %v6451, %v6449
    %v6498 = vpack.c.b16 %v6454, %v6452
    %v6499 = vpack.c.b16 %v6455, %v6453
    %v6500 = vpack.c.b16 %v6458, %v6456
    %v6501 = vpack.c.b16 %v6459, %v6457
    %v6502 = vpack.c.b16 %v6462, %v6460
    %v6503 = vpack.c.b16 %v6463, %v6461
    %v6504 = vpack.c.b16 %v6466, %v6464
    %v6505 = vpack.c.b16 %v6467, %v6465
    %v6506 = vpack.c.b16 %v6470, %v6468
    %v6507 = vpack.c.b16 %v6471, %v6469
    %v6508 = vpack.c.b16 %v6474, %v6472
    %v6509 = vpack.c.b16 %v6475, %v6473
    %v6510 = vpack.c.b16 %v6478, %v6476
    %v6511 = vpack.c.b16 %v6479, %v6477
    %6544 = vmatpush.bf16.msra.mxu0 %v6494
    %6545 = vmatpush.bf16.msra.mxu0 %v6492
    %6546 = vmatpush.bf16.msra.mxu0 %v6490
    %6547 = vmatpush.bf16.msra.mxu0 %v6488
    %6548 = vmatpush.bf16.msra.mxu0 %v6486
    %6549 = vmatpush.bf16.msra.mxu0 %v6484
    %6550 = vmatpush.bf16.msra.mxu0 %v6482
    %6551 = vmatpush.bf16.msra.mxu0 %v6480
    %6552 = vmatmul.bf16.gmra.mxu0 %v6344
    %v6553 = vpop.f32.mrf.mxu0
    %v6554 = vadd.f32 %v6380, %v6553
    %v6555 = vpop.f32.mrf.mxu0
    %6556 = vdwg.mxu0
    %6557 = vmatpush.bf16.msra.mxu0 %v6510
    %6558 = vmatpush.bf16.msra.mxu0 %v6508
    %6559 = vmatpush.bf16.msra.mxu0 %v6506
    %6560 = vmatpush.bf16.msra.mxu0 %v6504
    %6561 = vmatpush.bf16.msra.mxu0 %v6502
    %6562 = vmatpush.bf16.msra.mxu0 %v6500
    %6563 = vmatpush.bf16.msra.mxu0 %v6498
    %6564 = vmatpush.bf16.msra.mxu0 %v6496
    %6565 = vmatmul.bf16.gmra.mxu0 %v6345
    %v6566 = vpop.f32.mrf.mxu0
    %v6567 = vadd.f32 %v6554, %v6566
    %v6568 = vpop.f32.mrf.mxu0
    %6569 = vdwg.mxu0
    %6570 = vmatpush.bf16.msra.mxu0 %v6495
    %6571 = vmatpush.bf16.msra.mxu0 %v6493
    %6572 = vmatpush.bf16.msra.mxu0 %v6491
    %6573 = vmatpush.bf16.msra.mxu0 %v6489
    %6574 = vmatpush.bf16.msra.mxu0 %v6487
    %6575 = vmatpush.bf16.msra.mxu0 %v6485
    %6576 = vmatpush.bf16.msra.mxu0 %v6483
    %6577 = vmatpush.bf16.msra.mxu0 %v6481
    %6578 = vmatmul.bf16.gmra.mxu0 %v6344
    %v6579 = vpop.f32.mrf.mxu0
    %v6580 = vadd.f32 %v6381, %v6579
    %v6581 = vpop.f32.mrf.mxu0
    %6582 = vdwg.mxu0
    %6583 = vmatpush.bf16.msra.mxu0 %v6511
    %6584 = vmatpush.bf16.msra.mxu0 %v6509
    %6585 = vmatpush.bf16.msra.mxu0 %v6507
    %6586 = vmatpush.bf16.msra.mxu0 %v6505
    %6587 = vmatpush.bf16.msra.mxu0 %v6503
    %6588 = vmatpush.bf16.msra.mxu0 %v6501
    %6589 = vmatpush.bf16.msra.mxu0 %v6499
    %6590 = vmatpush.bf16.msra.mxu0 %v6497
    %6591 = vmatmul.bf16.gmra.mxu0 %v6345
    %v6592 = vpop.f32.mrf.mxu0
    %v6593 = vadd.f32 %v6580, %v6592
    %v6594 = vpop.f32.mrf.mxu0
    %6595 = vdwg.mxu0
    %v6596 = vperm.slane %v2323, 0
    %v6597 = vperm.slane %v2349, 0
    %v6598 = vadd.f32 %v6596, %v6567
    %v6599 = vadd.f32 %v6597, %v6593
    %v6600 = vpack.c.bf16 %v6598, %v6598
    %v6601 = vpack.c.bf16 %v6599, %v6599
    %v6602 = vld [vmem:[#allocation4] sm:$0xff]
    %v6603 = vld [vmem:[#allocation4 + $0x8] sm:$0xff]
    %v6604 = vld [vmem:[#allocation4 + $0x10] sm:$0xff]
    %v6605 = vld [vmem:[#allocation4 + $0x18] sm:$0xff]
    %v6606 = vld [vmem:[#allocation4 + $0x20] sm:$0xff]
    %v6607 = vld [vmem:[#allocation4 + $0x28] sm:$0xff]
    %v6608 = vld [vmem:[#allocation4 + $0x30] sm:$0xff]
    %v6609 = vld [vmem:[#allocation4 + $0x38] sm:$0xff]
    %v6610 = vld [vmem:[#allocation4 + $0x40] sm:$0xff]
    %v6611 = vld [vmem:[#allocation4 + $0x48] sm:$0xff]
    %v6612 = vld [vmem:[#allocation4 + $0x50] sm:$0xff]
    %v6613 = vld [vmem:[#allocation4 + $0x58] sm:$0xff]
    %v6614 = vld [vmem:[#allocation4 + $0x60] sm:$0xff]
    %v6615 = vld [vmem:[#allocation4 + $0x68] sm:$0xff]
    %v6616 = vld [vmem:[#allocation4 + $0x70] sm:$0xff]
    %v6617 = vld [vmem:[#allocation4 + $0x78] sm:$0xff]
    %v6618 = vld [vmem:[#allocation4 + $0x80] sm:$0xff]
    %v6619 = vld [vmem:[#allocation4 + $0x88] sm:$0xff]
    %v6620 = vld [vmem:[#allocation4 + $0x90] sm:$0xff]
    %v6621 = vld [vmem:[#allocation4 + $0x98] sm:$0xff]
    %v6622 = vld [vmem:[#allocation4 + $0xa0] sm:$0xff]
    %v6623 = vld [vmem:[#allocation4 + $0xa8] sm:$0xff]
    %v6624 = vld [vmem:[#allocation4 + $0xb0] sm:$0xff]
    %v6625 = vld [vmem:[#allocation4 + $0xb8] sm:$0xff]
    %v6626 = vld [vmem:[#allocation4 + $0xc0] sm:$0xff]
    %v6627 = vld [vmem:[#allocation4 + $0xc8] sm:$0xff]
    %v6628 = vld [vmem:[#allocation4 + $0xd0] sm:$0xff]
    %v6629 = vld [vmem:[#allocation4 + $0xd8] sm:$0xff]
    %v6630 = vld [vmem:[#allocation4 + $0xe0] sm:$0xff]
    %v6631 = vld [vmem:[#allocation4 + $0xe8] sm:$0xff]
    %v6632 = vld [vmem:[#allocation4 + $0xf0] sm:$0xff]
    %v6633 = vld [vmem:[#allocation4 + $0xf8] sm:$0xff]
    %v6634 = vld [vmem:[%s11] sm:$0x3]
    %v6636 = vperm.slane %v6634, 0
    %v6637 = vperm.slane %v6634, 1
    %v6672 = vunpack.c.l.b16 %v6602
    %v6673 = vunpack.c.h.b16 %v6602
    %v6674 = vunpack.c.l.b16 %v6603
    %v6675 = vunpack.c.h.b16 %v6603
    %v6676 = vunpack.c.l.b16 %v6604
    %v6677 = vunpack.c.h.b16 %v6604
    %v6678 = vunpack.c.l.b16 %v6605
    %v6679 = vunpack.c.h.b16 %v6605
    %v6680 = vunpack.c.l.b16 %v6606
    %v6681 = vunpack.c.h.b16 %v6606
    %v6682 = vunpack.c.l.b16 %v6607
    %v6683 = vunpack.c.h.b16 %v6607
    %v6684 = vunpack.c.l.b16 %v6608
    %v6685 = vunpack.c.h.b16 %v6608
    %v6686 = vunpack.c.l.b16 %v6609
    %v6687 = vunpack.c.h.b16 %v6609
    %v6688 = vunpack.c.l.b16 %v6610
    %v6689 = vunpack.c.h.b16 %v6610
    %v6690 = vunpack.c.l.b16 %v6611
    %v6691 = vunpack.c.h.b16 %v6611
    %v6692 = vunpack.c.l.b16 %v6612
    %v6693 = vunpack.c.h.b16 %v6612
    %v6694 = vunpack.c.l.b16 %v6613
    %v6695 = vunpack.c.h.b16 %v6613
    %v6696 = vunpack.c.l.b16 %v6614
    %v6697 = vunpack.c.h.b16 %v6614
    %v6698 = vunpack.c.l.b16 %v6615
    %v6699 = vunpack.c.h.b16 %v6615
    %v6700 = vunpack.c.l.b16 %v6616
    %v6701 = vunpack.c.h.b16 %v6616
    %v6702 = vunpack.c.l.b16 %v6617
    %v6703 = vunpack.c.h.b16 %v6617
    %v6704 = vunpack.c.l.b16 %v6618
    %v6705 = vunpack.c.h.b16 %v6618
    %v6706 = vunpack.c.l.b16 %v6619
    %v6707 = vunpack.c.h.b16 %v6619
    %v6708 = vunpack.c.l.b16 %v6620
    %v6709 = vunpack.c.h.b16 %v6620
    %v6710 = vunpack.c.l.b16 %v6621
    %v6711 = vunpack.c.h.b16 %v6621
    %v6712 = vunpack.c.l.b16 %v6622
    %v6713 = vunpack.c.h.b16 %v6622
    %v6714 = vunpack.c.l.b16 %v6623
    %v6715 = vunpack.c.h.b16 %v6623
    %v6716 = vunpack.c.l.b16 %v6624
    %v6717 = vunpack.c.h.b16 %v6624
    %v6718 = vunpack.c.l.b16 %v6625
    %v6719 = vunpack.c.h.b16 %v6625
    %v6720 = vunpack.c.l.b16 %v6626
    %v6721 = vunpack.c.h.b16 %v6626
    %v6722 = vunpack.c.l.b16 %v6627
    %v6723 = vunpack.c.h.b16 %v6627
    %v6724 = vunpack.c.l.b16 %v6628
    %v6725 = vunpack.c.h.b16 %v6628
    %v6726 = vunpack.c.l.b16 %v6629
    %v6727 = vunpack.c.h.b16 %v6629
    %v6728 = vunpack.c.l.b16 %v6630
    %v6729 = vunpack.c.h.b16 %v6630
    %v6730 = vunpack.c.l.b16 %v6631
    %v6731 = vunpack.c.h.b16 %v6631
    %v6732 = vunpack.c.l.b16 %v6632
    %v6733 = vunpack.c.h.b16 %v6632
    %v6734 = vunpack.c.l.b16 %v6633
    %v6735 = vunpack.c.h.b16 %v6633
    %v6736 = vpack.c.b16 %v6674, %v6672
    %v6737 = vpack.c.b16 %v6675, %v6673
    %v6738 = vpack.c.b16 %v6678, %v6676
    %v6739 = vpack.c.b16 %v6679, %v6677
    %v6740 = vpack.c.b16 %v6682, %v6680
    %v6741 = vpack.c.b16 %v6683, %v6681
    %v6742 = vpack.c.b16 %v6686, %v6684
    %v6743 = vpack.c.b16 %v6687, %v6685
    %v6744 = vpack.c.b16 %v6690, %v6688
    %v6745 = vpack.c.b16 %v6691, %v6689
    %v6746 = vpack.c.b16 %v6694, %v6692
    %v6747 = vpack.c.b16 %v6695, %v6693
    %v6748 = vpack.c.b16 %v6698, %v6696
    %v6749 = vpack.c.b16 %v6699, %v6697
    %v6750 = vpack.c.b16 %v6702, %v6700
    %v6751 = vpack.c.b16 %v6703, %v6701
    %v6752 = vpack.c.b16 %v6706, %v6704
    %v6753 = vpack.c.b16 %v6707, %v6705
    %v6754 = vpack.c.b16 %v6710, %v6708
    %v6755 = vpack.c.b16 %v6711, %v6709
    %v6756 = vpack.c.b16 %v6714, %v6712
    %v6757 = vpack.c.b16 %v6715, %v6713
    %v6758 = vpack.c.b16 %v6718, %v6716
    %v6759 = vpack.c.b16 %v6719, %v6717
    %v6760 = vpack.c.b16 %v6722, %v6720
    %v6761 = vpack.c.b16 %v6723, %v6721
    %v6762 = vpack.c.b16 %v6726, %v6724
    %v6763 = vpack.c.b16 %v6727, %v6725
    %v6764 = vpack.c.b16 %v6730, %v6728
    %v6765 = vpack.c.b16 %v6731, %v6729
    %v6766 = vpack.c.b16 %v6734, %v6732
    %v6767 = vpack.c.b16 %v6735, %v6733
    %6800 = vmatpush.bf16.msra.mxu0 %v6750
    %6801 = vmatpush.bf16.msra.mxu0 %v6748
    %6802 = vmatpush.bf16.msra.mxu0 %v6746
    %6803 = vmatpush.bf16.msra.mxu0 %v6744
    %6804 = vmatpush.bf16.msra.mxu0 %v6742
    %6805 = vmatpush.bf16.msra.mxu0 %v6740
    %6806 = vmatpush.bf16.msra.mxu0 %v6738
    %6807 = vmatpush.bf16.msra.mxu0 %v6736
    %6808 = vmatmul.bf16.gmra.mxu0 %v6600
    %v6809 = vpop.f32.mrf.mxu0
    %v6810 = vadd.f32 %v6636, %v6809
    %v6811 = vpop.f32.mrf.mxu0
    %6812 = vdwg.mxu0
    %6813 = vmatpush.bf16.msra.mxu0 %v6766
    %6814 = vmatpush.bf16.msra.mxu0 %v6764
    %6815 = vmatpush.bf16.msra.mxu0 %v6762
    %6816 = vmatpush.bf16.msra.mxu0 %v6760
    %6817 = vmatpush.bf16.msra.mxu0 %v6758
    %6818 = vmatpush.bf16.msra.mxu0 %v6756
    %6819 = vmatpush.bf16.msra.mxu0 %v6754
    %6820 = vmatpush.bf16.msra.mxu0 %v6752
    %6821 = vmatmul.bf16.gmra.mxu0 %v6601
    %v6822 = vpop.f32.mrf.mxu0
    %v6823 = vadd.f32 %v6810, %v6822
    %v6824 = vpop.f32.mrf.mxu0
    %6825 = vdwg.mxu0
    %6826 = vmatpush.bf16.msra.mxu0 %v6751
    %6827 = vmatpush.bf16.msra.mxu0 %v6749
    %6828 = vmatpush.bf16.msra.mxu0 %v6747
    %6829 = vmatpush.bf16.msra.mxu0 %v6745
    %6830 = vmatpush.bf16.msra.mxu0 %v6743
    %6831 = vmatpush.bf16.msra.mxu0 %v6741
    %6832 = vmatpush.bf16.msra.mxu0 %v6739
    %6833 = vmatpush.bf16.msra.mxu0 %v6737
    %6834 = vmatmul.bf16.gmra.mxu0 %v6600
    %v6835 = vpop.f32.mrf.mxu0
    %v6836 = vadd.f32 %v6637, %v6835
    %v6837 = vpop.f32.mrf.mxu0
    %6838 = vdwg.mxu0
    %6839 = vmatpush.bf16.msra.mxu0 %v6767
    %6840 = vmatpush.bf16.msra.mxu0 %v6765
    %6841 = vmatpush.bf16.msra.mxu0 %v6763
    %6842 = vmatpush.bf16.msra.mxu0 %v6761
    %6843 = vmatpush.bf16.msra.mxu0 %v6759
    %6844 = vmatpush.bf16.msra.mxu0 %v6757
    %6845 = vmatpush.bf16.msra.mxu0 %v6755
    %6846 = vmatpush.bf16.msra.mxu0 %v6753
    %6847 = vmatmul.bf16.gmra.mxu0 %v6601
    %v6848 = vpop.f32.mrf.mxu0
    %v6849 = vadd.f32 %v6836, %v6848
    %v6850 = vpop.f32.mrf.mxu0
    %6851 = vdwg.mxu0
    %v6852 = vpack.c.bf16 %v6823, %v6823
    %v6853 = vpack.c.bf16 %v6849, %v6849
    %v6854 = vld [vmem:[#allocation6] sm:$0xff]
    %v6855 = vld [vmem:[#allocation6 + $0x8] sm:$0xff]
    %v6856 = vld [vmem:[#allocation6 + $0x10] sm:$0xff]
    %v6857 = vld [vmem:[#allocation6 + $0x18] sm:$0xff]
    %v6858 = vld [vmem:[#allocation6 + $0x20] sm:$0xff]
    %v6859 = vld [vmem:[#allocation6 + $0x28] sm:$0xff]
    %v6860 = vld [vmem:[#allocation6 + $0x30] sm:$0xff]
    %v6861 = vld [vmem:[#allocation6 + $0x38] sm:$0xff]
    %v6862 = vld [vmem:[#allocation6 + $0x40] sm:$0xff]
    %v6863 = vld [vmem:[#allocation6 + $0x48] sm:$0xff]
    %v6864 = vld [vmem:[#allocation6 + $0x50] sm:$0xff]
    %v6865 = vld [vmem:[#allocation6 + $0x58] sm:$0xff]
    %v6866 = vld [vmem:[#allocation6 + $0x60] sm:$0xff]
    %v6867 = vld [vmem:[#allocation6 + $0x68] sm:$0xff]
    %v6868 = vld [vmem:[#allocation6 + $0x70] sm:$0xff]
    %v6869 = vld [vmem:[#allocation6 + $0x78] sm:$0xff]
    %v6870 = vld [vmem:[#allocation6 + $0x80] sm:$0xff]
    %v6871 = vld [vmem:[#allocation6 + $0x88] sm:$0xff]
    %v6872 = vld [vmem:[#allocation6 + $0x90] sm:$0xff]
    %v6873 = vld [vmem:[#allocation6 + $0x98] sm:$0xff]
    %v6874 = vld [vmem:[#allocation6 + $0xa0] sm:$0xff]
    %v6875 = vld [vmem:[#allocation6 + $0xa8] sm:$0xff]
    %v6876 = vld [vmem:[#allocation6 + $0xb0] sm:$0xff]
    %v6877 = vld [vmem:[#allocation6 + $0xb8] sm:$0xff]
    %v6878 = vld [vmem:[#allocation6 + $0xc0] sm:$0xff]
    %v6879 = vld [vmem:[#allocation6 + $0xc8] sm:$0xff]
    %v6880 = vld [vmem:[#allocation6 + $0xd0] sm:$0xff]
    %v6881 = vld [vmem:[#allocation6 + $0xd8] sm:$0xff]
    %v6882 = vld [vmem:[#allocation6 + $0xe0] sm:$0xff]
    %v6883 = vld [vmem:[#allocation6 + $0xe8] sm:$0xff]
    %v6884 = vld [vmem:[#allocation6 + $0xf0] sm:$0xff]
    %v6885 = vld [vmem:[#allocation6 + $0xf8] sm:$0xff]
    %v6886 = vld [vmem:[#allocation6 + $0x100] sm:$0xff]
    %v6887 = vld [vmem:[#allocation6 + $0x108] sm:$0xff]
    %v6888 = vld [vmem:[#allocation6 + $0x110] sm:$0xff]
    %v6889 = vld [vmem:[#allocation6 + $0x118] sm:$0xff]
    %v6890 = vld [vmem:[#allocation6 + $0x120] sm:$0xff]
    %v6891 = vld [vmem:[#allocation6 + $0x128] sm:$0xff]
    %v6892 = vld [vmem:[#allocation6 + $0x130] sm:$0xff]
    %v6893 = vld [vmem:[#allocation6 + $0x138] sm:$0xff]
    %v6894 = vld [vmem:[#allocation6 + $0x140] sm:$0xff]
    %v6895 = vld [vmem:[#allocation6 + $0x148] sm:$0xff]
    %v6896 = vld [vmem:[#allocation6 + $0x150] sm:$0xff]
    %v6897 = vld [vmem:[#allocation6 + $0x158] sm:$0xff]
    %v6898 = vld [vmem:[#allocation6 + $0x160] sm:$0xff]
    %v6899 = vld [vmem:[#allocation6 + $0x168] sm:$0xff]
    %v6900 = vld [vmem:[#allocation6 + $0x170] sm:$0xff]
    %v6901 = vld [vmem:[#allocation6 + $0x178] sm:$0xff]
    %v6902 = vld [vmem:[#allocation6 + $0x180] sm:$0xff]
    %v6903 = vld [vmem:[#allocation6 + $0x188] sm:$0xff]
    %v6904 = vld [vmem:[#allocation6 + $0x190] sm:$0xff]
    %v6905 = vld [vmem:[#allocation6 + $0x198] sm:$0xff]
    %v6906 = vld [vmem:[#allocation6 + $0x1a0] sm:$0xff]
    %v6907 = vld [vmem:[#allocation6 + $0x1a8] sm:$0xff]
    %v6908 = vld [vmem:[#allocation6 + $0x1b0] sm:$0xff]
    %v6909 = vld [vmem:[#allocation6 + $0x1b8] sm:$0xff]
    %v6910 = vld [vmem:[#allocation6 + $0x1c0] sm:$0xff]
    %v6911 = vld [vmem:[#allocation6 + $0x1c8] sm:$0xff]
    %v6912 = vld [vmem:[#allocation6 + $0x1d0] sm:$0xff]
    %v6913 = vld [vmem:[#allocation6 + $0x1d8] sm:$0xff]
    %v6914 = vld [vmem:[#allocation6 + $0x1e0] sm:$0xff]
    %v6915 = vld [vmem:[#allocation6 + $0x1e8] sm:$0xff]
    %v6916 = vld [vmem:[#allocation6 + $0x1f0] sm:$0xff]
    %v6917 = vld [vmem:[#allocation6 + $0x1f8] sm:$0xff]
    %v6918 = vld [vmem:[#allocation6 + $0x200] sm:$0xff]
    %v6919 = vld [vmem:[#allocation6 + $0x208] sm:$0xff]
    %v6920 = vld [vmem:[#allocation6 + $0x210] sm:$0xff]
    %v6921 = vld [vmem:[#allocation6 + $0x218] sm:$0xff]
    %v6922 = vld [vmem:[#allocation6 + $0x220] sm:$0xff]
    %v6923 = vld [vmem:[#allocation6 + $0x228] sm:$0xff]
    %v6924 = vld [vmem:[#allocation6 + $0x230] sm:$0xff]
    %v6925 = vld [vmem:[#allocation6 + $0x238] sm:$0xff]
    %v6926 = vld [vmem:[#allocation6 + $0x240] sm:$0xff]
    %v6927 = vld [vmem:[#allocation6 + $0x248] sm:$0xff]
    %v6928 = vld [vmem:[#allocation6 + $0x250] sm:$0xff]
    %v6929 = vld [vmem:[#allocation6 + $0x258] sm:$0xff]
    %v6930 = vld [vmem:[#allocation6 + $0x260] sm:$0xff]
    %v6931 = vld [vmem:[#allocation6 + $0x268] sm:$0xff]
    %v6932 = vld [vmem:[#allocation6 + $0x270] sm:$0xff]
    %v6933 = vld [vmem:[#allocation6 + $0x278] sm:$0xff]
    %v6934 = vld [vmem:[#allocation6 + $0x280] sm:$0xff]
    %v6935 = vld [vmem:[#allocation6 + $0x288] sm:$0xff]
    %v6936 = vld [vmem:[#allocation6 + $0x290] sm:$0xff]
    %v6937 = vld [vmem:[#allocation6 + $0x298] sm:$0xff]
    %v6938 = vld [vmem:[#allocation6 + $0x2a0] sm:$0xff]
    %v6939 = vld [vmem:[#allocation6 + $0x2a8] sm:$0xff]
    %v6940 = vld [vmem:[#allocation6 + $0x2b0] sm:$0xff]
    %v6941 = vld [vmem:[#allocation6 + $0x2b8] sm:$0xff]
    %v6942 = vld [vmem:[#allocation6 + $0x2c0] sm:$0xff]
    %v6943 = vld [vmem:[#allocation6 + $0x2c8] sm:$0xff]
    %v6944 = vld [vmem:[#allocation6 + $0x2d0] sm:$0xff]
    %v6945 = vld [vmem:[#allocation6 + $0x2d8] sm:$0xff]
    %v6946 = vld [vmem:[#allocation6 + $0x2e0] sm:$0xff]
    %v6947 = vld [vmem:[#allocation6 + $0x2e8] sm:$0xff]
    %v6948 = vld [vmem:[#allocation6 + $0x2f0] sm:$0xff]
    %v6949 = vld [vmem:[#allocation6 + $0x2f8] sm:$0xff]
    %v6950 = vld [vmem:[%s13] sm:$0x3f]
    %v6952 = vperm.slane %v6950, 0
    %v6953 = vperm.slane %v6950, 1
    %v6954 = vperm.slane %v6950, 2
    %v6955 = vperm.slane %v6950, 3
    %v6956 = vperm.slane %v6950, 4
    %v6957 = vperm.slane %v6950, 5
    %v7060 = vunpack.c.l.b16 %v6854
    %v7061 = vunpack.c.h.b16 %v6854
    %v7062 = vunpack.c.l.b16 %v6855
    %v7063 = vunpack.c.h.b16 %v6855
    %v7064 = vunpack.c.l.b16 %v6856
    %v7065 = vunpack.c.h.b16 %v6856
    %v7066 = vunpack.c.l.b16 %v6857
    %v7067 = vunpack.c.h.b16 %v6857
    %v7068 = vunpack.c.l.b16 %v6858
    %v7069 = vunpack.c.h.b16 %v6858
    %v7070 = vunpack.c.l.b16 %v6859
    %v7071 = vunpack.c.h.b16 %v6859
    %v7072 = vunpack.c.l.b16 %v6860
    %v7073 = vunpack.c.h.b16 %v6860
    %v7074 = vunpack.c.l.b16 %v6861
    %v7075 = vunpack.c.h.b16 %v6861
    %v7076 = vunpack.c.l.b16 %v6862
    %v7077 = vunpack.c.h.b16 %v6862
    %v7078 = vunpack.c.l.b16 %v6863
    %v7079 = vunpack.c.h.b16 %v6863
    %v7080 = vunpack.c.l.b16 %v6864
    %v7081 = vunpack.c.h.b16 %v6864
    %v7082 = vunpack.c.l.b16 %v6865
    %v7083 = vunpack.c.h.b16 %v6865
    %v7084 = vunpack.c.l.b16 %v6866
    %v7085 = vunpack.c.h.b16 %v6866
    %v7086 = vunpack.c.l.b16 %v6867
    %v7087 = vunpack.c.h.b16 %v6867
    %v7088 = vunpack.c.l.b16 %v6868
    %v7089 = vunpack.c.h.b16 %v6868
    %v7090 = vunpack.c.l.b16 %v6869
    %v7091 = vunpack.c.h.b16 %v6869
    %v7092 = vunpack.c.l.b16 %v6870
    %v7093 = vunpack.c.h.b16 %v6870
    %v7094 = vunpack.c.l.b16 %v6871
    %v7095 = vunpack.c.h.b16 %v6871
    %v7096 = vunpack.c.l.b16 %v6872
    %v7097 = vunpack.c.h.b16 %v6872
    %v7098 = vunpack.c.l.b16 %v6873
    %v7099 = vunpack.c.h.b16 %v6873
    %v7100 = vunpack.c.l.b16 %v6874
    %v7101 = vunpack.c.h.b16 %v6874
    %v7102 = vunpack.c.l.b16 %v6875
    %v7103 = vunpack.c.h.b16 %v6875
    %v7104 = vunpack.c.l.b16 %v6876
    %v7105 = vunpack.c.h.b16 %v6876
    %v7106 = vunpack.c.l.b16 %v6877
    %v7107 = vunpack.c.h.b16 %v6877
    %v7108 = vunpack.c.l.b16 %v6878
    %v7109 = vunpack.c.h.b16 %v6878
    %v7110 = vunpack.c.l.b16 %v6879
    %v7111 = vunpack.c.h.b16 %v6879
    %v7112 = vunpack.c.l.b16 %v6880
    %v7113 = vunpack.c.h.b16 %v6880
    %v7114 = vunpack.c.l.b16 %v6881
    %v7115 = vunpack.c.h.b16 %v6881
    %v7116 = vunpack.c.l.b16 %v6882
    %v7117 = vunpack.c.h.b16 %v6882
    %v7118 = vunpack.c.l.b16 %v6883
    %v7119 = vunpack.c.h.b16 %v6883
    %v7120 = vunpack.c.l.b16 %v6884
    %v7121 = vunpack.c.h.b16 %v6884
    %v7122 = vunpack.c.l.b16 %v6885
    %v7123 = vunpack.c.h.b16 %v6885
    %v7124 = vunpack.c.l.b16 %v6886
    %v7125 = vunpack.c.h.b16 %v6886
    %v7126 = vunpack.c.l.b16 %v6887
    %v7127 = vunpack.c.h.b16 %v6887
    %v7128 = vunpack.c.l.b16 %v6888
    %v7129 = vunpack.c.h.b16 %v6888
    %v7130 = vunpack.c.l.b16 %v6889
    %v7131 = vunpack.c.h.b16 %v6889
    %v7132 = vunpack.c.l.b16 %v6890
    %v7133 = vunpack.c.h.b16 %v6890
    %v7134 = vunpack.c.l.b16 %v6891
    %v7135 = vunpack.c.h.b16 %v6891
    %v7136 = vunpack.c.l.b16 %v6892
    %v7137 = vunpack.c.h.b16 %v6892
    %v7138 = vunpack.c.l.b16 %v6893
    %v7139 = vunpack.c.h.b16 %v6893
    %v7140 = vunpack.c.l.b16 %v6894
    %v7141 = vunpack.c.h.b16 %v6894
    %v7142 = vunpack.c.l.b16 %v6895
    %v7143 = vunpack.c.h.b16 %v6895
    %v7144 = vunpack.c.l.b16 %v6896
    %v7145 = vunpack.c.h.b16 %v6896
    %v7146 = vunpack.c.l.b16 %v6897
    %v7147 = vunpack.c.h.b16 %v6897
    %v7148 = vunpack.c.l.b16 %v6898
    %v7149 = vunpack.c.h.b16 %v6898
    %v7150 = vunpack.c.l.b16 %v6899
    %v7151 = vunpack.c.h.b16 %v6899
    %v7152 = vunpack.c.l.b16 %v6900
    %v7153 = vunpack.c.h.b16 %v6900
    %v7154 = vunpack.c.l.b16 %v6901
    %v7155 = vunpack.c.h.b16 %v6901
    %v7156 = vunpack.c.l.b16 %v6902
    %v7157 = vunpack.c.h.b16 %v6902
    %v7158 = vunpack.c.l.b16 %v6903
    %v7159 = vunpack.c.h.b16 %v6903
    %v7160 = vunpack.c.l.b16 %v6904
    %v7161 = vunpack.c.h.b16 %v6904
    %v7162 = vunpack.c.l.b16 %v6905
    %v7163 = vunpack.c.h.b16 %v6905
    %v7164 = vunpack.c.l.b16 %v6906
    %v7165 = vunpack.c.h.b16 %v6906
    %v7166 = vunpack.c.l.b16 %v6907
    %v7167 = vunpack.c.h.b16 %v6907
    %v7168 = vunpack.c.l.b16 %v6908
    %v7169 = vunpack.c.h.b16 %v6908
    %v7170 = vunpack.c.l.b16 %v6909
    %v7171 = vunpack.c.h.b16 %v6909
    %v7172 = vunpack.c.l.b16 %v6910
    %v7173 = vunpack.c.h.b16 %v6910
    %v7174 = vunpack.c.l.b16 %v6911
    %v7175 = vunpack.c.h.b16 %v6911
    %v7176 = vunpack.c.l.b16 %v6912
    %v7177 = vunpack.c.h.b16 %v6912
    %v7178 = vunpack.c.l.b16 %v6913
    %v7179 = vunpack.c.h.b16 %v6913
    %v7180 = vunpack.c.l.b16 %v6914
    %v7181 = vunpack.c.h.b16 %v6914
    %v7182 = vunpack.c.l.b16 %v6915
    %v7183 = vunpack.c.h.b16 %v6915
    %v7184 = vunpack.c.l.b16 %v6916
    %v7185 = vunpack.c.h.b16 %v6916
    %v7186 = vunpack.c.l.b16 %v6917
    %v7187 = vunpack.c.h.b16 %v6917
    %v7188 = vunpack.c.l.b16 %v6918
    %v7189 = vunpack.c.h.b16 %v6918
    %v7190 = vunpack.c.l.b16 %v6919
    %v7191 = vunpack.c.h.b16 %v6919
    %v7192 = vunpack.c.l.b16 %v6920
    %v7193 = vunpack.c.h.b16 %v6920
    %v7194 = vunpack.c.l.b16 %v6921
    %v7195 = vunpack.c.h.b16 %v6921
    %v7196 = vunpack.c.l.b16 %v6922
    %v7197 = vunpack.c.h.b16 %v6922
    %v7198 = vunpack.c.l.b16 %v6923
    %v7199 = vunpack.c.h.b16 %v6923
    %v7200 = vunpack.c.l.b16 %v6924
    %v7201 = vunpack.c.h.b16 %v6924
    %v7202 = vunpack.c.l.b16 %v6925
    %v7203 = vunpack.c.h.b16 %v6925
    %v7204 = vunpack.c.l.b16 %v6926
    %v7205 = vunpack.c.h.b16 %v6926
    %v7206 = vunpack.c.l.b16 %v6927
    %v7207 = vunpack.c.h.b16 %v6927
    %v7208 = vunpack.c.l.b16 %v6928
    %v7209 = vunpack.c.h.b16 %v6928
    %v7210 = vunpack.c.l.b16 %v6929
    %v7211 = vunpack.c.h.b16 %v6929
    %v7212 = vunpack.c.l.b16 %v6930
    %v7213 = vunpack.c.h.b16 %v6930
    %v7214 = vunpack.c.l.b16 %v6931
    %v7215 = vunpack.c.h.b16 %v6931
    %v7216 = vunpack.c.l.b16 %v6932
    %v7217 = vunpack.c.h.b16 %v6932
    %v7218 = vunpack.c.l.b16 %v6933
    %v7219 = vunpack.c.h.b16 %v6933
    %v7220 = vunpack.c.l.b16 %v6934
    %v7221 = vunpack.c.h.b16 %v6934
    %v7222 = vunpack.c.l.b16 %v6935
    %v7223 = vunpack.c.h.b16 %v6935
    %v7224 = vunpack.c.l.b16 %v6936
    %v7225 = vunpack.c.h.b16 %v6936
    %v7226 = vunpack.c.l.b16 %v6937
    %v7227 = vunpack.c.h.b16 %v6937
    %v7228 = vunpack.c.l.b16 %v6938
    %v7229 = vunpack.c.h.b16 %v6938
    %v7230 = vunpack.c.l.b16 %v6939
    %v7231 = vunpack.c.h.b16 %v6939
    %v7232 = vunpack.c.l.b16 %v6940
    %v7233 = vunpack.c.h.b16 %v6940
    %v7234 = vunpack.c.l.b16 %v6941
    %v7235 = vunpack.c.h.b16 %v6941
    %v7236 = vunpack.c.l.b16 %v6942
    %v7237 = vunpack.c.h.b16 %v6942
    %v7238 = vunpack.c.l.b16 %v6943
    %v7239 = vunpack.c.h.b16 %v6943
    %v7240 = vunpack.c.l.b16 %v6944
    %v7241 = vunpack.c.h.b16 %v6944
    %v7242 = vunpack.c.l.b16 %v6945
    %v7243 = vunpack.c.h.b16 %v6945
    %v7244 = vunpack.c.l.b16 %v6946
    %v7245 = vunpack.c.h.b16 %v6946
    %v7246 = vunpack.c.l.b16 %v6947
    %v7247 = vunpack.c.h.b16 %v6947
    %v7248 = vunpack.c.l.b16 %v6948
    %v7249 = vunpack.c.h.b16 %v6948
    %v7250 = vunpack.c.l.b16 %v6949
    %v7251 = vunpack.c.h.b16 %v6949
    %v7252 = vpack.c.b16 %v7066, %v7060
    %v7253 = vpack.c.b16 %v7067, %v7061
    %v7254 = vpack.c.b16 %v7068, %v7062
    %v7255 = vpack.c.b16 %v7069, %v7063
    %v7256 = vpack.c.b16 %v7070, %v7064
    %v7257 = vpack.c.b16 %v7071, %v7065
    %v7258 = vpack.c.b16 %v7078, %v7072
    %v7259 = vpack.c.b16 %v7079, %v7073
    %v7260 = vpack.c.b16 %v7080, %v7074
    %v7261 = vpack.c.b16 %v7081, %v7075
    %v7262 = vpack.c.b16 %v7082, %v7076
    %v7263 = vpack.c.b16 %v7083, %v7077
    %v7264 = vpack.c.b16 %v7090, %v7084
    %v7265 = vpack.c.b16 %v7091, %v7085
    %v7266 = vpack.c.b16 %v7092, %v7086
    %v7267 = vpack.c.b16 %v7093, %v7087
    %v7268 = vpack.c.b16 %v7094, %v7088
    %v7269 = vpack.c.b16 %v7095, %v7089
    %v7270 = vpack.c.b16 %v7102, %v7096
    %v7271 = vpack.c.b16 %v7103, %v7097
    %v7272 = vpack.c.b16 %v7104, %v7098
    %v7273 = vpack.c.b16 %v7105, %v7099
    %v7274 = vpack.c.b16 %v7106, %v7100
    %v7275 = vpack.c.b16 %v7107, %v7101
    %v7276 = vpack.c.b16 %v7114, %v7108
    %v7277 = vpack.c.b16 %v7115, %v7109
    %v7278 = vpack.c.b16 %v7116, %v7110
    %v7279 = vpack.c.b16 %v7117, %v7111
    %v7280 = vpack.c.b16 %v7118, %v7112
    %v7281 = vpack.c.b16 %v7119, %v7113
    %v7282 = vpack.c.b16 %v7126, %v7120
    %v7283 = vpack.c.b16 %v7127, %v7121
    %v7284 = vpack.c.b16 %v7128, %v7122
    %v7285 = vpack.c.b16 %v7129, %v7123
    %v7286 = vpack.c.b16 %v7130, %v7124
    %v7287 = vpack.c.b16 %v7131, %v7125
    %v7288 = vpack.c.b16 %v7138, %v7132
    %v7289 = vpack.c.b16 %v7139, %v7133
    %v7290 = vpack.c.b16 %v7140, %v7134
    %v7291 = vpack.c.b16 %v7141, %v7135
    %v7292 = vpack.c.b16 %v7142, %v7136
    %v7293 = vpack.c.b16 %v7143, %v7137
    %v7294 = vpack.c.b16 %v7150, %v7144
    %v7295 = vpack.c.b16 %v7151, %v7145
    %v7296 = vpack.c.b16 %v7152, %v7146
    %v7297 = vpack.c.b16 %v7153, %v7147
    %v7298 = vpack.c.b16 %v7154, %v7148
    %v7299 = vpack.c.b16 %v7155, %v7149
    %v7300 = vpack.c.b16 %v7162, %v7156
    %v7301 = vpack.c.b16 %v7163, %v7157
    %v7302 = vpack.c.b16 %v7164, %v7158
    %v7303 = vpack.c.b16 %v7165, %v7159
    %v7304 = vpack.c.b16 %v7166, %v7160
    %v7305 = vpack.c.b16 %v7167, %v7161
    %v7306 = vpack.c.b16 %v7174, %v7168
    %v7307 = vpack.c.b16 %v7175, %v7169
    %v7308 = vpack.c.b16 %v7176, %v7170
    %v7309 = vpack.c.b16 %v7177, %v7171
    %v7310 = vpack.c.b16 %v7178, %v7172
    %v7311 = vpack.c.b16 %v7179, %v7173
    %v7312 = vpack.c.b16 %v7186, %v7180
    %v7313 = vpack.c.b16 %v7187, %v7181
    %v7314 = vpack.c.b16 %v7188, %v7182
    %v7315 = vpack.c.b16 %v7189, %v7183
    %v7316 = vpack.c.b16 %v7190, %v7184
    %v7317 = vpack.c.b16 %v7191, %v7185
    %v7318 = vpack.c.b16 %v7198, %v7192
    %v7319 = vpack.c.b16 %v7199, %v7193
    %v7320 = vpack.c.b16 %v7200, %v7194
    %v7321 = vpack.c.b16 %v7201, %v7195
    %v7322 = vpack.c.b16 %v7202, %v7196
    %v7323 = vpack.c.b16 %v7203, %v7197
    %v7324 = vpack.c.b16 %v7210, %v7204
    %v7325 = vpack.c.b16 %v7211, %v7205
    %v7326 = vpack.c.b16 %v7212, %v7206
    %v7327 = vpack.c.b16 %v7213, %v7207
    %v7328 = vpack.c.b16 %v7214, %v7208
    %v7329 = vpack.c.b16 %v7215, %v7209
    %v7330 = vpack.c.b16 %v7222, %v7216
    %v7331 = vpack.c.b16 %v7223, %v7217
    %v7332 = vpack.c.b16 %v7224, %v7218
    %v7333 = vpack.c.b16 %v7225, %v7219
    %v7334 = vpack.c.b16 %v7226, %v7220
    %v7335 = vpack.c.b16 %v7227, %v7221
    %v7336 = vpack.c.b16 %v7234, %v7228
    %v7337 = vpack.c.b16 %v7235, %v7229
    %v7338 = vpack.c.b16 %v7236, %v7230
    %v7339 = vpack.c.b16 %v7237, %v7231
    %v7340 = vpack.c.b16 %v7238, %v7232
    %v7341 = vpack.c.b16 %v7239, %v7233
    %v7342 = vpack.c.b16 %v7246, %v7240
    %v7343 = vpack.c.b16 %v7247, %v7241
    %v7344 = vpack.c.b16 %v7248, %v7242
    %v7345 = vpack.c.b16 %v7249, %v7243
    %v7346 = vpack.c.b16 %v7250, %v7244
    %v7347 = vpack.c.b16 %v7251, %v7245
    %7444 = vmatpush.bf16.msra.mxu0 %v7294
    %7445 = vmatpush.bf16.msra.mxu0 %v7288
    %7446 = vmatpush.bf16.msra.mxu0 %v7282
    %7447 = vmatpush.bf16.msra.mxu0 %v7276
    %7448 = vmatpush.bf16.msra.mxu0 %v7270
    %7449 = vmatpush.bf16.msra.mxu0 %v7264
    %7450 = vmatpush.bf16.msra.mxu0 %v7258
    %7451 = vmatpush.bf16.msra.mxu0 %v7252
    %7452 = vmatmul.bf16.gmra.mxu0 %v6852
    %v7453 = vpop.f32.mrf.mxu0
    %v7454 = vadd.f32 %v6952, %v7453
    %v7455 = vpop.f32.mrf.mxu0
    %7456 = vdwg.mxu0
    %7457 = vmatpush.bf16.msra.mxu0 %v7342
    %7458 = vmatpush.bf16.msra.mxu0 %v7336
    %7459 = vmatpush.bf16.msra.mxu0 %v7330
    %7460 = vmatpush.bf16.msra.mxu0 %v7324
    %7461 = vmatpush.bf16.msra.mxu0 %v7318
    %7462 = vmatpush.bf16.msra.mxu0 %v7312
    %7463 = vmatpush.bf16.msra.mxu0 %v7306
    %7464 = vmatpush.bf16.msra.mxu0 %v7300
    %7465 = vmatmul.bf16.gmra.mxu0 %v6853
    %v7466 = vpop.f32.mrf.mxu0
    %v7467 = vadd.f32 %v7454, %v7466
    %v7468 = vpop.f32.mrf.mxu0
    %7469 = vdwg.mxu0
    %7470 = vmatpush.bf16.msra.mxu0 %v7295
    %7471 = vmatpush.bf16.msra.mxu0 %v7289
    %7472 = vmatpush.bf16.msra.mxu0 %v7283
    %7473 = vmatpush.bf16.msra.mxu0 %v7277
    %7474 = vmatpush.bf16.msra.mxu0 %v7271
    %7475 = vmatpush.bf16.msra.mxu0 %v7265
    %7476 = vmatpush.bf16.msra.mxu0 %v7259
    %7477 = vmatpush.bf16.msra.mxu0 %v7253
    %7478 = vmatmul.bf16.gmra.mxu0 %v6852
    %v7479 = vpop.f32.mrf.mxu0
    %v7480 = vadd.f32 %v6953, %v7479
    %v7481 = vpop.f32.mrf.mxu0
    %7482 = vdwg.mxu0
    %7483 = vmatpush.bf16.msra.mxu0 %v7343
    %7484 = vmatpush.bf16.msra.mxu0 %v7337
    %7485 = vmatpush.bf16.msra.mxu0 %v7331
    %7486 = vmatpush.bf16.msra.mxu0 %v7325
    %7487 = vmatpush.bf16.msra.mxu0 %v7319
    %7488 = vmatpush.bf16.msra.mxu0 %v7313
    %7489 = vmatpush.bf16.msra.mxu0 %v7307
    %7490 = vmatpush.bf16.msra.mxu0 %v7301
    %7491 = vmatmul.bf16.gmra.mxu0 %v6853
    %v7492 = vpop.f32.mrf.mxu0
    %v7493 = vadd.f32 %v7480, %v7492
    %v7494 = vpop.f32.mrf.mxu0
    %7495 = vdwg.mxu0
    %7496 = vmatpush.bf16.msra.mxu0 %v7296
    %7497 = vmatpush.bf16.msra.mxu0 %v7290
    %7498 = vmatpush.bf16.msra.mxu0 %v7284
    %7499 = vmatpush.bf16.msra.mxu0 %v7278
    %7500 = vmatpush.bf16.msra.mxu0 %v7272
    %7501 = vmatpush.bf16.msra.mxu0 %v7266
    %7502 = vmatpush.bf16.msra.mxu0 %v7260
    %7503 = vmatpush.bf16.msra.mxu0 %v7254
    %7504 = vmatmul.bf16.gmra.mxu0 %v6852
    %v7505 = vpop.f32.mrf.mxu0
    %v7506 = vadd.f32 %v6954, %v7505
    %v7507 = vpop.f32.mrf.mxu0
    %7508 = vdwg.mxu0
    %7509 = vmatpush.bf16.msra.mxu0 %v7344
    %7510 = vmatpush.bf16.msra.mxu0 %v7338
    %7511 = vmatpush.bf16.msra.mxu0 %v7332
    %7512 = vmatpush.bf16.msra.mxu0 %v7326
    %7513 = vmatpush.bf16.msra.mxu0 %v7320
    %7514 = vmatpush.bf16.msra.mxu0 %v7314
    %7515 = vmatpush.bf16.msra.mxu0 %v7308
    %7516 = vmatpush.bf16.msra.mxu0 %v7302
    %7517 = vmatmul.bf16.gmra.mxu0 %v6853
    %v7518 = vpop.f32.mrf.mxu0
    %v7519 = vadd.f32 %v7506, %v7518
    %v7520 = vpop.f32.mrf.mxu0
    %7521 = vdwg.mxu0
    %7522 = vmatpush.bf16.msra.mxu0 %v7297
    %7523 = vmatpush.bf16.msra.mxu0 %v7291
    %7524 = vmatpush.bf16.msra.mxu0 %v7285
    %7525 = vmatpush.bf16.msra.mxu0 %v7279
    %7526 = vmatpush.bf16.msra.mxu0 %v7273
    %7527 = vmatpush.bf16.msra.mxu0 %v7267
    %7528 = vmatpush.bf16.msra.mxu0 %v7261
    %7529 = vmatpush.bf16.msra.mxu0 %v7255
    %7530 = vmatmul.bf16.gmra.mxu0 %v6852
    %v7531 = vpop.f32.mrf.mxu0
    %v7532 = vadd.f32 %v6955, %v7531
    %v7533 = vpop.f32.mrf.mxu0
    %7534 = vdwg.mxu0
    %7535 = vmatpush.bf16.msra.mxu0 %v7345
    %7536 = vmatpush.bf16.msra.mxu0 %v7339
    %7537 = vmatpush.bf16.msra.mxu0 %v7333
    %7538 = vmatpush.bf16.msra.mxu0 %v7327
    %7539 = vmatpush.bf16.msra.mxu0 %v7321
    %7540 = vmatpush.bf16.msra.mxu0 %v7315
    %7541 = vmatpush.bf16.msra.mxu0 %v7309
    %7542 = vmatpush.bf16.msra.mxu0 %v7303
    %7543 = vmatmul.bf16.gmra.mxu0 %v6853
    %v7544 = vpop.f32.mrf.mxu0
    %v7545 = vadd.f32 %v7532, %v7544
    %v7546 = vpop.f32.mrf.mxu0
    %7547 = vdwg.mxu0
    %7548 = vmatpush.bf16.msra.mxu0 %v7298
    %7549 = vmatpush.bf16.msra.mxu0 %v7292
    %7550 = vmatpush.bf16.msra.mxu0 %v7286
    %7551 = vmatpush.bf16.msra.mxu0 %v7280
    %7552 = vmatpush.bf16.msra.mxu0 %v7274
    %7553 = vmatpush.bf16.msra.mxu0 %v7268
    %7554 = vmatpush.bf16.msra.mxu0 %v7262
    %7555 = vmatpush.bf16.msra.mxu0 %v7256
    %7556 = vmatmul.bf16.gmra.mxu0 %v6852
    %v7557 = vpop.f32.mrf.mxu0
    %v7558 = vadd.f32 %v6956, %v7557
    %v7559 = vpop.f32.mrf.mxu0
    %7560 = vdwg.mxu0
    %7561 = vmatpush.bf16.msra.mxu0 %v7346
    %7562 = vmatpush.bf16.msra.mxu0 %v7340
    %7563 = vmatpush.bf16.msra.mxu0 %v7334
    %7564 = vmatpush.bf16.msra.mxu0 %v7328
    %7565 = vmatpush.bf16.msra.mxu0 %v7322
    %7566 = vmatpush.bf16.msra.mxu0 %v7316
    %7567 = vmatpush.bf16.msra.mxu0 %v7310
    %7568 = vmatpush.bf16.msra.mxu0 %v7304
    %7569 = vmatmul.bf16.gmra.mxu0 %v6853
    %v7570 = vpop.f32.mrf.mxu0
    %v7571 = vadd.f32 %v7558, %v7570
    %v7572 = vpop.f32.mrf.mxu0
    %7573 = vdwg.mxu0
    %7574 = vmatpush.bf16.msra.mxu0 %v7299
    %7575 = vmatpush.bf16.msra.mxu0 %v7293
    %7576 = vmatpush.bf16.msra.mxu0 %v7287
    %7577 = vmatpush.bf16.msra.mxu0 %v7281
    %7578 = vmatpush.bf16.msra.mxu0 %v7275
    %7579 = vmatpush.bf16.msra.mxu0 %v7269
    %7580 = vmatpush.bf16.msra.mxu0 %v7263
    %7581 = vmatpush.bf16.msra.mxu0 %v7257
    %7582 = vmatmul.bf16.gmra.mxu0 %v6852
    %v7583 = vpop.f32.mrf.mxu0
    %v7584 = vadd.f32 %v6957, %v7583
    %v7585 = vpop.f32.mrf.mxu0
    %7586 = vdwg.mxu0
    %7587 = vmatpush.bf16.msra.mxu0 %v7347
    %7588 = vmatpush.bf16.msra.mxu0 %v7341
    %7589 = vmatpush.bf16.msra.mxu0 %v7335
    %7590 = vmatpush.bf16.msra.mxu0 %v7329
    %7591 = vmatpush.bf16.msra.mxu0 %v7323
    %7592 = vmatpush.bf16.msra.mxu0 %v7317
    %7593 = vmatpush.bf16.msra.mxu0 %v7311
    %7594 = vmatpush.bf16.msra.mxu0 %v7305
    %7595 = vmatmul.bf16.gmra.mxu0 %v6853
    %v7596 = vpop.f32.mrf.mxu0
    %v7597 = vadd.f32 %v7584, %v7596
    %v7598 = vpop.f32.mrf.mxu0
    %7599 = vdwg.mxu0
    %v7600 = vtanh.pop %v7467
    %v7601 = vtanh.pop %v7493
    %v7602 = vtanh.pop %v7519
    %v7603 = vtanh.pop %v7545
    %v7604 = vtanh.pop %v7571
    %v7605 = vtanh.pop %v7597
    %v7608 = vrot.slane %v6597, 6
    %vm7609 = vcmask 1041408
    %v7610 = vsel %vm7609, %v6596, %v7608
    %7612 = vst [vmem:[%s14] sm:$0xf] %v7610
    %v7615 = vrot.slane %v6593, 6
    %v7616 = vsel %vm7609, %v6567, %v7615
    %7618 = vst [vmem:[%s15] sm:$0xf] %v7616
    %v7621 = vrot.slane %v6849, 6
    %v7622 = vsel %vm7609, %v6823, %v7621
    %7624 = vst [vmem:[%s16] sm:$0xf] %v7622
    %v7631 = vrot.slane %v7601, 6
    %v7632 = vrot.slane %v7602, 4
    %v7633 = vrot.slane %v7603, 2
    %v7634 = vrot.slane %v7605, 6
    %v7635 = vsel %vm7609, %v7600, %v7631
    %vm7636 = vcmask 1045508
    %v7637 = vsel %vm7636, %v7632, %v7633
    %vm7638 = vcmask 1043456
    %v7639 = vsel %vm7638, %v7635, %v7637
    %v7640 = vsel %vm7609, %v7604, %v7634
    %7643 = vst [vmem:[%s17] sm:$0xff] %v7639
    %7644 = vst [vmem:[%s17 + $0x8] sm:$0xf] %v7640
    // Predicated region
    $region70: #{generator_forward.3} parent=1 // pred_check
      _
    $region71: #{generator_forward.3} parent=1 // pred_check_branch
      %7646 = sbr.rel (0) target = $region73
    $region72: #{generator_forward.3} parent=1 // pred_region
      _
    $region73: #{generator_forward.3} parent=1 // pred_fallthru
      _
    // Predicated region
    $region74: #{generator_forward.3} parent=1 // pred_check
      _
    $region75: #{generator_forward.3} parent=1 // pred_check_branch
      %7648 = sbr.rel (0) target = $region77
    $region76: #{generator_forward.3} parent=1 // pred_region
      _
    $region77: #{generator_forward.3} parent=1 // pred_fallthru
      _
    // Predicated region
    $region78: #{generator_forward.3} parent=1 // pred_check
      _
    $region79: #{generator_forward.3} parent=1 // pred_check_branch
      %7650 = sbr.rel (0) target = $region81
    $region80: #{generator_forward.3} parent=1 // pred_region
      _
    $region81: #{generator_forward.3} parent=1 // pred_fallthru
      _
    // Predicated region
    $region82: #{generator_forward.3} parent=1 // pred_check
      _
    $region83: #{generator_forward.3} parent=1 // pred_check_branch
      %7652 = sbr.rel (0) target = $region85
    $region84: #{generator_forward.3} parent=1 // pred_region
      _
    $region85: #{generator_forward.3} parent=1 // pred_fallthru
      _
    // Predicated region
    $region86: #{generator_forward.3} parent=1 // pred_check
      _
    $region87: #{generator_forward.3} parent=1 // pred_check_branch
      %7654 = sbr.rel (0) target = $region89
    $region88: #{generator_forward.3} parent=1 // pred_region
      _
    $region89: #{generator_forward.3} parent=1 // pred_fallthru
      _
    // Predicated region
    $region90: #{generator_forward.3} parent=1 // pred_check
      _
    $region91: #{generator_forward.3} parent=1 // pred_check_branch
      %7656 = sbr.rel (0) target = $region93
    $region92: #{generator_forward.3} parent=1 // pred_region
      _
    $region93: #{generator_forward.3} parent=1 // pred_fallthru
      _
    // Predicated region
    $region94: #{generator_forward.3} parent=1 // pred_check
      _
    $region95: #{generator_forward.3} parent=1 // pred_check_branch
      %7658 = sbr.rel (0) target = $region97
    $region96: #{generator_forward.3} parent=1 // pred_region
      _
    $region97: #{generator_forward.3} parent=1 // pred_fallthru
      _
    // Predicated region
    $region98: #{generator_forward.3} parent=1 // pred_check
      _
    $region99: #{generator_forward.3} parent=1 // pred_check_branch
      %7660 = sbr.rel (0) target = $region101
    $region100: #{generator_forward.3} parent=1 // pred_region
      _
    $region101: #{generator_forward.3} parent=1 // pred_fallthru
      _
    %7661 = vsyncpa [#allocation3], 1
    %7662 = vsyncpa [#allocation5], 1

</llo_original>
